<compile_context>
chip_gen: v7x
topology: tpu7x:2x2x1
jax: 0.10.0
libtpu: 0.0.40
codegen_flags: <defaults>
</compile_context>

<pallas_src>
import jax
import jax.numpy as jnp
from jax.experimental import pallas as pl
from jax.experimental.pallas import tpu as pltpu

IMG = 16        # input spatial size (four 2x2 pools collapse 16 -> 1)
IN_CH = 3       # input channels
CIN_PAD = 8     # stage-1 input channels zero-padded to 8 (host side, free)
HIDDEN = 32     # conv / fc hidden width
NUM_CLS = 5
_TAIL = 8       # extra zero rows after each padded flattened slab (shifted-read overrun)

_ACC_ROWS = IMG * (IMG + 2)   # conv accumulator rows (stage 1 is the largest)


def _slab_rows(h, w):
    """Rows of a zero-padded flattened feature slab, plus overrun tail."""
    return (h + 2) * (w + 2) + _TAIL


# ---------------------------------------------------------------------------
# In-kernel fused Conv3x3(pad=1) + bias + ReLU + MaxPool2x2 stage
# ---------------------------------------------------------------------------
def _conv_relu_pool_stage(read_slab, w_ref, b_ref, acc_ref, write_row, h, w):
    """read_slab(start, size) -> (size, Cin) window of the padded, flattened input.
    write_row(i, row)        -> consume pooled output row i of shape (w//2, Cout)."""
    wp = w + 2
    rows = h * wp
    # --- conv: accumulate 9 shifted matmuls (im2col entirely in VMEM) ---
    acc = None
    for ki in range(3):
        for kj in range(3):
            slab = read_slab(ki * wp + kj, rows)              # (rows, Cin)
            wk = w_ref[ki * 3 + kj]                           # (Cin, Cout)
            part = jnp.dot(slab, wk, preferred_element_type=jnp.float32)
            acc = part if acc is None else acc + part
    # acc rows are indexed (y * wp + x); columns x in {w, w+1} of each band are junk
    # (reads that spilled into the next padded row) and are never touched below.
    acc_ref[pl.ds(0, rows), :] = acc

    # --- bias + ReLU + 2x2 max-pool, one pooled row at a time ---
    ho, wo = h // 2, w // 2
    bias = b_ref[...]                                         # (1, Cout)
    for i in range(ho):
        r0 = 2 * i * wp
        r1 = r0 + wp
        a00 = acc_ref[pl.ds(r0, wo, 2), :]
        a01 = acc_ref[pl.ds(r0 + 1, wo, 2), :]
        a10 = acc_ref[pl.ds(r1, wo, 2), :]
        a11 = acc_ref[pl.ds(r1 + 1, wo, 2), :]
        m = jnp.maximum(jnp.maximum(a00, a01), jnp.maximum(a10, a11))
        # pool(relu(z + b)) == relu(pool(z) + b): bias+ReLU run at quarter resolution.
        write_row(i, jnp.maximum(m + bias, 0.0))              # (wo, Cout)


# ---------------------------------------------------------------------------
# Whole-network kernel (one grid step == one image)
# ---------------------------------------------------------------------------
def _fused_cnn_kernel(x_ref, w1, b1, w2, b2, w3, b3, w4, b4,
                      fc1w, fc1b, fc2w, fc2b, out_ref,
                      acc_ref, s2, s3, s4):
    # zero the padded feature slabs (their borders stay zero == conv "SAME" padding)
    s2[...] = jnp.zeros_like(s2)
    s3[...] = jnp.zeros_like(s3)
    s4[...] = jnp.zeros_like(s4)

    def writer(s_ref, wo):
        wpn = wo + 2

        def write(i, row):
            s_ref[pl.ds((i + 1) * wpn + 1, wo), :] = row
        return write

    # stage 1: 16x16x8(pad) -> 8x8x32  (input slab comes straight from the HBM block)
    _conv_relu_pool_stage(lambda st, sz: x_ref[0, pl.ds(st, sz), :],
                          w1, b1, acc_ref, writer(s2, 8), 16, 16)
    # stage 2: 8x8x32 -> 4x4x32
    _conv_relu_pool_stage(lambda st, sz: s2[pl.ds(st, sz), :],
                          w2, b2, acc_ref, writer(s3, 4), 8, 8)
    # stage 3: 4x4x32 -> 2x2x32
    _conv_relu_pool_stage(lambda st, sz: s3[pl.ds(st, sz), :],
                          w3, b3, acc_ref, writer(s4, 2), 4, 4)
    # stage 4: 2x2x32 -> 1x1x32
    feat_rows = []
    _conv_relu_pool_stage(lambda st, sz: s4[pl.ds(st, sz), :],
                          w4, b4, acc_ref, lambda i, row: feat_rows.append(row), 2, 2)
    feat = feat_rows[0]                                       # (1, HIDDEN)

    # MLP head fused into the same kernel: Linear -> ReLU -> Linear
    hid = jnp.maximum(
        jnp.dot(feat, fc1w[...], preferred_element_type=jnp.float32) + fc1b[...], 0.0)
    logits = jnp.dot(hid, fc2w[...], preferred_element_type=jnp.float32) + fc2b[...]
    out_ref[...] = logits.reshape((1, 1, NUM_CLS))


# ---------------------------------------------------------------------------
# Host wrapper
# ---------------------------------------------------------------------------
def simsiam_classifier_forward(params, x_nchw):
    n = x_nchw.shape[0]
    x = jnp.transpose(x_nchw, (0, 2, 3, 1)).astype(jnp.float32)            # NHWC
    xp = jnp.pad(x, ((0, 0), (1, 1), (1, 1), (0, CIN_PAD - IN_CH)))        # pad=1 + Cin pad
    xp = xp.reshape(n, (IMG + 2) * (IMG + 2), CIN_PAD)
    rows_in = _slab_rows(IMG, IMG)
    xp = jnp.pad(xp, ((0, 0), (0, rows_in - (IMG + 2) * (IMG + 2)), (0, 0)))  # zero tail

    w1 = params["conv1_w"].reshape(9, IN_CH, HIDDEN)
    w1 = jnp.pad(w1, ((0, 0), (0, CIN_PAD - IN_CH), (0, 0)))               # Cin pad (zeros)
    w2 = params["conv2_w"].reshape(9, HIDDEN, HIDDEN)
    w3 = params["conv3_w"].reshape(9, HIDDEN, HIDDEN)
    w4 = params["conv4_w"].reshape(9, HIDDEN, HIDDEN)
    b1 = params["conv1_b"].reshape(1, HIDDEN)
    b2 = params["conv2_b"].reshape(1, HIDDEN)
    b3 = params["conv3_b"].reshape(1, HIDDEN)
    b4 = params["conv4_b"].reshape(1, HIDDEN)
    fc1w = params["fc1_w"]
    fc1b = params["fc1_b"].reshape(1, HIDDEN)
    fc2w = params["fc2_w"]
    fc2b = params["fc2_b"].reshape(1, NUM_CLS)

    def const_spec(shape):
        nd = len(shape)
        return pl.BlockSpec(shape, lambda i, _nd=nd: (0,) * _nd)

    out = pl.pallas_call(
        _fused_cnn_kernel,
        out_shape=jax.ShapeDtypeStruct((n, 1, NUM_CLS), jnp.float32),
        grid=(n,),
        in_specs=[
            pl.BlockSpec((1, rows_in, CIN_PAD), lambda i: (i, 0, 0)),      # per-image slab
            const_spec(w1.shape), const_spec(b1.shape),
            const_spec(w2.shape), const_spec(b2.shape),
            const_spec(w3.shape), const_spec(b3.shape),
            const_spec(w4.shape), const_spec(b4.shape),
            const_spec(fc1w.shape), const_spec(fc1b.shape),
            const_spec(fc2w.shape), const_spec(fc2b.shape),
        ],
        out_specs=pl.BlockSpec((1, 1, NUM_CLS), lambda i: (i, 0, 0)),
        scratch_shapes=[
            pltpu.VMEM((_ACC_ROWS, HIDDEN), jnp.float32),                  # shared conv acc
            pltpu.VMEM((_slab_rows(8, 8), HIDDEN), jnp.float32),           # padded slab st2
            pltpu.VMEM((_slab_rows(4, 4), HIDDEN), jnp.float32),           # padded slab st3
            pltpu.VMEM((_slab_rows(2, 2), HIDDEN), jnp.float32),           # padded slab st4
        ],
        compiler_params=pltpu.CompilerParams(
            dimension_semantics=("parallel",)),
    )(xp, w1, b1, w2, b2, w3, b3, w4, b4, fc1w, fc1b, fc2w, fc2b)
    return out.reshape(n, NUM_CLS)


# ---------------------------------------------------------------------------
# Parameters (deterministic synthetic init) and a pure-JAX reference
# ---------------------------------------------------------------------------
def init_params(in_ch=IN_CH, hidden=HIDDEN, num_cls=NUM_CLS):
    key = jax.random.PRNGKey(0)
    keys = jax.random.split(key, 12)
    p = {}
    cin = in_ch
    for i in range(4):
        p[f"conv{i+1}_w"] = 0.1 * jax.random.normal(
            keys[2 * i], (3, 3, cin, hidden), jnp.float32)                 # HWIO
        p[f"conv{i+1}_b"] = 0.01 * jax.random.normal(
            keys[2 * i + 1], (hidden,), jnp.float32)
        cin = hidden
    p["fc1_w"] = 0.1 * jax.random.normal(keys[8], (hidden, hidden), jnp.float32)
    p["fc1_b"] = 0.01 * jax.random.normal(keys[9], (hidden,), jnp.float32)
    p["fc2_w"] = 0.1 * jax.random.normal(keys[10], (hidden, num_cls), jnp.float32)
    p["fc2_b"] = 0.01 * jax.random.normal(keys[11], (num_cls,), jnp.float32)
    return p


def _reference_forward(params, x_nchw):
    x = jnp.transpose(x_nchw, (0, 2, 3, 1)).astype(jnp.float32)
    for i in range(4):
        w = params[f"conv{i+1}_w"]
        b = params[f"conv{i+1}_b"]
        x = jax.lax.conv_general_dilated(
            x, w, window_strides=(1, 1), padding="SAME",
            dimension_numbers=("NHWC", "HWIO", "NHWC"),
            precision=jax.lax.Precision.HIGHEST)
        x = jax.nn.relu(x + b)
        x = jax.lax.reduce_window(x, -jnp.inf, jax.lax.max,
                                  (1, 2, 2, 1), (1, 2, 2, 1), "VALID")
    feat = x.reshape(x.shape[0], -1)
    h = jax.nn.relu(jnp.dot(feat, params["fc1_w"],
                            precision=jax.lax.Precision.HIGHEST) + params["fc1_b"])
    return jnp.dot(h, params["fc2_w"],
                   precision=jax.lax.Precision.HIGHEST) + params["fc2_b"]


if __name__ == "__main__":
    params = init_params()
    x = jax.random.normal(jax.random.PRNGKey(0), (2, IN_CH, IMG, IMG), jnp.float32)

    fwd = jax.jit(simsiam_classifier_forward)
    logits = fwd(params, x)
    jax.block_until_ready(logits)

    assert logits.shape == (2, NUM_CLS), logits.shape
    assert logits.dtype == jnp.float32
    assert bool(jnp.all(jnp.isfinite(logits)))

    ref = _reference_forward(params, x)
    assert jnp.allclose(logits, ref, rtol=5e-2, atol=5e-2), (logits, ref)

    print("KERNEL_OK")
</pallas_src>

<mosaic_0001>
module attributes {stable_mosaic.version = 11 : i64} {
  func.func @_fused_cnn_kernel(%arg0: i32, %arg1: memref<1x332x8xf32, #tpu.memory_space<vmem>>, %arg2: memref<9x8x32xf32, #tpu.memory_space<vmem>>, %arg3: memref<1x32xf32, #tpu.memory_space<vmem>>, %arg4: memref<9x32x32xf32, #tpu.memory_space<vmem>>, %arg5: memref<1x32xf32, #tpu.memory_space<vmem>>, %arg6: memref<9x32x32xf32, #tpu.memory_space<vmem>>, %arg7: memref<1x32xf32, #tpu.memory_space<vmem>>, %arg8: memref<9x32x32xf32, #tpu.memory_space<vmem>>, %arg9: memref<1x32xf32, #tpu.memory_space<vmem>>, %arg10: memref<32x32xf32, #tpu.memory_space<vmem>>, %arg11: memref<1x32xf32, #tpu.memory_space<vmem>>, %arg12: memref<32x5xf32, #tpu.memory_space<vmem>>, %arg13: memref<1x5xf32, #tpu.memory_space<vmem>>, %arg14: memref<1x1x5xf32, #tpu.memory_space<vmem>>, %arg15: memref<288x32xf32, #tpu.memory_space<vmem>>, %arg16: memref<108x32xf32, #tpu.memory_space<vmem>>, %arg17: memref<44x32xf32, #tpu.memory_space<vmem>>, %arg18: memref<24x32xf32, #tpu.memory_space<vmem>>) attributes {dimension_semantics = [#tpu.dimension_semantics<parallel>], iteration_bounds = array<i64: 2>, scalar_prefetch = 0 : i64, scratch_operands = 4 : i64, tpu.core_type = #tpu.core_type<tc>, window_params = [{transform_indices = @transform_0, window_bounds = array<i64: 1, 332, 8>}, {pipeline_mode = #tpu.pipeline_mode<synchronous>, transform_indices = @transform_1, window_bounds = array<i64: 9, 8, 32>}, {pipeline_mode = #tpu.pipeline_mode<synchronous>, transform_indices = @transform_2, window_bounds = array<i64: 1, 32>}, {pipeline_mode = #tpu.pipeline_mode<synchronous>, transform_indices = @transform_3, window_bounds = array<i64: 9, 32, 32>}, {pipeline_mode = #tpu.pipeline_mode<synchronous>, transform_indices = @transform_4, window_bounds = array<i64: 1, 32>}, {pipeline_mode = #tpu.pipeline_mode<synchronous>, transform_indices = @transform_5, window_bounds = array<i64: 9, 32, 32>}, {pipeline_mode = #tpu.pipeline_mode<synchronous>, transform_indices = @transform_6, window_bounds = array<i64: 1, 32>}, {pipeline_mode = #tpu.pipeline_mode<synchronous>, transform_indices = @transform_7, window_bounds = array<i64: 9, 32, 32>}, {pipeline_mode = #tpu.pipeline_mode<synchronous>, transform_indices = @transform_8, window_bounds = array<i64: 1, 32>}, {pipeline_mode = #tpu.pipeline_mode<synchronous>, transform_indices = @transform_9, window_bounds = array<i64: 32, 32>}, {pipeline_mode = #tpu.pipeline_mode<synchronous>, transform_indices = @transform_10, window_bounds = array<i64: 1, 32>}, {pipeline_mode = #tpu.pipeline_mode<synchronous>, transform_indices = @transform_11, window_bounds = array<i64: 32, 5>}, {pipeline_mode = #tpu.pipeline_mode<synchronous>, transform_indices = @transform_12, window_bounds = array<i64: 1, 5>}, {transform_indices = @transform_13, window_bounds = array<i64: 1, 1, 5>}]} {
    %cst = arith.constant 0.000000e+00 : f32
    %0 = vector.broadcast %cst : f32 to vector<108x32xf32>
    %c0 = arith.constant 0 : index
    %c0_0 = arith.constant 0 : index
    %1 = vector.load %arg16[%c0, %c0_0] : memref<108x32xf32, #tpu.memory_space<vmem>>, vector<108x32xf32>
    tpu.vector_store %arg16[%c0, %c0_0], %0 {strides = array<i32>} : memref<108x32xf32, #tpu.memory_space<vmem>>, vector<108x32xf32>,
    %cst_1 = arith.constant 0.000000e+00 : f32
    %2 = vector.broadcast %cst_1 : f32 to vector<44x32xf32>
    %c0_2 = arith.constant 0 : index
    %c0_3 = arith.constant 0 : index
    %3 = vector.load %arg17[%c0_2, %c0_3] : memref<44x32xf32, #tpu.memory_space<vmem>>, vector<44x32xf32>
    tpu.vector_store %arg17[%c0_2, %c0_3], %2 {strides = array<i32>} : memref<44x32xf32, #tpu.memory_space<vmem>>, vector<44x32xf32>,
    %cst_4 = arith.constant 0.000000e+00 : f32
    %4 = vector.broadcast %cst_4 : f32 to vector<24x32xf32>
    %c0_5 = arith.constant 0 : index
    %c0_6 = arith.constant 0 : index
    %5 = vector.load %arg18[%c0_5, %c0_6] : memref<24x32xf32, #tpu.memory_space<vmem>>, vector<24x32xf32>
    tpu.vector_store %arg18[%c0_5, %c0_6], %4 {strides = array<i32>} : memref<24x32xf32, #tpu.memory_space<vmem>>, vector<24x32xf32>,
    %c0_7 = arith.constant 0 : index
    %c0_8 = arith.constant 0 : index
    %c0_9 = arith.constant 0 : index
    %6 = vector.load %arg1[%c0_7, %c0_8, %c0_9] : memref<1x332x8xf32, #tpu.memory_space<vmem>>, vector<1x288x8xf32>
    %7 = vector.shape_cast %6 : vector<1x288x8xf32> to vector<288x8xf32>
    %c0_10 = arith.constant 0 : index
    %c0_11 = arith.constant 0 : index
    %c0_12 = arith.constant 0 : index
    %8 = vector.load %arg2[%c0_10, %c0_11, %c0_12] : memref<9x8x32xf32, #tpu.memory_space<vmem>>, vector<1x8x32xf32>
    %9 = vector.shape_cast %8 : vector<1x8x32xf32> to vector<8x32xf32>
    %cst_13 = arith.constant dense<0.000000e+00> : vector<288x32xf32>
    %10 = tpu.matmul %7, %9, %cst_13 {dimension_numbers = #tpu.dot_dimension_numbers<[1], [0], [0], [1], [0, 0, 1, 1], [], []>} : vector<288x8xf32>, vector<8x32xf32>, vector<288x32xf32> -> vector<288x32xf32>
    %c0_14 = arith.constant 0 : index
    %c1 = arith.constant 1 : index
    %c0_15 = arith.constant 0 : index
    %11 = vector.load %arg1[%c0_14, %c1, %c0_15] : memref<1x332x8xf32, #tpu.memory_space<vmem>>, vector<1x288x8xf32>
    %12 = vector.shape_cast %11 : vector<1x288x8xf32> to vector<288x8xf32>
    %c1_16 = arith.constant 1 : index
    %c0_17 = arith.constant 0 : index
    %c0_18 = arith.constant 0 : index
    %13 = vector.load %arg2[%c1_16, %c0_17, %c0_18] : memref<9x8x32xf32, #tpu.memory_space<vmem>>, vector<1x8x32xf32>
    %14 = vector.shape_cast %13 : vector<1x8x32xf32> to vector<8x32xf32>
    %cst_19 = arith.constant dense<0.000000e+00> : vector<288x32xf32>
    %15 = tpu.matmul %12, %14, %cst_19 {dimension_numbers = #tpu.dot_dimension_numbers<[1], [0], [0], [1], [0, 0, 1, 1], [], []>} : vector<288x8xf32>, vector<8x32xf32>, vector<288x32xf32> -> vector<288x32xf32>
    %16 = arith.addf %10, %15 : vector<288x32xf32>
    %c0_20 = arith.constant 0 : index
    %c2 = arith.constant 2 : index
    %c0_21 = arith.constant 0 : index
    %17 = vector.load %arg1[%c0_20, %c2, %c0_21] : memref<1x332x8xf32, #tpu.memory_space<vmem>>, vector<1x288x8xf32>
    %18 = vector.shape_cast %17 : vector<1x288x8xf32> to vector<288x8xf32>
    %c2_22 = arith.constant 2 : index
    %c0_23 = arith.constant 0 : index
    %c0_24 = arith.constant 0 : index
    %19 = vector.load %arg2[%c2_22, %c0_23, %c0_24] : memref<9x8x32xf32, #tpu.memory_space<vmem>>, vector<1x8x32xf32>
    %20 = vector.shape_cast %19 : vector<1x8x32xf32> to vector<8x32xf32>
    %cst_25 = arith.constant dense<0.000000e+00> : vector<288x32xf32>
    %21 = tpu.matmul %18, %20, %cst_25 {dimension_numbers = #tpu.dot_dimension_numbers<[1], [0], [0], [1], [0, 0, 1, 1], [], []>} : vector<288x8xf32>, vector<8x32xf32>, vector<288x32xf32> -> vector<288x32xf32>
    %22 = arith.addf %16, %21 : vector<288x32xf32>
    %c0_26 = arith.constant 0 : index
    %c18 = arith.constant 18 : index
    %c0_27 = arith.constant 0 : index
    %23 = vector.load %arg1[%c0_26, %c18, %c0_27] : memref<1x332x8xf32, #tpu.memory_space<vmem>>, vector<1x288x8xf32>
    %24 = vector.shape_cast %23 : vector<1x288x8xf32> to vector<288x8xf32>
    %c3 = arith.constant 3 : index
    %c0_28 = arith.constant 0 : index
    %c0_29 = arith.constant 0 : index
    %25 = vector.load %arg2[%c3, %c0_28, %c0_29] : memref<9x8x32xf32, #tpu.memory_space<vmem>>, vector<1x8x32xf32>
    %26 = vector.shape_cast %25 : vector<1x8x32xf32> to vector<8x32xf32>
    %cst_30 = arith.constant dense<0.000000e+00> : vector<288x32xf32>
    %27 = tpu.matmul %24, %26, %cst_30 {dimension_numbers = #tpu.dot_dimension_numbers<[1], [0], [0], [1], [0, 0, 1, 1], [], []>} : vector<288x8xf32>, vector<8x32xf32>, vector<288x32xf32> -> vector<288x32xf32>
    %28 = arith.addf %22, %27 : vector<288x32xf32>
    %c0_31 = arith.constant 0 : index
    %c19 = arith.constant 19 : index
    %c0_32 = arith.constant 0 : index
    %29 = vector.load %arg1[%c0_31, %c19, %c0_32] : memref<1x332x8xf32, #tpu.memory_space<vmem>>, vector<1x288x8xf32>
    %30 = vector.shape_cast %29 : vector<1x288x8xf32> to vector<288x8xf32>
    %c4 = arith.constant 4 : index
    %c0_33 = arith.constant 0 : index
    %c0_34 = arith.constant 0 : index
    %31 = vector.load %arg2[%c4, %c0_33, %c0_34] : memref<9x8x32xf32, #tpu.memory_space<vmem>>, vector<1x8x32xf32>
    %32 = vector.shape_cast %31 : vector<1x8x32xf32> to vector<8x32xf32>
    %cst_35 = arith.constant dense<0.000000e+00> : vector<288x32xf32>
    %33 = tpu.matmul %30, %32, %cst_35 {dimension_numbers = #tpu.dot_dimension_numbers<[1], [0], [0], [1], [0, 0, 1, 1], [], []>} : vector<288x8xf32>, vector<8x32xf32>, vector<288x32xf32> -> vector<288x32xf32>
    %34 = arith.addf %28, %33 : vector<288x32xf32>
    %c0_36 = arith.constant 0 : index
    %c20 = arith.constant 20 : index
    %c0_37 = arith.constant 0 : index
    %35 = vector.load %arg1[%c0_36, %c20, %c0_37] : memref<1x332x8xf32, #tpu.memory_space<vmem>>, vector<1x288x8xf32>
    %36 = vector.shape_cast %35 : vector<1x288x8xf32> to vector<288x8xf32>
    %c5 = arith.constant 5 : index
    %c0_38 = arith.constant 0 : index
    %c0_39 = arith.constant 0 : index
    %37 = vector.load %arg2[%c5, %c0_38, %c0_39] : memref<9x8x32xf32, #tpu.memory_space<vmem>>, vector<1x8x32xf32>
    %38 = vector.shape_cast %37 : vector<1x8x32xf32> to vector<8x32xf32>
    %cst_40 = arith.constant dense<0.000000e+00> : vector<288x32xf32>
    %39 = tpu.matmul %36, %38, %cst_40 {dimension_numbers = #tpu.dot_dimension_numbers<[1], [0], [0], [1], [0, 0, 1, 1], [], []>} : vector<288x8xf32>, vector<8x32xf32>, vector<288x32xf32> -> vector<288x32xf32>
    %40 = arith.addf %34, %39 : vector<288x32xf32>
    %c0_41 = arith.constant 0 : index
    %c36 = arith.constant 36 : index
    %c0_42 = arith.constant 0 : index
    %41 = vector.load %arg1[%c0_41, %c36, %c0_42] : memref<1x332x8xf32, #tpu.memory_space<vmem>>, vector<1x288x8xf32>
    %42 = vector.shape_cast %41 : vector<1x288x8xf32> to vector<288x8xf32>
    %c6 = arith.constant 6 : index
    %c0_43 = arith.constant 0 : index
    %c0_44 = arith.constant 0 : index
    %43 = vector.load %arg2[%c6, %c0_43, %c0_44] : memref<9x8x32xf32, #tpu.memory_space<vmem>>, vector<1x8x32xf32>
    %44 = vector.shape_cast %43 : vector<1x8x32xf32> to vector<8x32xf32>
    %cst_45 = arith.constant dense<0.000000e+00> : vector<288x32xf32>
    %45 = tpu.matmul %42, %44, %cst_45 {dimension_numbers = #tpu.dot_dimension_numbers<[1], [0], [0], [1], [0, 0, 1, 1], [], []>} : vector<288x8xf32>, vector<8x32xf32>, vector<288x32xf32> -> vector<288x32xf32>
    %46 = arith.addf %40, %45 : vector<288x32xf32>
    %c0_46 = arith.constant 0 : index
    %c37 = arith.constant 37 : index
    %c0_47 = arith.constant 0 : index
    %47 = vector.load %arg1[%c0_46, %c37, %c0_47] : memref<1x332x8xf32, #tpu.memory_space<vmem>>, vector<1x288x8xf32>
    %48 = vector.shape_cast %47 : vector<1x288x8xf32> to vector<288x8xf32>
    %c7 = arith.constant 7 : index
    %c0_48 = arith.constant 0 : index
    %c0_49 = arith.constant 0 : index
    %49 = vector.load %arg2[%c7, %c0_48, %c0_49] : memref<9x8x32xf32, #tpu.memory_space<vmem>>, vector<1x8x32xf32>
    %50 = vector.shape_cast %49 : vector<1x8x32xf32> to vector<8x32xf32>
    %cst_50 = arith.constant dense<0.000000e+00> : vector<288x32xf32>
    %51 = tpu.matmul %48, %50, %cst_50 {dimension_numbers = #tpu.dot_dimension_numbers<[1], [0], [0], [1], [0, 0, 1, 1], [], []>} : vector<288x8xf32>, vector<8x32xf32>, vector<288x32xf32> -> vector<288x32xf32>
    %52 = arith.addf %46, %51 : vector<288x32xf32>
    %c0_51 = arith.constant 0 : index
    %c38 = arith.constant 38 : index
    %c0_52 = arith.constant 0 : index
    %53 = vector.load %arg1[%c0_51, %c38, %c0_52] : memref<1x332x8xf32, #tpu.memory_space<vmem>>, vector<1x288x8xf32>
    %54 = vector.shape_cast %53 : vector<1x288x8xf32> to vector<288x8xf32>
    %c8 = arith.constant 8 : index
    %c0_53 = arith.constant 0 : index
    %c0_54 = arith.constant 0 : index
    %55 = vector.load %arg2[%c8, %c0_53, %c0_54] : memref<9x8x32xf32, #tpu.memory_space<vmem>>, vector<1x8x32xf32>
    %56 = vector.shape_cast %55 : vector<1x8x32xf32> to vector<8x32xf32>
    %cst_55 = arith.constant dense<0.000000e+00> : vector<288x32xf32>
    %57 = tpu.matmul %54, %56, %cst_55 {dimension_numbers = #tpu.dot_dimension_numbers<[1], [0], [0], [1], [0, 0, 1, 1], [], []>} : vector<288x8xf32>, vector<8x32xf32>, vector<288x32xf32> -> vector<288x32xf32>
    %58 = arith.addf %52, %57 : vector<288x32xf32>
    %c0_56 = arith.constant 0 : index
    %c0_57 = arith.constant 0 : index
    %59 = vector.load %arg15[%c0_56, %c0_57] : memref<288x32xf32, #tpu.memory_space<vmem>>, vector<288x32xf32>
    tpu.vector_store %arg15[%c0_56, %c0_57], %58 {strides = array<i32>} : memref<288x32xf32, #tpu.memory_space<vmem>>, vector<288x32xf32>,
    %c0_58 = arith.constant 0 : index
    %c0_59 = arith.constant 0 : index
    %60 = vector.load %arg3[%c0_58, %c0_59] : memref<1x32xf32, #tpu.memory_space<vmem>>, vector<1x32xf32>
    %c0_60 = arith.constant 0 : index
    %c0_61 = arith.constant 0 : index
    %61 = tpu.strided_load %arg15[%c0_60, %c0_61] {strides = array<i32: 2, 1>} : memref<288x32xf32, #tpu.memory_space<vmem>>, vector<8x32xf32>
    %c1_62 = arith.constant 1 : index
    %c0_63 = arith.constant 0 : index
    %62 = tpu.strided_load %arg15[%c1_62, %c0_63] {strides = array<i32: 2, 1>} : memref<288x32xf32, #tpu.memory_space<vmem>>, vector<8x32xf32>
    %c18_64 = arith.constant 18 : index
    %c0_65 = arith.constant 0 : index
    %63 = tpu.strided_load %arg15[%c18_64, %c0_65] {strides = array<i32: 2, 1>} : memref<288x32xf32, #tpu.memory_space<vmem>>, vector<8x32xf32>
    %c19_66 = arith.constant 19 : index
    %c0_67 = arith.constant 0 : index
    %64 = tpu.strided_load %arg15[%c19_66, %c0_67] {strides = array<i32: 2, 1>} : memref<288x32xf32, #tpu.memory_space<vmem>>, vector<8x32xf32>
    %65 = arith.maximumf %61, %62 : vector<8x32xf32>
    %66 = arith.maximumf %63, %64 : vector<8x32xf32>
    %67 = arith.maximumf %65, %66 : vector<8x32xf32>
    %68 = vector.broadcast %60 : vector<1x32xf32> to vector<8x32xf32>
    %69 = arith.addf %67, %68 : vector<8x32xf32>
    %cst_68 = arith.constant 0.000000e+00 : f32
    %70 = vector.broadcast %cst_68 : f32 to vector<8x32xf32>
    %71 = arith.maximumf %69, %70 : vector<8x32xf32>
    %c11 = arith.constant 11 : index
    %c0_69 = arith.constant 0 : index
    %72 = vector.load %arg16[%c11, %c0_69] : memref<108x32xf32, #tpu.memory_space<vmem>>, vector<8x32xf32>
    tpu.vector_store %arg16[%c11, %c0_69], %71 {strides = array<i32>} : memref<108x32xf32, #tpu.memory_space<vmem>>, vector<8x32xf32>,
    %c36_70 = arith.constant 36 : index
    %c0_71 = arith.constant 0 : index
    %73 = tpu.strided_load %arg15[%c36_70, %c0_71] {strides = array<i32: 2, 1>} : memref<288x32xf32, #tpu.memory_space<vmem>>, vector<8x32xf32>
    %c37_72 = arith.constant 37 : index
    %c0_73 = arith.constant 0 : index
    %74 = tpu.strided_load %arg15[%c37_72, %c0_73] {strides = array<i32: 2, 1>} : memref<288x32xf32, #tpu.memory_space<vmem>>, vector<8x32xf32>
    %c54 = arith.constant 54 : index
    %c0_74 = arith.constant 0 : index
    %75 = tpu.strided_load %arg15[%c54, %c0_74] {strides = array<i32: 2, 1>} : memref<288x32xf32, #tpu.memory_space<vmem>>, vector<8x32xf32>
    %c55 = arith.constant 55 : index
    %c0_75 = arith.constant 0 : index
    %76 = tpu.strided_load %arg15[%c55, %c0_75] {strides = array<i32: 2, 1>} : memref<288x32xf32, #tpu.memory_space<vmem>>, vector<8x32xf32>
    %77 = arith.maximumf %73, %74 : vector<8x32xf32>
    %78 = arith.maximumf %75, %76 : vector<8x32xf32>
    %79 = arith.maximumf %77, %78 : vector<8x32xf32>
    %80 = vector.broadcast %60 : vector<1x32xf32> to vector<8x32xf32>
    %81 = arith.addf %79, %80 : vector<8x32xf32>
    %cst_76 = arith.constant 0.000000e+00 : f32
    %82 = vector.broadcast %cst_76 : f32 to vector<8x32xf32>
    %83 = arith.maximumf %81, %82 : vector<8x32xf32>
    %c21 = arith.constant 21 : index
    %c0_77 = arith.constant 0 : index
    %84 = vector.load %arg16[%c21, %c0_77] : memref<108x32xf32, #tpu.memory_space<vmem>>, vector<8x32xf32>
    tpu.vector_store %arg16[%c21, %c0_77], %83 {strides = array<i32>} : memref<108x32xf32, #tpu.memory_space<vmem>>, vector<8x32xf32>,
    %c72 = arith.constant 72 : index
    %c0_78 = arith.constant 0 : index
    %85 = tpu.strided_load %arg15[%c72, %c0_78] {strides = array<i32: 2, 1>} : memref<288x32xf32, #tpu.memory_space<vmem>>, vector<8x32xf32>
    %c73 = arith.constant 73 : index
    %c0_79 = arith.constant 0 : index
    %86 = tpu.strided_load %arg15[%c73, %c0_79] {strides = array<i32: 2, 1>} : memref<288x32xf32, #tpu.memory_space<vmem>>, vector<8x32xf32>
    %c90 = arith.constant 90 : index
    %c0_80 = arith.constant 0 : index
    %87 = tpu.strided_load %arg15[%c90, %c0_80] {strides = array<i32: 2, 1>} : memref<288x32xf32, #tpu.memory_space<vmem>>, vector<8x32xf32>
    %c91 = arith.constant 91 : index
    %c0_81 = arith.constant 0 : index
    %88 = tpu.strided_load %arg15[%c91, %c0_81] {strides = array<i32: 2, 1>} : memref<288x32xf32, #tpu.memory_space<vmem>>, vector<8x32xf32>
    %89 = arith.maximumf %85, %86 : vector<8x32xf32>
    %90 = arith.maximumf %87, %88 : vector<8x32xf32>
    %91 = arith.maximumf %89, %90 : vector<8x32xf32>
    %92 = vector.broadcast %60 : vector<1x32xf32> to vector<8x32xf32>
    %93 = arith.addf %91, %92 : vector<8x32xf32>
    %cst_82 = arith.constant 0.000000e+00 : f32
    %94 = vector.broadcast %cst_82 : f32 to vector<8x32xf32>
    %95 = arith.maximumf %93, %94 : vector<8x32xf32>
    %c31 = arith.constant 31 : index
    %c0_83 = arith.constant 0 : index
    %96 = vector.load %arg16[%c31, %c0_83] : memref<108x32xf32, #tpu.memory_space<vmem>>, vector<8x32xf32>
    tpu.vector_store %arg16[%c31, %c0_83], %95 {strides = array<i32>} : memref<108x32xf32, #tpu.memory_space<vmem>>, vector<8x32xf32>,
    %c108 = arith.constant 108 : index
    %c0_84 = arith.constant 0 : index
    %97 = tpu.strided_load %arg15[%c108, %c0_84] {strides = array<i32: 2, 1>} : memref<288x32xf32, #tpu.memory_space<vmem>>, vector<8x32xf32>
    %c109 = arith.constant 109 : index
    %c0_85 = arith.constant 0 : index
    %98 = tpu.strided_load %arg15[%c109, %c0_85] {strides = array<i32: 2, 1>} : memref<288x32xf32, #tpu.memory_space<vmem>>, vector<8x32xf32>
    %c126 = arith.constant 126 : index
    %c0_86 = arith.constant 0 : index
    %99 = tpu.strided_load %arg15[%c126, %c0_86] {strides = array<i32: 2, 1>} : memref<288x32xf32, #tpu.memory_space<vmem>>, vector<8x32xf32>
    %c127 = arith.constant 127 : index
    %c0_87 = arith.constant 0 : index
    %100 = tpu.strided_load %arg15[%c127, %c0_87] {strides = array<i32: 2, 1>} : memref<288x32xf32, #tpu.memory_space<vmem>>, vector<8x32xf32>
    %101 = arith.maximumf %97, %98 : vector<8x32xf32>
    %102 = arith.maximumf %99, %100 : vector<8x32xf32>
    %103 = arith.maximumf %101, %102 : vector<8x32xf32>
    %104 = vector.broadcast %60 : vector<1x32xf32> to vector<8x32xf32>
    %105 = arith.addf %103, %104 : vector<8x32xf32>
    %cst_88 = arith.constant 0.000000e+00 : f32
    %106 = vector.broadcast %cst_88 : f32 to vector<8x32xf32>
    %107 = arith.maximumf %105, %106 : vector<8x32xf32>
    %c41 = arith.constant 41 : index
    %c0_89 = arith.constant 0 : index
    %108 = vector.load %arg16[%c41, %c0_89] : memref<108x32xf32, #tpu.memory_space<vmem>>, vector<8x32xf32>
    tpu.vector_store %arg16[%c41, %c0_89], %107 {strides = array<i32>} : memref<108x32xf32, #tpu.memory_space<vmem>>, vector<8x32xf32>,
    %c144 = arith.constant 144 : index
    %c0_90 = arith.constant 0 : index
    %109 = tpu.strided_load %arg15[%c144, %c0_90] {strides = array<i32: 2, 1>} : memref<288x32xf32, #tpu.memory_space<vmem>>, vector<8x32xf32>
    %c145 = arith.constant 145 : index
    %c0_91 = arith.constant 0 : index
    %110 = tpu.strided_load %arg15[%c145, %c0_91] {strides = array<i32: 2, 1>} : memref<288x32xf32, #tpu.memory_space<vmem>>, vector<8x32xf32>
    %c162 = arith.constant 162 : index
    %c0_92 = arith.constant 0 : index
    %111 = tpu.strided_load %arg15[%c162, %c0_92] {strides = array<i32: 2, 1>} : memref<288x32xf32, #tpu.memory_space<vmem>>, vector<8x32xf32>
    %c163 = arith.constant 163 : index
    %c0_93 = arith.constant 0 : index
    %112 = tpu.strided_load %arg15[%c163, %c0_93] {strides = array<i32: 2, 1>} : memref<288x32xf32, #tpu.memory_space<vmem>>, vector<8x32xf32>
    %113 = arith.maximumf %109, %110 : vector<8x32xf32>
    %114 = arith.maximumf %111, %112 : vector<8x32xf32>
    %115 = arith.maximumf %113, %114 : vector<8x32xf32>
    %116 = vector.broadcast %60 : vector<1x32xf32> to vector<8x32xf32>
    %117 = arith.addf %115, %116 : vector<8x32xf32>
    %cst_94 = arith.constant 0.000000e+00 : f32
    %118 = vector.broadcast %cst_94 : f32 to vector<8x32xf32>
    %119 = arith.maximumf %117, %118 : vector<8x32xf32>
    %c51 = arith.constant 51 : index
    %c0_95 = arith.constant 0 : index
    %120 = vector.load %arg16[%c51, %c0_95] : memref<108x32xf32, #tpu.memory_space<vmem>>, vector<8x32xf32>
    tpu.vector_store %arg16[%c51, %c0_95], %119 {strides = array<i32>} : memref<108x32xf32, #tpu.memory_space<vmem>>, vector<8x32xf32>,
    %c180 = arith.constant 180 : index
    %c0_96 = arith.constant 0 : index
    %121 = tpu.strided_load %arg15[%c180, %c0_96] {strides = array<i32: 2, 1>} : memref<288x32xf32, #tpu.memory_space<vmem>>, vector<8x32xf32>
    %c181 = arith.constant 181 : index
    %c0_97 = arith.constant 0 : index
    %122 = tpu.strided_load %arg15[%c181, %c0_97] {strides = array<i32: 2, 1>} : memref<288x32xf32, #tpu.memory_space<vmem>>, vector<8x32xf32>
    %c198 = arith.constant 198 : index
    %c0_98 = arith.constant 0 : index
    %123 = tpu.strided_load %arg15[%c198, %c0_98] {strides = array<i32: 2, 1>} : memref<288x32xf32, #tpu.memory_space<vmem>>, vector<8x32xf32>
    %c199 = arith.constant 199 : index
    %c0_99 = arith.constant 0 : index
    %124 = tpu.strided_load %arg15[%c199, %c0_99] {strides = array<i32: 2, 1>} : memref<288x32xf32, #tpu.memory_space<vmem>>, vector<8x32xf32>
    %125 = arith.maximumf %121, %122 : vector<8x32xf32>
    %126 = arith.maximumf %123, %124 : vector<8x32xf32>
    %127 = arith.maximumf %125, %126 : vector<8x32xf32>
    %128 = vector.broadcast %60 : vector<1x32xf32> to vector<8x32xf32>
    %129 = arith.addf %127, %128 : vector<8x32xf32>
    %cst_100 = arith.constant 0.000000e+00 : f32
    %130 = vector.broadcast %cst_100 : f32 to vector<8x32xf32>
    %131 = arith.maximumf %129, %130 : vector<8x32xf32>
    %c61 = arith.constant 61 : index
    %c0_101 = arith.constant 0 : index
    %132 = vector.load %arg16[%c61, %c0_101] : memref<108x32xf32, #tpu.memory_space<vmem>>, vector<8x32xf32>
    tpu.vector_store %arg16[%c61, %c0_101], %131 {strides = array<i32>} : memref<108x32xf32, #tpu.memory_space<vmem>>, vector<8x32xf32>,
    %c216 = arith.constant 216 : index
    %c0_102 = arith.constant 0 : index
    %133 = tpu.strided_load %arg15[%c216, %c0_102] {strides = array<i32: 2, 1>} : memref<288x32xf32, #tpu.memory_space<vmem>>, vector<8x32xf32>
    %c217 = arith.constant 217 : index
    %c0_103 = arith.constant 0 : index
    %134 = tpu.strided_load %arg15[%c217, %c0_103] {strides = array<i32: 2, 1>} : memref<288x32xf32, #tpu.memory_space<vmem>>, vector<8x32xf32>
    %c234 = arith.constant 234 : index
    %c0_104 = arith.constant 0 : index
    %135 = tpu.strided_load %arg15[%c234, %c0_104] {strides = array<i32: 2, 1>} : memref<288x32xf32, #tpu.memory_space<vmem>>, vector<8x32xf32>
    %c235 = arith.constant 235 : index
    %c0_105 = arith.constant 0 : index
    %136 = tpu.strided_load %arg15[%c235, %c0_105] {strides = array<i32: 2, 1>} : memref<288x32xf32, #tpu.memory_space<vmem>>, vector<8x32xf32>
    %137 = arith.maximumf %133, %134 : vector<8x32xf32>
    %138 = arith.maximumf %135, %136 : vector<8x32xf32>
    %139 = arith.maximumf %137, %138 : vector<8x32xf32>
    %140 = vector.broadcast %60 : vector<1x32xf32> to vector<8x32xf32>
    %141 = arith.addf %139, %140 : vector<8x32xf32>
    %cst_106 = arith.constant 0.000000e+00 : f32
    %142 = vector.broadcast %cst_106 : f32 to vector<8x32xf32>
    %143 = arith.maximumf %141, %142 : vector<8x32xf32>
    %c71 = arith.constant 71 : index
    %c0_107 = arith.constant 0 : index
    %144 = vector.load %arg16[%c71, %c0_107] : memref<108x32xf32, #tpu.memory_space<vmem>>, vector<8x32xf32>
    tpu.vector_store %arg16[%c71, %c0_107], %143 {strides = array<i32>} : memref<108x32xf32, #tpu.memory_space<vmem>>, vector<8x32xf32>,
    %c252 = arith.constant 252 : index
    %c0_108 = arith.constant 0 : index
    %145 = tpu.strided_load %arg15[%c252, %c0_108] {strides = array<i32: 2, 1>} : memref<288x32xf32, #tpu.memory_space<vmem>>, vector<8x32xf32>
    %c253 = arith.constant 253 : index
    %c0_109 = arith.constant 0 : index
    %146 = tpu.strided_load %arg15[%c253, %c0_109] {strides = array<i32: 2, 1>} : memref<288x32xf32, #tpu.memory_space<vmem>>, vector<8x32xf32>
    %c270 = arith.constant 270 : index
    %c0_110 = arith.constant 0 : index
    %147 = tpu.strided_load %arg15[%c270, %c0_110] {strides = array<i32: 2, 1>} : memref<288x32xf32, #tpu.memory_space<vmem>>, vector<8x32xf32>
    %c271 = arith.constant 271 : index
    %c0_111 = arith.constant 0 : index
    %148 = tpu.strided_load %arg15[%c271, %c0_111] {strides = array<i32: 2, 1>} : memref<288x32xf32, #tpu.memory_space<vmem>>, vector<8x32xf32>
    %149 = arith.maximumf %145, %146 : vector<8x32xf32>
    %150 = arith.maximumf %147, %148 : vector<8x32xf32>
    %151 = arith.maximumf %149, %150 : vector<8x32xf32>
    %152 = vector.broadcast %60 : vector<1x32xf32> to vector<8x32xf32>
    %153 = arith.addf %151, %152 : vector<8x32xf32>
    %cst_112 = arith.constant 0.000000e+00 : f32
    %154 = vector.broadcast %cst_112 : f32 to vector<8x32xf32>
    %155 = arith.maximumf %153, %154 : vector<8x32xf32>
    %c81 = arith.constant 81 : index
    %c0_113 = arith.constant 0 : index
    %156 = vector.load %arg16[%c81, %c0_113] : memref<108x32xf32, #tpu.memory_space<vmem>>, vector<8x32xf32>
    tpu.vector_store %arg16[%c81, %c0_113], %155 {strides = array<i32>} : memref<108x32xf32, #tpu.memory_space<vmem>>, vector<8x32xf32>,
    %c0_114 = arith.constant 0 : index
    %c0_115 = arith.constant 0 : index
    %157 = vector.load %arg16[%c0_114, %c0_115] : memref<108x32xf32, #tpu.memory_space<vmem>>, vector<80x32xf32>
    %c0_116 = arith.constant 0 : index
    %c0_117 = arith.constant 0 : index
    %c0_118 = arith.constant 0 : index
    %158 = vector.load %arg4[%c0_116, %c0_117, %c0_118] : memref<9x32x32xf32, #tpu.memory_space<vmem>>, vector<1x32x32xf32>
    %159 = vector.shape_cast %158 : vector<1x32x32xf32> to vector<32x32xf32>
    %cst_119 = arith.constant dense<0.000000e+00> : vector<80x32xf32>
    %160 = tpu.matmul %157, %159, %cst_119 {dimension_numbers = #tpu.dot_dimension_numbers<[1], [0], [0], [1], [0, 0, 1, 1], [], []>} : vector<80x32xf32>, vector<32x32xf32>, vector<80x32xf32> -> vector<80x32xf32>
    %c1_120 = arith.constant 1 : index
    %c0_121 = arith.constant 0 : index
    %161 = vector.load %arg16[%c1_120, %c0_121] : memref<108x32xf32, #tpu.memory_space<vmem>>, vector<80x32xf32>
    %c1_122 = arith.constant 1 : index
    %c0_123 = arith.constant 0 : index
    %c0_124 = arith.constant 0 : index
    %162 = vector.load %arg4[%c1_122, %c0_123, %c0_124] : memref<9x32x32xf32, #tpu.memory_space<vmem>>, vector<1x32x32xf32>
    %163 = vector.shape_cast %162 : vector<1x32x32xf32> to vector<32x32xf32>
    %cst_125 = arith.constant dense<0.000000e+00> : vector<80x32xf32>
    %164 = tpu.matmul %161, %163, %cst_125 {dimension_numbers = #tpu.dot_dimension_numbers<[1], [0], [0], [1], [0, 0, 1, 1], [], []>} : vector<80x32xf32>, vector<32x32xf32>, vector<80x32xf32> -> vector<80x32xf32>
    %165 = arith.addf %160, %164 : vector<80x32xf32>
    %c2_126 = arith.constant 2 : index
    %c0_127 = arith.constant 0 : index
    %166 = vector.load %arg16[%c2_126, %c0_127] : memref<108x32xf32, #tpu.memory_space<vmem>>, vector<80x32xf32>
    %c2_128 = arith.constant 2 : index
    %c0_129 = arith.constant 0 : index
    %c0_130 = arith.constant 0 : index
    %167 = vector.load %arg4[%c2_128, %c0_129, %c0_130] : memref<9x32x32xf32, #tpu.memory_space<vmem>>, vector<1x32x32xf32>
    %168 = vector.shape_cast %167 : vector<1x32x32xf32> to vector<32x32xf32>
    %cst_131 = arith.constant dense<0.000000e+00> : vector<80x32xf32>
    %169 = tpu.matmul %166, %168, %cst_131 {dimension_numbers = #tpu.dot_dimension_numbers<[1], [0], [0], [1], [0, 0, 1, 1], [], []>} : vector<80x32xf32>, vector<32x32xf32>, vector<80x32xf32> -> vector<80x32xf32>
    %170 = arith.addf %165, %169 : vector<80x32xf32>
    %c10 = arith.constant 10 : index
    %c0_132 = arith.constant 0 : index
    %171 = vector.load %arg16[%c10, %c0_132] : memref<108x32xf32, #tpu.memory_space<vmem>>, vector<80x32xf32>
    %c3_133 = arith.constant 3 : index
    %c0_134 = arith.constant 0 : index
    %c0_135 = arith.constant 0 : index
    %172 = vector.load %arg4[%c3_133, %c0_134, %c0_135] : memref<9x32x32xf32, #tpu.memory_space<vmem>>, vector<1x32x32xf32>
    %173 = vector.shape_cast %172 : vector<1x32x32xf32> to vector<32x32xf32>
    %cst_136 = arith.constant dense<0.000000e+00> : vector<80x32xf32>
    %174 = tpu.matmul %171, %173, %cst_136 {dimension_numbers = #tpu.dot_dimension_numbers<[1], [0], [0], [1], [0, 0, 1, 1], [], []>} : vector<80x32xf32>, vector<32x32xf32>, vector<80x32xf32> -> vector<80x32xf32>
    %175 = arith.addf %170, %174 : vector<80x32xf32>
    %c11_137 = arith.constant 11 : index
    %c0_138 = arith.constant 0 : index
    %176 = vector.load %arg16[%c11_137, %c0_138] : memref<108x32xf32, #tpu.memory_space<vmem>>, vector<80x32xf32>
    %c4_139 = arith.constant 4 : index
    %c0_140 = arith.constant 0 : index
    %c0_141 = arith.constant 0 : index
    %177 = vector.load %arg4[%c4_139, %c0_140, %c0_141] : memref<9x32x32xf32, #tpu.memory_space<vmem>>, vector<1x32x32xf32>
    %178 = vector.shape_cast %177 : vector<1x32x32xf32> to vector<32x32xf32>
    %cst_142 = arith.constant dense<0.000000e+00> : vector<80x32xf32>
    %179 = tpu.matmul %176, %178, %cst_142 {dimension_numbers = #tpu.dot_dimension_numbers<[1], [0], [0], [1], [0, 0, 1, 1], [], []>} : vector<80x32xf32>, vector<32x32xf32>, vector<80x32xf32> -> vector<80x32xf32>
    %180 = arith.addf %175, %179 : vector<80x32xf32>
    %c12 = arith.constant 12 : index
    %c0_143 = arith.constant 0 : index
    %181 = vector.load %arg16[%c12, %c0_143] : memref<108x32xf32, #tpu.memory_space<vmem>>, vector<80x32xf32>
    %c5_144 = arith.constant 5 : index
    %c0_145 = arith.constant 0 : index
    %c0_146 = arith.constant 0 : index
    %182 = vector.load %arg4[%c5_144, %c0_145, %c0_146] : memref<9x32x32xf32, #tpu.memory_space<vmem>>, vector<1x32x32xf32>
    %183 = vector.shape_cast %182 : vector<1x32x32xf32> to vector<32x32xf32>
    %cst_147 = arith.constant dense<0.000000e+00> : vector<80x32xf32>
    %184 = tpu.matmul %181, %183, %cst_147 {dimension_numbers = #tpu.dot_dimension_numbers<[1], [0], [0], [1], [0, 0, 1, 1], [], []>} : vector<80x32xf32>, vector<32x32xf32>, vector<80x32xf32> -> vector<80x32xf32>
    %185 = arith.addf %180, %184 : vector<80x32xf32>
    %c20_148 = arith.constant 20 : index
    %c0_149 = arith.constant 0 : index
    %186 = vector.load %arg16[%c20_148, %c0_149] : memref<108x32xf32, #tpu.memory_space<vmem>>, vector<80x32xf32>
    %c6_150 = arith.constant 6 : index
    %c0_151 = arith.constant 0 : index
    %c0_152 = arith.constant 0 : index
    %187 = vector.load %arg4[%c6_150, %c0_151, %c0_152] : memref<9x32x32xf32, #tpu.memory_space<vmem>>, vector<1x32x32xf32>
    %188 = vector.shape_cast %187 : vector<1x32x32xf32> to vector<32x32xf32>
    %cst_153 = arith.constant dense<0.000000e+00> : vector<80x32xf32>
    %189 = tpu.matmul %186, %188, %cst_153 {dimension_numbers = #tpu.dot_dimension_numbers<[1], [0], [0], [1], [0, 0, 1, 1], [], []>} : vector<80x32xf32>, vector<32x32xf32>, vector<80x32xf32> -> vector<80x32xf32>
    %190 = arith.addf %185, %189 : vector<80x32xf32>
    %c21_154 = arith.constant 21 : index
    %c0_155 = arith.constant 0 : index
    %191 = vector.load %arg16[%c21_154, %c0_155] : memref<108x32xf32, #tpu.memory_space<vmem>>, vector<80x32xf32>
    %c7_156 = arith.constant 7 : index
    %c0_157 = arith.constant 0 : index
    %c0_158 = arith.constant 0 : index
    %192 = vector.load %arg4[%c7_156, %c0_157, %c0_158] : memref<9x32x32xf32, #tpu.memory_space<vmem>>, vector<1x32x32xf32>
    %193 = vector.shape_cast %192 : vector<1x32x32xf32> to vector<32x32xf32>
    %cst_159 = arith.constant dense<0.000000e+00> : vector<80x32xf32>
    %194 = tpu.matmul %191, %193, %cst_159 {dimension_numbers = #tpu.dot_dimension_numbers<[1], [0], [0], [1], [0, 0, 1, 1], [], []>} : vector<80x32xf32>, vector<32x32xf32>, vector<80x32xf32> -> vector<80x32xf32>
    %195 = arith.addf %190, %194 : vector<80x32xf32>
    %c22 = arith.constant 22 : index
    %c0_160 = arith.constant 0 : index
    %196 = vector.load %arg16[%c22, %c0_160] : memref<108x32xf32, #tpu.memory_space<vmem>>, vector<80x32xf32>
    %c8_161 = arith.constant 8 : index
    %c0_162 = arith.constant 0 : index
    %c0_163 = arith.constant 0 : index
    %197 = vector.load %arg4[%c8_161, %c0_162, %c0_163] : memref<9x32x32xf32, #tpu.memory_space<vmem>>, vector<1x32x32xf32>
    %198 = vector.shape_cast %197 : vector<1x32x32xf32> to vector<32x32xf32>
    %cst_164 = arith.constant dense<0.000000e+00> : vector<80x32xf32>
    %199 = tpu.matmul %196, %198, %cst_164 {dimension_numbers = #tpu.dot_dimension_numbers<[1], [0], [0], [1], [0, 0, 1, 1], [], []>} : vector<80x32xf32>, vector<32x32xf32>, vector<80x32xf32> -> vector<80x32xf32>
    %200 = arith.addf %195, %199 : vector<80x32xf32>
    %c0_165 = arith.constant 0 : index
    %c0_166 = arith.constant 0 : index
    %201 = vector.load %arg15[%c0_165, %c0_166] : memref<288x32xf32, #tpu.memory_space<vmem>>, vector<80x32xf32>
    tpu.vector_store %arg15[%c0_165, %c0_166], %200 {strides = array<i32>} : memref<288x32xf32, #tpu.memory_space<vmem>>, vector<80x32xf32>,
    %c0_167 = arith.constant 0 : index
    %c0_168 = arith.constant 0 : index
    %202 = vector.load %arg5[%c0_167, %c0_168] : memref<1x32xf32, #tpu.memory_space<vmem>>, vector<1x32xf32>
    %c0_169 = arith.constant 0 : index
    %c0_170 = arith.constant 0 : index
    %203 = tpu.strided_load %arg15[%c0_169, %c0_170] {strides = array<i32: 2, 1>} : memref<288x32xf32, #tpu.memory_space<vmem>>, vector<4x32xf32>
    %c1_171 = arith.constant 1 : index
    %c0_172 = arith.constant 0 : index
    %204 = tpu.strided_load %arg15[%c1_171, %c0_172] {strides = array<i32: 2, 1>} : memref<288x32xf32, #tpu.memory_space<vmem>>, vector<4x32xf32>
    %c10_173 = arith.constant 10 : index
    %c0_174 = arith.constant 0 : index
    %205 = tpu.strided_load %arg15[%c10_173, %c0_174] {strides = array<i32: 2, 1>} : memref<288x32xf32, #tpu.memory_space<vmem>>, vector<4x32xf32>
    %c11_175 = arith.constant 11 : index
    %c0_176 = arith.constant 0 : index
    %206 = tpu.strided_load %arg15[%c11_175, %c0_176] {strides = array<i32: 2, 1>} : memref<288x32xf32, #tpu.memory_space<vmem>>, vector<4x32xf32>
    %207 = arith.maximumf %203, %204 : vector<4x32xf32>
    %208 = arith.maximumf %205, %206 : vector<4x32xf32>
    %209 = arith.maximumf %207, %208 : vector<4x32xf32>
    %210 = vector.broadcast %202 : vector<1x32xf32> to vector<4x32xf32>
    %211 = arith.addf %209, %210 : vector<4x32xf32>
    %cst_177 = arith.constant 0.000000e+00 : f32
    %212 = vector.broadcast %cst_177 : f32 to vector<4x32xf32>
    %213 = arith.maximumf %211, %212 : vector<4x32xf32>
    %c7_178 = arith.constant 7 : index
    %c0_179 = arith.constant 0 : index
    %214 = vector.load %arg17[%c7_178, %c0_179] : memref<44x32xf32, #tpu.memory_space<vmem>>, vector<4x32xf32>
    tpu.vector_store %arg17[%c7_178, %c0_179], %213 {strides = array<i32>} : memref<44x32xf32, #tpu.memory_space<vmem>>, vector<4x32xf32>,
    %c20_180 = arith.constant 20 : index
    %c0_181 = arith.constant 0 : index
    %215 = tpu.strided_load %arg15[%c20_180, %c0_181] {strides = array<i32: 2, 1>} : memref<288x32xf32, #tpu.memory_space<vmem>>, vector<4x32xf32>
    %c21_182 = arith.constant 21 : index
    %c0_183 = arith.constant 0 : index
    %216 = tpu.strided_load %arg15[%c21_182, %c0_183] {strides = array<i32: 2, 1>} : memref<288x32xf32, #tpu.memory_space<vmem>>, vector<4x32xf32>
    %c30 = arith.constant 30 : index
    %c0_184 = arith.constant 0 : index
    %217 = tpu.strided_load %arg15[%c30, %c0_184] {strides = array<i32: 2, 1>} : memref<288x32xf32, #tpu.memory_space<vmem>>, vector<4x32xf32>
    %c31_185 = arith.constant 31 : index
    %c0_186 = arith.constant 0 : index
    %218 = tpu.strided_load %arg15[%c31_185, %c0_186] {strides = array<i32: 2, 1>} : memref<288x32xf32, #tpu.memory_space<vmem>>, vector<4x32xf32>
    %219 = arith.maximumf %215, %216 : vector<4x32xf32>
    %220 = arith.maximumf %217, %218 : vector<4x32xf32>
    %221 = arith.maximumf %219, %220 : vector<4x32xf32>
    %222 = vector.broadcast %202 : vector<1x32xf32> to vector<4x32xf32>
    %223 = arith.addf %221, %222 : vector<4x32xf32>
    %cst_187 = arith.constant 0.000000e+00 : f32
    %224 = vector.broadcast %cst_187 : f32 to vector<4x32xf32>
    %225 = arith.maximumf %223, %224 : vector<4x32xf32>
    %c13 = arith.constant 13 : index
    %c0_188 = arith.constant 0 : index
    %226 = vector.load %arg17[%c13, %c0_188] : memref<44x32xf32, #tpu.memory_space<vmem>>, vector<4x32xf32>
    tpu.vector_store %arg17[%c13, %c0_188], %225 {strides = array<i32>} : memref<44x32xf32, #tpu.memory_space<vmem>>, vector<4x32xf32>,
    %c40 = arith.constant 40 : index
    %c0_189 = arith.constant 0 : index
    %227 = tpu.strided_load %arg15[%c40, %c0_189] {strides = array<i32: 2, 1>} : memref<288x32xf32, #tpu.memory_space<vmem>>, vector<4x32xf32>
    %c41_190 = arith.constant 41 : index
    %c0_191 = arith.constant 0 : index
    %228 = tpu.strided_load %arg15[%c41_190, %c0_191] {strides = array<i32: 2, 1>} : memref<288x32xf32, #tpu.memory_space<vmem>>, vector<4x32xf32>
    %c50 = arith.constant 50 : index
    %c0_192 = arith.constant 0 : index
    %229 = tpu.strided_load %arg15[%c50, %c0_192] {strides = array<i32: 2, 1>} : memref<288x32xf32, #tpu.memory_space<vmem>>, vector<4x32xf32>
    %c51_193 = arith.constant 51 : index
    %c0_194 = arith.constant 0 : index
    %230 = tpu.strided_load %arg15[%c51_193, %c0_194] {strides = array<i32: 2, 1>} : memref<288x32xf32, #tpu.memory_space<vmem>>, vector<4x32xf32>
    %231 = arith.maximumf %227, %228 : vector<4x32xf32>
    %232 = arith.maximumf %229, %230 : vector<4x32xf32>
    %233 = arith.maximumf %231, %232 : vector<4x32xf32>
    %234 = vector.broadcast %202 : vector<1x32xf32> to vector<4x32xf32>
    %235 = arith.addf %233, %234 : vector<4x32xf32>
    %cst_195 = arith.constant 0.000000e+00 : f32
    %236 = vector.broadcast %cst_195 : f32 to vector<4x32xf32>
    %237 = arith.maximumf %235, %236 : vector<4x32xf32>
    %c19_196 = arith.constant 19 : index
    %c0_197 = arith.constant 0 : index
    %238 = vector.load %arg17[%c19_196, %c0_197] : memref<44x32xf32, #tpu.memory_space<vmem>>, vector<4x32xf32>
    tpu.vector_store %arg17[%c19_196, %c0_197], %237 {strides = array<i32>} : memref<44x32xf32, #tpu.memory_space<vmem>>, vector<4x32xf32>,
    %c60 = arith.constant 60 : index
    %c0_198 = arith.constant 0 : index
    %239 = tpu.strided_load %arg15[%c60, %c0_198] {strides = array<i32: 2, 1>} : memref<288x32xf32, #tpu.memory_space<vmem>>, vector<4x32xf32>
    %c61_199 = arith.constant 61 : index
    %c0_200 = arith.constant 0 : index
    %240 = tpu.strided_load %arg15[%c61_199, %c0_200] {strides = array<i32: 2, 1>} : memref<288x32xf32, #tpu.memory_space<vmem>>, vector<4x32xf32>
    %c70 = arith.constant 70 : index
    %c0_201 = arith.constant 0 : index
    %241 = tpu.strided_load %arg15[%c70, %c0_201] {strides = array<i32: 2, 1>} : memref<288x32xf32, #tpu.memory_space<vmem>>, vector<4x32xf32>
    %c71_202 = arith.constant 71 : index
    %c0_203 = arith.constant 0 : index
    %242 = tpu.strided_load %arg15[%c71_202, %c0_203] {strides = array<i32: 2, 1>} : memref<288x32xf32, #tpu.memory_space<vmem>>, vector<4x32xf32>
    %243 = arith.maximumf %239, %240 : vector<4x32xf32>
    %244 = arith.maximumf %241, %242 : vector<4x32xf32>
    %245 = arith.maximumf %243, %244 : vector<4x32xf32>
    %246 = vector.broadcast %202 : vector<1x32xf32> to vector<4x32xf32>
    %247 = arith.addf %245, %246 : vector<4x32xf32>
    %cst_204 = arith.constant 0.000000e+00 : f32
    %248 = vector.broadcast %cst_204 : f32 to vector<4x32xf32>
    %249 = arith.maximumf %247, %248 : vector<4x32xf32>
    %c25 = arith.constant 25 : index
    %c0_205 = arith.constant 0 : index
    %250 = vector.load %arg17[%c25, %c0_205] : memref<44x32xf32, #tpu.memory_space<vmem>>, vector<4x32xf32>
    tpu.vector_store %arg17[%c25, %c0_205], %249 {strides = array<i32>} : memref<44x32xf32, #tpu.memory_space<vmem>>, vector<4x32xf32>,
    %c0_206 = arith.constant 0 : index
    %c0_207 = arith.constant 0 : index
    %251 = vector.load %arg17[%c0_206, %c0_207] : memref<44x32xf32, #tpu.memory_space<vmem>>, vector<24x32xf32>
    %c0_208 = arith.constant 0 : index
    %c0_209 = arith.constant 0 : index
    %c0_210 = arith.constant 0 : index
    %252 = vector.load %arg6[%c0_208, %c0_209, %c0_210] : memref<9x32x32xf32, #tpu.memory_space<vmem>>, vector<1x32x32xf32>
    %253 = vector.shape_cast %252 : vector<1x32x32xf32> to vector<32x32xf32>
    %cst_211 = arith.constant dense<0.000000e+00> : vector<24x32xf32>
    %254 = tpu.matmul %251, %253, %cst_211 {dimension_numbers = #tpu.dot_dimension_numbers<[1], [0], [0], [1], [0, 0, 1, 1], [], []>} : vector<24x32xf32>, vector<32x32xf32>, vector<24x32xf32> -> vector<24x32xf32>
    %c1_212 = arith.constant 1 : index
    %c0_213 = arith.constant 0 : index
    %255 = vector.load %arg17[%c1_212, %c0_213] : memref<44x32xf32, #tpu.memory_space<vmem>>, vector<24x32xf32>
    %c1_214 = arith.constant 1 : index
    %c0_215 = arith.constant 0 : index
    %c0_216 = arith.constant 0 : index
    %256 = vector.load %arg6[%c1_214, %c0_215, %c0_216] : memref<9x32x32xf32, #tpu.memory_space<vmem>>, vector<1x32x32xf32>
    %257 = vector.shape_cast %256 : vector<1x32x32xf32> to vector<32x32xf32>
    %cst_217 = arith.constant dense<0.000000e+00> : vector<24x32xf32>
    %258 = tpu.matmul %255, %257, %cst_217 {dimension_numbers = #tpu.dot_dimension_numbers<[1], [0], [0], [1], [0, 0, 1, 1], [], []>} : vector<24x32xf32>, vector<32x32xf32>, vector<24x32xf32> -> vector<24x32xf32>
    %259 = arith.addf %254, %258 : vector<24x32xf32>
    %c2_218 = arith.constant 2 : index
    %c0_219 = arith.constant 0 : index
    %260 = vector.load %arg17[%c2_218, %c0_219] : memref<44x32xf32, #tpu.memory_space<vmem>>, vector<24x32xf32>
    %c2_220 = arith.constant 2 : index
    %c0_221 = arith.constant 0 : index
    %c0_222 = arith.constant 0 : index
    %261 = vector.load %arg6[%c2_220, %c0_221, %c0_222] : memref<9x32x32xf32, #tpu.memory_space<vmem>>, vector<1x32x32xf32>
    %262 = vector.shape_cast %261 : vector<1x32x32xf32> to vector<32x32xf32>
    %cst_223 = arith.constant dense<0.000000e+00> : vector<24x32xf32>
    %263 = tpu.matmul %260, %262, %cst_223 {dimension_numbers = #tpu.dot_dimension_numbers<[1], [0], [0], [1], [0, 0, 1, 1], [], []>} : vector<24x32xf32>, vector<32x32xf32>, vector<24x32xf32> -> vector<24x32xf32>
    %264 = arith.addf %259, %263 : vector<24x32xf32>
    %c6_224 = arith.constant 6 : index
    %c0_225 = arith.constant 0 : index
    %265 = vector.load %arg17[%c6_224, %c0_225] : memref<44x32xf32, #tpu.memory_space<vmem>>, vector<24x32xf32>
    %c3_226 = arith.constant 3 : index
    %c0_227 = arith.constant 0 : index
    %c0_228 = arith.constant 0 : index
    %266 = vector.load %arg6[%c3_226, %c0_227, %c0_228] : memref<9x32x32xf32, #tpu.memory_space<vmem>>, vector<1x32x32xf32>
    %267 = vector.shape_cast %266 : vector<1x32x32xf32> to vector<32x32xf32>
    %cst_229 = arith.constant dense<0.000000e+00> : vector<24x32xf32>
    %268 = tpu.matmul %265, %267, %cst_229 {dimension_numbers = #tpu.dot_dimension_numbers<[1], [0], [0], [1], [0, 0, 1, 1], [], []>} : vector<24x32xf32>, vector<32x32xf32>, vector<24x32xf32> -> vector<24x32xf32>
    %269 = arith.addf %264, %268 : vector<24x32xf32>
    %c7_230 = arith.constant 7 : index
    %c0_231 = arith.constant 0 : index
    %270 = vector.load %arg17[%c7_230, %c0_231] : memref<44x32xf32, #tpu.memory_space<vmem>>, vector<24x32xf32>
    %c4_232 = arith.constant 4 : index
    %c0_233 = arith.constant 0 : index
    %c0_234 = arith.constant 0 : index
    %271 = vector.load %arg6[%c4_232, %c0_233, %c0_234] : memref<9x32x32xf32, #tpu.memory_space<vmem>>, vector<1x32x32xf32>
    %272 = vector.shape_cast %271 : vector<1x32x32xf32> to vector<32x32xf32>
    %cst_235 = arith.constant dense<0.000000e+00> : vector<24x32xf32>
    %273 = tpu.matmul %270, %272, %cst_235 {dimension_numbers = #tpu.dot_dimension_numbers<[1], [0], [0], [1], [0, 0, 1, 1], [], []>} : vector<24x32xf32>, vector<32x32xf32>, vector<24x32xf32> -> vector<24x32xf32>
    %274 = arith.addf %269, %273 : vector<24x32xf32>
    %c8_236 = arith.constant 8 : index
    %c0_237 = arith.constant 0 : index
    %275 = vector.load %arg17[%c8_236, %c0_237] : memref<44x32xf32, #tpu.memory_space<vmem>>, vector<24x32xf32>
    %c5_238 = arith.constant 5 : index
    %c0_239 = arith.constant 0 : index
    %c0_240 = arith.constant 0 : index
    %276 = vector.load %arg6[%c5_238, %c0_239, %c0_240] : memref<9x32x32xf32, #tpu.memory_space<vmem>>, vector<1x32x32xf32>
    %277 = vector.shape_cast %276 : vector<1x32x32xf32> to vector<32x32xf32>
    %cst_241 = arith.constant dense<0.000000e+00> : vector<24x32xf32>
    %278 = tpu.matmul %275, %277, %cst_241 {dimension_numbers = #tpu.dot_dimension_numbers<[1], [0], [0], [1], [0, 0, 1, 1], [], []>} : vector<24x32xf32>, vector<32x32xf32>, vector<24x32xf32> -> vector<24x32xf32>
    %279 = arith.addf %274, %278 : vector<24x32xf32>
    %c12_242 = arith.constant 12 : index
    %c0_243 = arith.constant 0 : index
    %280 = vector.load %arg17[%c12_242, %c0_243] : memref<44x32xf32, #tpu.memory_space<vmem>>, vector<24x32xf32>
    %c6_244 = arith.constant 6 : index
    %c0_245 = arith.constant 0 : index
    %c0_246 = arith.constant 0 : index
    %281 = vector.load %arg6[%c6_244, %c0_245, %c0_246] : memref<9x32x32xf32, #tpu.memory_space<vmem>>, vector<1x32x32xf32>
    %282 = vector.shape_cast %281 : vector<1x32x32xf32> to vector<32x32xf32>
    %cst_247 = arith.constant dense<0.000000e+00> : vector<24x32xf32>
    %283 = tpu.matmul %280, %282, %cst_247 {dimension_numbers = #tpu.dot_dimension_numbers<[1], [0], [0], [1], [0, 0, 1, 1], [], []>} : vector<24x32xf32>, vector<32x32xf32>, vector<24x32xf32> -> vector<24x32xf32>
    %284 = arith.addf %279, %283 : vector<24x32xf32>
    %c13_248 = arith.constant 13 : index
    %c0_249 = arith.constant 0 : index
    %285 = vector.load %arg17[%c13_248, %c0_249] : memref<44x32xf32, #tpu.memory_space<vmem>>, vector<24x32xf32>
    %c7_250 = arith.constant 7 : index
    %c0_251 = arith.constant 0 : index
    %c0_252 = arith.constant 0 : index
    %286 = vector.load %arg6[%c7_250, %c0_251, %c0_252] : memref<9x32x32xf32, #tpu.memory_space<vmem>>, vector<1x32x32xf32>
    %287 = vector.shape_cast %286 : vector<1x32x32xf32> to vector<32x32xf32>
    %cst_253 = arith.constant dense<0.000000e+00> : vector<24x32xf32>
    %288 = tpu.matmul %285, %287, %cst_253 {dimension_numbers = #tpu.dot_dimension_numbers<[1], [0], [0], [1], [0, 0, 1, 1], [], []>} : vector<24x32xf32>, vector<32x32xf32>, vector<24x32xf32> -> vector<24x32xf32>
    %289 = arith.addf %284, %288 : vector<24x32xf32>
    %c14 = arith.constant 14 : index
    %c0_254 = arith.constant 0 : index
    %290 = vector.load %arg17[%c14, %c0_254] : memref<44x32xf32, #tpu.memory_space<vmem>>, vector<24x32xf32>
    %c8_255 = arith.constant 8 : index
    %c0_256 = arith.constant 0 : index
    %c0_257 = arith.constant 0 : index
    %291 = vector.load %arg6[%c8_255, %c0_256, %c0_257] : memref<9x32x32xf32, #tpu.memory_space<vmem>>, vector<1x32x32xf32>
    %292 = vector.shape_cast %291 : vector<1x32x32xf32> to vector<32x32xf32>
    %cst_258 = arith.constant dense<0.000000e+00> : vector<24x32xf32>
    %293 = tpu.matmul %290, %292, %cst_258 {dimension_numbers = #tpu.dot_dimension_numbers<[1], [0], [0], [1], [0, 0, 1, 1], [], []>} : vector<24x32xf32>, vector<32x32xf32>, vector<24x32xf32> -> vector<24x32xf32>
    %294 = arith.addf %289, %293 : vector<24x32xf32>
    %c0_259 = arith.constant 0 : index
    %c0_260 = arith.constant 0 : index
    %295 = vector.load %arg15[%c0_259, %c0_260] : memref<288x32xf32, #tpu.memory_space<vmem>>, vector<24x32xf32>
    tpu.vector_store %arg15[%c0_259, %c0_260], %294 {strides = array<i32>} : memref<288x32xf32, #tpu.memory_space<vmem>>, vector<24x32xf32>,
    %c0_261 = arith.constant 0 : index
    %c0_262 = arith.constant 0 : index
    %296 = vector.load %arg7[%c0_261, %c0_262] : memref<1x32xf32, #tpu.memory_space<vmem>>, vector<1x32xf32>
    %c0_263 = arith.constant 0 : index
    %c0_264 = arith.constant 0 : index
    %297 = tpu.strided_load %arg15[%c0_263, %c0_264] {strides = array<i32: 2, 1>} : memref<288x32xf32, #tpu.memory_space<vmem>>, vector<2x32xf32>
    %c1_265 = arith.constant 1 : index
    %c0_266 = arith.constant 0 : index
    %298 = tpu.strided_load %arg15[%c1_265, %c0_266] {strides = array<i32: 2, 1>} : memref<288x32xf32, #tpu.memory_space<vmem>>, vector<2x32xf32>
    %c6_267 = arith.constant 6 : index
    %c0_268 = arith.constant 0 : index
    %299 = tpu.strided_load %arg15[%c6_267, %c0_268] {strides = array<i32: 2, 1>} : memref<288x32xf32, #tpu.memory_space<vmem>>, vector<2x32xf32>
    %c7_269 = arith.constant 7 : index
    %c0_270 = arith.constant 0 : index
    %300 = tpu.strided_load %arg15[%c7_269, %c0_270] {strides = array<i32: 2, 1>} : memref<288x32xf32, #tpu.memory_space<vmem>>, vector<2x32xf32>
    %301 = arith.maximumf %297, %298 : vector<2x32xf32>
    %302 = arith.maximumf %299, %300 : vector<2x32xf32>
    %303 = arith.maximumf %301, %302 : vector<2x32xf32>
    %304 = vector.broadcast %296 : vector<1x32xf32> to vector<2x32xf32>
    %305 = arith.addf %303, %304 : vector<2x32xf32>
    %cst_271 = arith.constant 0.000000e+00 : f32
    %306 = vector.broadcast %cst_271 : f32 to vector<2x32xf32>
    %307 = arith.maximumf %305, %306 : vector<2x32xf32>
    %c5_272 = arith.constant 5 : index
    %c0_273 = arith.constant 0 : index
    %308 = vector.load %arg18[%c5_272, %c0_273] : memref<24x32xf32, #tpu.memory_space<vmem>>, vector<2x32xf32>
    tpu.vector_store %arg18[%c5_272, %c0_273], %307 {strides = array<i32>} : memref<24x32xf32, #tpu.memory_space<vmem>>, vector<2x32xf32>,
    %c12_274 = arith.constant 12 : index
    %c0_275 = arith.constant 0 : index
    %309 = tpu.strided_load %arg15[%c12_274, %c0_275] {strides = array<i32: 2, 1>} : memref<288x32xf32, #tpu.memory_space<vmem>>, vector<2x32xf32>
    %c13_276 = arith.constant 13 : index
    %c0_277 = arith.constant 0 : index
    %310 = tpu.strided_load %arg15[%c13_276, %c0_277] {strides = array<i32: 2, 1>} : memref<288x32xf32, #tpu.memory_space<vmem>>, vector<2x32xf32>
    %c18_278 = arith.constant 18 : index
    %c0_279 = arith.constant 0 : index
    %311 = tpu.strided_load %arg15[%c18_278, %c0_279] {strides = array<i32: 2, 1>} : memref<288x32xf32, #tpu.memory_space<vmem>>, vector<2x32xf32>
    %c19_280 = arith.constant 19 : index
    %c0_281 = arith.constant 0 : index
    %312 = tpu.strided_load %arg15[%c19_280, %c0_281] {strides = array<i32: 2, 1>} : memref<288x32xf32, #tpu.memory_space<vmem>>, vector<2x32xf32>
    %313 = arith.maximumf %309, %310 : vector<2x32xf32>
    %314 = arith.maximumf %311, %312 : vector<2x32xf32>
    %315 = arith.maximumf %313, %314 : vector<2x32xf32>
    %316 = vector.broadcast %296 : vector<1x32xf32> to vector<2x32xf32>
    %317 = arith.addf %315, %316 : vector<2x32xf32>
    %cst_282 = arith.constant 0.000000e+00 : f32
    %318 = vector.broadcast %cst_282 : f32 to vector<2x32xf32>
    %319 = arith.maximumf %317, %318 : vector<2x32xf32>
    %c9 = arith.constant 9 : index
    %c0_283 = arith.constant 0 : index
    %320 = vector.load %arg18[%c9, %c0_283] : memref<24x32xf32, #tpu.memory_space<vmem>>, vector<2x32xf32>
    tpu.vector_store %arg18[%c9, %c0_283], %319 {strides = array<i32>} : memref<24x32xf32, #tpu.memory_space<vmem>>, vector<2x32xf32>,
    %c0_284 = arith.constant 0 : index
    %c0_285 = arith.constant 0 : index
    %321 = vector.load %arg18[%c0_284, %c0_285] : memref<24x32xf32, #tpu.memory_space<vmem>>, vector<8x32xf32>
    %c0_286 = arith.constant 0 : index
    %c0_287 = arith.constant 0 : index
    %c0_288 = arith.constant 0 : index
    %322 = vector.load %arg8[%c0_286, %c0_287, %c0_288] : memref<9x32x32xf32, #tpu.memory_space<vmem>>, vector<1x32x32xf32>
    %323 = vector.shape_cast %322 : vector<1x32x32xf32> to vector<32x32xf32>
    %cst_289 = arith.constant dense<0.000000e+00> : vector<8x32xf32>
    %324 = tpu.matmul %321, %323, %cst_289 {dimension_numbers = #tpu.dot_dimension_numbers<[1], [0], [0], [1], [0, 0, 1, 1], [], []>} : vector<8x32xf32>, vector<32x32xf32>, vector<8x32xf32> -> vector<8x32xf32>
    %c1_290 = arith.constant 1 : index
    %c0_291 = arith.constant 0 : index
    %325 = vector.load %arg18[%c1_290, %c0_291] : memref<24x32xf32, #tpu.memory_space<vmem>>, vector<8x32xf32>
    %c1_292 = arith.constant 1 : index
    %c0_293 = arith.constant 0 : index
    %c0_294 = arith.constant 0 : index
    %326 = vector.load %arg8[%c1_292, %c0_293, %c0_294] : memref<9x32x32xf32, #tpu.memory_space<vmem>>, vector<1x32x32xf32>
    %327 = vector.shape_cast %326 : vector<1x32x32xf32> to vector<32x32xf32>
    %cst_295 = arith.constant dense<0.000000e+00> : vector<8x32xf32>
    %328 = tpu.matmul %325, %327, %cst_295 {dimension_numbers = #tpu.dot_dimension_numbers<[1], [0], [0], [1], [0, 0, 1, 1], [], []>} : vector<8x32xf32>, vector<32x32xf32>, vector<8x32xf32> -> vector<8x32xf32>
    %329 = arith.addf %324, %328 : vector<8x32xf32>
    %c2_296 = arith.constant 2 : index
    %c0_297 = arith.constant 0 : index
    %330 = vector.load %arg18[%c2_296, %c0_297] : memref<24x32xf32, #tpu.memory_space<vmem>>, vector<8x32xf32>
    %c2_298 = arith.constant 2 : index
    %c0_299 = arith.constant 0 : index
    %c0_300 = arith.constant 0 : index
    %331 = vector.load %arg8[%c2_298, %c0_299, %c0_300] : memref<9x32x32xf32, #tpu.memory_space<vmem>>, vector<1x32x32xf32>
    %332 = vector.shape_cast %331 : vector<1x32x32xf32> to vector<32x32xf32>
    %cst_301 = arith.constant dense<0.000000e+00> : vector<8x32xf32>
    %333 = tpu.matmul %330, %332, %cst_301 {dimension_numbers = #tpu.dot_dimension_numbers<[1], [0], [0], [1], [0, 0, 1, 1], [], []>} : vector<8x32xf32>, vector<32x32xf32>, vector<8x32xf32> -> vector<8x32xf32>
    %334 = arith.addf %329, %333 : vector<8x32xf32>
    %c4_302 = arith.constant 4 : index
    %c0_303 = arith.constant 0 : index
    %335 = vector.load %arg18[%c4_302, %c0_303] : memref<24x32xf32, #tpu.memory_space<vmem>>, vector<8x32xf32>
    %c3_304 = arith.constant 3 : index
    %c0_305 = arith.constant 0 : index
    %c0_306 = arith.constant 0 : index
    %336 = vector.load %arg8[%c3_304, %c0_305, %c0_306] : memref<9x32x32xf32, #tpu.memory_space<vmem>>, vector<1x32x32xf32>
    %337 = vector.shape_cast %336 : vector<1x32x32xf32> to vector<32x32xf32>
    %cst_307 = arith.constant dense<0.000000e+00> : vector<8x32xf32>
    %338 = tpu.matmul %335, %337, %cst_307 {dimension_numbers = #tpu.dot_dimension_numbers<[1], [0], [0], [1], [0, 0, 1, 1], [], []>} : vector<8x32xf32>, vector<32x32xf32>, vector<8x32xf32> -> vector<8x32xf32>
    %339 = arith.addf %334, %338 : vector<8x32xf32>
    %c5_308 = arith.constant 5 : index
    %c0_309 = arith.constant 0 : index
    %340 = vector.load %arg18[%c5_308, %c0_309] : memref<24x32xf32, #tpu.memory_space<vmem>>, vector<8x32xf32>
    %c4_310 = arith.constant 4 : index
    %c0_311 = arith.constant 0 : index
    %c0_312 = arith.constant 0 : index
    %341 = vector.load %arg8[%c4_310, %c0_311, %c0_312] : memref<9x32x32xf32, #tpu.memory_space<vmem>>, vector<1x32x32xf32>
    %342 = vector.shape_cast %341 : vector<1x32x32xf32> to vector<32x32xf32>
    %cst_313 = arith.constant dense<0.000000e+00> : vector<8x32xf32>
    %343 = tpu.matmul %340, %342, %cst_313 {dimension_numbers = #tpu.dot_dimension_numbers<[1], [0], [0], [1], [0, 0, 1, 1], [], []>} : vector<8x32xf32>, vector<32x32xf32>, vector<8x32xf32> -> vector<8x32xf32>
    %344 = arith.addf %339, %343 : vector<8x32xf32>
    %c6_314 = arith.constant 6 : index
    %c0_315 = arith.constant 0 : index
    %345 = vector.load %arg18[%c6_314, %c0_315] : memref<24x32xf32, #tpu.memory_space<vmem>>, vector<8x32xf32>
    %c5_316 = arith.constant 5 : index
    %c0_317 = arith.constant 0 : index
    %c0_318 = arith.constant 0 : index
    %346 = vector.load %arg8[%c5_316, %c0_317, %c0_318] : memref<9x32x32xf32, #tpu.memory_space<vmem>>, vector<1x32x32xf32>
    %347 = vector.shape_cast %346 : vector<1x32x32xf32> to vector<32x32xf32>
    %cst_319 = arith.constant dense<0.000000e+00> : vector<8x32xf32>
    %348 = tpu.matmul %345, %347, %cst_319 {dimension_numbers = #tpu.dot_dimension_numbers<[1], [0], [0], [1], [0, 0, 1, 1], [], []>} : vector<8x32xf32>, vector<32x32xf32>, vector<8x32xf32> -> vector<8x32xf32>
    %349 = arith.addf %344, %348 : vector<8x32xf32>
    %c8_320 = arith.constant 8 : index
    %c0_321 = arith.constant 0 : index
    %350 = vector.load %arg18[%c8_320, %c0_321] : memref<24x32xf32, #tpu.memory_space<vmem>>, vector<8x32xf32>
    %c6_322 = arith.constant 6 : index
    %c0_323 = arith.constant 0 : index
    %c0_324 = arith.constant 0 : index
    %351 = vector.load %arg8[%c6_322, %c0_323, %c0_324] : memref<9x32x32xf32, #tpu.memory_space<vmem>>, vector<1x32x32xf32>
    %352 = vector.shape_cast %351 : vector<1x32x32xf32> to vector<32x32xf32>
    %cst_325 = arith.constant dense<0.000000e+00> : vector<8x32xf32>
    %353 = tpu.matmul %350, %352, %cst_325 {dimension_numbers = #tpu.dot_dimension_numbers<[1], [0], [0], [1], [0, 0, 1, 1], [], []>} : vector<8x32xf32>, vector<32x32xf32>, vector<8x32xf32> -> vector<8x32xf32>
    %354 = arith.addf %349, %353 : vector<8x32xf32>
    %c9_326 = arith.constant 9 : index
    %c0_327 = arith.constant 0 : index
    %355 = vector.load %arg18[%c9_326, %c0_327] : memref<24x32xf32, #tpu.memory_space<vmem>>, vector<8x32xf32>
    %c7_328 = arith.constant 7 : index
    %c0_329 = arith.constant 0 : index
    %c0_330 = arith.constant 0 : index
    %356 = vector.load %arg8[%c7_328, %c0_329, %c0_330] : memref<9x32x32xf32, #tpu.memory_space<vmem>>, vector<1x32x32xf32>
    %357 = vector.shape_cast %356 : vector<1x32x32xf32> to vector<32x32xf32>
    %cst_331 = arith.constant dense<0.000000e+00> : vector<8x32xf32>
    %358 = tpu.matmul %355, %357, %cst_331 {dimension_numbers = #tpu.dot_dimension_numbers<[1], [0], [0], [1], [0, 0, 1, 1], [], []>} : vector<8x32xf32>, vector<32x32xf32>, vector<8x32xf32> -> vector<8x32xf32>
    %359 = arith.addf %354, %358 : vector<8x32xf32>
    %c10_332 = arith.constant 10 : index
    %c0_333 = arith.constant 0 : index
    %360 = vector.load %arg18[%c10_332, %c0_333] : memref<24x32xf32, #tpu.memory_space<vmem>>, vector<8x32xf32>
    %c8_334 = arith.constant 8 : index
    %c0_335 = arith.constant 0 : index
    %c0_336 = arith.constant 0 : index
    %361 = vector.load %arg8[%c8_334, %c0_335, %c0_336] : memref<9x32x32xf32, #tpu.memory_space<vmem>>, vector<1x32x32xf32>
    %362 = vector.shape_cast %361 : vector<1x32x32xf32> to vector<32x32xf32>
    %cst_337 = arith.constant dense<0.000000e+00> : vector<8x32xf32>
    %363 = tpu.matmul %360, %362, %cst_337 {dimension_numbers = #tpu.dot_dimension_numbers<[1], [0], [0], [1], [0, 0, 1, 1], [], []>} : vector<8x32xf32>, vector<32x32xf32>, vector<8x32xf32> -> vector<8x32xf32>
    %364 = arith.addf %359, %363 : vector<8x32xf32>
    %c0_338 = arith.constant 0 : index
    %c0_339 = arith.constant 0 : index
    %365 = vector.load %arg15[%c0_338, %c0_339] : memref<288x32xf32, #tpu.memory_space<vmem>>, vector<8x32xf32>
    tpu.vector_store %arg15[%c0_338, %c0_339], %364 {strides = array<i32>} : memref<288x32xf32, #tpu.memory_space<vmem>>, vector<8x32xf32>,
    %c0_340 = arith.constant 0 : index
    %c0_341 = arith.constant 0 : index
    %366 = vector.load %arg9[%c0_340, %c0_341] : memref<1x32xf32, #tpu.memory_space<vmem>>, vector<1x32xf32>
    %c0_342 = arith.constant 0 : index
    %c0_343 = arith.constant 0 : index
    %367 = tpu.strided_load %arg15[%c0_342, %c0_343] {strides = array<i32: 2, 1>} : memref<288x32xf32, #tpu.memory_space<vmem>>, vector<1x32xf32>
    %c1_344 = arith.constant 1 : index
    %c0_345 = arith.constant 0 : index
    %368 = tpu.strided_load %arg15[%c1_344, %c0_345] {strides = array<i32: 2, 1>} : memref<288x32xf32, #tpu.memory_space<vmem>>, vector<1x32xf32>
    %c4_346 = arith.constant 4 : index
    %c0_347 = arith.constant 0 : index
    %369 = tpu.strided_load %arg15[%c4_346, %c0_347] {strides = array<i32: 2, 1>} : memref<288x32xf32, #tpu.memory_space<vmem>>, vector<1x32xf32>
    %c5_348 = arith.constant 5 : index
    %c0_349 = arith.constant 0 : index
    %370 = tpu.strided_load %arg15[%c5_348, %c0_349] {strides = array<i32: 2, 1>} : memref<288x32xf32, #tpu.memory_space<vmem>>, vector<1x32xf32>
    %371 = arith.maximumf %367, %368 : vector<1x32xf32>
    %372 = arith.maximumf %369, %370 : vector<1x32xf32>
    %373 = arith.maximumf %371, %372 : vector<1x32xf32>
    %374 = arith.addf %373, %366 : vector<1x32xf32>
    %cst_350 = arith.constant 0.000000e+00 : f32
    %375 = vector.broadcast %cst_350 : f32 to vector<1x32xf32>
    %376 = arith.maximumf %374, %375 : vector<1x32xf32>
    %c0_351 = arith.constant 0 : index
    %c0_352 = arith.constant 0 : index
    %377 = vector.load %arg10[%c0_351, %c0_352] : memref<32x32xf32, #tpu.memory_space<vmem>>, vector<32x32xf32>
    %cst_353 = arith.constant dense<0.000000e+00> : vector<1x32xf32>
    %378 = tpu.matmul %376, %377, %cst_353 {dimension_numbers = #tpu.dot_dimension_numbers<[1], [0], [0], [1], [0, 0, 1, 1], [], []>} : vector<1x32xf32>, vector<32x32xf32>, vector<1x32xf32> -> vector<1x32xf32>
    %c0_354 = arith.constant 0 : index
    %c0_355 = arith.constant 0 : index
    %379 = vector.load %arg11[%c0_354, %c0_355] : memref<1x32xf32, #tpu.memory_space<vmem>>, vector<1x32xf32>
    %380 = arith.addf %378, %379 : vector<1x32xf32>
    %cst_356 = arith.constant 0.000000e+00 : f32
    %381 = vector.broadcast %cst_356 : f32 to vector<1x32xf32>
    %382 = arith.maximumf %380, %381 : vector<1x32xf32>
    %c0_357 = arith.constant 0 : index
    %c0_358 = arith.constant 0 : index
    %383 = vector.load %arg12[%c0_357, %c0_358] : memref<32x5xf32, #tpu.memory_space<vmem>>, vector<32x5xf32>
    %cst_359 = arith.constant dense<0.000000e+00> : vector<1x5xf32>
    %384 = tpu.matmul %382, %383, %cst_359 {dimension_numbers = #tpu.dot_dimension_numbers<[1], [0], [0], [1], [0, 0, 1, 1], [], []>} : vector<1x32xf32>, vector<32x5xf32>, vector<1x5xf32> -> vector<1x5xf32>
    %c0_360 = arith.constant 0 : index
    %c0_361 = arith.constant 0 : index
    %385 = vector.load %arg13[%c0_360, %c0_361] : memref<1x5xf32, #tpu.memory_space<vmem>>, vector<1x5xf32>
    %386 = arith.addf %384, %385 : vector<1x5xf32>
    %387 = vector.shape_cast %386 : vector<1x5xf32> to vector<1x1x5xf32>
    %c0_362 = arith.constant 0 : index
    %c0_363 = arith.constant 0 : index
    %c0_364 = arith.constant 0 : index
    %388 = vector.load %arg14[%c0_362, %c0_363, %c0_364] : memref<1x1x5xf32, #tpu.memory_space<vmem>>, vector<1x1x5xf32>
    tpu.vector_store %arg14[%c0_362, %c0_363, %c0_364], %387 {strides = array<i32>} : memref<1x1x5xf32, #tpu.memory_space<vmem>>, vector<1x1x5xf32>,
    return
  }
  func.func @transform_0(%arg0: i32) -> (i32, i32, i32) {
    %c0_i32 = arith.constant 0 : i32
    %c0_i32_0 = arith.constant 0 : i32
    %c0_i32_1 = arith.constant 0 : i32
    return %arg0, %c0_i32, %c0_i32_0 : i32, i32, i32
  }
  func.func @transform_1(%arg0: i32) -> (i32, i32, i32) {
    %c0_i32 = arith.constant 0 : i32
    %c0_i32_0 = arith.constant 0 : i32
    %c0_i32_1 = arith.constant 0 : i32
    %c0_i32_2 = arith.constant 0 : i32
    return %c0_i32, %c0_i32_0, %c0_i32_1 : i32, i32, i32
  }
  func.func @transform_2(%arg0: i32) -> (i32, i32) {
    %c0_i32 = arith.constant 0 : i32
    %c0_i32_0 = arith.constant 0 : i32
    %c0_i32_1 = arith.constant 0 : i32
    return %c0_i32, %c0_i32_0 : i32, i32
  }
  func.func @transform_3(%arg0: i32) -> (i32, i32, i32) {
    %c0_i32 = arith.constant 0 : i32
    %c0_i32_0 = arith.constant 0 : i32
    %c0_i32_1 = arith.constant 0 : i32
    %c0_i32_2 = arith.constant 0 : i32
    return %c0_i32, %c0_i32_0, %c0_i32_1 : i32, i32, i32
  }
  func.func @transform_4(%arg0: i32) -> (i32, i32) {
    %c0_i32 = arith.constant 0 : i32
    %c0_i32_0 = arith.constant 0 : i32
    %c0_i32_1 = arith.constant 0 : i32
    return %c0_i32, %c0_i32_0 : i32, i32
  }
  func.func @transform_5(%arg0: i32) -> (i32, i32, i32) {
    %c0_i32 = arith.constant 0 : i32
    %c0_i32_0 = arith.constant 0 : i32
    %c0_i32_1 = arith.constant 0 : i32
    %c0_i32_2 = arith.constant 0 : i32
    return %c0_i32, %c0_i32_0, %c0_i32_1 : i32, i32, i32
  }
  func.func @transform_6(%arg0: i32) -> (i32, i32) {
    %c0_i32 = arith.constant 0 : i32
    %c0_i32_0 = arith.constant 0 : i32
    %c0_i32_1 = arith.constant 0 : i32
    return %c0_i32, %c0_i32_0 : i32, i32
  }
  func.func @transform_7(%arg0: i32) -> (i32, i32, i32) {
    %c0_i32 = arith.constant 0 : i32
    %c0_i32_0 = arith.constant 0 : i32
    %c0_i32_1 = arith.constant 0 : i32
    %c0_i32_2 = arith.constant 0 : i32
    return %c0_i32, %c0_i32_0, %c0_i32_1 : i32, i32, i32
  }
  func.func @transform_8(%arg0: i32) -> (i32, i32) {
    %c0_i32 = arith.constant 0 : i32
    %c0_i32_0 = arith.constant 0 : i32
    %c0_i32_1 = arith.constant 0 : i32
    return %c0_i32, %c0_i32_0 : i32, i32
  }
  func.func @transform_9(%arg0: i32) -> (i32, i32) {
    %c0_i32 = arith.constant 0 : i32
    %c0_i32_0 = arith.constant 0 : i32
    %c0_i32_1 = arith.constant 0 : i32
    return %c0_i32, %c0_i32_0 : i32, i32
  }
  func.func @transform_10(%arg0: i32) -> (i32, i32) {
    %c0_i32 = arith.constant 0 : i32
    %c0_i32_0 = arith.constant 0 : i32
    %c0_i32_1 = arith.constant 0 : i32
    return %c0_i32, %c0_i32_0 : i32, i32
  }
  func.func @transform_11(%arg0: i32) -> (i32, i32) {
    %c0_i32 = arith.constant 0 : i32
    %c0_i32_0 = arith.constant 0 : i32
    %c0_i32_1 = arith.constant 0 : i32
    return %c0_i32, %c0_i32_0 : i32, i32
  }
  func.func @transform_12(%arg0: i32) -> (i32, i32) {
    %c0_i32 = arith.constant 0 : i32
    %c0_i32_0 = arith.constant 0 : i32
    %c0_i32_1 = arith.constant 0 : i32
    return %c0_i32, %c0_i32_0 : i32, i32
  }
  func.func @transform_13(%arg0: i32) -> (i32, i32, i32) {
    %c0_i32 = arith.constant 0 : i32
    %c0_i32_0 = arith.constant 0 : i32
    %c0_i32_1 = arith.constant 0 : i32
    return %arg0, %c0_i32, %c0_i32_0 : i32, i32, i32
  }
}

</mosaic_0001>

<llo_original>
// kernel: simsiam_classifier_forward.1
$region0: #{simsiam_classifier_forward.1}
  #allocation0 [shape = 'u32[]', space=smem, size = 0x4, offset = 0x4, fixed_abs, tag = 'smem constant byte address 0x4 - core index']
  #allocation1 [shape = 'u32[144,128]{1,0:T(1,128)}', space=vmem, size = 0x12000, scoped, tag = 'internal scratch']
  #allocation2 [shape = 'f32[288,32]{1,0:T(8,128)}', space=vmem, size = 0x24000, scoped, tag = 'scratch operand']
  #allocation3 [shape = 'f32[108,32]{1,0:T(8,128)}', space=vmem, size = 0xe000, scoped, tag = 'scratch operand']
  #allocation4 [shape = 'f32[44,32]{1,0:T(8,128)}', space=vmem, size = 0x6000, scoped, tag = 'scratch operand']
  #allocation5 [shape = 'f32[24,32]{1,0:T(8,128)}', space=vmem, size = 0x3000, scoped, tag = 'scratch operand']
  %s0 = inlined_call_operand.vmem [shape: f32[2,332,8], index: 0, kind: input, shape index: {}]
  %s1 = inlined_call_operand.vmem [shape: f32[9,8,32], index: 1, kind: input, shape index: {}]
  %s2 = inlined_call_operand.vmem [shape: f32[1,32], index: 2, kind: input, shape index: {}]
  %s3 = inlined_call_operand.vmem [shape: f32[9,32,32], index: 3, kind: input, shape index: {}]
  %s4 = inlined_call_operand.vmem [shape: f32[1,32], index: 4, kind: input, shape index: {}]
  %s5 = inlined_call_operand.vmem [shape: f32[9,32,32], index: 5, kind: input, shape index: {}]
  %s6 = inlined_call_operand.vmem [shape: f32[1,32], index: 6, kind: input, shape index: {}]
  %s7 = inlined_call_operand.vmem [shape: f32[9,32,32], index: 7, kind: input, shape index: {}]
  %s8 = inlined_call_operand.vmem [shape: f32[1,32], index: 8, kind: input, shape index: {}]
  %s9 = inlined_call_operand.vmem [shape: f32[32,32], index: 9, kind: input, shape index: {}]
  %s10 = inlined_call_operand.vmem [shape: f32[1,32], index: 10, kind: input, shape index: {}]
  %s11 = inlined_call_operand.vmem [shape: f32[32,5], index: 11, kind: input, shape index: {}]
  %s12 = inlined_call_operand.vmem [shape: f32[1,5], index: 12, kind: input, shape index: {}]
  %s13 = inlined_call_operand.hbm [shape: f32[2,1,5], index: 13, kind: output, shape index: {}]
  %s14 = sld [smem:[#allocation0]]
  $region85: #{simsiam_classifier_forward.1} parent=0
    _
  %s16 = ssub.s32 1, %s14
  %s17 = scalar_select 0, %s16, %s14
  $region1: #{simsiam_classifier_forward.1} parent=0
    #allocation6 [shape = 'u8[1024]{0}', space=vmem, size = 0x400, scoped, tag = 'output window, operand 0']
    #allocation7 [shape = 's32[2]{0}', space=sflag, size = 0x8, scoped, tag = 'scoped memory for simsiam_classifier_forward.1']
    %18 = vsyncpa [#allocation7], 0
    %s19 = scalar_lea.sflag [#allocation7], 1
    %20 = vsyncpa %s19, 0
    loop: start=0, step=1, limit=4
    $region2: #{simsiam_classifier_forward.1} parent=1 // loop_pre_header
      _
    $region3: #{simsiam_classifier_forward.1} parent=1 // loop_header
      %s22 = sphi 0, %s26
      %p23 = scmp.ge.s32.totalorder %s22, 4
      %s32 = sphi 0, %s34
      %s35 = sphi 0, %s32
      %s36 = sphi 0, %s35
      %s52 = sphi 0, %s36
      %s56 = sphi 0, %s56
      %s58 = sphi 0, %s56
      %s59 = sphi 0, %s58
      %s73 = sphi 0, %s59
      %s77 = sphi 0, %s77
      %s79 = sphi 0, %s77
      %s80 = sphi 0, %s79
      %s94 = sphi 0, %s80
      %s98 = sphi 0, %s98
      %s100 = sphi 0, %s98
      %s101 = sphi 0, %s100
      %s115 = sphi 0, %s101
      %s119 = sphi 0, %s119
      %s121 = sphi 0, %s119
      %s122 = sphi 0, %s121
      %s136 = sphi 0, %s122
      %s140 = sphi 0, %s140
      %s142 = sphi 0, %s140
      %s143 = sphi 0, %s142
      %s157 = sphi 0, %s143
      %s161 = sphi 0, %s161
      %s163 = sphi 0, %s161
      %s164 = sphi 0, %s163
      %s178 = sphi 0, %s164
      %s182 = sphi 0, %s182
      %s184 = sphi 0, %s182
      %s185 = sphi 0, %s184
      %s199 = sphi 0, %s185
      %s203 = sphi 0, %s203
      %s205 = sphi 0, %s203
      %s206 = sphi 0, %s205
      %s220 = sphi 0, %s206
      %s224 = sphi 0, %s224
      %s226 = sphi 0, %s224
      %s227 = sphi 0, %s226
      %s241 = sphi 0, %s227
      %s245 = sphi 0, %s245
      %s247 = sphi 0, %s245
      %s248 = sphi 0, %s247
      %s262 = sphi 0, %s248
      %s266 = sphi 0, %s266
      %s268 = sphi 0, %s266
      %s269 = sphi 0, %s268
      %s283 = sphi 0, %s269
      %s287 = sphi 0, %s287
      %s289 = sphi 0, %s287
      %s290 = sphi 0, %s289
      %s304 = sphi 0, %s290
      %s310 = sphi 0, %s312
      %s313 = sphi 0, %s310
      %s314 = sphi 0, %s313
      %s330 = sphi 0, %s314
    $region4: #{simsiam_classifier_forward.1} parent=1 // loop_header_branch
      %25 = sbr.rel (%p23) target = $region8
    $region5: #{simsiam_classifier_forward.1} parent=1 // loop_body
      %s27 = ssub.s32 %s22, 1
      %s28 = ssub.s32 %s22, 2
      %s29 = sadd.s32 %s22, 1
      %s30 = ssub.s32 %s22, %s29
      %p31 = scmp.eq.s32.totalorder %s30, 0
      %s33 = sadd.s32 %s32, 1
      %s34 = scalar_select %p31, %s32, %s33
      %p37 = pneg %p31
      %p38 = scmp.eq.s32.totalorder %s22, 1
      %p39 = por %p37, %p38
      %p40 = scmp.ne.s32.totalorder %s32, %s35
      %p41 = scmp.eq.s32.totalorder %s22, 0
      %p42 = por %p40, %p41
      %p43 = scmp.ne.s32.totalorder %s32, %s35
      %p44 = scmp.eq.s32.totalorder %s27, 1
      %p45 = por %p43, %p44
      %p46 = scmp.ne.s32.totalorder %s35, %s36
      %p47 = scmp.eq.s32.totalorder %s27, 0
      %p48 = por %p46, %p47
      %p49 = scmp.ne.s32.totalorder %s35, %s36
      %p50 = scmp.eq.s32.totalorder %s28, 1
      %p51 = por %p49, %p50
      %p53 = scmp.ne.s32.totalorder %s36, %s52
      %p54 = scmp.eq.s32.totalorder %s28, 0
      %p55 = por %p53, %p54
      %s57 = sadd.s32 %s56, 1
      %p60 = scmp.eq.s32.totalorder %s22, 1
      %p61 = scmp.ne.s32.totalorder %s56, %s58
      %p62 = scmp.eq.s32.totalorder %s22, 0
      %p63 = por %p61, %p62
      %p64 = scmp.ne.s32.totalorder %s56, %s58
      %p65 = scmp.eq.s32.totalorder %s27, 1
      %p66 = por %p64, %p65
      %p67 = scmp.ne.s32.totalorder %s58, %s59
      %p68 = scmp.eq.s32.totalorder %s27, 0
      %p69 = por %p67, %p68
      %p70 = scmp.ne.s32.totalorder %s58, %s59
      %p71 = scmp.eq.s32.totalorder %s28, 1
      %p72 = por %p70, %p71
      %p74 = scmp.ne.s32.totalorder %s59, %s73
      %p75 = scmp.eq.s32.totalorder %s28, 0
      %p76 = por %p74, %p75
      %s78 = sadd.s32 %s77, 1
      %p81 = scmp.eq.s32.totalorder %s22, 1
      %p82 = scmp.ne.s32.totalorder %s77, %s79
      %p83 = scmp.eq.s32.totalorder %s22, 0
      %p84 = por %p82, %p83
      %p85 = scmp.ne.s32.totalorder %s77, %s79
      %p86 = scmp.eq.s32.totalorder %s27, 1
      %p87 = por %p85, %p86
      %p88 = scmp.ne.s32.totalorder %s79, %s80
      %p89 = scmp.eq.s32.totalorder %s27, 0
      %p90 = por %p88, %p89
      %p91 = scmp.ne.s32.totalorder %s79, %s80
      %p92 = scmp.eq.s32.totalorder %s28, 1
      %p93 = por %p91, %p92
      %p95 = scmp.ne.s32.totalorder %s80, %s94
      %p96 = scmp.eq.s32.totalorder %s28, 0
      %p97 = por %p95, %p96
      %s99 = sadd.s32 %s98, 1
      %p102 = scmp.eq.s32.totalorder %s22, 1
      %p103 = scmp.ne.s32.totalorder %s98, %s100
      %p104 = scmp.eq.s32.totalorder %s22, 0
      %p105 = por %p103, %p104
      %p106 = scmp.ne.s32.totalorder %s98, %s100
      %p107 = scmp.eq.s32.totalorder %s27, 1
      %p108 = por %p106, %p107
      %p109 = scmp.ne.s32.totalorder %s100, %s101
      %p110 = scmp.eq.s32.totalorder %s27, 0
      %p111 = por %p109, %p110
      %p112 = scmp.ne.s32.totalorder %s100, %s101
      %p113 = scmp.eq.s32.totalorder %s28, 1
      %p114 = por %p112, %p113
      %p116 = scmp.ne.s32.totalorder %s101, %s115
      %p117 = scmp.eq.s32.totalorder %s28, 0
      %p118 = por %p116, %p117
      %s120 = sadd.s32 %s119, 1
      %p123 = scmp.eq.s32.totalorder %s22, 1
      %p124 = scmp.ne.s32.totalorder %s119, %s121
      %p125 = scmp.eq.s32.totalorder %s22, 0
      %p126 = por %p124, %p125
      %p127 = scmp.ne.s32.totalorder %s119, %s121
      %p128 = scmp.eq.s32.totalorder %s27, 1
      %p129 = por %p127, %p128
      %p130 = scmp.ne.s32.totalorder %s121, %s122
      %p131 = scmp.eq.s32.totalorder %s27, 0
      %p132 = por %p130, %p131
      %p133 = scmp.ne.s32.totalorder %s121, %s122
      %p134 = scmp.eq.s32.totalorder %s28, 1
      %p135 = por %p133, %p134
      %p137 = scmp.ne.s32.totalorder %s122, %s136
      %p138 = scmp.eq.s32.totalorder %s28, 0
      %p139 = por %p137, %p138
      %s141 = sadd.s32 %s140, 1
      %p144 = scmp.eq.s32.totalorder %s22, 1
      %p145 = scmp.ne.s32.totalorder %s140, %s142
      %p146 = scmp.eq.s32.totalorder %s22, 0
      %p147 = por %p145, %p146
      %p148 = scmp.ne.s32.totalorder %s140, %s142
      %p149 = scmp.eq.s32.totalorder %s27, 1
      %p150 = por %p148, %p149
      %p151 = scmp.ne.s32.totalorder %s142, %s143
      %p152 = scmp.eq.s32.totalorder %s27, 0
      %p153 = por %p151, %p152
      %p154 = scmp.ne.s32.totalorder %s142, %s143
      %p155 = scmp.eq.s32.totalorder %s28, 1
      %p156 = por %p154, %p155
      %p158 = scmp.ne.s32.totalorder %s143, %s157
      %p159 = scmp.eq.s32.totalorder %s28, 0
      %p160 = por %p158, %p159
      %s162 = sadd.s32 %s161, 1
      %p165 = scmp.eq.s32.totalorder %s22, 1
      %p166 = scmp.ne.s32.totalorder %s161, %s163
      %p167 = scmp.eq.s32.totalorder %s22, 0
      %p168 = por %p166, %p167
      %p169 = scmp.ne.s32.totalorder %s161, %s163
      %p170 = scmp.eq.s32.totalorder %s27, 1
      %p171 = por %p169, %p170
      %p172 = scmp.ne.s32.totalorder %s163, %s164
      %p173 = scmp.eq.s32.totalorder %s27, 0
      %p174 = por %p172, %p173
      %p175 = scmp.ne.s32.totalorder %s163, %s164
      %p176 = scmp.eq.s32.totalorder %s28, 1
      %p177 = por %p175, %p176
      %p179 = scmp.ne.s32.totalorder %s164, %s178
      %p180 = scmp.eq.s32.totalorder %s28, 0
      %p181 = por %p179, %p180
      %s183 = sadd.s32 %s182, 1
      %p186 = scmp.eq.s32.totalorder %s22, 1
      %p187 = scmp.ne.s32.totalorder %s182, %s184
      %p188 = scmp.eq.s32.totalorder %s22, 0
      %p189 = por %p187, %p188
      %p190 = scmp.ne.s32.totalorder %s182, %s184
      %p191 = scmp.eq.s32.totalorder %s27, 1
      %p192 = por %p190, %p191
      %p193 = scmp.ne.s32.totalorder %s184, %s185
      %p194 = scmp.eq.s32.totalorder %s27, 0
      %p195 = por %p193, %p194
      %p196 = scmp.ne.s32.totalorder %s184, %s185
      %p197 = scmp.eq.s32.totalorder %s28, 1
      %p198 = por %p196, %p197
      %p200 = scmp.ne.s32.totalorder %s185, %s199
      %p201 = scmp.eq.s32.totalorder %s28, 0
      %p202 = por %p200, %p201
      %s204 = sadd.s32 %s203, 1
      %p207 = scmp.eq.s32.totalorder %s22, 1
      %p208 = scmp.ne.s32.totalorder %s203, %s205
      %p209 = scmp.eq.s32.totalorder %s22, 0
      %p210 = por %p208, %p209
      %p211 = scmp.ne.s32.totalorder %s203, %s205
      %p212 = scmp.eq.s32.totalorder %s27, 1
      %p213 = por %p211, %p212
      %p214 = scmp.ne.s32.totalorder %s205, %s206
      %p215 = scmp.eq.s32.totalorder %s27, 0
      %p216 = por %p214, %p215
      %p217 = scmp.ne.s32.totalorder %s205, %s206
      %p218 = scmp.eq.s32.totalorder %s28, 1
      %p219 = por %p217, %p218
      %p221 = scmp.ne.s32.totalorder %s206, %s220
      %p222 = scmp.eq.s32.totalorder %s28, 0
      %p223 = por %p221, %p222
      %s225 = sadd.s32 %s224, 1
      %p228 = scmp.eq.s32.totalorder %s22, 1
      %p229 = scmp.ne.s32.totalorder %s224, %s226
      %p230 = scmp.eq.s32.totalorder %s22, 0
      %p231 = por %p229, %p230
      %p232 = scmp.ne.s32.totalorder %s224, %s226
      %p233 = scmp.eq.s32.totalorder %s27, 1
      %p234 = por %p232, %p233
      %p235 = scmp.ne.s32.totalorder %s226, %s227
      %p236 = scmp.eq.s32.totalorder %s27, 0
      %p237 = por %p235, %p236
      %p238 = scmp.ne.s32.totalorder %s226, %s227
      %p239 = scmp.eq.s32.totalorder %s28, 1
      %p240 = por %p238, %p239
      %p242 = scmp.ne.s32.totalorder %s227, %s241
      %p243 = scmp.eq.s32.totalorder %s28, 0
      %p244 = por %p242, %p243
      %s246 = sadd.s32 %s245, 1
      %p249 = scmp.eq.s32.totalorder %s22, 1
      %p250 = scmp.ne.s32.totalorder %s245, %s247
      %p251 = scmp.eq.s32.totalorder %s22, 0
      %p252 = por %p250, %p251
      %p253 = scmp.ne.s32.totalorder %s245, %s247
      %p254 = scmp.eq.s32.totalorder %s27, 1
      %p255 = por %p253, %p254
      %p256 = scmp.ne.s32.totalorder %s247, %s248
      %p257 = scmp.eq.s32.totalorder %s27, 0
      %p258 = por %p256, %p257
      %p259 = scmp.ne.s32.totalorder %s247, %s248
      %p260 = scmp.eq.s32.totalorder %s28, 1
      %p261 = por %p259, %p260
      %p263 = scmp.ne.s32.totalorder %s248, %s262
      %p264 = scmp.eq.s32.totalorder %s28, 0
      %p265 = por %p263, %p264
      %s267 = sadd.s32 %s266, 1
      %p270 = scmp.eq.s32.totalorder %s22, 1
      %p271 = scmp.ne.s32.totalorder %s266, %s268
      %p272 = scmp.eq.s32.totalorder %s22, 0
      %p273 = por %p271, %p272
      %p274 = scmp.ne.s32.totalorder %s266, %s268
      %p275 = scmp.eq.s32.totalorder %s27, 1
      %p276 = por %p274, %p275
      %p277 = scmp.ne.s32.totalorder %s268, %s269
      %p278 = scmp.eq.s32.totalorder %s27, 0
      %p279 = por %p277, %p278
      %p280 = scmp.ne.s32.totalorder %s268, %s269
      %p281 = scmp.eq.s32.totalorder %s28, 1
      %p282 = por %p280, %p281
      %p284 = scmp.ne.s32.totalorder %s269, %s283
      %p285 = scmp.eq.s32.totalorder %s28, 0
      %p286 = por %p284, %p285
      %s288 = sadd.s32 %s287, 1
      %p291 = scmp.eq.s32.totalorder %s22, 1
      %p292 = scmp.ne.s32.totalorder %s287, %s289
      %p293 = scmp.eq.s32.totalorder %s22, 0
      %p294 = por %p292, %p293
      %p295 = scmp.ne.s32.totalorder %s287, %s289
      %p296 = scmp.eq.s32.totalorder %s27, 1
      %p297 = por %p295, %p296
      %p298 = scmp.ne.s32.totalorder %s289, %s290
      %p299 = scmp.eq.s32.totalorder %s27, 0
      %p300 = por %p298, %p299
      %p301 = scmp.ne.s32.totalorder %s289, %s290
      %p302 = scmp.eq.s32.totalorder %s28, 1
      %p303 = por %p301, %p302
      %p305 = scmp.ne.s32.totalorder %s290, %s304
      %p306 = scmp.eq.s32.totalorder %s28, 0
      %p307 = por %p305, %p306
      %s308 = ssub.s32 %s22, %s29
      %p309 = scmp.eq.s32.totalorder %s308, 0
      %s311 = sadd.s32 %s310, 1
      %s312 = scalar_select %p309, %s310, %s311
      %p315 = pneg %p309
      %p316 = scmp.eq.s32.totalorder %s22, 1
      %p317 = por %p315, %p316
      %p318 = scmp.ne.s32.totalorder %s310, %s313
      %p319 = scmp.eq.s32.totalorder %s22, 0
      %p320 = por %p318, %p319
      %p321 = scmp.ne.s32.totalorder %s310, %s313
      %p322 = scmp.eq.s32.totalorder %s27, 1
      %p323 = por %p321, %p322
      %p324 = scmp.ne.s32.totalorder %s313, %s314
      %p325 = scmp.eq.s32.totalorder %s27, 0
      %p326 = por %p324, %p325
      %p327 = scmp.ne.s32.totalorder %s313, %s314
      %p328 = scmp.eq.s32.totalorder %s28, 1
      %p329 = por %p327, %p328
      %p331 = scmp.ne.s32.totalorder %s314, %s330
      %p332 = scmp.eq.s32.totalorder %s28, 0
      %p333 = por %p331, %p332
      %p334 = scmp.le.s32.totalorder 1, %s22
      %p335 = scmp.lt.s32.totalorder %s22, 3
      %p336 = pnand %p334, %p335
      %p337 = pneg %p336
      // Predicated region
      $region9: #{simsiam_classifier_forward.1} parent=5 // pred_check
        _
      $region10: #{simsiam_classifier_forward.1} parent=5 // pred_check_branch
        %339 = sbr.rel (%p336) target = $region12
      $region11: #{simsiam_classifier_forward.1} parent=5 // pred_region
        %s340 = ssub.s32 %s22, 1
        // Predicated region
        $region13: #{simsiam_classifier_forward.1} parent=11 // pred_check
          %p341 = pneg %p69
        $region14: #{simsiam_classifier_forward.1} parent=11 // pred_check_branch
          %343 = sbr.rel (%p341) target = $region16
        $region15: #{simsiam_classifier_forward.1} parent=11 // pred_region
          _
        $region16: #{simsiam_classifier_forward.1} parent=11 // pred_fallthru
          _
        // Predicated region
        $region17: #{simsiam_classifier_forward.1} parent=11 // pred_check
          %p344 = pneg %p90
        $region18: #{simsiam_classifier_forward.1} parent=11 // pred_check_branch
          %346 = sbr.rel (%p344) target = $region20
        $region19: #{simsiam_classifier_forward.1} parent=11 // pred_region
          _
        $region20: #{simsiam_classifier_forward.1} parent=11 // pred_fallthru
          _
        // Predicated region
        $region21: #{simsiam_classifier_forward.1} parent=11 // pred_check
          %p347 = pneg %p111
        $region22: #{simsiam_classifier_forward.1} parent=11 // pred_check_branch
          %349 = sbr.rel (%p347) target = $region24
        $region23: #{simsiam_classifier_forward.1} parent=11 // pred_region
          _
        $region24: #{simsiam_classifier_forward.1} parent=11 // pred_fallthru
          _
        // Predicated region
        $region25: #{simsiam_classifier_forward.1} parent=11 // pred_check
          %p350 = pneg %p132
        $region26: #{simsiam_classifier_forward.1} parent=11 // pred_check_branch
          %352 = sbr.rel (%p350) target = $region28
        $region27: #{simsiam_classifier_forward.1} parent=11 // pred_region
          _
        $region28: #{simsiam_classifier_forward.1} parent=11 // pred_fallthru
          _
        // Predicated region
        $region29: #{simsiam_classifier_forward.1} parent=11 // pred_check
          %p353 = pneg %p153
        $region30: #{simsiam_classifier_forward.1} parent=11 // pred_check_branch
          %355 = sbr.rel (%p353) target = $region32
        $region31: #{simsiam_classifier_forward.1} parent=11 // pred_region
          _
        $region32: #{simsiam_classifier_forward.1} parent=11 // pred_fallthru
          _
        // Predicated region
        $region33: #{simsiam_classifier_forward.1} parent=11 // pred_check
          %p356 = pneg %p174
        $region34: #{simsiam_classifier_forward.1} parent=11 // pred_check_branch
          %358 = sbr.rel (%p356) target = $region36
        $region35: #{simsiam_classifier_forward.1} parent=11 // pred_region
          _
        $region36: #{simsiam_classifier_forward.1} parent=11 // pred_fallthru
          _
        // Predicated region
        $region37: #{simsiam_classifier_forward.1} parent=11 // pred_check
          %p359 = pneg %p195
        $region38: #{simsiam_classifier_forward.1} parent=11 // pred_check_branch
          %361 = sbr.rel (%p359) target = $region40
        $region39: #{simsiam_classifier_forward.1} parent=11 // pred_region
          _
        $region40: #{simsiam_classifier_forward.1} parent=11 // pred_fallthru
          _
        // Predicated region
        $region41: #{simsiam_classifier_forward.1} parent=11 // pred_check
          %p362 = pneg %p216
        $region42: #{simsiam_classifier_forward.1} parent=11 // pred_check_branch
          %364 = sbr.rel (%p362) target = $region44
        $region43: #{simsiam_classifier_forward.1} parent=11 // pred_region
          _
        $region44: #{simsiam_classifier_forward.1} parent=11 // pred_fallthru
          _
        // Predicated region
        $region45: #{simsiam_classifier_forward.1} parent=11 // pred_check
          %p365 = pneg %p237
        $region46: #{simsiam_classifier_forward.1} parent=11 // pred_check_branch
          %367 = sbr.rel (%p365) target = $region48
        $region47: #{simsiam_classifier_forward.1} parent=11 // pred_region
          _
        $region48: #{simsiam_classifier_forward.1} parent=11 // pred_fallthru
          _
        // Predicated region
        $region49: #{simsiam_classifier_forward.1} parent=11 // pred_check
          %p368 = pneg %p258
        $region50: #{simsiam_classifier_forward.1} parent=11 // pred_check_branch
          %370 = sbr.rel (%p368) target = $region52
        $region51: #{simsiam_classifier_forward.1} parent=11 // pred_region
          _
        $region52: #{simsiam_classifier_forward.1} parent=11 // pred_fallthru
          _
        // Predicated region
        $region53: #{simsiam_classifier_forward.1} parent=11 // pred_check
          %p371 = pneg %p279
        $region54: #{simsiam_classifier_forward.1} parent=11 // pred_check_branch
          %373 = sbr.rel (%p371) target = $region56
        $region55: #{simsiam_classifier_forward.1} parent=11 // pred_region
          _
        $region56: #{simsiam_classifier_forward.1} parent=11 // pred_fallthru
          _
        // Predicated region
        $region57: #{simsiam_classifier_forward.1} parent=11 // pred_check
          %p374 = pneg %p300
        $region58: #{simsiam_classifier_forward.1} parent=11 // pred_check_branch
          %376 = sbr.rel (%p374) target = $region60
        $region59: #{simsiam_classifier_forward.1} parent=11 // pred_region
          _
        $region60: #{simsiam_classifier_forward.1} parent=11 // pred_fallthru
          _
      $region12: #{simsiam_classifier_forward.1} parent=5 // pred_fallthru
        _
      %p377 = scmp.lt.s32.totalorder %s22, 2
      // Predicated region
      $region61: #{simsiam_classifier_forward.1} parent=5 // pred_check
        %p378 = pneg %p377
      $region62: #{simsiam_classifier_forward.1} parent=5 // pred_check_branch
        %380 = sbr.rel (%p378) target = $region64
      $region63: #{simsiam_classifier_forward.1} parent=5 // pred_region
        // Predicated region
        $region65: #{simsiam_classifier_forward.1} parent=63 // pred_check
          %p381 = pneg %p42
        $region66: #{simsiam_classifier_forward.1} parent=63 // pred_check_branch
          %383 = sbr.rel (%p381) target = $region68
        $region67: #{simsiam_classifier_forward.1} parent=63 // pred_region
          %p384 = scmp.lt.s32.totalorder %s22, 1
          %s385 = scalar_select %p384, %s22, 1
          %s386 = smul.addr %s385, 42
          %s387 = smul.addr %s386, 8
          %s388 = scalar_lea.vmem %s0, %s387
        $region68: #{simsiam_classifier_forward.1} parent=63 // pred_fallthru
          _
      $region64: #{simsiam_classifier_forward.1} parent=5 // pred_fallthru
        _
      %p389 = scmp.le.s32.totalorder 1, %s22
      %p390 = scmp.lt.s32.totalorder %s22, 3
      %p391 = pnand %p389, %p390
      %p392 = pneg %p391
      // Predicated region
      $region69: #{simsiam_classifier_forward.1} parent=5 // pred_check
        _
      $region70: #{simsiam_classifier_forward.1} parent=5 // pred_check_branch
        %394 = sbr.rel (%p391) target = $region72
      $region71: #{simsiam_classifier_forward.1} parent=5 // pred_region
        %s395 = ssub.s32 %s22, 1
        %p396 = scmp.lt.s32.totalorder %s27, 1
        %s397 = scalar_select %p396, %s27, 1
        %s398 = smul.addr %s397, 42
        %s399 = smul.addr %s398, 8
        %s400 = scalar_lea.vmem %s0, %s399
        %p401 = pneg %p48
        %p402 = pneg %p45
        %p403 = pneg %p69
        %p404 = pneg %p66
        %p405 = pneg %p90
        %p406 = pneg %p87
        %p407 = pneg %p111
        %p408 = pneg %p108
        %p409 = pneg %p132
        %p410 = pneg %p129
        %p411 = pneg %p153
        %p412 = pneg %p150
        %p413 = pneg %p174
        %p414 = pneg %p171
        %p415 = pneg %p195
        %p416 = pneg %p192
        %p417 = pneg %p216
        %p418 = pneg %p213
        %p419 = pneg %p237
        %p420 = pneg %p234
        %p421 = pneg %p258
        %p422 = pneg %p255
        %p423 = pneg %p279
        %p424 = pneg %p276
        %p425 = pneg %p300
        %p426 = pneg %p297
        %p427 = pneg %p326
        %p428 = pneg %p323
        %s429 = sand.u32 %s313, 1
        %s430 = scalar_lea.sflag [#allocation7], %s429
        %s431 = sand.u32 %s313, 1
        %s432 = scalar_lea.vmem [#allocation6], %s431
        %p433 = scmp.lt.s32.totalorder %s27, 1
        %s434 = scalar_select %p433, %s27, 1
        %s435 = smul.addr %s434, 42
        %s436 = smul.addr %s435, 8
        %s437 = scalar_lea.vmem %s0, %s436
        %vm438 = vcmask 261120
        %439 = vst.msk [vmem:[#allocation3] sm:$0xff] %vm438, 0.0
        %440 = vst.msk [vmem:[#allocation3 + $0x8] sm:$0xff] %vm438, 0.0
        %441 = vst.msk [vmem:[#allocation3 + $0x10] sm:$0xff] %vm438, 0.0
        %442 = vst.msk [vmem:[#allocation3 + $0x18] sm:$0xff] %vm438, 0.0
        %443 = vst.msk [vmem:[#allocation3 + $0x20] sm:$0xff] %vm438, 0.0
        %444 = vst.msk [vmem:[#allocation3 + $0x28] sm:$0xff] %vm438, 0.0
        %445 = vst.msk [vmem:[#allocation3 + $0x30] sm:$0xff] %vm438, 0.0
        %446 = vst.msk [vmem:[#allocation3 + $0x38] sm:$0xff] %vm438, 0.0
        %447 = vst.msk [vmem:[#allocation3 + $0x40] sm:$0xff] %vm438, 0.0
        %448 = vst.msk [vmem:[#allocation3 + $0x48] sm:$0xff] %vm438, 0.0
        %449 = vst.msk [vmem:[#allocation3 + $0x50] sm:$0xff] %vm438, 0.0
        %450 = vst.msk [vmem:[#allocation3 + $0x58] sm:$0xff] %vm438, 0.0
        %451 = vst.msk [vmem:[#allocation3 + $0x60] sm:$0xff] %vm438, 0.0
        %vm452 = vcmask 257024
        %453 = vst.msk [vmem:[#allocation3 + $0x68] sm:$0xf] %vm452, 0.0
        %454 = vst.msk [vmem:[#allocation4] sm:$0xff] %vm438, 0.0
        %455 = vst.msk [vmem:[#allocation4 + $0x8] sm:$0xff] %vm438, 0.0
        %456 = vst.msk [vmem:[#allocation4 + $0x10] sm:$0xff] %vm438, 0.0
        %457 = vst.msk [vmem:[#allocation4 + $0x18] sm:$0xff] %vm438, 0.0
        %458 = vst.msk [vmem:[#allocation4 + $0x20] sm:$0xff] %vm438, 0.0
        %459 = vst.msk [vmem:[#allocation4 + $0x28] sm:$0xf] %vm452, 0.0
        %460 = vst.msk [vmem:[#allocation5] sm:$0xff] %vm438, 0.0
        %461 = vst.msk [vmem:[#allocation5 + $0x8] sm:$0xff] %vm438, 0.0
        %462 = vst.msk [vmem:[#allocation5 + $0x10] sm:$0xff] %vm438, 0.0
        %v463 = vld [vmem:[%s437] sm:$0xff]
        %v464 = vld [vmem:[%s437 + $0x8] sm:$0xff]
        %v465 = vld [vmem:[%s437 + $0x10] sm:$0xff]
        %v466 = vld [vmem:[%s437 + $0x18] sm:$0xff]
        %v467 = vld [vmem:[%s437 + $0x20] sm:$0xff]
        %v468 = vld [vmem:[%s437 + $0x28] sm:$0xff]
        %v469 = vld [vmem:[%s437 + $0x30] sm:$0xff]
        %v470 = vld [vmem:[%s437 + $0x38] sm:$0xff]
        %v471 = vld [vmem:[%s437 + $0x40] sm:$0xff]
        %v472 = vld [vmem:[%s437 + $0x48] sm:$0xff]
        %v473 = vld [vmem:[%s437 + $0x50] sm:$0xff]
        %v474 = vld [vmem:[%s437 + $0x58] sm:$0xff]
        %v475 = vld [vmem:[%s437 + $0x60] sm:$0xff]
        %v476 = vld [vmem:[%s437 + $0x68] sm:$0xff]
        %v477 = vld [vmem:[%s437 + $0x70] sm:$0xff]
        %v478 = vld [vmem:[%s437 + $0x78] sm:$0xff]
        %v479 = vld [vmem:[%s437 + $0x80] sm:$0xff]
        %v480 = vld [vmem:[%s437 + $0x88] sm:$0xff]
        %v481 = vld [vmem:[%s437 + $0x90] sm:$0xff]
        %v482 = vld [vmem:[%s437 + $0x98] sm:$0xff]
        %v483 = vld [vmem:[%s437 + $0xa0] sm:$0xff]
        %v484 = vld [vmem:[%s437 + $0xa8] sm:$0xff]
        %v485 = vld [vmem:[%s437 + $0xb0] sm:$0xff]
        %v486 = vld [vmem:[%s437 + $0xb8] sm:$0xff]
        %v487 = vld [vmem:[%s437 + $0xc0] sm:$0xff]
        %v488 = vld [vmem:[%s437 + $0xc8] sm:$0xff]
        %v489 = vld [vmem:[%s437 + $0xd0] sm:$0xff]
        %v490 = vld [vmem:[%s437 + $0xd8] sm:$0xff]
        %v491 = vld [vmem:[%s437 + $0xe0] sm:$0xff]
        %v492 = vld [vmem:[%s437 + $0xe8] sm:$0xff]
        %v493 = vld [vmem:[%s437 + $0xf0] sm:$0xff]
        %v494 = vld [vmem:[%s437 + $0xf8] sm:$0xff]
        %v495 = vld [vmem:[%s437 + $0x100] sm:$0xff]
        %v496 = vld [vmem:[%s437 + $0x108] sm:$0xff]
        %v497 = vld [vmem:[%s437 + $0x110] sm:$0xff]
        %v498 = vld [vmem:[%s437 + $0x118] sm:$0xff]
        %v499 = vld [vmem:[%s1] sm:$0xff]
        %v500 = vld [vmem:[%s437 + $0x1] sm:$0xff]
        %v501 = vld [vmem:[%s437 + $0x9] sm:$0xff]
        %v502 = vld [vmem:[%s437 + $0x11] sm:$0xff]
        %v503 = vld [vmem:[%s437 + $0x19] sm:$0xff]
        %v504 = vld [vmem:[%s437 + $0x21] sm:$0xff]
        %v505 = vld [vmem:[%s437 + $0x29] sm:$0xff]
        %v506 = vld [vmem:[%s437 + $0x31] sm:$0xff]
        %v507 = vld [vmem:[%s437 + $0x39] sm:$0xff]
        %v508 = vld [vmem:[%s437 + $0x41] sm:$0xff]
        %v509 = vld [vmem:[%s437 + $0x49] sm:$0xff]
        %v510 = vld [vmem:[%s437 + $0x51] sm:$0xff]
        %v511 = vld [vmem:[%s437 + $0x59] sm:$0xff]
        %v512 = vld [vmem:[%s437 + $0x61] sm:$0xff]
        %v513 = vld [vmem:[%s437 + $0x69] sm:$0xff]
        %v514 = vld [vmem:[%s437 + $0x71] sm:$0xff]
        %v515 = vld [vmem:[%s437 + $0x79] sm:$0xff]
        %v516 = vld [vmem:[%s437 + $0x81] sm:$0xff]
        %v517 = vld [vmem:[%s437 + $0x89] sm:$0xff]
        %v518 = vld [vmem:[%s437 + $0x91] sm:$0xff]
        %v519 = vld [vmem:[%s437 + $0x99] sm:$0xff]
        %v520 = vld [vmem:[%s437 + $0xa1] sm:$0xff]
        %v521 = vld [vmem:[%s437 + $0xa9] sm:$0xff]
        %v522 = vld [vmem:[%s437 + $0xb1] sm:$0xff]
        %v523 = vld [vmem:[%s437 + $0xb9] sm:$0xff]
        %v524 = vld [vmem:[%s437 + $0xc1] sm:$0xff]
        %v525 = vld [vmem:[%s437 + $0xc9] sm:$0xff]
        %v526 = vld [vmem:[%s437 + $0xd1] sm:$0xff]
        %v527 = vld [vmem:[%s437 + $0xd9] sm:$0xff]
        %v528 = vld [vmem:[%s437 + $0xe1] sm:$0xff]
        %v529 = vld [vmem:[%s437 + $0xe9] sm:$0xff]
        %v530 = vld [vmem:[%s437 + $0xf1] sm:$0xff]
        %v531 = vld [vmem:[%s437 + $0xf9] sm:$0xff]
        %v532 = vld [vmem:[%s437 + $0x101] sm:$0xff]
        %v533 = vld [vmem:[%s437 + $0x109] sm:$0xff]
        %v534 = vld [vmem:[%s437 + $0x111] sm:$0xff]
        %v535 = vld [vmem:[%s437 + $0x119] sm:$0xff]
        %s536 = scalar_lea.vmem %s1, 8
        %v537 = vld [vmem:[%s536] sm:$0xff]
        %vm538 = vcmask 64512
        %v540 = vsel %vm538, %v500, 0
        %v543 = vsel %vm538, %v501, 0
        %v546 = vsel %vm538, %v502, 0
        %v549 = vsel %vm538, %v503, 0
        %v552 = vsel %vm538, %v504, 0
        %v555 = vsel %vm538, %v505, 0
        %v558 = vsel %vm538, %v506, 0
        %v561 = vsel %vm538, %v507, 0
        %v564 = vsel %vm538, %v508, 0
        %v567 = vsel %vm538, %v509, 0
        %v570 = vsel %vm538, %v510, 0
        %v573 = vsel %vm538, %v511, 0
        %v576 = vsel %vm538, %v512, 0
        %v579 = vsel %vm538, %v513, 0
        %v582 = vsel %vm538, %v514, 0
        %v585 = vsel %vm538, %v515, 0
        %v588 = vsel %vm538, %v516, 0
        %v591 = vsel %vm538, %v517, 0
        %v594 = vsel %vm538, %v518, 0
        %v597 = vsel %vm538, %v519, 0
        %v600 = vsel %vm538, %v520, 0
        %v603 = vsel %vm538, %v521, 0
        %v606 = vsel %vm538, %v522, 0
        %v609 = vsel %vm538, %v523, 0
        %v612 = vsel %vm538, %v524, 0
        %v615 = vsel %vm538, %v525, 0
        %v618 = vsel %vm538, %v526, 0
        %v621 = vsel %vm538, %v527, 0
        %v624 = vsel %vm538, %v528, 0
        %v627 = vsel %vm538, %v529, 0
        %v630 = vsel %vm538, %v530, 0
        %v633 = vsel %vm538, %v531, 0
        %v636 = vsel %vm538, %v532, 0
        %v639 = vsel %vm538, %v533, 0
        %v642 = vsel %vm538, %v534, 0
        %v645 = vsel %vm538, %v535, 0
        %647 = vmatprep.subr.mxu0 0.0
        %648 = vmatpush1.msra.mxu0 %v537
        %649 = vmatprep.subr.mxu0 0.0
        %650 = vmatpush1.msra.mxu0 0.0
        %651 = vmatprep.subr.mxu0 0.0
        %652 = vmatpush1.msra.mxu0 0.0
        %653 = vmatprep.subr.mxu0 0.0
        %654 = vmatpush1.msra.mxu0 0.0
        %655 = vmatprep.subr.mxu0 0.0
        %656 = vmatpush1.msra.mxu0 0.0
        %657 = vmatprep.subr.mxu0 0.0
        %658 = vmatpush1.msra.mxu0 0.0
        %659 = vmatprep.subr.mxu0 0.0
        %660 = vmatpush1.msra.mxu0 0.0
        %661 = vmatprep.subr.mxu0 0.0
        %662 = vmatpush1.msra.mxu0 0.0
        %663 = vmatprep.subr.mxu0 0.0
        %664 = vmatpush1.msra.mxu0 0.0
        %665 = vmatprep.subr.mxu0 0.0
        %666 = vmatpush1.msra.mxu0 0.0
        %667 = vmatprep.subr.mxu0 0.0
        %668 = vmatpush1.msra.mxu0 0.0
        %669 = vmatprep.subr.mxu0 0.0
        %670 = vmatpush1.msra.mxu0 0.0
        %671 = vmatprep.subr.mxu0 0.0
        %672 = vmatpush1.msra.mxu0 0.0
        %673 = vmatprep.subr.mxu0 0.0
        %674 = vmatpush1.msra.mxu0 0.0
        %675 = vmatprep.subr.mxu0 0.0
        %676 = vmatpush1.msra.mxu0 0.0
        %677 = vmatprep.subr.mxu0 0.0
        %678 = vmatpush1.msra.mxu0 0.0
        %679 = vmatprep.subr.mxu0 0.0
        %680 = vmatpush1.msra.mxu0 0.0
        %681 = vmatprep.subr.mxu0 0.0
        %682 = vmatpush1.msra.mxu0 0.0
        %683 = vmatprep.subr.mxu0 0.0
        %684 = vmatpush1.msra.mxu0 0.0
        %685 = vmatprep.subr.mxu0 0.0
        %686 = vmatpush1.msra.mxu0 0.0
        %687 = vmatprep.subr.mxu0 0.0
        %688 = vmatpush1.msra.mxu0 0.0
        %689 = vmatprep.subr.mxu0 0.0
        %690 = vmatpush1.msra.mxu0 0.0
        %691 = vmatprep.subr.mxu0 0.0
        %692 = vmatpush1.msra.mxu0 0.0
        %693 = vmatprep.subr.mxu0 0.0
        %694 = vmatpush1.msra.mxu0 0.0
        %695 = vmatprep.subr.mxu0 0.0
        %696 = vmatpush1.msra.mxu0 0.0
        %697 = vmatprep.subr.mxu0 0.0
        %698 = vmatpush1.msra.mxu0 0.0
        %699 = vmatprep.subr.mxu0 0.0
        %700 = vmatpush1.msra.mxu0 0.0
        %701 = vmatprep.subr.mxu0 0.0
        %702 = vmatpush1.msra.mxu0 0.0
        %703 = vmatprep.subr.mxu0 0.0
        %704 = vmatpush1.msra.mxu0 0.0
        %705 = vmatprep.subr.mxu0 0.0
        %706 = vmatpush1.msra.mxu0 0.0
        %707 = vmatprep.subr.mxu0 0.0
        %708 = vmatpush1.msra.mxu0 0.0
        %709 = vmatprep.subr.mxu0 0.0
        %710 = vmatpush1.msra.mxu0 0.0
        %711 = vmatprep.mubr.f32.mxu0 0.0
        %712 = vmatmul.mubr.f32.gmra.mrb[0].mxu0 %v540
        %v713 = vpop.f32.mrb[0].mxu0
        %v714 = vadd.f32 0.0, %v713
        %v715 = vpop.f32.mrb[0].mxu0
        %716 = vmatprep.mubr.f32.mxu0 0.0
        %717 = vmatmul.mubr.f32.gmra.mrb[0].mxu0 %v543
        %v718 = vpop.f32.mrb[0].mxu0
        %v719 = vadd.f32 0.0, %v718
        %v720 = vpop.f32.mrb[0].mxu0
        %721 = vmatprep.mubr.f32.mxu0 0.0
        %722 = vmatmul.mubr.f32.gmra.mrb[0].mxu0 %v546
        %v723 = vpop.f32.mrb[0].mxu0
        %v724 = vadd.f32 0.0, %v723
        %v725 = vpop.f32.mrb[0].mxu0
        %726 = vmatprep.mubr.f32.mxu0 0.0
        %727 = vmatmul.mubr.f32.gmra.mrb[0].mxu0 %v549
        %v728 = vpop.f32.mrb[0].mxu0
        %v729 = vadd.f32 0.0, %v728
        %v730 = vpop.f32.mrb[0].mxu0
        %731 = vmatprep.mubr.f32.mxu0 0.0
        %732 = vmatmul.mubr.f32.gmra.mrb[0].mxu0 %v552
        %v733 = vpop.f32.mrb[0].mxu0
        %v734 = vadd.f32 0.0, %v733
        %v735 = vpop.f32.mrb[0].mxu0
        %736 = vmatprep.mubr.f32.mxu0 0.0
        %737 = vmatmul.mubr.f32.gmra.mrb[0].mxu0 %v555
        %v738 = vpop.f32.mrb[0].mxu0
        %v739 = vadd.f32 0.0, %v738
        %v740 = vpop.f32.mrb[0].mxu0
        %741 = vmatprep.mubr.f32.mxu0 0.0
        %742 = vmatmul.mubr.f32.gmra.mrb[0].mxu0 %v558
        %v743 = vpop.f32.mrb[0].mxu0
        %v744 = vadd.f32 0.0, %v743
        %v745 = vpop.f32.mrb[0].mxu0
        %746 = vmatprep.mubr.f32.mxu0 0.0
        %747 = vmatmul.mubr.f32.gmra.mrb[0].mxu0 %v561
        %v748 = vpop.f32.mrb[0].mxu0
        %v749 = vadd.f32 0.0, %v748
        %v750 = vpop.f32.mrb[0].mxu0
        %751 = vmatprep.mubr.f32.mxu0 0.0
        %752 = vmatmul.mubr.f32.gmra.mrb[0].mxu0 %v564
        %v753 = vpop.f32.mrb[0].mxu0
        %v754 = vadd.f32 0.0, %v753
        %v755 = vpop.f32.mrb[0].mxu0
        %756 = vmatprep.mubr.f32.mxu0 0.0
        %757 = vmatmul.mubr.f32.gmra.mrb[0].mxu0 %v567
        %v758 = vpop.f32.mrb[0].mxu0
        %v759 = vadd.f32 0.0, %v758
        %v760 = vpop.f32.mrb[0].mxu0
        %761 = vmatprep.mubr.f32.mxu0 0.0
        %762 = vmatmul.mubr.f32.gmra.mrb[0].mxu0 %v570
        %v763 = vpop.f32.mrb[0].mxu0
        %v764 = vadd.f32 0.0, %v763
        %v765 = vpop.f32.mrb[0].mxu0
        %766 = vmatprep.mubr.f32.mxu0 0.0
        %767 = vmatmul.mubr.f32.gmra.mrb[0].mxu0 %v573
        %v768 = vpop.f32.mrb[0].mxu0
        %v769 = vadd.f32 0.0, %v768
        %v770 = vpop.f32.mrb[0].mxu0
        %771 = vmatprep.mubr.f32.mxu0 0.0
        %772 = vmatmul.mubr.f32.gmra.mrb[0].mxu0 %v576
        %v773 = vpop.f32.mrb[0].mxu0
        %v774 = vadd.f32 0.0, %v773
        %v775 = vpop.f32.mrb[0].mxu0
        %776 = vmatprep.mubr.f32.mxu0 0.0
        %777 = vmatmul.mubr.f32.gmra.mrb[0].mxu0 %v579
        %v778 = vpop.f32.mrb[0].mxu0
        %v779 = vadd.f32 0.0, %v778
        %v780 = vpop.f32.mrb[0].mxu0
        %781 = vmatprep.mubr.f32.mxu0 0.0
        %782 = vmatmul.mubr.f32.gmra.mrb[0].mxu0 %v582
        %v783 = vpop.f32.mrb[0].mxu0
        %v784 = vadd.f32 0.0, %v783
        %v785 = vpop.f32.mrb[0].mxu0
        %786 = vmatprep.mubr.f32.mxu0 0.0
        %787 = vmatmul.mubr.f32.gmra.mrb[0].mxu0 %v585
        %v788 = vpop.f32.mrb[0].mxu0
        %v789 = vadd.f32 0.0, %v788
        %v790 = vpop.f32.mrb[0].mxu0
        %791 = vmatprep.mubr.f32.mxu0 0.0
        %792 = vmatmul.mubr.f32.gmra.mrb[0].mxu0 %v588
        %v793 = vpop.f32.mrb[0].mxu0
        %v794 = vadd.f32 0.0, %v793
        %v795 = vpop.f32.mrb[0].mxu0
        %796 = vmatprep.mubr.f32.mxu0 0.0
        %797 = vmatmul.mubr.f32.gmra.mrb[0].mxu0 %v591
        %v798 = vpop.f32.mrb[0].mxu0
        %v799 = vadd.f32 0.0, %v798
        %v800 = vpop.f32.mrb[0].mxu0
        %801 = vmatprep.mubr.f32.mxu0 0.0
        %802 = vmatmul.mubr.f32.gmra.mrb[0].mxu0 %v594
        %v803 = vpop.f32.mrb[0].mxu0
        %v804 = vadd.f32 0.0, %v803
        %v805 = vpop.f32.mrb[0].mxu0
        %806 = vmatprep.mubr.f32.mxu0 0.0
        %807 = vmatmul.mubr.f32.gmra.mrb[0].mxu0 %v597
        %v808 = vpop.f32.mrb[0].mxu0
        %v809 = vadd.f32 0.0, %v808
        %v810 = vpop.f32.mrb[0].mxu0
        %811 = vmatprep.mubr.f32.mxu0 0.0
        %812 = vmatmul.mubr.f32.gmra.mrb[0].mxu0 %v600
        %v813 = vpop.f32.mrb[0].mxu0
        %v814 = vadd.f32 0.0, %v813
        %v815 = vpop.f32.mrb[0].mxu0
        %816 = vmatprep.mubr.f32.mxu0 0.0
        %817 = vmatmul.mubr.f32.gmra.mrb[0].mxu0 %v603
        %v818 = vpop.f32.mrb[0].mxu0
        %v819 = vadd.f32 0.0, %v818
        %v820 = vpop.f32.mrb[0].mxu0
        %821 = vmatprep.mubr.f32.mxu0 0.0
        %822 = vmatmul.mubr.f32.gmra.mrb[0].mxu0 %v606
        %v823 = vpop.f32.mrb[0].mxu0
        %v824 = vadd.f32 0.0, %v823
        %v825 = vpop.f32.mrb[0].mxu0
        %826 = vmatprep.mubr.f32.mxu0 0.0
        %827 = vmatmul.mubr.f32.gmra.mrb[0].mxu0 %v609
        %v828 = vpop.f32.mrb[0].mxu0
        %v829 = vadd.f32 0.0, %v828
        %v830 = vpop.f32.mrb[0].mxu0
        %831 = vmatprep.mubr.f32.mxu0 0.0
        %832 = vmatmul.mubr.f32.gmra.mrb[0].mxu0 %v612
        %v833 = vpop.f32.mrb[0].mxu0
        %v834 = vadd.f32 0.0, %v833
        %v835 = vpop.f32.mrb[0].mxu0
        %836 = vmatprep.mubr.f32.mxu0 0.0
        %837 = vmatmul.mubr.f32.gmra.mrb[0].mxu0 %v615
        %v838 = vpop.f32.mrb[0].mxu0
        %v839 = vadd.f32 0.0, %v838
        %v840 = vpop.f32.mrb[0].mxu0
        %841 = vmatprep.mubr.f32.mxu0 0.0
        %842 = vmatmul.mubr.f32.gmra.mrb[0].mxu0 %v618
        %v843 = vpop.f32.mrb[0].mxu0
        %v844 = vadd.f32 0.0, %v843
        %v845 = vpop.f32.mrb[0].mxu0
        %846 = vmatprep.mubr.f32.mxu0 0.0
        %847 = vmatmul.mubr.f32.gmra.mrb[0].mxu0 %v621
        %v848 = vpop.f32.mrb[0].mxu0
        %v849 = vadd.f32 0.0, %v848
        %v850 = vpop.f32.mrb[0].mxu0
        %851 = vmatprep.mubr.f32.mxu0 0.0
        %852 = vmatmul.mubr.f32.gmra.mrb[0].mxu0 %v624
        %v853 = vpop.f32.mrb[0].mxu0
        %v854 = vadd.f32 0.0, %v853
        %v855 = vpop.f32.mrb[0].mxu0
        %856 = vmatprep.mubr.f32.mxu0 0.0
        %857 = vmatmul.mubr.f32.gmra.mrb[0].mxu0 %v627
        %v858 = vpop.f32.mrb[0].mxu0
        %v859 = vadd.f32 0.0, %v858
        %v860 = vpop.f32.mrb[0].mxu0
        %861 = vmatprep.mubr.f32.mxu0 0.0
        %862 = vmatmul.mubr.f32.gmra.mrb[0].mxu0 %v630
        %v863 = vpop.f32.mrb[0].mxu0
        %v864 = vadd.f32 0.0, %v863
        %v865 = vpop.f32.mrb[0].mxu0
        %866 = vmatprep.mubr.f32.mxu0 0.0
        %867 = vmatmul.mubr.f32.gmra.mrb[0].mxu0 %v633
        %v868 = vpop.f32.mrb[0].mxu0
        %v869 = vadd.f32 0.0, %v868
        %v870 = vpop.f32.mrb[0].mxu0
        %871 = vmatprep.mubr.f32.mxu0 0.0
        %872 = vmatmul.mubr.f32.gmra.mrb[0].mxu0 %v636
        %v873 = vpop.f32.mrb[0].mxu0
        %v874 = vadd.f32 0.0, %v873
        %v875 = vpop.f32.mrb[0].mxu0
        %876 = vmatprep.mubr.f32.mxu0 0.0
        %877 = vmatmul.mubr.f32.gmra.mrb[0].mxu0 %v639
        %v878 = vpop.f32.mrb[0].mxu0
        %v879 = vadd.f32 0.0, %v878
        %v880 = vpop.f32.mrb[0].mxu0
        %881 = vmatprep.mubr.f32.mxu0 0.0
        %882 = vmatmul.mubr.f32.gmra.mrb[0].mxu0 %v642
        %v883 = vpop.f32.mrb[0].mxu0
        %v884 = vadd.f32 0.0, %v883
        %v885 = vpop.f32.mrb[0].mxu0
        %886 = vmatprep.mubr.f32.mxu0 0.0
        %887 = vmatmul.mubr.f32.gmra.mrb[0].mxu0 %v645
        %v888 = vpop.f32.mrb[0].mxu0
        %v889 = vadd.f32 0.0, %v888
        %v890 = vpop.f32.mrb[0].mxu0
        %891 = vdwg.mxu0
        %v893 = vsel %vm538, %v463, 0
        %v896 = vsel %vm538, %v464, 0
        %v899 = vsel %vm538, %v465, 0
        %v902 = vsel %vm538, %v466, 0
        %v905 = vsel %vm538, %v467, 0
        %v908 = vsel %vm538, %v468, 0
        %v911 = vsel %vm538, %v469, 0
        %v914 = vsel %vm538, %v470, 0
        %v917 = vsel %vm538, %v471, 0
        %v920 = vsel %vm538, %v472, 0
        %v923 = vsel %vm538, %v473, 0
        %v926 = vsel %vm538, %v474, 0
        %v929 = vsel %vm538, %v475, 0
        %v932 = vsel %vm538, %v476, 0
        %v935 = vsel %vm538, %v477, 0
        %v938 = vsel %vm538, %v478, 0
        %v941 = vsel %vm538, %v479, 0
        %v944 = vsel %vm538, %v480, 0
        %v947 = vsel %vm538, %v481, 0
        %v950 = vsel %vm538, %v482, 0
        %v953 = vsel %vm538, %v483, 0
        %v956 = vsel %vm538, %v484, 0
        %v959 = vsel %vm538, %v485, 0
        %v962 = vsel %vm538, %v486, 0
        %v965 = vsel %vm538, %v487, 0
        %v968 = vsel %vm538, %v488, 0
        %v971 = vsel %vm538, %v489, 0
        %v974 = vsel %vm538, %v490, 0
        %v977 = vsel %vm538, %v491, 0
        %v980 = vsel %vm538, %v492, 0
        %v983 = vsel %vm538, %v493, 0
        %v986 = vsel %vm538, %v494, 0
        %v989 = vsel %vm538, %v495, 0
        %v992 = vsel %vm538, %v496, 0
        %v995 = vsel %vm538, %v497, 0
        %v998 = vsel %vm538, %v498, 0
        %1000 = vmatprep.subr.mxu0 0.0
        %1001 = vmatpush1.msra.mxu0 %v499
        %1002 = vmatprep.subr.mxu0 0.0
        %1003 = vmatpush1.msra.mxu0 0.0
        %1004 = vmatprep.subr.mxu0 0.0
        %1005 = vmatpush1.msra.mxu0 0.0
        %1006 = vmatprep.subr.mxu0 0.0
        %1007 = vmatpush1.msra.mxu0 0.0
        %1008 = vmatprep.subr.mxu0 0.0
        %1009 = vmatpush1.msra.mxu0 0.0
        %1010 = vmatprep.subr.mxu0 0.0
        %1011 = vmatpush1.msra.mxu0 0.0
        %1012 = vmatprep.subr.mxu0 0.0
        %1013 = vmatpush1.msra.mxu0 0.0
        %1014 = vmatprep.subr.mxu0 0.0
        %1015 = vmatpush1.msra.mxu0 0.0
        %1016 = vmatprep.subr.mxu0 0.0
        %1017 = vmatpush1.msra.mxu0 0.0
        %1018 = vmatprep.subr.mxu0 0.0
        %1019 = vmatpush1.msra.mxu0 0.0
        %1020 = vmatprep.subr.mxu0 0.0
        %1021 = vmatpush1.msra.mxu0 0.0
        %1022 = vmatprep.subr.mxu0 0.0
        %1023 = vmatpush1.msra.mxu0 0.0
        %1024 = vmatprep.subr.mxu0 0.0
        %1025 = vmatpush1.msra.mxu0 0.0
        %1026 = vmatprep.subr.mxu0 0.0
        %1027 = vmatpush1.msra.mxu0 0.0
        %1028 = vmatprep.subr.mxu0 0.0
        %1029 = vmatpush1.msra.mxu0 0.0
        %1030 = vmatprep.subr.mxu0 0.0
        %1031 = vmatpush1.msra.mxu0 0.0
        %1032 = vmatprep.subr.mxu0 0.0
        %1033 = vmatpush1.msra.mxu0 0.0
        %1034 = vmatprep.subr.mxu0 0.0
        %1035 = vmatpush1.msra.mxu0 0.0
        %1036 = vmatprep.subr.mxu0 0.0
        %1037 = vmatpush1.msra.mxu0 0.0
        %1038 = vmatprep.subr.mxu0 0.0
        %1039 = vmatpush1.msra.mxu0 0.0
        %1040 = vmatprep.subr.mxu0 0.0
        %1041 = vmatpush1.msra.mxu0 0.0
        %1042 = vmatprep.subr.mxu0 0.0
        %1043 = vmatpush1.msra.mxu0 0.0
        %1044 = vmatprep.subr.mxu0 0.0
        %1045 = vmatpush1.msra.mxu0 0.0
        %1046 = vmatprep.subr.mxu0 0.0
        %1047 = vmatpush1.msra.mxu0 0.0
        %1048 = vmatprep.subr.mxu0 0.0
        %1049 = vmatpush1.msra.mxu0 0.0
        %1050 = vmatprep.subr.mxu0 0.0
        %1051 = vmatpush1.msra.mxu0 0.0
        %1052 = vmatprep.subr.mxu0 0.0
        %1053 = vmatpush1.msra.mxu0 0.0
        %1054 = vmatprep.subr.mxu0 0.0
        %1055 = vmatpush1.msra.mxu0 0.0
        %1056 = vmatprep.subr.mxu0 0.0
        %1057 = vmatpush1.msra.mxu0 0.0
        %1058 = vmatprep.subr.mxu0 0.0
        %1059 = vmatpush1.msra.mxu0 0.0
        %1060 = vmatprep.subr.mxu0 0.0
        %1061 = vmatpush1.msra.mxu0 0.0
        %1062 = vmatprep.subr.mxu0 0.0
        %1063 = vmatpush1.msra.mxu0 0.0
        %1064 = vmatprep.mubr.f32.mxu0 0.0
        %1065 = vmatmul.mubr.f32.gmra.mrb[0].mxu0 %v893
        %v1066 = vpop.f32.mrb[0].mxu0
        %v1067 = vadd.f32 %v714, %v1066
        %v1068 = vpop.f32.mrb[0].mxu0
        %1069 = vmatprep.mubr.f32.mxu0 0.0
        %1070 = vmatmul.mubr.f32.gmra.mrb[0].mxu0 %v896
        %v1071 = vpop.f32.mrb[0].mxu0
        %v1072 = vadd.f32 %v719, %v1071
        %v1073 = vpop.f32.mrb[0].mxu0
        %1074 = vmatprep.mubr.f32.mxu0 0.0
        %1075 = vmatmul.mubr.f32.gmra.mrb[0].mxu0 %v899
        %v1076 = vpop.f32.mrb[0].mxu0
        %v1077 = vadd.f32 %v724, %v1076
        %v1078 = vpop.f32.mrb[0].mxu0
        %1079 = vmatprep.mubr.f32.mxu0 0.0
        %1080 = vmatmul.mubr.f32.gmra.mrb[0].mxu0 %v902
        %v1081 = vpop.f32.mrb[0].mxu0
        %v1082 = vadd.f32 %v729, %v1081
        %v1083 = vpop.f32.mrb[0].mxu0
        %1084 = vmatprep.mubr.f32.mxu0 0.0
        %1085 = vmatmul.mubr.f32.gmra.mrb[0].mxu0 %v905
        %v1086 = vpop.f32.mrb[0].mxu0
        %v1087 = vadd.f32 %v734, %v1086
        %v1088 = vpop.f32.mrb[0].mxu0
        %1089 = vmatprep.mubr.f32.mxu0 0.0
        %1090 = vmatmul.mubr.f32.gmra.mrb[0].mxu0 %v908
        %v1091 = vpop.f32.mrb[0].mxu0
        %v1092 = vadd.f32 %v739, %v1091
        %v1093 = vpop.f32.mrb[0].mxu0
        %1094 = vmatprep.mubr.f32.mxu0 0.0
        %1095 = vmatmul.mubr.f32.gmra.mrb[0].mxu0 %v911
        %v1096 = vpop.f32.mrb[0].mxu0
        %v1097 = vadd.f32 %v744, %v1096
        %v1098 = vpop.f32.mrb[0].mxu0
        %1099 = vmatprep.mubr.f32.mxu0 0.0
        %1100 = vmatmul.mubr.f32.gmra.mrb[0].mxu0 %v914
        %v1101 = vpop.f32.mrb[0].mxu0
        %v1102 = vadd.f32 %v749, %v1101
        %v1103 = vpop.f32.mrb[0].mxu0
        %1104 = vmatprep.mubr.f32.mxu0 0.0
        %1105 = vmatmul.mubr.f32.gmra.mrb[0].mxu0 %v917
        %v1106 = vpop.f32.mrb[0].mxu0
        %v1107 = vadd.f32 %v754, %v1106
        %v1108 = vpop.f32.mrb[0].mxu0
        %1109 = vmatprep.mubr.f32.mxu0 0.0
        %1110 = vmatmul.mubr.f32.gmra.mrb[0].mxu0 %v920
        %v1111 = vpop.f32.mrb[0].mxu0
        %v1112 = vadd.f32 %v759, %v1111
        %v1113 = vpop.f32.mrb[0].mxu0
        %1114 = vmatprep.mubr.f32.mxu0 0.0
        %1115 = vmatmul.mubr.f32.gmra.mrb[0].mxu0 %v923
        %v1116 = vpop.f32.mrb[0].mxu0
        %v1117 = vadd.f32 %v764, %v1116
        %v1118 = vpop.f32.mrb[0].mxu0
        %1119 = vmatprep.mubr.f32.mxu0 0.0
        %1120 = vmatmul.mubr.f32.gmra.mrb[0].mxu0 %v926
        %v1121 = vpop.f32.mrb[0].mxu0
        %v1122 = vadd.f32 %v769, %v1121
        %v1123 = vpop.f32.mrb[0].mxu0
        %1124 = vmatprep.mubr.f32.mxu0 0.0
        %1125 = vmatmul.mubr.f32.gmra.mrb[0].mxu0 %v929
        %v1126 = vpop.f32.mrb[0].mxu0
        %v1127 = vadd.f32 %v774, %v1126
        %v1128 = vpop.f32.mrb[0].mxu0
        %1129 = vmatprep.mubr.f32.mxu0 0.0
        %1130 = vmatmul.mubr.f32.gmra.mrb[0].mxu0 %v932
        %v1131 = vpop.f32.mrb[0].mxu0
        %v1132 = vadd.f32 %v779, %v1131
        %v1133 = vpop.f32.mrb[0].mxu0
        %1134 = vmatprep.mubr.f32.mxu0 0.0
        %1135 = vmatmul.mubr.f32.gmra.mrb[0].mxu0 %v935
        %v1136 = vpop.f32.mrb[0].mxu0
        %v1137 = vadd.f32 %v784, %v1136
        %v1138 = vpop.f32.mrb[0].mxu0
        %1139 = vmatprep.mubr.f32.mxu0 0.0
        %1140 = vmatmul.mubr.f32.gmra.mrb[0].mxu0 %v938
        %v1141 = vpop.f32.mrb[0].mxu0
        %v1142 = vadd.f32 %v789, %v1141
        %v1143 = vpop.f32.mrb[0].mxu0
        %1144 = vmatprep.mubr.f32.mxu0 0.0
        %1145 = vmatmul.mubr.f32.gmra.mrb[0].mxu0 %v941
        %v1146 = vpop.f32.mrb[0].mxu0
        %v1147 = vadd.f32 %v794, %v1146
        %v1148 = vpop.f32.mrb[0].mxu0
        %1149 = vmatprep.mubr.f32.mxu0 0.0
        %1150 = vmatmul.mubr.f32.gmra.mrb[0].mxu0 %v944
        %v1151 = vpop.f32.mrb[0].mxu0
        %v1152 = vadd.f32 %v799, %v1151
        %v1153 = vpop.f32.mrb[0].mxu0
        %1154 = vmatprep.mubr.f32.mxu0 0.0
        %1155 = vmatmul.mubr.f32.gmra.mrb[0].mxu0 %v947
        %v1156 = vpop.f32.mrb[0].mxu0
        %v1157 = vadd.f32 %v804, %v1156
        %v1158 = vpop.f32.mrb[0].mxu0
        %1159 = vmatprep.mubr.f32.mxu0 0.0
        %1160 = vmatmul.mubr.f32.gmra.mrb[0].mxu0 %v950
        %v1161 = vpop.f32.mrb[0].mxu0
        %v1162 = vadd.f32 %v809, %v1161
        %v1163 = vpop.f32.mrb[0].mxu0
        %1164 = vmatprep.mubr.f32.mxu0 0.0
        %1165 = vmatmul.mubr.f32.gmra.mrb[0].mxu0 %v953
        %v1166 = vpop.f32.mrb[0].mxu0
        %v1167 = vadd.f32 %v814, %v1166
        %v1168 = vpop.f32.mrb[0].mxu0
        %1169 = vmatprep.mubr.f32.mxu0 0.0
        %1170 = vmatmul.mubr.f32.gmra.mrb[0].mxu0 %v956
        %v1171 = vpop.f32.mrb[0].mxu0
        %v1172 = vadd.f32 %v819, %v1171
        %v1173 = vpop.f32.mrb[0].mxu0
        %1174 = vmatprep.mubr.f32.mxu0 0.0
        %1175 = vmatmul.mubr.f32.gmra.mrb[0].mxu0 %v959
        %v1176 = vpop.f32.mrb[0].mxu0
        %v1177 = vadd.f32 %v824, %v1176
        %v1178 = vpop.f32.mrb[0].mxu0
        %1179 = vmatprep.mubr.f32.mxu0 0.0
        %1180 = vmatmul.mubr.f32.gmra.mrb[0].mxu0 %v962
        %v1181 = vpop.f32.mrb[0].mxu0
        %v1182 = vadd.f32 %v829, %v1181
        %v1183 = vpop.f32.mrb[0].mxu0
        %1184 = vmatprep.mubr.f32.mxu0 0.0
        %1185 = vmatmul.mubr.f32.gmra.mrb[0].mxu0 %v965
        %v1186 = vpop.f32.mrb[0].mxu0
        %v1187 = vadd.f32 %v834, %v1186
        %v1188 = vpop.f32.mrb[0].mxu0
        %1189 = vmatprep.mubr.f32.mxu0 0.0
        %1190 = vmatmul.mubr.f32.gmra.mrb[0].mxu0 %v968
        %v1191 = vpop.f32.mrb[0].mxu0
        %v1192 = vadd.f32 %v839, %v1191
        %v1193 = vpop.f32.mrb[0].mxu0
        %1194 = vmatprep.mubr.f32.mxu0 0.0
        %1195 = vmatmul.mubr.f32.gmra.mrb[0].mxu0 %v971
        %v1196 = vpop.f32.mrb[0].mxu0
        %v1197 = vadd.f32 %v844, %v1196
        %v1198 = vpop.f32.mrb[0].mxu0
        %1199 = vmatprep.mubr.f32.mxu0 0.0
        %1200 = vmatmul.mubr.f32.gmra.mrb[0].mxu0 %v974
        %v1201 = vpop.f32.mrb[0].mxu0
        %v1202 = vadd.f32 %v849, %v1201
        %v1203 = vpop.f32.mrb[0].mxu0
        %1204 = vmatprep.mubr.f32.mxu0 0.0
        %1205 = vmatmul.mubr.f32.gmra.mrb[0].mxu0 %v977
        %v1206 = vpop.f32.mrb[0].mxu0
        %v1207 = vadd.f32 %v854, %v1206
        %v1208 = vpop.f32.mrb[0].mxu0
        %1209 = vmatprep.mubr.f32.mxu0 0.0
        %1210 = vmatmul.mubr.f32.gmra.mrb[0].mxu0 %v980
        %v1211 = vpop.f32.mrb[0].mxu0
        %v1212 = vadd.f32 %v859, %v1211
        %v1213 = vpop.f32.mrb[0].mxu0
        %1214 = vmatprep.mubr.f32.mxu0 0.0
        %1215 = vmatmul.mubr.f32.gmra.mrb[0].mxu0 %v983
        %v1216 = vpop.f32.mrb[0].mxu0
        %v1217 = vadd.f32 %v864, %v1216
        %v1218 = vpop.f32.mrb[0].mxu0
        %1219 = vmatprep.mubr.f32.mxu0 0.0
        %1220 = vmatmul.mubr.f32.gmra.mrb[0].mxu0 %v986
        %v1221 = vpop.f32.mrb[0].mxu0
        %v1222 = vadd.f32 %v869, %v1221
        %v1223 = vpop.f32.mrb[0].mxu0
        %1224 = vmatprep.mubr.f32.mxu0 0.0
        %1225 = vmatmul.mubr.f32.gmra.mrb[0].mxu0 %v989
        %v1226 = vpop.f32.mrb[0].mxu0
        %v1227 = vadd.f32 %v874, %v1226
        %v1228 = vpop.f32.mrb[0].mxu0
        %1229 = vmatprep.mubr.f32.mxu0 0.0
        %1230 = vmatmul.mubr.f32.gmra.mrb[0].mxu0 %v992
        %v1231 = vpop.f32.mrb[0].mxu0
        %v1232 = vadd.f32 %v879, %v1231
        %v1233 = vpop.f32.mrb[0].mxu0
        %1234 = vmatprep.mubr.f32.mxu0 0.0
        %1235 = vmatmul.mubr.f32.gmra.mrb[0].mxu0 %v995
        %v1236 = vpop.f32.mrb[0].mxu0
        %v1237 = vadd.f32 %v884, %v1236
        %v1238 = vpop.f32.mrb[0].mxu0
        %1239 = vmatprep.mubr.f32.mxu0 0.0
        %1240 = vmatmul.mubr.f32.gmra.mrb[0].mxu0 %v998
        %v1241 = vpop.f32.mrb[0].mxu0
        %v1242 = vadd.f32 %v889, %v1241
        %v1243 = vpop.f32.mrb[0].mxu0
        %1244 = vdwg.mxu0
        %v1245 = vld [vmem:[%s437 + $0x2] sm:$0xff]
        %v1246 = vld [vmem:[%s437 + $0xa] sm:$0xff]
        %v1247 = vld [vmem:[%s437 + $0x12] sm:$0xff]
        %v1248 = vld [vmem:[%s437 + $0x1a] sm:$0xff]
        %v1249 = vld [vmem:[%s437 + $0x22] sm:$0xff]
        %v1250 = vld [vmem:[%s437 + $0x2a] sm:$0xff]
        %v1251 = vld [vmem:[%s437 + $0x32] sm:$0xff]
        %v1252 = vld [vmem:[%s437 + $0x3a] sm:$0xff]
        %v1253 = vld [vmem:[%s437 + $0x42] sm:$0xff]
        %v1254 = vld [vmem:[%s437 + $0x4a] sm:$0xff]
        %v1255 = vld [vmem:[%s437 + $0x52] sm:$0xff]
        %v1256 = vld [vmem:[%s437 + $0x5a] sm:$0xff]
        %v1257 = vld [vmem:[%s437 + $0x62] sm:$0xff]
        %v1258 = vld [vmem:[%s437 + $0x6a] sm:$0xff]
        %v1259 = vld [vmem:[%s437 + $0x72] sm:$0xff]
        %v1260 = vld [vmem:[%s437 + $0x7a] sm:$0xff]
        %v1261 = vld [vmem:[%s437 + $0x82] sm:$0xff]
        %v1262 = vld [vmem:[%s437 + $0x8a] sm:$0xff]
        %v1263 = vld [vmem:[%s437 + $0x92] sm:$0xff]
        %v1264 = vld [vmem:[%s437 + $0x9a] sm:$0xff]
        %v1265 = vld [vmem:[%s437 + $0xa2] sm:$0xff]
        %v1266 = vld [vmem:[%s437 + $0xaa] sm:$0xff]
        %v1267 = vld [vmem:[%s437 + $0xb2] sm:$0xff]
        %v1268 = vld [vmem:[%s437 + $0xba] sm:$0xff]
        %v1269 = vld [vmem:[%s437 + $0xc2] sm:$0xff]
        %v1270 = vld [vmem:[%s437 + $0xca] sm:$0xff]
        %v1271 = vld [vmem:[%s437 + $0xd2] sm:$0xff]
        %v1272 = vld [vmem:[%s437 + $0xda] sm:$0xff]
        %v1273 = vld [vmem:[%s437 + $0xe2] sm:$0xff]
        %v1274 = vld [vmem:[%s437 + $0xea] sm:$0xff]
        %v1275 = vld [vmem:[%s437 + $0xf2] sm:$0xff]
        %v1276 = vld [vmem:[%s437 + $0xfa] sm:$0xff]
        %v1277 = vld [vmem:[%s437 + $0x102] sm:$0xff]
        %v1278 = vld [vmem:[%s437 + $0x10a] sm:$0xff]
        %v1279 = vld [vmem:[%s437 + $0x112] sm:$0xff]
        %v1280 = vld [vmem:[%s437 + $0x11a] sm:$0xff]
        %s1281 = scalar_lea.vmem %s1, 16
        %v1282 = vld [vmem:[%s1281] sm:$0xff]
        %v1284 = vsel %vm538, %v1245, 0
        %v1287 = vsel %vm538, %v1246, 0
        %v1290 = vsel %vm538, %v1247, 0
        %v1293 = vsel %vm538, %v1248, 0
        %v1296 = vsel %vm538, %v1249, 0
        %v1299 = vsel %vm538, %v1250, 0
        %v1302 = vsel %vm538, %v1251, 0
        %v1305 = vsel %vm538, %v1252, 0
        %v1308 = vsel %vm538, %v1253, 0
        %v1311 = vsel %vm538, %v1254, 0
        %v1314 = vsel %vm538, %v1255, 0
        %v1317 = vsel %vm538, %v1256, 0
        %v1320 = vsel %vm538, %v1257, 0
        %v1323 = vsel %vm538, %v1258, 0
        %v1326 = vsel %vm538, %v1259, 0
        %v1329 = vsel %vm538, %v1260, 0
        %v1332 = vsel %vm538, %v1261, 0
        %v1335 = vsel %vm538, %v1262, 0
        %v1338 = vsel %vm538, %v1263, 0
        %v1341 = vsel %vm538, %v1264, 0
        %v1344 = vsel %vm538, %v1265, 0
        %v1347 = vsel %vm538, %v1266, 0
        %v1350 = vsel %vm538, %v1267, 0
        %v1353 = vsel %vm538, %v1268, 0
        %v1356 = vsel %vm538, %v1269, 0
        %v1359 = vsel %vm538, %v1270, 0
        %v1362 = vsel %vm538, %v1271, 0
        %v1365 = vsel %vm538, %v1272, 0
        %v1368 = vsel %vm538, %v1273, 0
        %v1371 = vsel %vm538, %v1274, 0
        %v1374 = vsel %vm538, %v1275, 0
        %v1377 = vsel %vm538, %v1276, 0
        %v1380 = vsel %vm538, %v1277, 0
        %v1383 = vsel %vm538, %v1278, 0
        %v1386 = vsel %vm538, %v1279, 0
        %v1389 = vsel %vm538, %v1280, 0
        %1391 = vmatprep.subr.mxu0 0.0
        %1392 = vmatpush1.msra.mxu0 %v1282
        %1393 = vmatprep.subr.mxu0 0.0
        %1394 = vmatpush1.msra.mxu0 0.0
        %1395 = vmatprep.subr.mxu0 0.0
        %1396 = vmatpush1.msra.mxu0 0.0
        %1397 = vmatprep.subr.mxu0 0.0
        %1398 = vmatpush1.msra.mxu0 0.0
        %1399 = vmatprep.subr.mxu0 0.0
        %1400 = vmatpush1.msra.mxu0 0.0
        %1401 = vmatprep.subr.mxu0 0.0
        %1402 = vmatpush1.msra.mxu0 0.0
        %1403 = vmatprep.subr.mxu0 0.0
        %1404 = vmatpush1.msra.mxu0 0.0
        %1405 = vmatprep.subr.mxu0 0.0
        %1406 = vmatpush1.msra.mxu0 0.0
        %1407 = vmatprep.subr.mxu0 0.0
        %1408 = vmatpush1.msra.mxu0 0.0
        %1409 = vmatprep.subr.mxu0 0.0
        %1410 = vmatpush1.msra.mxu0 0.0
        %1411 = vmatprep.subr.mxu0 0.0
        %1412 = vmatpush1.msra.mxu0 0.0
        %1413 = vmatprep.subr.mxu0 0.0
        %1414 = vmatpush1.msra.mxu0 0.0
        %1415 = vmatprep.subr.mxu0 0.0
        %1416 = vmatpush1.msra.mxu0 0.0
        %1417 = vmatprep.subr.mxu0 0.0
        %1418 = vmatpush1.msra.mxu0 0.0
        %1419 = vmatprep.subr.mxu0 0.0
        %1420 = vmatpush1.msra.mxu0 0.0
        %1421 = vmatprep.subr.mxu0 0.0
        %1422 = vmatpush1.msra.mxu0 0.0
        %1423 = vmatprep.subr.mxu0 0.0
        %1424 = vmatpush1.msra.mxu0 0.0
        %1425 = vmatprep.subr.mxu0 0.0
        %1426 = vmatpush1.msra.mxu0 0.0
        %1427 = vmatprep.subr.mxu0 0.0
        %1428 = vmatpush1.msra.mxu0 0.0
        %1429 = vmatprep.subr.mxu0 0.0
        %1430 = vmatpush1.msra.mxu0 0.0
        %1431 = vmatprep.subr.mxu0 0.0
        %1432 = vmatpush1.msra.mxu0 0.0
        %1433 = vmatprep.subr.mxu0 0.0
        %1434 = vmatpush1.msra.mxu0 0.0
        %1435 = vmatprep.subr.mxu0 0.0
        %1436 = vmatpush1.msra.mxu0 0.0
        %1437 = vmatprep.subr.mxu0 0.0
        %1438 = vmatpush1.msra.mxu0 0.0
        %1439 = vmatprep.subr.mxu0 0.0
        %1440 = vmatpush1.msra.mxu0 0.0
        %1441 = vmatprep.subr.mxu0 0.0
        %1442 = vmatpush1.msra.mxu0 0.0
        %1443 = vmatprep.subr.mxu0 0.0
        %1444 = vmatpush1.msra.mxu0 0.0
        %1445 = vmatprep.subr.mxu0 0.0
        %1446 = vmatpush1.msra.mxu0 0.0
        %1447 = vmatprep.subr.mxu0 0.0
        %1448 = vmatpush1.msra.mxu0 0.0
        %1449 = vmatprep.subr.mxu0 0.0
        %1450 = vmatpush1.msra.mxu0 0.0
        %1451 = vmatprep.subr.mxu0 0.0
        %1452 = vmatpush1.msra.mxu0 0.0
        %1453 = vmatprep.subr.mxu0 0.0
        %1454 = vmatpush1.msra.mxu0 0.0
        %1455 = vmatprep.mubr.f32.mxu0 0.0
        %1456 = vmatmul.mubr.f32.gmra.mrb[0].mxu0 %v1284
        %v1457 = vpop.f32.mrb[0].mxu0
        %v1458 = vadd.f32 0.0, %v1457
        %v1459 = vpop.f32.mrb[0].mxu0
        %1460 = vmatprep.mubr.f32.mxu0 0.0
        %1461 = vmatmul.mubr.f32.gmra.mrb[0].mxu0 %v1287
        %v1462 = vpop.f32.mrb[0].mxu0
        %v1463 = vadd.f32 0.0, %v1462
        %v1464 = vpop.f32.mrb[0].mxu0
        %1465 = vmatprep.mubr.f32.mxu0 0.0
        %1466 = vmatmul.mubr.f32.gmra.mrb[0].mxu0 %v1290
        %v1467 = vpop.f32.mrb[0].mxu0
        %v1468 = vadd.f32 0.0, %v1467
        %v1469 = vpop.f32.mrb[0].mxu0
        %1470 = vmatprep.mubr.f32.mxu0 0.0
        %1471 = vmatmul.mubr.f32.gmra.mrb[0].mxu0 %v1293
        %v1472 = vpop.f32.mrb[0].mxu0
        %v1473 = vadd.f32 0.0, %v1472
        %v1474 = vpop.f32.mrb[0].mxu0
        %1475 = vmatprep.mubr.f32.mxu0 0.0
        %1476 = vmatmul.mubr.f32.gmra.mrb[0].mxu0 %v1296
        %v1477 = vpop.f32.mrb[0].mxu0
        %v1478 = vadd.f32 0.0, %v1477
        %v1479 = vpop.f32.mrb[0].mxu0
        %1480 = vmatprep.mubr.f32.mxu0 0.0
        %1481 = vmatmul.mubr.f32.gmra.mrb[0].mxu0 %v1299
        %v1482 = vpop.f32.mrb[0].mxu0
        %v1483 = vadd.f32 0.0, %v1482
        %v1484 = vpop.f32.mrb[0].mxu0
        %1485 = vmatprep.mubr.f32.mxu0 0.0
        %1486 = vmatmul.mubr.f32.gmra.mrb[0].mxu0 %v1302
        %v1487 = vpop.f32.mrb[0].mxu0
        %v1488 = vadd.f32 0.0, %v1487
        %v1489 = vpop.f32.mrb[0].mxu0
        %1490 = vmatprep.mubr.f32.mxu0 0.0
        %1491 = vmatmul.mubr.f32.gmra.mrb[0].mxu0 %v1305
        %v1492 = vpop.f32.mrb[0].mxu0
        %v1493 = vadd.f32 0.0, %v1492
        %v1494 = vpop.f32.mrb[0].mxu0
        %1495 = vmatprep.mubr.f32.mxu0 0.0
        %1496 = vmatmul.mubr.f32.gmra.mrb[0].mxu0 %v1308
        %v1497 = vpop.f32.mrb[0].mxu0
        %v1498 = vadd.f32 0.0, %v1497
        %v1499 = vpop.f32.mrb[0].mxu0
        %1500 = vmatprep.mubr.f32.mxu0 0.0
        %1501 = vmatmul.mubr.f32.gmra.mrb[0].mxu0 %v1311
        %v1502 = vpop.f32.mrb[0].mxu0
        %v1503 = vadd.f32 0.0, %v1502
        %v1504 = vpop.f32.mrb[0].mxu0
        %1505 = vmatprep.mubr.f32.mxu0 0.0
        %1506 = vmatmul.mubr.f32.gmra.mrb[0].mxu0 %v1314
        %v1507 = vpop.f32.mrb[0].mxu0
        %v1508 = vadd.f32 0.0, %v1507
        %v1509 = vpop.f32.mrb[0].mxu0
        %1510 = vmatprep.mubr.f32.mxu0 0.0
        %1511 = vmatmul.mubr.f32.gmra.mrb[0].mxu0 %v1317
        %v1512 = vpop.f32.mrb[0].mxu0
        %v1513 = vadd.f32 0.0, %v1512
        %v1514 = vpop.f32.mrb[0].mxu0
        %1515 = vmatprep.mubr.f32.mxu0 0.0
        %1516 = vmatmul.mubr.f32.gmra.mrb[0].mxu0 %v1320
        %v1517 = vpop.f32.mrb[0].mxu0
        %v1518 = vadd.f32 0.0, %v1517
        %v1519 = vpop.f32.mrb[0].mxu0
        %1520 = vmatprep.mubr.f32.mxu0 0.0
        %1521 = vmatmul.mubr.f32.gmra.mrb[0].mxu0 %v1323
        %v1522 = vpop.f32.mrb[0].mxu0
        %v1523 = vadd.f32 0.0, %v1522
        %v1524 = vpop.f32.mrb[0].mxu0
        %1525 = vmatprep.mubr.f32.mxu0 0.0
        %1526 = vmatmul.mubr.f32.gmra.mrb[0].mxu0 %v1326
        %v1527 = vpop.f32.mrb[0].mxu0
        %v1528 = vadd.f32 0.0, %v1527
        %v1529 = vpop.f32.mrb[0].mxu0
        %1530 = vmatprep.mubr.f32.mxu0 0.0
        %1531 = vmatmul.mubr.f32.gmra.mrb[0].mxu0 %v1329
        %v1532 = vpop.f32.mrb[0].mxu0
        %v1533 = vadd.f32 0.0, %v1532
        %v1534 = vpop.f32.mrb[0].mxu0
        %1535 = vmatprep.mubr.f32.mxu0 0.0
        %1536 = vmatmul.mubr.f32.gmra.mrb[0].mxu0 %v1332
        %v1537 = vpop.f32.mrb[0].mxu0
        %v1538 = vadd.f32 0.0, %v1537
        %v1539 = vpop.f32.mrb[0].mxu0
        %1540 = vmatprep.mubr.f32.mxu0 0.0
        %1541 = vmatmul.mubr.f32.gmra.mrb[0].mxu0 %v1335
        %v1542 = vpop.f32.mrb[0].mxu0
        %v1543 = vadd.f32 0.0, %v1542
        %v1544 = vpop.f32.mrb[0].mxu0
        %1545 = vmatprep.mubr.f32.mxu0 0.0
        %1546 = vmatmul.mubr.f32.gmra.mrb[0].mxu0 %v1338
        %v1547 = vpop.f32.mrb[0].mxu0
        %v1548 = vadd.f32 0.0, %v1547
        %v1549 = vpop.f32.mrb[0].mxu0
        %1550 = vmatprep.mubr.f32.mxu0 0.0
        %1551 = vmatmul.mubr.f32.gmra.mrb[0].mxu0 %v1341
        %v1552 = vpop.f32.mrb[0].mxu0
        %v1553 = vadd.f32 0.0, %v1552
        %v1554 = vpop.f32.mrb[0].mxu0
        %1555 = vmatprep.mubr.f32.mxu0 0.0
        %1556 = vmatmul.mubr.f32.gmra.mrb[0].mxu0 %v1344
        %v1557 = vpop.f32.mrb[0].mxu0
        %v1558 = vadd.f32 0.0, %v1557
        %v1559 = vpop.f32.mrb[0].mxu0
        %1560 = vmatprep.mubr.f32.mxu0 0.0
        %1561 = vmatmul.mubr.f32.gmra.mrb[0].mxu0 %v1347
        %v1562 = vpop.f32.mrb[0].mxu0
        %v1563 = vadd.f32 0.0, %v1562
        %v1564 = vpop.f32.mrb[0].mxu0
        %1565 = vmatprep.mubr.f32.mxu0 0.0
        %1566 = vmatmul.mubr.f32.gmra.mrb[0].mxu0 %v1350
        %v1567 = vpop.f32.mrb[0].mxu0
        %v1568 = vadd.f32 0.0, %v1567
        %v1569 = vpop.f32.mrb[0].mxu0
        %1570 = vmatprep.mubr.f32.mxu0 0.0
        %1571 = vmatmul.mubr.f32.gmra.mrb[0].mxu0 %v1353
        %v1572 = vpop.f32.mrb[0].mxu0
        %v1573 = vadd.f32 0.0, %v1572
        %v1574 = vpop.f32.mrb[0].mxu0
        %1575 = vmatprep.mubr.f32.mxu0 0.0
        %1576 = vmatmul.mubr.f32.gmra.mrb[0].mxu0 %v1356
        %v1577 = vpop.f32.mrb[0].mxu0
        %v1578 = vadd.f32 0.0, %v1577
        %v1579 = vpop.f32.mrb[0].mxu0
        %1580 = vmatprep.mubr.f32.mxu0 0.0
        %1581 = vmatmul.mubr.f32.gmra.mrb[0].mxu0 %v1359
        %v1582 = vpop.f32.mrb[0].mxu0
        %v1583 = vadd.f32 0.0, %v1582
        %v1584 = vpop.f32.mrb[0].mxu0
        %1585 = vmatprep.mubr.f32.mxu0 0.0
        %1586 = vmatmul.mubr.f32.gmra.mrb[0].mxu0 %v1362
        %v1587 = vpop.f32.mrb[0].mxu0
        %v1588 = vadd.f32 0.0, %v1587
        %v1589 = vpop.f32.mrb[0].mxu0
        %1590 = vmatprep.mubr.f32.mxu0 0.0
        %1591 = vmatmul.mubr.f32.gmra.mrb[0].mxu0 %v1365
        %v1592 = vpop.f32.mrb[0].mxu0
        %v1593 = vadd.f32 0.0, %v1592
        %v1594 = vpop.f32.mrb[0].mxu0
        %1595 = vmatprep.mubr.f32.mxu0 0.0
        %1596 = vmatmul.mubr.f32.gmra.mrb[0].mxu0 %v1368
        %v1597 = vpop.f32.mrb[0].mxu0
        %v1598 = vadd.f32 0.0, %v1597
        %v1599 = vpop.f32.mrb[0].mxu0
        %1600 = vmatprep.mubr.f32.mxu0 0.0
        %1601 = vmatmul.mubr.f32.gmra.mrb[0].mxu0 %v1371
        %v1602 = vpop.f32.mrb[0].mxu0
        %v1603 = vadd.f32 0.0, %v1602
        %v1604 = vpop.f32.mrb[0].mxu0
        %1605 = vmatprep.mubr.f32.mxu0 0.0
        %1606 = vmatmul.mubr.f32.gmra.mrb[0].mxu0 %v1374
        %v1607 = vpop.f32.mrb[0].mxu0
        %v1608 = vadd.f32 0.0, %v1607
        %v1609 = vpop.f32.mrb[0].mxu0
        %1610 = vmatprep.mubr.f32.mxu0 0.0
        %1611 = vmatmul.mubr.f32.gmra.mrb[0].mxu0 %v1377
        %v1612 = vpop.f32.mrb[0].mxu0
        %v1613 = vadd.f32 0.0, %v1612
        %v1614 = vpop.f32.mrb[0].mxu0
        %1615 = vmatprep.mubr.f32.mxu0 0.0
        %1616 = vmatmul.mubr.f32.gmra.mrb[0].mxu0 %v1380
        %v1617 = vpop.f32.mrb[0].mxu0
        %v1618 = vadd.f32 0.0, %v1617
        %v1619 = vpop.f32.mrb[0].mxu0
        %1620 = vmatprep.mubr.f32.mxu0 0.0
        %1621 = vmatmul.mubr.f32.gmra.mrb[0].mxu0 %v1383
        %v1622 = vpop.f32.mrb[0].mxu0
        %v1623 = vadd.f32 0.0, %v1622
        %v1624 = vpop.f32.mrb[0].mxu0
        %1625 = vmatprep.mubr.f32.mxu0 0.0
        %1626 = vmatmul.mubr.f32.gmra.mrb[0].mxu0 %v1386
        %v1627 = vpop.f32.mrb[0].mxu0
        %v1628 = vadd.f32 0.0, %v1627
        %v1629 = vpop.f32.mrb[0].mxu0
        %1630 = vmatprep.mubr.f32.mxu0 0.0
        %1631 = vmatmul.mubr.f32.gmra.mrb[0].mxu0 %v1389
        %v1632 = vpop.f32.mrb[0].mxu0
        %v1633 = vadd.f32 0.0, %v1632
        %v1634 = vpop.f32.mrb[0].mxu0
        %1635 = vdwg.mxu0
        %v1636 = vadd.f32 %v1067, %v1458
        %v1637 = vadd.f32 %v1072, %v1463
        %v1638 = vadd.f32 %v1077, %v1468
        %v1639 = vadd.f32 %v1082, %v1473
        %v1640 = vadd.f32 %v1087, %v1478
        %v1641 = vadd.f32 %v1092, %v1483
        %v1642 = vadd.f32 %v1097, %v1488
        %v1643 = vadd.f32 %v1102, %v1493
        %v1644 = vadd.f32 %v1107, %v1498
        %v1645 = vadd.f32 %v1112, %v1503
        %v1646 = vadd.f32 %v1117, %v1508
        %v1647 = vadd.f32 %v1122, %v1513
        %v1648 = vadd.f32 %v1127, %v1518
        %v1649 = vadd.f32 %v1132, %v1523
        %v1650 = vadd.f32 %v1137, %v1528
        %v1651 = vadd.f32 %v1142, %v1533
        %v1652 = vadd.f32 %v1147, %v1538
        %v1653 = vadd.f32 %v1152, %v1543
        %v1654 = vadd.f32 %v1157, %v1548
        %v1655 = vadd.f32 %v1162, %v1553
        %v1656 = vadd.f32 %v1167, %v1558
        %v1657 = vadd.f32 %v1172, %v1563
        %v1658 = vadd.f32 %v1177, %v1568
        %v1659 = vadd.f32 %v1182, %v1573
        %v1660 = vadd.f32 %v1187, %v1578
        %v1661 = vadd.f32 %v1192, %v1583
        %v1662 = vadd.f32 %v1197, %v1588
        %v1663 = vadd.f32 %v1202, %v1593
        %v1664 = vadd.f32 %v1207, %v1598
        %v1665 = vadd.f32 %v1212, %v1603
        %v1666 = vadd.f32 %v1217, %v1608
        %v1667 = vadd.f32 %v1222, %v1613
        %v1668 = vadd.f32 %v1227, %v1618
        %v1669 = vadd.f32 %v1232, %v1623
        %v1670 = vadd.f32 %v1237, %v1628
        %v1671 = vadd.f32 %v1242, %v1633
        %v1672 = vld [vmem:[%s437 + $0x12] sm:$0xff]
        %v1673 = vld [vmem:[%s437 + $0x1a] sm:$0xff]
        %v1674 = vld [vmem:[%s437 + $0x22] sm:$0xff]
        %v1675 = vld [vmem:[%s437 + $0x2a] sm:$0xff]
        %v1676 = vld [vmem:[%s437 + $0x32] sm:$0xff]
        %v1677 = vld [vmem:[%s437 + $0x3a] sm:$0xff]
        %v1678 = vld [vmem:[%s437 + $0x42] sm:$0xff]
        %v1679 = vld [vmem:[%s437 + $0x4a] sm:$0xff]
        %v1680 = vld [vmem:[%s437 + $0x52] sm:$0xff]
        %v1681 = vld [vmem:[%s437 + $0x5a] sm:$0xff]
        %v1682 = vld [vmem:[%s437 + $0x62] sm:$0xff]
        %v1683 = vld [vmem:[%s437 + $0x6a] sm:$0xff]
        %v1684 = vld [vmem:[%s437 + $0x72] sm:$0xff]
        %v1685 = vld [vmem:[%s437 + $0x7a] sm:$0xff]
        %v1686 = vld [vmem:[%s437 + $0x82] sm:$0xff]
        %v1687 = vld [vmem:[%s437 + $0x8a] sm:$0xff]
        %v1688 = vld [vmem:[%s437 + $0x92] sm:$0xff]
        %v1689 = vld [vmem:[%s437 + $0x9a] sm:$0xff]
        %v1690 = vld [vmem:[%s437 + $0xa2] sm:$0xff]
        %v1691 = vld [vmem:[%s437 + $0xaa] sm:$0xff]
        %v1692 = vld [vmem:[%s437 + $0xb2] sm:$0xff]
        %v1693 = vld [vmem:[%s437 + $0xba] sm:$0xff]
        %v1694 = vld [vmem:[%s437 + $0xc2] sm:$0xff]
        %v1695 = vld [vmem:[%s437 + $0xca] sm:$0xff]
        %v1696 = vld [vmem:[%s437 + $0xd2] sm:$0xff]
        %v1697 = vld [vmem:[%s437 + $0xda] sm:$0xff]
        %v1698 = vld [vmem:[%s437 + $0xe2] sm:$0xff]
        %v1699 = vld [vmem:[%s437 + $0xea] sm:$0xff]
        %v1700 = vld [vmem:[%s437 + $0xf2] sm:$0xff]
        %v1701 = vld [vmem:[%s437 + $0xfa] sm:$0xff]
        %v1702 = vld [vmem:[%s437 + $0x102] sm:$0xff]
        %v1703 = vld [vmem:[%s437 + $0x10a] sm:$0xff]
        %v1704 = vld [vmem:[%s437 + $0x112] sm:$0xff]
        %v1705 = vld [vmem:[%s437 + $0x11a] sm:$0xff]
        %v1706 = vld [vmem:[%s437 + $0x122] sm:$0xff]
        %v1707 = vld [vmem:[%s437 + $0x12a] sm:$0xff]
        %s1708 = scalar_lea.vmem %s1, 24
        %v1709 = vld [vmem:[%s1708] sm:$0xff]
        %v1711 = vsel %vm538, %v1672, 0
        %v1714 = vsel %vm538, %v1673, 0
        %v1717 = vsel %vm538, %v1674, 0
        %v1720 = vsel %vm538, %v1675, 0
        %v1723 = vsel %vm538, %v1676, 0
        %v1726 = vsel %vm538, %v1677, 0
        %v1729 = vsel %vm538, %v1678, 0
        %v1732 = vsel %vm538, %v1679, 0
        %v1735 = vsel %vm538, %v1680, 0
        %v1738 = vsel %vm538, %v1681, 0
        %v1741 = vsel %vm538, %v1682, 0
        %v1744 = vsel %vm538, %v1683, 0
        %v1747 = vsel %vm538, %v1684, 0
        %v1750 = vsel %vm538, %v1685, 0
        %v1753 = vsel %vm538, %v1686, 0
        %v1756 = vsel %vm538, %v1687, 0
        %v1759 = vsel %vm538, %v1688, 0
        %v1762 = vsel %vm538, %v1689, 0
        %v1765 = vsel %vm538, %v1690, 0
        %v1768 = vsel %vm538, %v1691, 0
        %v1771 = vsel %vm538, %v1692, 0
        %v1774 = vsel %vm538, %v1693, 0
        %v1777 = vsel %vm538, %v1694, 0
        %v1780 = vsel %vm538, %v1695, 0
        %v1783 = vsel %vm538, %v1696, 0
        %v1786 = vsel %vm538, %v1697, 0
        %v1789 = vsel %vm538, %v1698, 0
        %v1792 = vsel %vm538, %v1699, 0
        %v1795 = vsel %vm538, %v1700, 0
        %v1798 = vsel %vm538, %v1701, 0
        %v1801 = vsel %vm538, %v1702, 0
        %v1804 = vsel %vm538, %v1703, 0
        %v1807 = vsel %vm538, %v1704, 0
        %v1810 = vsel %vm538, %v1705, 0
        %v1813 = vsel %vm538, %v1706, 0
        %v1816 = vsel %vm538, %v1707, 0
        %1818 = vmatprep.subr.mxu0 0.0
        %1819 = vmatpush1.msra.mxu0 %v1709
        %1820 = vmatprep.subr.mxu0 0.0
        %1821 = vmatpush1.msra.mxu0 0.0
        %1822 = vmatprep.subr.mxu0 0.0
        %1823 = vmatpush1.msra.mxu0 0.0
        %1824 = vmatprep.subr.mxu0 0.0
        %1825 = vmatpush1.msra.mxu0 0.0
        %1826 = vmatprep.subr.mxu0 0.0
        %1827 = vmatpush1.msra.mxu0 0.0
        %1828 = vmatprep.subr.mxu0 0.0
        %1829 = vmatpush1.msra.mxu0 0.0
        %1830 = vmatprep.subr.mxu0 0.0
        %1831 = vmatpush1.msra.mxu0 0.0
        %1832 = vmatprep.subr.mxu0 0.0
        %1833 = vmatpush1.msra.mxu0 0.0
        %1834 = vmatprep.subr.mxu0 0.0
        %1835 = vmatpush1.msra.mxu0 0.0
        %1836 = vmatprep.subr.mxu0 0.0
        %1837 = vmatpush1.msra.mxu0 0.0
        %1838 = vmatprep.subr.mxu0 0.0
        %1839 = vmatpush1.msra.mxu0 0.0
        %1840 = vmatprep.subr.mxu0 0.0
        %1841 = vmatpush1.msra.mxu0 0.0
        %1842 = vmatprep.subr.mxu0 0.0
        %1843 = vmatpush1.msra.mxu0 0.0
        %1844 = vmatprep.subr.mxu0 0.0
        %1845 = vmatpush1.msra.mxu0 0.0
        %1846 = vmatprep.subr.mxu0 0.0
        %1847 = vmatpush1.msra.mxu0 0.0
        %1848 = vmatprep.subr.mxu0 0.0
        %1849 = vmatpush1.msra.mxu0 0.0
        %1850 = vmatprep.subr.mxu0 0.0
        %1851 = vmatpush1.msra.mxu0 0.0
        %1852 = vmatprep.subr.mxu0 0.0
        %1853 = vmatpush1.msra.mxu0 0.0
        %1854 = vmatprep.subr.mxu0 0.0
        %1855 = vmatpush1.msra.mxu0 0.0
        %1856 = vmatprep.subr.mxu0 0.0
        %1857 = vmatpush1.msra.mxu0 0.0
        %1858 = vmatprep.subr.mxu0 0.0
        %1859 = vmatpush1.msra.mxu0 0.0
        %1860 = vmatprep.subr.mxu0 0.0
        %1861 = vmatpush1.msra.mxu0 0.0
        %1862 = vmatprep.subr.mxu0 0.0
        %1863 = vmatpush1.msra.mxu0 0.0
        %1864 = vmatprep.subr.mxu0 0.0
        %1865 = vmatpush1.msra.mxu0 0.0
        %1866 = vmatprep.subr.mxu0 0.0
        %1867 = vmatpush1.msra.mxu0 0.0
        %1868 = vmatprep.subr.mxu0 0.0
        %1869 = vmatpush1.msra.mxu0 0.0
        %1870 = vmatprep.subr.mxu0 0.0
        %1871 = vmatpush1.msra.mxu0 0.0
        %1872 = vmatprep.subr.mxu0 0.0
        %1873 = vmatpush1.msra.mxu0 0.0
        %1874 = vmatprep.subr.mxu0 0.0
        %1875 = vmatpush1.msra.mxu0 0.0
        %1876 = vmatprep.subr.mxu0 0.0
        %1877 = vmatpush1.msra.mxu0 0.0
        %1878 = vmatprep.subr.mxu0 0.0
        %1879 = vmatpush1.msra.mxu0 0.0
        %1880 = vmatprep.subr.mxu0 0.0
        %1881 = vmatpush1.msra.mxu0 0.0
        %1882 = vmatprep.mubr.f32.mxu0 0.0
        %1883 = vmatmul.mubr.f32.gmra.mrb[0].mxu0 %v1711
        %v1884 = vpop.f32.mrb[0].mxu0
        %v1885 = vadd.f32 0.0, %v1884
        %v1886 = vpop.f32.mrb[0].mxu0
        %1887 = vmatprep.mubr.f32.mxu0 0.0
        %1888 = vmatmul.mubr.f32.gmra.mrb[0].mxu0 %v1714
        %v1889 = vpop.f32.mrb[0].mxu0
        %v1890 = vadd.f32 0.0, %v1889
        %v1891 = vpop.f32.mrb[0].mxu0
        %1892 = vmatprep.mubr.f32.mxu0 0.0
        %1893 = vmatmul.mubr.f32.gmra.mrb[0].mxu0 %v1717
        %v1894 = vpop.f32.mrb[0].mxu0
        %v1895 = vadd.f32 0.0, %v1894
        %v1896 = vpop.f32.mrb[0].mxu0
        %1897 = vmatprep.mubr.f32.mxu0 0.0
        %1898 = vmatmul.mubr.f32.gmra.mrb[0].mxu0 %v1720
        %v1899 = vpop.f32.mrb[0].mxu0
        %v1900 = vadd.f32 0.0, %v1899
        %v1901 = vpop.f32.mrb[0].mxu0
        %1902 = vmatprep.mubr.f32.mxu0 0.0
        %1903 = vmatmul.mubr.f32.gmra.mrb[0].mxu0 %v1723
        %v1904 = vpop.f32.mrb[0].mxu0
        %v1905 = vadd.f32 0.0, %v1904
        %v1906 = vpop.f32.mrb[0].mxu0
        %1907 = vmatprep.mubr.f32.mxu0 0.0
        %1908 = vmatmul.mubr.f32.gmra.mrb[0].mxu0 %v1726
        %v1909 = vpop.f32.mrb[0].mxu0
        %v1910 = vadd.f32 0.0, %v1909
        %v1911 = vpop.f32.mrb[0].mxu0
        %1912 = vmatprep.mubr.f32.mxu0 0.0
        %1913 = vmatmul.mubr.f32.gmra.mrb[0].mxu0 %v1729
        %v1914 = vpop.f32.mrb[0].mxu0
        %v1915 = vadd.f32 0.0, %v1914
        %v1916 = vpop.f32.mrb[0].mxu0
        %1917 = vmatprep.mubr.f32.mxu0 0.0
        %1918 = vmatmul.mubr.f32.gmra.mrb[0].mxu0 %v1732
        %v1919 = vpop.f32.mrb[0].mxu0
        %v1920 = vadd.f32 0.0, %v1919
        %v1921 = vpop.f32.mrb[0].mxu0
        %1922 = vmatprep.mubr.f32.mxu0 0.0
        %1923 = vmatmul.mubr.f32.gmra.mrb[0].mxu0 %v1735
        %v1924 = vpop.f32.mrb[0].mxu0
        %v1925 = vadd.f32 0.0, %v1924
        %v1926 = vpop.f32.mrb[0].mxu0
        %1927 = vmatprep.mubr.f32.mxu0 0.0
        %1928 = vmatmul.mubr.f32.gmra.mrb[0].mxu0 %v1738
        %v1929 = vpop.f32.mrb[0].mxu0
        %v1930 = vadd.f32 0.0, %v1929
        %v1931 = vpop.f32.mrb[0].mxu0
        %1932 = vmatprep.mubr.f32.mxu0 0.0
        %1933 = vmatmul.mubr.f32.gmra.mrb[0].mxu0 %v1741
        %v1934 = vpop.f32.mrb[0].mxu0
        %v1935 = vadd.f32 0.0, %v1934
        %v1936 = vpop.f32.mrb[0].mxu0
        %1937 = vmatprep.mubr.f32.mxu0 0.0
        %1938 = vmatmul.mubr.f32.gmra.mrb[0].mxu0 %v1744
        %v1939 = vpop.f32.mrb[0].mxu0
        %v1940 = vadd.f32 0.0, %v1939
        %v1941 = vpop.f32.mrb[0].mxu0
        %1942 = vmatprep.mubr.f32.mxu0 0.0
        %1943 = vmatmul.mubr.f32.gmra.mrb[0].mxu0 %v1747
        %v1944 = vpop.f32.mrb[0].mxu0
        %v1945 = vadd.f32 0.0, %v1944
        %v1946 = vpop.f32.mrb[0].mxu0
        %1947 = vmatprep.mubr.f32.mxu0 0.0
        %1948 = vmatmul.mubr.f32.gmra.mrb[0].mxu0 %v1750
        %v1949 = vpop.f32.mrb[0].mxu0
        %v1950 = vadd.f32 0.0, %v1949
        %v1951 = vpop.f32.mrb[0].mxu0
        %1952 = vmatprep.mubr.f32.mxu0 0.0
        %1953 = vmatmul.mubr.f32.gmra.mrb[0].mxu0 %v1753
        %v1954 = vpop.f32.mrb[0].mxu0
        %v1955 = vadd.f32 0.0, %v1954
        %v1956 = vpop.f32.mrb[0].mxu0
        %1957 = vmatprep.mubr.f32.mxu0 0.0
        %1958 = vmatmul.mubr.f32.gmra.mrb[0].mxu0 %v1756
        %v1959 = vpop.f32.mrb[0].mxu0
        %v1960 = vadd.f32 0.0, %v1959
        %v1961 = vpop.f32.mrb[0].mxu0
        %1962 = vmatprep.mubr.f32.mxu0 0.0
        %1963 = vmatmul.mubr.f32.gmra.mrb[0].mxu0 %v1759
        %v1964 = vpop.f32.mrb[0].mxu0
        %v1965 = vadd.f32 0.0, %v1964
        %v1966 = vpop.f32.mrb[0].mxu0
        %1967 = vmatprep.mubr.f32.mxu0 0.0
        %1968 = vmatmul.mubr.f32.gmra.mrb[0].mxu0 %v1762
        %v1969 = vpop.f32.mrb[0].mxu0
        %v1970 = vadd.f32 0.0, %v1969
        %v1971 = vpop.f32.mrb[0].mxu0
        %1972 = vmatprep.mubr.f32.mxu0 0.0
        %1973 = vmatmul.mubr.f32.gmra.mrb[0].mxu0 %v1765
        %v1974 = vpop.f32.mrb[0].mxu0
        %v1975 = vadd.f32 0.0, %v1974
        %v1976 = vpop.f32.mrb[0].mxu0
        %1977 = vmatprep.mubr.f32.mxu0 0.0
        %1978 = vmatmul.mubr.f32.gmra.mrb[0].mxu0 %v1768
        %v1979 = vpop.f32.mrb[0].mxu0
        %v1980 = vadd.f32 0.0, %v1979
        %v1981 = vpop.f32.mrb[0].mxu0
        %1982 = vmatprep.mubr.f32.mxu0 0.0
        %1983 = vmatmul.mubr.f32.gmra.mrb[0].mxu0 %v1771
        %v1984 = vpop.f32.mrb[0].mxu0
        %v1985 = vadd.f32 0.0, %v1984
        %v1986 = vpop.f32.mrb[0].mxu0
        %1987 = vmatprep.mubr.f32.mxu0 0.0
        %1988 = vmatmul.mubr.f32.gmra.mrb[0].mxu0 %v1774
        %v1989 = vpop.f32.mrb[0].mxu0
        %v1990 = vadd.f32 0.0, %v1989
        %v1991 = vpop.f32.mrb[0].mxu0
        %1992 = vmatprep.mubr.f32.mxu0 0.0
        %1993 = vmatmul.mubr.f32.gmra.mrb[0].mxu0 %v1777
        %v1994 = vpop.f32.mrb[0].mxu0
        %v1995 = vadd.f32 0.0, %v1994
        %v1996 = vpop.f32.mrb[0].mxu0
        %1997 = vmatprep.mubr.f32.mxu0 0.0
        %1998 = vmatmul.mubr.f32.gmra.mrb[0].mxu0 %v1780
        %v1999 = vpop.f32.mrb[0].mxu0
        %v2000 = vadd.f32 0.0, %v1999
        %v2001 = vpop.f32.mrb[0].mxu0
        %2002 = vmatprep.mubr.f32.mxu0 0.0
        %2003 = vmatmul.mubr.f32.gmra.mrb[0].mxu0 %v1783
        %v2004 = vpop.f32.mrb[0].mxu0
        %v2005 = vadd.f32 0.0, %v2004
        %v2006 = vpop.f32.mrb[0].mxu0
        %2007 = vmatprep.mubr.f32.mxu0 0.0
        %2008 = vmatmul.mubr.f32.gmra.mrb[0].mxu0 %v1786
        %v2009 = vpop.f32.mrb[0].mxu0
        %v2010 = vadd.f32 0.0, %v2009
        %v2011 = vpop.f32.mrb[0].mxu0
        %2012 = vmatprep.mubr.f32.mxu0 0.0
        %2013 = vmatmul.mubr.f32.gmra.mrb[0].mxu0 %v1789
        %v2014 = vpop.f32.mrb[0].mxu0
        %v2015 = vadd.f32 0.0, %v2014
        %v2016 = vpop.f32.mrb[0].mxu0
        %2017 = vmatprep.mubr.f32.mxu0 0.0
        %2018 = vmatmul.mubr.f32.gmra.mrb[0].mxu0 %v1792
        %v2019 = vpop.f32.mrb[0].mxu0
        %v2020 = vadd.f32 0.0, %v2019
        %v2021 = vpop.f32.mrb[0].mxu0
        %2022 = vmatprep.mubr.f32.mxu0 0.0
        %2023 = vmatmul.mubr.f32.gmra.mrb[0].mxu0 %v1795
        %v2024 = vpop.f32.mrb[0].mxu0
        %v2025 = vadd.f32 0.0, %v2024
        %v2026 = vpop.f32.mrb[0].mxu0
        %2027 = vmatprep.mubr.f32.mxu0 0.0
        %2028 = vmatmul.mubr.f32.gmra.mrb[0].mxu0 %v1798
        %v2029 = vpop.f32.mrb[0].mxu0
        %v2030 = vadd.f32 0.0, %v2029
        %v2031 = vpop.f32.mrb[0].mxu0
        %2032 = vmatprep.mubr.f32.mxu0 0.0
        %2033 = vmatmul.mubr.f32.gmra.mrb[0].mxu0 %v1801
        %v2034 = vpop.f32.mrb[0].mxu0
        %v2035 = vadd.f32 0.0, %v2034
        %v2036 = vpop.f32.mrb[0].mxu0
        %2037 = vmatprep.mubr.f32.mxu0 0.0
        %2038 = vmatmul.mubr.f32.gmra.mrb[0].mxu0 %v1804
        %v2039 = vpop.f32.mrb[0].mxu0
        %v2040 = vadd.f32 0.0, %v2039
        %v2041 = vpop.f32.mrb[0].mxu0
        %2042 = vmatprep.mubr.f32.mxu0 0.0
        %2043 = vmatmul.mubr.f32.gmra.mrb[0].mxu0 %v1807
        %v2044 = vpop.f32.mrb[0].mxu0
        %v2045 = vadd.f32 0.0, %v2044
        %v2046 = vpop.f32.mrb[0].mxu0
        %2047 = vmatprep.mubr.f32.mxu0 0.0
        %2048 = vmatmul.mubr.f32.gmra.mrb[0].mxu0 %v1810
        %v2049 = vpop.f32.mrb[0].mxu0
        %v2050 = vadd.f32 0.0, %v2049
        %v2051 = vpop.f32.mrb[0].mxu0
        %2052 = vmatprep.mubr.f32.mxu0 0.0
        %2053 = vmatmul.mubr.f32.gmra.mrb[0].mxu0 %v1813
        %v2054 = vpop.f32.mrb[0].mxu0
        %v2055 = vadd.f32 0.0, %v2054
        %v2056 = vpop.f32.mrb[0].mxu0
        %2057 = vmatprep.mubr.f32.mxu0 0.0
        %2058 = vmatmul.mubr.f32.gmra.mrb[0].mxu0 %v1816
        %v2059 = vpop.f32.mrb[0].mxu0
        %v2060 = vadd.f32 0.0, %v2059
        %v2061 = vpop.f32.mrb[0].mxu0
        %2062 = vdwg.mxu0
        %v2063 = vadd.f32 %v1636, %v1885
        %v2064 = vadd.f32 %v1637, %v1890
        %v2065 = vadd.f32 %v1638, %v1895
        %v2066 = vadd.f32 %v1639, %v1900
        %v2067 = vadd.f32 %v1640, %v1905
        %v2068 = vadd.f32 %v1641, %v1910
        %v2069 = vadd.f32 %v1642, %v1915
        %v2070 = vadd.f32 %v1643, %v1920
        %v2071 = vadd.f32 %v1644, %v1925
        %v2072 = vadd.f32 %v1645, %v1930
        %v2073 = vadd.f32 %v1646, %v1935
        %v2074 = vadd.f32 %v1647, %v1940
        %v2075 = vadd.f32 %v1648, %v1945
        %v2076 = vadd.f32 %v1649, %v1950
        %v2077 = vadd.f32 %v1650, %v1955
        %v2078 = vadd.f32 %v1651, %v1960
        %v2079 = vadd.f32 %v1652, %v1965
        %v2080 = vadd.f32 %v1653, %v1970
        %v2081 = vadd.f32 %v1654, %v1975
        %v2082 = vadd.f32 %v1655, %v1980
        %v2083 = vadd.f32 %v1656, %v1985
        %v2084 = vadd.f32 %v1657, %v1990
        %v2085 = vadd.f32 %v1658, %v1995
        %v2086 = vadd.f32 %v1659, %v2000
        %v2087 = vadd.f32 %v1660, %v2005
        %v2088 = vadd.f32 %v1661, %v2010
        %v2089 = vadd.f32 %v1662, %v2015
        %v2090 = vadd.f32 %v1663, %v2020
        %v2091 = vadd.f32 %v1664, %v2025
        %v2092 = vadd.f32 %v1665, %v2030
        %v2093 = vadd.f32 %v1666, %v2035
        %v2094 = vadd.f32 %v1667, %v2040
        %v2095 = vadd.f32 %v1668, %v2045
        %v2096 = vadd.f32 %v1669, %v2050
        %v2097 = vadd.f32 %v1670, %v2055
        %v2098 = vadd.f32 %v1671, %v2060
        %v2099 = vld [vmem:[%s437 + $0x13] sm:$0xff]
        %v2100 = vld [vmem:[%s437 + $0x1b] sm:$0xff]
        %v2101 = vld [vmem:[%s437 + $0x23] sm:$0xff]
        %v2102 = vld [vmem:[%s437 + $0x2b] sm:$0xff]
        %v2103 = vld [vmem:[%s437 + $0x33] sm:$0xff]
        %v2104 = vld [vmem:[%s437 + $0x3b] sm:$0xff]
        %v2105 = vld [vmem:[%s437 + $0x43] sm:$0xff]
        %v2106 = vld [vmem:[%s437 + $0x4b] sm:$0xff]
        %v2107 = vld [vmem:[%s437 + $0x53] sm:$0xff]
        %v2108 = vld [vmem:[%s437 + $0x5b] sm:$0xff]
        %v2109 = vld [vmem:[%s437 + $0x63] sm:$0xff]
        %v2110 = vld [vmem:[%s437 + $0x6b] sm:$0xff]
        %v2111 = vld [vmem:[%s437 + $0x73] sm:$0xff]
        %v2112 = vld [vmem:[%s437 + $0x7b] sm:$0xff]
        %v2113 = vld [vmem:[%s437 + $0x83] sm:$0xff]
        %v2114 = vld [vmem:[%s437 + $0x8b] sm:$0xff]
        %v2115 = vld [vmem:[%s437 + $0x93] sm:$0xff]
        %v2116 = vld [vmem:[%s437 + $0x9b] sm:$0xff]
        %v2117 = vld [vmem:[%s437 + $0xa3] sm:$0xff]
        %v2118 = vld [vmem:[%s437 + $0xab] sm:$0xff]
        %v2119 = vld [vmem:[%s437 + $0xb3] sm:$0xff]
        %v2120 = vld [vmem:[%s437 + $0xbb] sm:$0xff]
        %v2121 = vld [vmem:[%s437 + $0xc3] sm:$0xff]
        %v2122 = vld [vmem:[%s437 + $0xcb] sm:$0xff]
        %v2123 = vld [vmem:[%s437 + $0xd3] sm:$0xff]
        %v2124 = vld [vmem:[%s437 + $0xdb] sm:$0xff]
        %v2125 = vld [vmem:[%s437 + $0xe3] sm:$0xff]
        %v2126 = vld [vmem:[%s437 + $0xeb] sm:$0xff]
        %v2127 = vld [vmem:[%s437 + $0xf3] sm:$0xff]
        %v2128 = vld [vmem:[%s437 + $0xfb] sm:$0xff]
        %v2129 = vld [vmem:[%s437 + $0x103] sm:$0xff]
        %v2130 = vld [vmem:[%s437 + $0x10b] sm:$0xff]
        %v2131 = vld [vmem:[%s437 + $0x113] sm:$0xff]
        %v2132 = vld [vmem:[%s437 + $0x11b] sm:$0xff]
        %v2133 = vld [vmem:[%s437 + $0x123] sm:$0xff]
        %v2134 = vld [vmem:[%s437 + $0x12b] sm:$0xff]
        %s2135 = scalar_lea.vmem %s1, 32
        %v2136 = vld [vmem:[%s2135] sm:$0xff]
        %v2138 = vsel %vm538, %v2099, 0
        %v2141 = vsel %vm538, %v2100, 0
        %v2144 = vsel %vm538, %v2101, 0
        %v2147 = vsel %vm538, %v2102, 0
        %v2150 = vsel %vm538, %v2103, 0
        %v2153 = vsel %vm538, %v2104, 0
        %v2156 = vsel %vm538, %v2105, 0
        %v2159 = vsel %vm538, %v2106, 0
        %v2162 = vsel %vm538, %v2107, 0
        %v2165 = vsel %vm538, %v2108, 0
        %v2168 = vsel %vm538, %v2109, 0
        %v2171 = vsel %vm538, %v2110, 0
        %v2174 = vsel %vm538, %v2111, 0
        %v2177 = vsel %vm538, %v2112, 0
        %v2180 = vsel %vm538, %v2113, 0
        %v2183 = vsel %vm538, %v2114, 0
        %v2186 = vsel %vm538, %v2115, 0
        %v2189 = vsel %vm538, %v2116, 0
        %v2192 = vsel %vm538, %v2117, 0
        %v2195 = vsel %vm538, %v2118, 0
        %v2198 = vsel %vm538, %v2119, 0
        %v2201 = vsel %vm538, %v2120, 0
        %v2204 = vsel %vm538, %v2121, 0
        %v2207 = vsel %vm538, %v2122, 0
        %v2210 = vsel %vm538, %v2123, 0
        %v2213 = vsel %vm538, %v2124, 0
        %v2216 = vsel %vm538, %v2125, 0
        %v2219 = vsel %vm538, %v2126, 0
        %v2222 = vsel %vm538, %v2127, 0
        %v2225 = vsel %vm538, %v2128, 0
        %v2228 = vsel %vm538, %v2129, 0
        %v2231 = vsel %vm538, %v2130, 0
        %v2234 = vsel %vm538, %v2131, 0
        %v2237 = vsel %vm538, %v2132, 0
        %v2240 = vsel %vm538, %v2133, 0
        %v2243 = vsel %vm538, %v2134, 0
        %2245 = vmatprep.subr.mxu0 0.0
        %2246 = vmatpush1.msra.mxu0 %v2136
        %2247 = vmatprep.subr.mxu0 0.0
        %2248 = vmatpush1.msra.mxu0 0.0
        %2249 = vmatprep.subr.mxu0 0.0
        %2250 = vmatpush1.msra.mxu0 0.0
        %2251 = vmatprep.subr.mxu0 0.0
        %2252 = vmatpush1.msra.mxu0 0.0
        %2253 = vmatprep.subr.mxu0 0.0
        %2254 = vmatpush1.msra.mxu0 0.0
        %2255 = vmatprep.subr.mxu0 0.0
        %2256 = vmatpush1.msra.mxu0 0.0
        %2257 = vmatprep.subr.mxu0 0.0
        %2258 = vmatpush1.msra.mxu0 0.0
        %2259 = vmatprep.subr.mxu0 0.0
        %2260 = vmatpush1.msra.mxu0 0.0
        %2261 = vmatprep.subr.mxu0 0.0
        %2262 = vmatpush1.msra.mxu0 0.0
        %2263 = vmatprep.subr.mxu0 0.0
        %2264 = vmatpush1.msra.mxu0 0.0
        %2265 = vmatprep.subr.mxu0 0.0
        %2266 = vmatpush1.msra.mxu0 0.0
        %2267 = vmatprep.subr.mxu0 0.0
        %2268 = vmatpush1.msra.mxu0 0.0
        %2269 = vmatprep.subr.mxu0 0.0
        %2270 = vmatpush1.msra.mxu0 0.0
        %2271 = vmatprep.subr.mxu0 0.0
        %2272 = vmatpush1.msra.mxu0 0.0
        %2273 = vmatprep.subr.mxu0 0.0
        %2274 = vmatpush1.msra.mxu0 0.0
        %2275 = vmatprep.subr.mxu0 0.0
        %2276 = vmatpush1.msra.mxu0 0.0
        %2277 = vmatprep.subr.mxu0 0.0
        %2278 = vmatpush1.msra.mxu0 0.0
        %2279 = vmatprep.subr.mxu0 0.0
        %2280 = vmatpush1.msra.mxu0 0.0
        %2281 = vmatprep.subr.mxu0 0.0
        %2282 = vmatpush1.msra.mxu0 0.0
        %2283 = vmatprep.subr.mxu0 0.0
        %2284 = vmatpush1.msra.mxu0 0.0
        %2285 = vmatprep.subr.mxu0 0.0
        %2286 = vmatpush1.msra.mxu0 0.0
        %2287 = vmatprep.subr.mxu0 0.0
        %2288 = vmatpush1.msra.mxu0 0.0
        %2289 = vmatprep.subr.mxu0 0.0
        %2290 = vmatpush1.msra.mxu0 0.0
        %2291 = vmatprep.subr.mxu0 0.0
        %2292 = vmatpush1.msra.mxu0 0.0
        %2293 = vmatprep.subr.mxu0 0.0
        %2294 = vmatpush1.msra.mxu0 0.0
        %2295 = vmatprep.subr.mxu0 0.0
        %2296 = vmatpush1.msra.mxu0 0.0
        %2297 = vmatprep.subr.mxu0 0.0
        %2298 = vmatpush1.msra.mxu0 0.0
        %2299 = vmatprep.subr.mxu0 0.0
        %2300 = vmatpush1.msra.mxu0 0.0
        %2301 = vmatprep.subr.mxu0 0.0
        %2302 = vmatpush1.msra.mxu0 0.0
        %2303 = vmatprep.subr.mxu0 0.0
        %2304 = vmatpush1.msra.mxu0 0.0
        %2305 = vmatprep.subr.mxu0 0.0
        %2306 = vmatpush1.msra.mxu0 0.0
        %2307 = vmatprep.subr.mxu0 0.0
        %2308 = vmatpush1.msra.mxu0 0.0
        %2309 = vmatprep.mubr.f32.mxu0 0.0
        %2310 = vmatmul.mubr.f32.gmra.mrb[0].mxu0 %v2138
        %v2311 = vpop.f32.mrb[0].mxu0
        %v2312 = vadd.f32 0.0, %v2311
        %v2313 = vpop.f32.mrb[0].mxu0
        %2314 = vmatprep.mubr.f32.mxu0 0.0
        %2315 = vmatmul.mubr.f32.gmra.mrb[0].mxu0 %v2141
        %v2316 = vpop.f32.mrb[0].mxu0
        %v2317 = vadd.f32 0.0, %v2316
        %v2318 = vpop.f32.mrb[0].mxu0
        %2319 = vmatprep.mubr.f32.mxu0 0.0
        %2320 = vmatmul.mubr.f32.gmra.mrb[0].mxu0 %v2144
        %v2321 = vpop.f32.mrb[0].mxu0
        %v2322 = vadd.f32 0.0, %v2321
        %v2323 = vpop.f32.mrb[0].mxu0
        %2324 = vmatprep.mubr.f32.mxu0 0.0
        %2325 = vmatmul.mubr.f32.gmra.mrb[0].mxu0 %v2147
        %v2326 = vpop.f32.mrb[0].mxu0
        %v2327 = vadd.f32 0.0, %v2326
        %v2328 = vpop.f32.mrb[0].mxu0
        %2329 = vmatprep.mubr.f32.mxu0 0.0
        %2330 = vmatmul.mubr.f32.gmra.mrb[0].mxu0 %v2150
        %v2331 = vpop.f32.mrb[0].mxu0
        %v2332 = vadd.f32 0.0, %v2331
        %v2333 = vpop.f32.mrb[0].mxu0
        %2334 = vmatprep.mubr.f32.mxu0 0.0
        %2335 = vmatmul.mubr.f32.gmra.mrb[0].mxu0 %v2153
        %v2336 = vpop.f32.mrb[0].mxu0
        %v2337 = vadd.f32 0.0, %v2336
        %v2338 = vpop.f32.mrb[0].mxu0
        %2339 = vmatprep.mubr.f32.mxu0 0.0
        %2340 = vmatmul.mubr.f32.gmra.mrb[0].mxu0 %v2156
        %v2341 = vpop.f32.mrb[0].mxu0
        %v2342 = vadd.f32 0.0, %v2341
        %v2343 = vpop.f32.mrb[0].mxu0
        %2344 = vmatprep.mubr.f32.mxu0 0.0
        %2345 = vmatmul.mubr.f32.gmra.mrb[0].mxu0 %v2159
        %v2346 = vpop.f32.mrb[0].mxu0
        %v2347 = vadd.f32 0.0, %v2346
        %v2348 = vpop.f32.mrb[0].mxu0
        %2349 = vmatprep.mubr.f32.mxu0 0.0
        %2350 = vmatmul.mubr.f32.gmra.mrb[0].mxu0 %v2162
        %v2351 = vpop.f32.mrb[0].mxu0
        %v2352 = vadd.f32 0.0, %v2351
        %v2353 = vpop.f32.mrb[0].mxu0
        %2354 = vmatprep.mubr.f32.mxu0 0.0
        %2355 = vmatmul.mubr.f32.gmra.mrb[0].mxu0 %v2165
        %v2356 = vpop.f32.mrb[0].mxu0
        %v2357 = vadd.f32 0.0, %v2356
        %v2358 = vpop.f32.mrb[0].mxu0
        %2359 = vmatprep.mubr.f32.mxu0 0.0
        %2360 = vmatmul.mubr.f32.gmra.mrb[0].mxu0 %v2168
        %v2361 = vpop.f32.mrb[0].mxu0
        %v2362 = vadd.f32 0.0, %v2361
        %v2363 = vpop.f32.mrb[0].mxu0
        %2364 = vmatprep.mubr.f32.mxu0 0.0
        %2365 = vmatmul.mubr.f32.gmra.mrb[0].mxu0 %v2171
        %v2366 = vpop.f32.mrb[0].mxu0
        %v2367 = vadd.f32 0.0, %v2366
        %v2368 = vpop.f32.mrb[0].mxu0
        %2369 = vmatprep.mubr.f32.mxu0 0.0
        %2370 = vmatmul.mubr.f32.gmra.mrb[0].mxu0 %v2174
        %v2371 = vpop.f32.mrb[0].mxu0
        %v2372 = vadd.f32 0.0, %v2371
        %v2373 = vpop.f32.mrb[0].mxu0
        %2374 = vmatprep.mubr.f32.mxu0 0.0
        %2375 = vmatmul.mubr.f32.gmra.mrb[0].mxu0 %v2177
        %v2376 = vpop.f32.mrb[0].mxu0
        %v2377 = vadd.f32 0.0, %v2376
        %v2378 = vpop.f32.mrb[0].mxu0
        %2379 = vmatprep.mubr.f32.mxu0 0.0
        %2380 = vmatmul.mubr.f32.gmra.mrb[0].mxu0 %v2180
        %v2381 = vpop.f32.mrb[0].mxu0
        %v2382 = vadd.f32 0.0, %v2381
        %v2383 = vpop.f32.mrb[0].mxu0
        %2384 = vmatprep.mubr.f32.mxu0 0.0
        %2385 = vmatmul.mubr.f32.gmra.mrb[0].mxu0 %v2183
        %v2386 = vpop.f32.mrb[0].mxu0
        %v2387 = vadd.f32 0.0, %v2386
        %v2388 = vpop.f32.mrb[0].mxu0
        %2389 = vmatprep.mubr.f32.mxu0 0.0
        %2390 = vmatmul.mubr.f32.gmra.mrb[0].mxu0 %v2186
        %v2391 = vpop.f32.mrb[0].mxu0
        %v2392 = vadd.f32 0.0, %v2391
        %v2393 = vpop.f32.mrb[0].mxu0
        %2394 = vmatprep.mubr.f32.mxu0 0.0
        %2395 = vmatmul.mubr.f32.gmra.mrb[0].mxu0 %v2189
        %v2396 = vpop.f32.mrb[0].mxu0
        %v2397 = vadd.f32 0.0, %v2396
        %v2398 = vpop.f32.mrb[0].mxu0
        %2399 = vmatprep.mubr.f32.mxu0 0.0
        %2400 = vmatmul.mubr.f32.gmra.mrb[0].mxu0 %v2192
        %v2401 = vpop.f32.mrb[0].mxu0
        %v2402 = vadd.f32 0.0, %v2401
        %v2403 = vpop.f32.mrb[0].mxu0
        %2404 = vmatprep.mubr.f32.mxu0 0.0
        %2405 = vmatmul.mubr.f32.gmra.mrb[0].mxu0 %v2195
        %v2406 = vpop.f32.mrb[0].mxu0
        %v2407 = vadd.f32 0.0, %v2406
        %v2408 = vpop.f32.mrb[0].mxu0
        %2409 = vmatprep.mubr.f32.mxu0 0.0
        %2410 = vmatmul.mubr.f32.gmra.mrb[0].mxu0 %v2198
        %v2411 = vpop.f32.mrb[0].mxu0
        %v2412 = vadd.f32 0.0, %v2411
        %v2413 = vpop.f32.mrb[0].mxu0
        %2414 = vmatprep.mubr.f32.mxu0 0.0
        %2415 = vmatmul.mubr.f32.gmra.mrb[0].mxu0 %v2201
        %v2416 = vpop.f32.mrb[0].mxu0
        %v2417 = vadd.f32 0.0, %v2416
        %v2418 = vpop.f32.mrb[0].mxu0
        %2419 = vmatprep.mubr.f32.mxu0 0.0
        %2420 = vmatmul.mubr.f32.gmra.mrb[0].mxu0 %v2204
        %v2421 = vpop.f32.mrb[0].mxu0
        %v2422 = vadd.f32 0.0, %v2421
        %v2423 = vpop.f32.mrb[0].mxu0
        %2424 = vmatprep.mubr.f32.mxu0 0.0
        %2425 = vmatmul.mubr.f32.gmra.mrb[0].mxu0 %v2207
        %v2426 = vpop.f32.mrb[0].mxu0
        %v2427 = vadd.f32 0.0, %v2426
        %v2428 = vpop.f32.mrb[0].mxu0
        %2429 = vmatprep.mubr.f32.mxu0 0.0
        %2430 = vmatmul.mubr.f32.gmra.mrb[0].mxu0 %v2210
        %v2431 = vpop.f32.mrb[0].mxu0
        %v2432 = vadd.f32 0.0, %v2431
        %v2433 = vpop.f32.mrb[0].mxu0
        %2434 = vmatprep.mubr.f32.mxu0 0.0
        %2435 = vmatmul.mubr.f32.gmra.mrb[0].mxu0 %v2213
        %v2436 = vpop.f32.mrb[0].mxu0
        %v2437 = vadd.f32 0.0, %v2436
        %v2438 = vpop.f32.mrb[0].mxu0
        %2439 = vmatprep.mubr.f32.mxu0 0.0
        %2440 = vmatmul.mubr.f32.gmra.mrb[0].mxu0 %v2216
        %v2441 = vpop.f32.mrb[0].mxu0
        %v2442 = vadd.f32 0.0, %v2441
        %v2443 = vpop.f32.mrb[0].mxu0
        %2444 = vmatprep.mubr.f32.mxu0 0.0
        %2445 = vmatmul.mubr.f32.gmra.mrb[0].mxu0 %v2219
        %v2446 = vpop.f32.mrb[0].mxu0
        %v2447 = vadd.f32 0.0, %v2446
        %v2448 = vpop.f32.mrb[0].mxu0
        %2449 = vmatprep.mubr.f32.mxu0 0.0
        %2450 = vmatmul.mubr.f32.gmra.mrb[0].mxu0 %v2222
        %v2451 = vpop.f32.mrb[0].mxu0
        %v2452 = vadd.f32 0.0, %v2451
        %v2453 = vpop.f32.mrb[0].mxu0
        %2454 = vmatprep.mubr.f32.mxu0 0.0
        %2455 = vmatmul.mubr.f32.gmra.mrb[0].mxu0 %v2225
        %v2456 = vpop.f32.mrb[0].mxu0
        %v2457 = vadd.f32 0.0, %v2456
        %v2458 = vpop.f32.mrb[0].mxu0
        %2459 = vmatprep.mubr.f32.mxu0 0.0
        %2460 = vmatmul.mubr.f32.gmra.mrb[0].mxu0 %v2228
        %v2461 = vpop.f32.mrb[0].mxu0
        %v2462 = vadd.f32 0.0, %v2461
        %v2463 = vpop.f32.mrb[0].mxu0
        %2464 = vmatprep.mubr.f32.mxu0 0.0
        %2465 = vmatmul.mubr.f32.gmra.mrb[0].mxu0 %v2231
        %v2466 = vpop.f32.mrb[0].mxu0
        %v2467 = vadd.f32 0.0, %v2466
        %v2468 = vpop.f32.mrb[0].mxu0
        %2469 = vmatprep.mubr.f32.mxu0 0.0
        %2470 = vmatmul.mubr.f32.gmra.mrb[0].mxu0 %v2234
        %v2471 = vpop.f32.mrb[0].mxu0
        %v2472 = vadd.f32 0.0, %v2471
        %v2473 = vpop.f32.mrb[0].mxu0
        %2474 = vmatprep.mubr.f32.mxu0 0.0
        %2475 = vmatmul.mubr.f32.gmra.mrb[0].mxu0 %v2237
        %v2476 = vpop.f32.mrb[0].mxu0
        %v2477 = vadd.f32 0.0, %v2476
        %v2478 = vpop.f32.mrb[0].mxu0
        %2479 = vmatprep.mubr.f32.mxu0 0.0
        %2480 = vmatmul.mubr.f32.gmra.mrb[0].mxu0 %v2240
        %v2481 = vpop.f32.mrb[0].mxu0
        %v2482 = vadd.f32 0.0, %v2481
        %v2483 = vpop.f32.mrb[0].mxu0
        %2484 = vmatprep.mubr.f32.mxu0 0.0
        %2485 = vmatmul.mubr.f32.gmra.mrb[0].mxu0 %v2243
        %v2486 = vpop.f32.mrb[0].mxu0
        %v2487 = vadd.f32 0.0, %v2486
        %v2488 = vpop.f32.mrb[0].mxu0
        %2489 = vdwg.mxu0
        %v2490 = vadd.f32 %v2063, %v2312
        %v2491 = vadd.f32 %v2064, %v2317
        %v2492 = vadd.f32 %v2065, %v2322
        %v2493 = vadd.f32 %v2066, %v2327
        %v2494 = vadd.f32 %v2067, %v2332
        %v2495 = vadd.f32 %v2068, %v2337
        %v2496 = vadd.f32 %v2069, %v2342
        %v2497 = vadd.f32 %v2070, %v2347
        %v2498 = vadd.f32 %v2071, %v2352
        %v2499 = vadd.f32 %v2072, %v2357
        %v2500 = vadd.f32 %v2073, %v2362
        %v2501 = vadd.f32 %v2074, %v2367
        %v2502 = vadd.f32 %v2075, %v2372
        %v2503 = vadd.f32 %v2076, %v2377
        %v2504 = vadd.f32 %v2077, %v2382
        %v2505 = vadd.f32 %v2078, %v2387
        %v2506 = vadd.f32 %v2079, %v2392
        %v2507 = vadd.f32 %v2080, %v2397
        %v2508 = vadd.f32 %v2081, %v2402
        %v2509 = vadd.f32 %v2082, %v2407
        %v2510 = vadd.f32 %v2083, %v2412
        %v2511 = vadd.f32 %v2084, %v2417
        %v2512 = vadd.f32 %v2085, %v2422
        %v2513 = vadd.f32 %v2086, %v2427
        %v2514 = vadd.f32 %v2087, %v2432
        %v2515 = vadd.f32 %v2088, %v2437
        %v2516 = vadd.f32 %v2089, %v2442
        %v2517 = vadd.f32 %v2090, %v2447
        %v2518 = vadd.f32 %v2091, %v2452
        %v2519 = vadd.f32 %v2092, %v2457
        %v2520 = vadd.f32 %v2093, %v2462
        %v2521 = vadd.f32 %v2094, %v2467
        %v2522 = vadd.f32 %v2095, %v2472
        %v2523 = vadd.f32 %v2096, %v2477
        %v2524 = vadd.f32 %v2097, %v2482
        %v2525 = vadd.f32 %v2098, %v2487
        %v2526 = vld [vmem:[%s437 + $0x14] sm:$0xff]
        %v2527 = vld [vmem:[%s437 + $0x1c] sm:$0xff]
        %v2528 = vld [vmem:[%s437 + $0x24] sm:$0xff]
        %v2529 = vld [vmem:[%s437 + $0x2c] sm:$0xff]
        %v2530 = vld [vmem:[%s437 + $0x34] sm:$0xff]
        %v2531 = vld [vmem:[%s437 + $0x3c] sm:$0xff]
        %v2532 = vld [vmem:[%s437 + $0x44] sm:$0xff]
        %v2533 = vld [vmem:[%s437 + $0x4c] sm:$0xff]
        %v2534 = vld [vmem:[%s437 + $0x54] sm:$0xff]
        %v2535 = vld [vmem:[%s437 + $0x5c] sm:$0xff]
        %v2536 = vld [vmem:[%s437 + $0x64] sm:$0xff]
        %v2537 = vld [vmem:[%s437 + $0x6c] sm:$0xff]
        %v2538 = vld [vmem:[%s437 + $0x74] sm:$0xff]
        %v2539 = vld [vmem:[%s437 + $0x7c] sm:$0xff]
        %v2540 = vld [vmem:[%s437 + $0x84] sm:$0xff]
        %v2541 = vld [vmem:[%s437 + $0x8c] sm:$0xff]
        %v2542 = vld [vmem:[%s437 + $0x94] sm:$0xff]
        %v2543 = vld [vmem:[%s437 + $0x9c] sm:$0xff]
        %v2544 = vld [vmem:[%s437 + $0xa4] sm:$0xff]
        %v2545 = vld [vmem:[%s437 + $0xac] sm:$0xff]
        %v2546 = vld [vmem:[%s437 + $0xb4] sm:$0xff]
        %v2547 = vld [vmem:[%s437 + $0xbc] sm:$0xff]
        %v2548 = vld [vmem:[%s437 + $0xc4] sm:$0xff]
        %v2549 = vld [vmem:[%s437 + $0xcc] sm:$0xff]
        %v2550 = vld [vmem:[%s437 + $0xd4] sm:$0xff]
        %v2551 = vld [vmem:[%s437 + $0xdc] sm:$0xff]
        %v2552 = vld [vmem:[%s437 + $0xe4] sm:$0xff]
        %v2553 = vld [vmem:[%s437 + $0xec] sm:$0xff]
        %v2554 = vld [vmem:[%s437 + $0xf4] sm:$0xff]
        %v2555 = vld [vmem:[%s437 + $0xfc] sm:$0xff]
        %v2556 = vld [vmem:[%s437 + $0x104] sm:$0xff]
        %v2557 = vld [vmem:[%s437 + $0x10c] sm:$0xff]
        %v2558 = vld [vmem:[%s437 + $0x114] sm:$0xff]
        %v2559 = vld [vmem:[%s437 + $0x11c] sm:$0xff]
        %v2560 = vld [vmem:[%s437 + $0x124] sm:$0xff]
        %v2561 = vld [vmem:[%s437 + $0x12c] sm:$0xff]
        %s2562 = scalar_lea.vmem %s1, 40
        %v2563 = vld [vmem:[%s2562] sm:$0xff]
        %v2565 = vsel %vm538, %v2526, 0
        %v2568 = vsel %vm538, %v2527, 0
        %v2571 = vsel %vm538, %v2528, 0
        %v2574 = vsel %vm538, %v2529, 0
        %v2577 = vsel %vm538, %v2530, 0
        %v2580 = vsel %vm538, %v2531, 0
        %v2583 = vsel %vm538, %v2532, 0
        %v2586 = vsel %vm538, %v2533, 0
        %v2589 = vsel %vm538, %v2534, 0
        %v2592 = vsel %vm538, %v2535, 0
        %v2595 = vsel %vm538, %v2536, 0
        %v2598 = vsel %vm538, %v2537, 0
        %v2601 = vsel %vm538, %v2538, 0
        %v2604 = vsel %vm538, %v2539, 0
        %v2607 = vsel %vm538, %v2540, 0
        %v2610 = vsel %vm538, %v2541, 0
        %v2613 = vsel %vm538, %v2542, 0
        %v2616 = vsel %vm538, %v2543, 0
        %v2619 = vsel %vm538, %v2544, 0
        %v2622 = vsel %vm538, %v2545, 0
        %v2625 = vsel %vm538, %v2546, 0
        %v2628 = vsel %vm538, %v2547, 0
        %v2631 = vsel %vm538, %v2548, 0
        %v2634 = vsel %vm538, %v2549, 0
        %v2637 = vsel %vm538, %v2550, 0
        %v2640 = vsel %vm538, %v2551, 0
        %v2643 = vsel %vm538, %v2552, 0
        %v2646 = vsel %vm538, %v2553, 0
        %v2649 = vsel %vm538, %v2554, 0
        %v2652 = vsel %vm538, %v2555, 0
        %v2655 = vsel %vm538, %v2556, 0
        %v2658 = vsel %vm538, %v2557, 0
        %v2661 = vsel %vm538, %v2558, 0
        %v2664 = vsel %vm538, %v2559, 0
        %v2667 = vsel %vm538, %v2560, 0
        %v2670 = vsel %vm538, %v2561, 0
        %2672 = vmatprep.subr.mxu0 0.0
        %2673 = vmatpush1.msra.mxu0 %v2563
        %2674 = vmatprep.subr.mxu0 0.0
        %2675 = vmatpush1.msra.mxu0 0.0
        %2676 = vmatprep.subr.mxu0 0.0
        %2677 = vmatpush1.msra.mxu0 0.0
        %2678 = vmatprep.subr.mxu0 0.0
        %2679 = vmatpush1.msra.mxu0 0.0
        %2680 = vmatprep.subr.mxu0 0.0
        %2681 = vmatpush1.msra.mxu0 0.0
        %2682 = vmatprep.subr.mxu0 0.0
        %2683 = vmatpush1.msra.mxu0 0.0
        %2684 = vmatprep.subr.mxu0 0.0
        %2685 = vmatpush1.msra.mxu0 0.0
        %2686 = vmatprep.subr.mxu0 0.0
        %2687 = vmatpush1.msra.mxu0 0.0
        %2688 = vmatprep.subr.mxu0 0.0
        %2689 = vmatpush1.msra.mxu0 0.0
        %2690 = vmatprep.subr.mxu0 0.0
        %2691 = vmatpush1.msra.mxu0 0.0
        %2692 = vmatprep.subr.mxu0 0.0
        %2693 = vmatpush1.msra.mxu0 0.0
        %2694 = vmatprep.subr.mxu0 0.0
        %2695 = vmatpush1.msra.mxu0 0.0
        %2696 = vmatprep.subr.mxu0 0.0
        %2697 = vmatpush1.msra.mxu0 0.0
        %2698 = vmatprep.subr.mxu0 0.0
        %2699 = vmatpush1.msra.mxu0 0.0
        %2700 = vmatprep.subr.mxu0 0.0
        %2701 = vmatpush1.msra.mxu0 0.0
        %2702 = vmatprep.subr.mxu0 0.0
        %2703 = vmatpush1.msra.mxu0 0.0
        %2704 = vmatprep.subr.mxu0 0.0
        %2705 = vmatpush1.msra.mxu0 0.0
        %2706 = vmatprep.subr.mxu0 0.0
        %2707 = vmatpush1.msra.mxu0 0.0
        %2708 = vmatprep.subr.mxu0 0.0
        %2709 = vmatpush1.msra.mxu0 0.0
        %2710 = vmatprep.subr.mxu0 0.0
        %2711 = vmatpush1.msra.mxu0 0.0
        %2712 = vmatprep.subr.mxu0 0.0
        %2713 = vmatpush1.msra.mxu0 0.0
        %2714 = vmatprep.subr.mxu0 0.0
        %2715 = vmatpush1.msra.mxu0 0.0
        %2716 = vmatprep.subr.mxu0 0.0
        %2717 = vmatpush1.msra.mxu0 0.0
        %2718 = vmatprep.subr.mxu0 0.0
        %2719 = vmatpush1.msra.mxu0 0.0
        %2720 = vmatprep.subr.mxu0 0.0
        %2721 = vmatpush1.msra.mxu0 0.0
        %2722 = vmatprep.subr.mxu0 0.0
        %2723 = vmatpush1.msra.mxu0 0.0
        %2724 = vmatprep.subr.mxu0 0.0
        %2725 = vmatpush1.msra.mxu0 0.0
        %2726 = vmatprep.subr.mxu0 0.0
        %2727 = vmatpush1.msra.mxu0 0.0
        %2728 = vmatprep.subr.mxu0 0.0
        %2729 = vmatpush1.msra.mxu0 0.0
        %2730 = vmatprep.subr.mxu0 0.0
        %2731 = vmatpush1.msra.mxu0 0.0
        %2732 = vmatprep.subr.mxu0 0.0
        %2733 = vmatpush1.msra.mxu0 0.0
        %2734 = vmatprep.subr.mxu0 0.0
        %2735 = vmatpush1.msra.mxu0 0.0
        %2736 = vmatprep.mubr.f32.mxu0 0.0
        %2737 = vmatmul.mubr.f32.gmra.mrb[0].mxu0 %v2565
        %v2738 = vpop.f32.mrb[0].mxu0
        %v2739 = vadd.f32 0.0, %v2738
        %v2740 = vpop.f32.mrb[0].mxu0
        %2741 = vmatprep.mubr.f32.mxu0 0.0
        %2742 = vmatmul.mubr.f32.gmra.mrb[0].mxu0 %v2568
        %v2743 = vpop.f32.mrb[0].mxu0
        %v2744 = vadd.f32 0.0, %v2743
        %v2745 = vpop.f32.mrb[0].mxu0
        %2746 = vmatprep.mubr.f32.mxu0 0.0
        %2747 = vmatmul.mubr.f32.gmra.mrb[0].mxu0 %v2571
        %v2748 = vpop.f32.mrb[0].mxu0
        %v2749 = vadd.f32 0.0, %v2748
        %v2750 = vpop.f32.mrb[0].mxu0
        %2751 = vmatprep.mubr.f32.mxu0 0.0
        %2752 = vmatmul.mubr.f32.gmra.mrb[0].mxu0 %v2574
        %v2753 = vpop.f32.mrb[0].mxu0
        %v2754 = vadd.f32 0.0, %v2753
        %v2755 = vpop.f32.mrb[0].mxu0
        %2756 = vmatprep.mubr.f32.mxu0 0.0
        %2757 = vmatmul.mubr.f32.gmra.mrb[0].mxu0 %v2577
        %v2758 = vpop.f32.mrb[0].mxu0
        %v2759 = vadd.f32 0.0, %v2758
        %v2760 = vpop.f32.mrb[0].mxu0
        %2761 = vmatprep.mubr.f32.mxu0 0.0
        %2762 = vmatmul.mubr.f32.gmra.mrb[0].mxu0 %v2580
        %v2763 = vpop.f32.mrb[0].mxu0
        %v2764 = vadd.f32 0.0, %v2763
        %v2765 = vpop.f32.mrb[0].mxu0
        %2766 = vmatprep.mubr.f32.mxu0 0.0
        %2767 = vmatmul.mubr.f32.gmra.mrb[0].mxu0 %v2583
        %v2768 = vpop.f32.mrb[0].mxu0
        %v2769 = vadd.f32 0.0, %v2768
        %v2770 = vpop.f32.mrb[0].mxu0
        %2771 = vmatprep.mubr.f32.mxu0 0.0
        %2772 = vmatmul.mubr.f32.gmra.mrb[0].mxu0 %v2586
        %v2773 = vpop.f32.mrb[0].mxu0
        %v2774 = vadd.f32 0.0, %v2773
        %v2775 = vpop.f32.mrb[0].mxu0
        %2776 = vmatprep.mubr.f32.mxu0 0.0
        %2777 = vmatmul.mubr.f32.gmra.mrb[0].mxu0 %v2589
        %v2778 = vpop.f32.mrb[0].mxu0
        %v2779 = vadd.f32 0.0, %v2778
        %v2780 = vpop.f32.mrb[0].mxu0
        %2781 = vmatprep.mubr.f32.mxu0 0.0
        %2782 = vmatmul.mubr.f32.gmra.mrb[0].mxu0 %v2592
        %v2783 = vpop.f32.mrb[0].mxu0
        %v2784 = vadd.f32 0.0, %v2783
        %v2785 = vpop.f32.mrb[0].mxu0
        %2786 = vmatprep.mubr.f32.mxu0 0.0
        %2787 = vmatmul.mubr.f32.gmra.mrb[0].mxu0 %v2595
        %v2788 = vpop.f32.mrb[0].mxu0
        %v2789 = vadd.f32 0.0, %v2788
        %v2790 = vpop.f32.mrb[0].mxu0
        %2791 = vmatprep.mubr.f32.mxu0 0.0
        %2792 = vmatmul.mubr.f32.gmra.mrb[0].mxu0 %v2598
        %v2793 = vpop.f32.mrb[0].mxu0
        %v2794 = vadd.f32 0.0, %v2793
        %v2795 = vpop.f32.mrb[0].mxu0
        %2796 = vmatprep.mubr.f32.mxu0 0.0
        %2797 = vmatmul.mubr.f32.gmra.mrb[0].mxu0 %v2601
        %v2798 = vpop.f32.mrb[0].mxu0
        %v2799 = vadd.f32 0.0, %v2798
        %v2800 = vpop.f32.mrb[0].mxu0
        %2801 = vmatprep.mubr.f32.mxu0 0.0
        %2802 = vmatmul.mubr.f32.gmra.mrb[0].mxu0 %v2604
        %v2803 = vpop.f32.mrb[0].mxu0
        %v2804 = vadd.f32 0.0, %v2803
        %v2805 = vpop.f32.mrb[0].mxu0
        %2806 = vmatprep.mubr.f32.mxu0 0.0
        %2807 = vmatmul.mubr.f32.gmra.mrb[0].mxu0 %v2607
        %v2808 = vpop.f32.mrb[0].mxu0
        %v2809 = vadd.f32 0.0, %v2808
        %v2810 = vpop.f32.mrb[0].mxu0
        %2811 = vmatprep.mubr.f32.mxu0 0.0
        %2812 = vmatmul.mubr.f32.gmra.mrb[0].mxu0 %v2610
        %v2813 = vpop.f32.mrb[0].mxu0
        %v2814 = vadd.f32 0.0, %v2813
        %v2815 = vpop.f32.mrb[0].mxu0
        %2816 = vmatprep.mubr.f32.mxu0 0.0
        %2817 = vmatmul.mubr.f32.gmra.mrb[0].mxu0 %v2613
        %v2818 = vpop.f32.mrb[0].mxu0
        %v2819 = vadd.f32 0.0, %v2818
        %v2820 = vpop.f32.mrb[0].mxu0
        %2821 = vmatprep.mubr.f32.mxu0 0.0
        %2822 = vmatmul.mubr.f32.gmra.mrb[0].mxu0 %v2616
        %v2823 = vpop.f32.mrb[0].mxu0
        %v2824 = vadd.f32 0.0, %v2823
        %v2825 = vpop.f32.mrb[0].mxu0
        %2826 = vmatprep.mubr.f32.mxu0 0.0
        %2827 = vmatmul.mubr.f32.gmra.mrb[0].mxu0 %v2619
        %v2828 = vpop.f32.mrb[0].mxu0
        %v2829 = vadd.f32 0.0, %v2828
        %v2830 = vpop.f32.mrb[0].mxu0
        %2831 = vmatprep.mubr.f32.mxu0 0.0
        %2832 = vmatmul.mubr.f32.gmra.mrb[0].mxu0 %v2622
        %v2833 = vpop.f32.mrb[0].mxu0
        %v2834 = vadd.f32 0.0, %v2833
        %v2835 = vpop.f32.mrb[0].mxu0
        %2836 = vmatprep.mubr.f32.mxu0 0.0
        %2837 = vmatmul.mubr.f32.gmra.mrb[0].mxu0 %v2625
        %v2838 = vpop.f32.mrb[0].mxu0
        %v2839 = vadd.f32 0.0, %v2838
        %v2840 = vpop.f32.mrb[0].mxu0
        %2841 = vmatprep.mubr.f32.mxu0 0.0
        %2842 = vmatmul.mubr.f32.gmra.mrb[0].mxu0 %v2628
        %v2843 = vpop.f32.mrb[0].mxu0
        %v2844 = vadd.f32 0.0, %v2843
        %v2845 = vpop.f32.mrb[0].mxu0
        %2846 = vmatprep.mubr.f32.mxu0 0.0
        %2847 = vmatmul.mubr.f32.gmra.mrb[0].mxu0 %v2631
        %v2848 = vpop.f32.mrb[0].mxu0
        %v2849 = vadd.f32 0.0, %v2848
        %v2850 = vpop.f32.mrb[0].mxu0
        %2851 = vmatprep.mubr.f32.mxu0 0.0
        %2852 = vmatmul.mubr.f32.gmra.mrb[0].mxu0 %v2634
        %v2853 = vpop.f32.mrb[0].mxu0
        %v2854 = vadd.f32 0.0, %v2853
        %v2855 = vpop.f32.mrb[0].mxu0
        %2856 = vmatprep.mubr.f32.mxu0 0.0
        %2857 = vmatmul.mubr.f32.gmra.mrb[0].mxu0 %v2637
        %v2858 = vpop.f32.mrb[0].mxu0
        %v2859 = vadd.f32 0.0, %v2858
        %v2860 = vpop.f32.mrb[0].mxu0
        %2861 = vmatprep.mubr.f32.mxu0 0.0
        %2862 = vmatmul.mubr.f32.gmra.mrb[0].mxu0 %v2640
        %v2863 = vpop.f32.mrb[0].mxu0
        %v2864 = vadd.f32 0.0, %v2863
        %v2865 = vpop.f32.mrb[0].mxu0
        %2866 = vmatprep.mubr.f32.mxu0 0.0
        %2867 = vmatmul.mubr.f32.gmra.mrb[0].mxu0 %v2643
        %v2868 = vpop.f32.mrb[0].mxu0
        %v2869 = vadd.f32 0.0, %v2868
        %v2870 = vpop.f32.mrb[0].mxu0
        %2871 = vmatprep.mubr.f32.mxu0 0.0
        %2872 = vmatmul.mubr.f32.gmra.mrb[0].mxu0 %v2646
        %v2873 = vpop.f32.mrb[0].mxu0
        %v2874 = vadd.f32 0.0, %v2873
        %v2875 = vpop.f32.mrb[0].mxu0
        %2876 = vmatprep.mubr.f32.mxu0 0.0
        %2877 = vmatmul.mubr.f32.gmra.mrb[0].mxu0 %v2649
        %v2878 = vpop.f32.mrb[0].mxu0
        %v2879 = vadd.f32 0.0, %v2878
        %v2880 = vpop.f32.mrb[0].mxu0
        %2881 = vmatprep.mubr.f32.mxu0 0.0
        %2882 = vmatmul.mubr.f32.gmra.mrb[0].mxu0 %v2652
        %v2883 = vpop.f32.mrb[0].mxu0
        %v2884 = vadd.f32 0.0, %v2883
        %v2885 = vpop.f32.mrb[0].mxu0
        %2886 = vmatprep.mubr.f32.mxu0 0.0
        %2887 = vmatmul.mubr.f32.gmra.mrb[0].mxu0 %v2655
        %v2888 = vpop.f32.mrb[0].mxu0
        %v2889 = vadd.f32 0.0, %v2888
        %v2890 = vpop.f32.mrb[0].mxu0
        %2891 = vmatprep.mubr.f32.mxu0 0.0
        %2892 = vmatmul.mubr.f32.gmra.mrb[0].mxu0 %v2658
        %v2893 = vpop.f32.mrb[0].mxu0
        %v2894 = vadd.f32 0.0, %v2893
        %v2895 = vpop.f32.mrb[0].mxu0
        %2896 = vmatprep.mubr.f32.mxu0 0.0
        %2897 = vmatmul.mubr.f32.gmra.mrb[0].mxu0 %v2661
        %v2898 = vpop.f32.mrb[0].mxu0
        %v2899 = vadd.f32 0.0, %v2898
        %v2900 = vpop.f32.mrb[0].mxu0
        %2901 = vmatprep.mubr.f32.mxu0 0.0
        %2902 = vmatmul.mubr.f32.gmra.mrb[0].mxu0 %v2664
        %v2903 = vpop.f32.mrb[0].mxu0
        %v2904 = vadd.f32 0.0, %v2903
        %v2905 = vpop.f32.mrb[0].mxu0
        %2906 = vmatprep.mubr.f32.mxu0 0.0
        %2907 = vmatmul.mubr.f32.gmra.mrb[0].mxu0 %v2667
        %v2908 = vpop.f32.mrb[0].mxu0
        %v2909 = vadd.f32 0.0, %v2908
        %v2910 = vpop.f32.mrb[0].mxu0
        %2911 = vmatprep.mubr.f32.mxu0 0.0
        %2912 = vmatmul.mubr.f32.gmra.mrb[0].mxu0 %v2670
        %v2913 = vpop.f32.mrb[0].mxu0
        %v2914 = vadd.f32 0.0, %v2913
        %v2915 = vpop.f32.mrb[0].mxu0
        %2916 = vdwg.mxu0
        %v2917 = vadd.f32 %v2490, %v2739
        %v2918 = vadd.f32 %v2491, %v2744
        %v2919 = vadd.f32 %v2492, %v2749
        %v2920 = vadd.f32 %v2493, %v2754
        %v2921 = vadd.f32 %v2494, %v2759
        %v2922 = vadd.f32 %v2495, %v2764
        %v2923 = vadd.f32 %v2496, %v2769
        %v2924 = vadd.f32 %v2497, %v2774
        %v2925 = vadd.f32 %v2498, %v2779
        %v2926 = vadd.f32 %v2499, %v2784
        %v2927 = vadd.f32 %v2500, %v2789
        %v2928 = vadd.f32 %v2501, %v2794
        %v2929 = vadd.f32 %v2502, %v2799
        %v2930 = vadd.f32 %v2503, %v2804
        %v2931 = vadd.f32 %v2504, %v2809
        %v2932 = vadd.f32 %v2505, %v2814
        %v2933 = vadd.f32 %v2506, %v2819
        %v2934 = vadd.f32 %v2507, %v2824
        %v2935 = vadd.f32 %v2508, %v2829
        %v2936 = vadd.f32 %v2509, %v2834
        %v2937 = vadd.f32 %v2510, %v2839
        %v2938 = vadd.f32 %v2511, %v2844
        %v2939 = vadd.f32 %v2512, %v2849
        %v2940 = vadd.f32 %v2513, %v2854
        %v2941 = vadd.f32 %v2514, %v2859
        %v2942 = vadd.f32 %v2515, %v2864
        %v2943 = vadd.f32 %v2516, %v2869
        %v2944 = vadd.f32 %v2517, %v2874
        %v2945 = vadd.f32 %v2518, %v2879
        %v2946 = vadd.f32 %v2519, %v2884
        %v2947 = vadd.f32 %v2520, %v2889
        %v2948 = vadd.f32 %v2521, %v2894
        %v2949 = vadd.f32 %v2522, %v2899
        %v2950 = vadd.f32 %v2523, %v2904
        %v2951 = vadd.f32 %v2524, %v2909
        %v2952 = vadd.f32 %v2525, %v2914
        %v2953 = vld [vmem:[%s437 + $0x24] sm:$0xff]
        %v2954 = vld [vmem:[%s437 + $0x2c] sm:$0xff]
        %v2955 = vld [vmem:[%s437 + $0x34] sm:$0xff]
        %v2956 = vld [vmem:[%s437 + $0x3c] sm:$0xff]
        %v2957 = vld [vmem:[%s437 + $0x44] sm:$0xff]
        %v2958 = vld [vmem:[%s437 + $0x4c] sm:$0xff]
        %v2959 = vld [vmem:[%s437 + $0x54] sm:$0xff]
        %v2960 = vld [vmem:[%s437 + $0x5c] sm:$0xff]
        %v2961 = vld [vmem:[%s437 + $0x64] sm:$0xff]
        %v2962 = vld [vmem:[%s437 + $0x6c] sm:$0xff]
        %v2963 = vld [vmem:[%s437 + $0x74] sm:$0xff]
        %v2964 = vld [vmem:[%s437 + $0x7c] sm:$0xff]
        %v2965 = vld [vmem:[%s437 + $0x84] sm:$0xff]
        %v2966 = vld [vmem:[%s437 + $0x8c] sm:$0xff]
        %v2967 = vld [vmem:[%s437 + $0x94] sm:$0xff]
        %v2968 = vld [vmem:[%s437 + $0x9c] sm:$0xff]
        %v2969 = vld [vmem:[%s437 + $0xa4] sm:$0xff]
        %v2970 = vld [vmem:[%s437 + $0xac] sm:$0xff]
        %v2971 = vld [vmem:[%s437 + $0xb4] sm:$0xff]
        %v2972 = vld [vmem:[%s437 + $0xbc] sm:$0xff]
        %v2973 = vld [vmem:[%s437 + $0xc4] sm:$0xff]
        %v2974 = vld [vmem:[%s437 + $0xcc] sm:$0xff]
        %v2975 = vld [vmem:[%s437 + $0xd4] sm:$0xff]
        %v2976 = vld [vmem:[%s437 + $0xdc] sm:$0xff]
        %v2977 = vld [vmem:[%s437 + $0xe4] sm:$0xff]
        %v2978 = vld [vmem:[%s437 + $0xec] sm:$0xff]
        %v2979 = vld [vmem:[%s437 + $0xf4] sm:$0xff]
        %v2980 = vld [vmem:[%s437 + $0xfc] sm:$0xff]
        %v2981 = vld [vmem:[%s437 + $0x104] sm:$0xff]
        %v2982 = vld [vmem:[%s437 + $0x10c] sm:$0xff]
        %v2983 = vld [vmem:[%s437 + $0x114] sm:$0xff]
        %v2984 = vld [vmem:[%s437 + $0x11c] sm:$0xff]
        %v2985 = vld [vmem:[%s437 + $0x124] sm:$0xff]
        %v2986 = vld [vmem:[%s437 + $0x12c] sm:$0xff]
        %v2987 = vld [vmem:[%s437 + $0x134] sm:$0xff]
        %v2988 = vld [vmem:[%s437 + $0x13c] sm:$0xff]
        %s2989 = scalar_lea.vmem %s1, 48
        %v2990 = vld [vmem:[%s2989] sm:$0xff]
        %v2992 = vsel %vm538, %v2953, 0
        %v2995 = vsel %vm538, %v2954, 0
        %v2998 = vsel %vm538, %v2955, 0
        %v3001 = vsel %vm538, %v2956, 0
        %v3004 = vsel %vm538, %v2957, 0
        %v3007 = vsel %vm538, %v2958, 0
        %v3010 = vsel %vm538, %v2959, 0
        %v3013 = vsel %vm538, %v2960, 0
        %v3016 = vsel %vm538, %v2961, 0
        %v3019 = vsel %vm538, %v2962, 0
        %v3022 = vsel %vm538, %v2963, 0
        %v3025 = vsel %vm538, %v2964, 0
        %v3028 = vsel %vm538, %v2965, 0
        %v3031 = vsel %vm538, %v2966, 0
        %v3034 = vsel %vm538, %v2967, 0
        %v3037 = vsel %vm538, %v2968, 0
        %v3040 = vsel %vm538, %v2969, 0
        %v3043 = vsel %vm538, %v2970, 0
        %v3046 = vsel %vm538, %v2971, 0
        %v3049 = vsel %vm538, %v2972, 0
        %v3052 = vsel %vm538, %v2973, 0
        %v3055 = vsel %vm538, %v2974, 0
        %v3058 = vsel %vm538, %v2975, 0
        %v3061 = vsel %vm538, %v2976, 0
        %v3064 = vsel %vm538, %v2977, 0
        %v3067 = vsel %vm538, %v2978, 0
        %v3070 = vsel %vm538, %v2979, 0
        %v3073 = vsel %vm538, %v2980, 0
        %v3076 = vsel %vm538, %v2981, 0
        %v3079 = vsel %vm538, %v2982, 0
        %v3082 = vsel %vm538, %v2983, 0
        %v3085 = vsel %vm538, %v2984, 0
        %v3088 = vsel %vm538, %v2985, 0
        %v3091 = vsel %vm538, %v2986, 0
        %v3094 = vsel %vm538, %v2987, 0
        %v3097 = vsel %vm538, %v2988, 0
        %3099 = vmatprep.subr.mxu0 0.0
        %3100 = vmatpush1.msra.mxu0 %v2990
        %3101 = vmatprep.subr.mxu0 0.0
        %3102 = vmatpush1.msra.mxu0 0.0
        %3103 = vmatprep.subr.mxu0 0.0
        %3104 = vmatpush1.msra.mxu0 0.0
        %3105 = vmatprep.subr.mxu0 0.0
        %3106 = vmatpush1.msra.mxu0 0.0
        %3107 = vmatprep.subr.mxu0 0.0
        %3108 = vmatpush1.msra.mxu0 0.0
        %3109 = vmatprep.subr.mxu0 0.0
        %3110 = vmatpush1.msra.mxu0 0.0
        %3111 = vmatprep.subr.mxu0 0.0
        %3112 = vmatpush1.msra.mxu0 0.0
        %3113 = vmatprep.subr.mxu0 0.0
        %3114 = vmatpush1.msra.mxu0 0.0
        %3115 = vmatprep.subr.mxu0 0.0
        %3116 = vmatpush1.msra.mxu0 0.0
        %3117 = vmatprep.subr.mxu0 0.0
        %3118 = vmatpush1.msra.mxu0 0.0
        %3119 = vmatprep.subr.mxu0 0.0
        %3120 = vmatpush1.msra.mxu0 0.0
        %3121 = vmatprep.subr.mxu0 0.0
        %3122 = vmatpush1.msra.mxu0 0.0
        %3123 = vmatprep.subr.mxu0 0.0
        %3124 = vmatpush1.msra.mxu0 0.0
        %3125 = vmatprep.subr.mxu0 0.0
        %3126 = vmatpush1.msra.mxu0 0.0
        %3127 = vmatprep.subr.mxu0 0.0
        %3128 = vmatpush1.msra.mxu0 0.0
        %3129 = vmatprep.subr.mxu0 0.0
        %3130 = vmatpush1.msra.mxu0 0.0
        %3131 = vmatprep.subr.mxu0 0.0
        %3132 = vmatpush1.msra.mxu0 0.0
        %3133 = vmatprep.subr.mxu0 0.0
        %3134 = vmatpush1.msra.mxu0 0.0
        %3135 = vmatprep.subr.mxu0 0.0
        %3136 = vmatpush1.msra.mxu0 0.0
        %3137 = vmatprep.subr.mxu0 0.0
        %3138 = vmatpush1.msra.mxu0 0.0
        %3139 = vmatprep.subr.mxu0 0.0
        %3140 = vmatpush1.msra.mxu0 0.0
        %3141 = vmatprep.subr.mxu0 0.0
        %3142 = vmatpush1.msra.mxu0 0.0
        %3143 = vmatprep.subr.mxu0 0.0
        %3144 = vmatpush1.msra.mxu0 0.0
        %3145 = vmatprep.subr.mxu0 0.0
        %3146 = vmatpush1.msra.mxu0 0.0
        %3147 = vmatprep.subr.mxu0 0.0
        %3148 = vmatpush1.msra.mxu0 0.0
        %3149 = vmatprep.subr.mxu0 0.0
        %3150 = vmatpush1.msra.mxu0 0.0
        %3151 = vmatprep.subr.mxu0 0.0
        %3152 = vmatpush1.msra.mxu0 0.0
        %3153 = vmatprep.subr.mxu0 0.0
        %3154 = vmatpush1.msra.mxu0 0.0
        %3155 = vmatprep.subr.mxu0 0.0
        %3156 = vmatpush1.msra.mxu0 0.0
        %3157 = vmatprep.subr.mxu0 0.0
        %3158 = vmatpush1.msra.mxu0 0.0
        %3159 = vmatprep.subr.mxu0 0.0
        %3160 = vmatpush1.msra.mxu0 0.0
        %3161 = vmatprep.subr.mxu0 0.0
        %3162 = vmatpush1.msra.mxu0 0.0
        %3163 = vmatprep.mubr.f32.mxu0 0.0
        %3164 = vmatmul.mubr.f32.gmra.mrb[0].mxu0 %v2992
        %v3165 = vpop.f32.mrb[0].mxu0
        %v3166 = vadd.f32 0.0, %v3165
        %v3167 = vpop.f32.mrb[0].mxu0
        %3168 = vmatprep.mubr.f32.mxu0 0.0
        %3169 = vmatmul.mubr.f32.gmra.mrb[0].mxu0 %v2995
        %v3170 = vpop.f32.mrb[0].mxu0
        %v3171 = vadd.f32 0.0, %v3170
        %v3172 = vpop.f32.mrb[0].mxu0
        %3173 = vmatprep.mubr.f32.mxu0 0.0
        %3174 = vmatmul.mubr.f32.gmra.mrb[0].mxu0 %v2998
        %v3175 = vpop.f32.mrb[0].mxu0
        %v3176 = vadd.f32 0.0, %v3175
        %v3177 = vpop.f32.mrb[0].mxu0
        %3178 = vmatprep.mubr.f32.mxu0 0.0
        %3179 = vmatmul.mubr.f32.gmra.mrb[0].mxu0 %v3001
        %v3180 = vpop.f32.mrb[0].mxu0
        %v3181 = vadd.f32 0.0, %v3180
        %v3182 = vpop.f32.mrb[0].mxu0
        %3183 = vmatprep.mubr.f32.mxu0 0.0
        %3184 = vmatmul.mubr.f32.gmra.mrb[0].mxu0 %v3004
        %v3185 = vpop.f32.mrb[0].mxu0
        %v3186 = vadd.f32 0.0, %v3185
        %v3187 = vpop.f32.mrb[0].mxu0
        %3188 = vmatprep.mubr.f32.mxu0 0.0
        %3189 = vmatmul.mubr.f32.gmra.mrb[0].mxu0 %v3007
        %v3190 = vpop.f32.mrb[0].mxu0
        %v3191 = vadd.f32 0.0, %v3190
        %v3192 = vpop.f32.mrb[0].mxu0
        %3193 = vmatprep.mubr.f32.mxu0 0.0
        %3194 = vmatmul.mubr.f32.gmra.mrb[0].mxu0 %v3010
        %v3195 = vpop.f32.mrb[0].mxu0
        %v3196 = vadd.f32 0.0, %v3195
        %v3197 = vpop.f32.mrb[0].mxu0
        %3198 = vmatprep.mubr.f32.mxu0 0.0
        %3199 = vmatmul.mubr.f32.gmra.mrb[0].mxu0 %v3013
        %v3200 = vpop.f32.mrb[0].mxu0
        %v3201 = vadd.f32 0.0, %v3200
        %v3202 = vpop.f32.mrb[0].mxu0
        %3203 = vmatprep.mubr.f32.mxu0 0.0
        %3204 = vmatmul.mubr.f32.gmra.mrb[0].mxu0 %v3016
        %v3205 = vpop.f32.mrb[0].mxu0
        %v3206 = vadd.f32 0.0, %v3205
        %v3207 = vpop.f32.mrb[0].mxu0
        %3208 = vmatprep.mubr.f32.mxu0 0.0
        %3209 = vmatmul.mubr.f32.gmra.mrb[0].mxu0 %v3019
        %v3210 = vpop.f32.mrb[0].mxu0
        %v3211 = vadd.f32 0.0, %v3210
        %v3212 = vpop.f32.mrb[0].mxu0
        %3213 = vmatprep.mubr.f32.mxu0 0.0
        %3214 = vmatmul.mubr.f32.gmra.mrb[0].mxu0 %v3022
        %v3215 = vpop.f32.mrb[0].mxu0
        %v3216 = vadd.f32 0.0, %v3215
        %v3217 = vpop.f32.mrb[0].mxu0
        %3218 = vmatprep.mubr.f32.mxu0 0.0
        %3219 = vmatmul.mubr.f32.gmra.mrb[0].mxu0 %v3025
        %v3220 = vpop.f32.mrb[0].mxu0
        %v3221 = vadd.f32 0.0, %v3220
        %v3222 = vpop.f32.mrb[0].mxu0
        %3223 = vmatprep.mubr.f32.mxu0 0.0
        %3224 = vmatmul.mubr.f32.gmra.mrb[0].mxu0 %v3028
        %v3225 = vpop.f32.mrb[0].mxu0
        %v3226 = vadd.f32 0.0, %v3225
        %v3227 = vpop.f32.mrb[0].mxu0
        %3228 = vmatprep.mubr.f32.mxu0 0.0
        %3229 = vmatmul.mubr.f32.gmra.mrb[0].mxu0 %v3031
        %v3230 = vpop.f32.mrb[0].mxu0
        %v3231 = vadd.f32 0.0, %v3230
        %v3232 = vpop.f32.mrb[0].mxu0
        %3233 = vmatprep.mubr.f32.mxu0 0.0
        %3234 = vmatmul.mubr.f32.gmra.mrb[0].mxu0 %v3034
        %v3235 = vpop.f32.mrb[0].mxu0
        %v3236 = vadd.f32 0.0, %v3235
        %v3237 = vpop.f32.mrb[0].mxu0
        %3238 = vmatprep.mubr.f32.mxu0 0.0
        %3239 = vmatmul.mubr.f32.gmra.mrb[0].mxu0 %v3037
        %v3240 = vpop.f32.mrb[0].mxu0
        %v3241 = vadd.f32 0.0, %v3240
        %v3242 = vpop.f32.mrb[0].mxu0
        %3243 = vmatprep.mubr.f32.mxu0 0.0
        %3244 = vmatmul.mubr.f32.gmra.mrb[0].mxu0 %v3040
        %v3245 = vpop.f32.mrb[0].mxu0
        %v3246 = vadd.f32 0.0, %v3245
        %v3247 = vpop.f32.mrb[0].mxu0
        %3248 = vmatprep.mubr.f32.mxu0 0.0
        %3249 = vmatmul.mubr.f32.gmra.mrb[0].mxu0 %v3043
        %v3250 = vpop.f32.mrb[0].mxu0
        %v3251 = vadd.f32 0.0, %v3250
        %v3252 = vpop.f32.mrb[0].mxu0
        %3253 = vmatprep.mubr.f32.mxu0 0.0
        %3254 = vmatmul.mubr.f32.gmra.mrb[0].mxu0 %v3046
        %v3255 = vpop.f32.mrb[0].mxu0
        %v3256 = vadd.f32 0.0, %v3255
        %v3257 = vpop.f32.mrb[0].mxu0
        %3258 = vmatprep.mubr.f32.mxu0 0.0
        %3259 = vmatmul.mubr.f32.gmra.mrb[0].mxu0 %v3049
        %v3260 = vpop.f32.mrb[0].mxu0
        %v3261 = vadd.f32 0.0, %v3260
        %v3262 = vpop.f32.mrb[0].mxu0
        %3263 = vmatprep.mubr.f32.mxu0 0.0
        %3264 = vmatmul.mubr.f32.gmra.mrb[0].mxu0 %v3052
        %v3265 = vpop.f32.mrb[0].mxu0
        %v3266 = vadd.f32 0.0, %v3265
        %v3267 = vpop.f32.mrb[0].mxu0
        %3268 = vmatprep.mubr.f32.mxu0 0.0
        %3269 = vmatmul.mubr.f32.gmra.mrb[0].mxu0 %v3055
        %v3270 = vpop.f32.mrb[0].mxu0
        %v3271 = vadd.f32 0.0, %v3270
        %v3272 = vpop.f32.mrb[0].mxu0
        %3273 = vmatprep.mubr.f32.mxu0 0.0
        %3274 = vmatmul.mubr.f32.gmra.mrb[0].mxu0 %v3058
        %v3275 = vpop.f32.mrb[0].mxu0
        %v3276 = vadd.f32 0.0, %v3275
        %v3277 = vpop.f32.mrb[0].mxu0
        %3278 = vmatprep.mubr.f32.mxu0 0.0
        %3279 = vmatmul.mubr.f32.gmra.mrb[0].mxu0 %v3061
        %v3280 = vpop.f32.mrb[0].mxu0
        %v3281 = vadd.f32 0.0, %v3280
        %v3282 = vpop.f32.mrb[0].mxu0
        %3283 = vmatprep.mubr.f32.mxu0 0.0
        %3284 = vmatmul.mubr.f32.gmra.mrb[0].mxu0 %v3064
        %v3285 = vpop.f32.mrb[0].mxu0
        %v3286 = vadd.f32 0.0, %v3285
        %v3287 = vpop.f32.mrb[0].mxu0
        %3288 = vmatprep.mubr.f32.mxu0 0.0
        %3289 = vmatmul.mubr.f32.gmra.mrb[0].mxu0 %v3067
        %v3290 = vpop.f32.mrb[0].mxu0
        %v3291 = vadd.f32 0.0, %v3290
        %v3292 = vpop.f32.mrb[0].mxu0
        %3293 = vmatprep.mubr.f32.mxu0 0.0
        %3294 = vmatmul.mubr.f32.gmra.mrb[0].mxu0 %v3070
        %v3295 = vpop.f32.mrb[0].mxu0
        %v3296 = vadd.f32 0.0, %v3295
        %v3297 = vpop.f32.mrb[0].mxu0
        %3298 = vmatprep.mubr.f32.mxu0 0.0
        %3299 = vmatmul.mubr.f32.gmra.mrb[0].mxu0 %v3073
        %v3300 = vpop.f32.mrb[0].mxu0
        %v3301 = vadd.f32 0.0, %v3300
        %v3302 = vpop.f32.mrb[0].mxu0
        %3303 = vmatprep.mubr.f32.mxu0 0.0
        %3304 = vmatmul.mubr.f32.gmra.mrb[0].mxu0 %v3076
        %v3305 = vpop.f32.mrb[0].mxu0
        %v3306 = vadd.f32 0.0, %v3305
        %v3307 = vpop.f32.mrb[0].mxu0
        %3308 = vmatprep.mubr.f32.mxu0 0.0
        %3309 = vmatmul.mubr.f32.gmra.mrb[0].mxu0 %v3079
        %v3310 = vpop.f32.mrb[0].mxu0
        %v3311 = vadd.f32 0.0, %v3310
        %v3312 = vpop.f32.mrb[0].mxu0
        %3313 = vmatprep.mubr.f32.mxu0 0.0
        %3314 = vmatmul.mubr.f32.gmra.mrb[0].mxu0 %v3082
        %v3315 = vpop.f32.mrb[0].mxu0
        %v3316 = vadd.f32 0.0, %v3315
        %v3317 = vpop.f32.mrb[0].mxu0
        %3318 = vmatprep.mubr.f32.mxu0 0.0
        %3319 = vmatmul.mubr.f32.gmra.mrb[0].mxu0 %v3085
        %v3320 = vpop.f32.mrb[0].mxu0
        %v3321 = vadd.f32 0.0, %v3320
        %v3322 = vpop.f32.mrb[0].mxu0
        %3323 = vmatprep.mubr.f32.mxu0 0.0
        %3324 = vmatmul.mubr.f32.gmra.mrb[0].mxu0 %v3088
        %v3325 = vpop.f32.mrb[0].mxu0
        %v3326 = vadd.f32 0.0, %v3325
        %v3327 = vpop.f32.mrb[0].mxu0
        %3328 = vmatprep.mubr.f32.mxu0 0.0
        %3329 = vmatmul.mubr.f32.gmra.mrb[0].mxu0 %v3091
        %v3330 = vpop.f32.mrb[0].mxu0
        %v3331 = vadd.f32 0.0, %v3330
        %v3332 = vpop.f32.mrb[0].mxu0
        %3333 = vmatprep.mubr.f32.mxu0 0.0
        %3334 = vmatmul.mubr.f32.gmra.mrb[0].mxu0 %v3094
        %v3335 = vpop.f32.mrb[0].mxu0
        %v3336 = vadd.f32 0.0, %v3335
        %v3337 = vpop.f32.mrb[0].mxu0
        %3338 = vmatprep.mubr.f32.mxu0 0.0
        %3339 = vmatmul.mubr.f32.gmra.mrb[0].mxu0 %v3097
        %v3340 = vpop.f32.mrb[0].mxu0
        %v3341 = vadd.f32 0.0, %v3340
        %v3342 = vpop.f32.mrb[0].mxu0
        %3343 = vdwg.mxu0
        %v3344 = vadd.f32 %v2917, %v3166
        %v3345 = vadd.f32 %v2918, %v3171
        %v3346 = vadd.f32 %v2919, %v3176
        %v3347 = vadd.f32 %v2920, %v3181
        %v3348 = vadd.f32 %v2921, %v3186
        %v3349 = vadd.f32 %v2922, %v3191
        %v3350 = vadd.f32 %v2923, %v3196
        %v3351 = vadd.f32 %v2924, %v3201
        %v3352 = vadd.f32 %v2925, %v3206
        %v3353 = vadd.f32 %v2926, %v3211
        %v3354 = vadd.f32 %v2927, %v3216
        %v3355 = vadd.f32 %v2928, %v3221
        %v3356 = vadd.f32 %v2929, %v3226
        %v3357 = vadd.f32 %v2930, %v3231
        %v3358 = vadd.f32 %v2931, %v3236
        %v3359 = vadd.f32 %v2932, %v3241
        %v3360 = vadd.f32 %v2933, %v3246
        %v3361 = vadd.f32 %v2934, %v3251
        %v3362 = vadd.f32 %v2935, %v3256
        %v3363 = vadd.f32 %v2936, %v3261
        %v3364 = vadd.f32 %v2937, %v3266
        %v3365 = vadd.f32 %v2938, %v3271
        %v3366 = vadd.f32 %v2939, %v3276
        %v3367 = vadd.f32 %v2940, %v3281
        %v3368 = vadd.f32 %v2941, %v3286
        %v3369 = vadd.f32 %v2942, %v3291
        %v3370 = vadd.f32 %v2943, %v3296
        %v3371 = vadd.f32 %v2944, %v3301
        %v3372 = vadd.f32 %v2945, %v3306
        %v3373 = vadd.f32 %v2946, %v3311
        %v3374 = vadd.f32 %v2947, %v3316
        %v3375 = vadd.f32 %v2948, %v3321
        %v3376 = vadd.f32 %v2949, %v3326
        %v3377 = vadd.f32 %v2950, %v3331
        %v3378 = vadd.f32 %v2951, %v3336
        %v3379 = vadd.f32 %v2952, %v3341
        %v3380 = vld [vmem:[%s437 + $0x25] sm:$0xff]
        %v3381 = vld [vmem:[%s437 + $0x2d] sm:$0xff]
        %v3382 = vld [vmem:[%s437 + $0x35] sm:$0xff]
        %v3383 = vld [vmem:[%s437 + $0x3d] sm:$0xff]
        %v3384 = vld [vmem:[%s437 + $0x45] sm:$0xff]
        %v3385 = vld [vmem:[%s437 + $0x4d] sm:$0xff]
        %v3386 = vld [vmem:[%s437 + $0x55] sm:$0xff]
        %v3387 = vld [vmem:[%s437 + $0x5d] sm:$0xff]
        %v3388 = vld [vmem:[%s437 + $0x65] sm:$0xff]
        %v3389 = vld [vmem:[%s437 + $0x6d] sm:$0xff]
        %v3390 = vld [vmem:[%s437 + $0x75] sm:$0xff]
        %v3391 = vld [vmem:[%s437 + $0x7d] sm:$0xff]
        %v3392 = vld [vmem:[%s437 + $0x85] sm:$0xff]
        %v3393 = vld [vmem:[%s437 + $0x8d] sm:$0xff]
        %v3394 = vld [vmem:[%s437 + $0x95] sm:$0xff]
        %v3395 = vld [vmem:[%s437 + $0x9d] sm:$0xff]
        %v3396 = vld [vmem:[%s437 + $0xa5] sm:$0xff]
        %v3397 = vld [vmem:[%s437 + $0xad] sm:$0xff]
        %v3398 = vld [vmem:[%s437 + $0xb5] sm:$0xff]
        %v3399 = vld [vmem:[%s437 + $0xbd] sm:$0xff]
        %v3400 = vld [vmem:[%s437 + $0xc5] sm:$0xff]
        %v3401 = vld [vmem:[%s437 + $0xcd] sm:$0xff]
        %v3402 = vld [vmem:[%s437 + $0xd5] sm:$0xff]
        %v3403 = vld [vmem:[%s437 + $0xdd] sm:$0xff]
        %v3404 = vld [vmem:[%s437 + $0xe5] sm:$0xff]
        %v3405 = vld [vmem:[%s437 + $0xed] sm:$0xff]
        %v3406 = vld [vmem:[%s437 + $0xf5] sm:$0xff]
        %v3407 = vld [vmem:[%s437 + $0xfd] sm:$0xff]
        %v3408 = vld [vmem:[%s437 + $0x105] sm:$0xff]
        %v3409 = vld [vmem:[%s437 + $0x10d] sm:$0xff]
        %v3410 = vld [vmem:[%s437 + $0x115] sm:$0xff]
        %v3411 = vld [vmem:[%s437 + $0x11d] sm:$0xff]
        %v3412 = vld [vmem:[%s437 + $0x125] sm:$0xff]
        %v3413 = vld [vmem:[%s437 + $0x12d] sm:$0xff]
        %v3414 = vld [vmem:[%s437 + $0x135] sm:$0xff]
        %v3415 = vld [vmem:[%s437 + $0x13d] sm:$0xff]
        %s3416 = scalar_lea.vmem %s1, 56
        %v3417 = vld [vmem:[%s3416] sm:$0xff]
        %v3419 = vsel %vm538, %v3380, 0
        %v3422 = vsel %vm538, %v3381, 0
        %v3425 = vsel %vm538, %v3382, 0
        %v3428 = vsel %vm538, %v3383, 0
        %v3431 = vsel %vm538, %v3384, 0
        %v3434 = vsel %vm538, %v3385, 0
        %v3437 = vsel %vm538, %v3386, 0
        %v3440 = vsel %vm538, %v3387, 0
        %v3443 = vsel %vm538, %v3388, 0
        %v3446 = vsel %vm538, %v3389, 0
        %v3449 = vsel %vm538, %v3390, 0
        %v3452 = vsel %vm538, %v3391, 0
        %v3455 = vsel %vm538, %v3392, 0
        %v3458 = vsel %vm538, %v3393, 0
        %v3461 = vsel %vm538, %v3394, 0
        %v3464 = vsel %vm538, %v3395, 0
        %v3467 = vsel %vm538, %v3396, 0
        %v3470 = vsel %vm538, %v3397, 0
        %v3473 = vsel %vm538, %v3398, 0
        %v3476 = vsel %vm538, %v3399, 0
        %v3479 = vsel %vm538, %v3400, 0
        %v3482 = vsel %vm538, %v3401, 0
        %v3485 = vsel %vm538, %v3402, 0
        %v3488 = vsel %vm538, %v3403, 0
        %v3491 = vsel %vm538, %v3404, 0
        %v3494 = vsel %vm538, %v3405, 0
        %v3497 = vsel %vm538, %v3406, 0
        %v3500 = vsel %vm538, %v3407, 0
        %v3503 = vsel %vm538, %v3408, 0
        %v3506 = vsel %vm538, %v3409, 0
        %v3509 = vsel %vm538, %v3410, 0
        %v3512 = vsel %vm538, %v3411, 0
        %v3515 = vsel %vm538, %v3412, 0
        %v3518 = vsel %vm538, %v3413, 0
        %v3521 = vsel %vm538, %v3414, 0
        %v3524 = vsel %vm538, %v3415, 0
        %3526 = vmatprep.subr.mxu0 0.0
        %3527 = vmatpush1.msra.mxu0 %v3417
        %3528 = vmatprep.subr.mxu0 0.0
        %3529 = vmatpush1.msra.mxu0 0.0
        %3530 = vmatprep.subr.mxu0 0.0
        %3531 = vmatpush1.msra.mxu0 0.0
        %3532 = vmatprep.subr.mxu0 0.0
        %3533 = vmatpush1.msra.mxu0 0.0
        %3534 = vmatprep.subr.mxu0 0.0
        %3535 = vmatpush1.msra.mxu0 0.0
        %3536 = vmatprep.subr.mxu0 0.0
        %3537 = vmatpush1.msra.mxu0 0.0
        %3538 = vmatprep.subr.mxu0 0.0
        %3539 = vmatpush1.msra.mxu0 0.0
        %3540 = vmatprep.subr.mxu0 0.0
        %3541 = vmatpush1.msra.mxu0 0.0
        %3542 = vmatprep.subr.mxu0 0.0
        %3543 = vmatpush1.msra.mxu0 0.0
        %3544 = vmatprep.subr.mxu0 0.0
        %3545 = vmatpush1.msra.mxu0 0.0
        %3546 = vmatprep.subr.mxu0 0.0
        %3547 = vmatpush1.msra.mxu0 0.0
        %3548 = vmatprep.subr.mxu0 0.0
        %3549 = vmatpush1.msra.mxu0 0.0
        %3550 = vmatprep.subr.mxu0 0.0
        %3551 = vmatpush1.msra.mxu0 0.0
        %3552 = vmatprep.subr.mxu0 0.0
        %3553 = vmatpush1.msra.mxu0 0.0
        %3554 = vmatprep.subr.mxu0 0.0
        %3555 = vmatpush1.msra.mxu0 0.0
        %3556 = vmatprep.subr.mxu0 0.0
        %3557 = vmatpush1.msra.mxu0 0.0
        %3558 = vmatprep.subr.mxu0 0.0
        %3559 = vmatpush1.msra.mxu0 0.0
        %3560 = vmatprep.subr.mxu0 0.0
        %3561 = vmatpush1.msra.mxu0 0.0
        %3562 = vmatprep.subr.mxu0 0.0
        %3563 = vmatpush1.msra.mxu0 0.0
        %3564 = vmatprep.subr.mxu0 0.0
        %3565 = vmatpush1.msra.mxu0 0.0
        %3566 = vmatprep.subr.mxu0 0.0
        %3567 = vmatpush1.msra.mxu0 0.0
        %3568 = vmatprep.subr.mxu0 0.0
        %3569 = vmatpush1.msra.mxu0 0.0
        %3570 = vmatprep.subr.mxu0 0.0
        %3571 = vmatpush1.msra.mxu0 0.0
        %3572 = vmatprep.subr.mxu0 0.0
        %3573 = vmatpush1.msra.mxu0 0.0
        %3574 = vmatprep.subr.mxu0 0.0
        %3575 = vmatpush1.msra.mxu0 0.0
        %3576 = vmatprep.subr.mxu0 0.0
        %3577 = vmatpush1.msra.mxu0 0.0
        %3578 = vmatprep.subr.mxu0 0.0
        %3579 = vmatpush1.msra.mxu0 0.0
        %3580 = vmatprep.subr.mxu0 0.0
        %3581 = vmatpush1.msra.mxu0 0.0
        %3582 = vmatprep.subr.mxu0 0.0
        %3583 = vmatpush1.msra.mxu0 0.0
        %3584 = vmatprep.subr.mxu0 0.0
        %3585 = vmatpush1.msra.mxu0 0.0
        %3586 = vmatprep.subr.mxu0 0.0
        %3587 = vmatpush1.msra.mxu0 0.0
        %3588 = vmatprep.subr.mxu0 0.0
        %3589 = vmatpush1.msra.mxu0 0.0
        %3590 = vmatprep.mubr.f32.mxu0 0.0
        %3591 = vmatmul.mubr.f32.gmra.mrb[0].mxu0 %v3419
        %v3592 = vpop.f32.mrb[0].mxu0
        %v3593 = vadd.f32 0.0, %v3592
        %v3594 = vpop.f32.mrb[0].mxu0
        %3595 = vmatprep.mubr.f32.mxu0 0.0
        %3596 = vmatmul.mubr.f32.gmra.mrb[0].mxu0 %v3422
        %v3597 = vpop.f32.mrb[0].mxu0
        %v3598 = vadd.f32 0.0, %v3597
        %v3599 = vpop.f32.mrb[0].mxu0
        %3600 = vmatprep.mubr.f32.mxu0 0.0
        %3601 = vmatmul.mubr.f32.gmra.mrb[0].mxu0 %v3425
        %v3602 = vpop.f32.mrb[0].mxu0
        %v3603 = vadd.f32 0.0, %v3602
        %v3604 = vpop.f32.mrb[0].mxu0
        %3605 = vmatprep.mubr.f32.mxu0 0.0
        %3606 = vmatmul.mubr.f32.gmra.mrb[0].mxu0 %v3428
        %v3607 = vpop.f32.mrb[0].mxu0
        %v3608 = vadd.f32 0.0, %v3607
        %v3609 = vpop.f32.mrb[0].mxu0
        %3610 = vmatprep.mubr.f32.mxu0 0.0
        %3611 = vmatmul.mubr.f32.gmra.mrb[0].mxu0 %v3431
        %v3612 = vpop.f32.mrb[0].mxu0
        %v3613 = vadd.f32 0.0, %v3612
        %v3614 = vpop.f32.mrb[0].mxu0
        %3615 = vmatprep.mubr.f32.mxu0 0.0
        %3616 = vmatmul.mubr.f32.gmra.mrb[0].mxu0 %v3434
        %v3617 = vpop.f32.mrb[0].mxu0
        %v3618 = vadd.f32 0.0, %v3617
        %v3619 = vpop.f32.mrb[0].mxu0
        %3620 = vmatprep.mubr.f32.mxu0 0.0
        %3621 = vmatmul.mubr.f32.gmra.mrb[0].mxu0 %v3437
        %v3622 = vpop.f32.mrb[0].mxu0
        %v3623 = vadd.f32 0.0, %v3622
        %v3624 = vpop.f32.mrb[0].mxu0
        %3625 = vmatprep.mubr.f32.mxu0 0.0
        %3626 = vmatmul.mubr.f32.gmra.mrb[0].mxu0 %v3440
        %v3627 = vpop.f32.mrb[0].mxu0
        %v3628 = vadd.f32 0.0, %v3627
        %v3629 = vpop.f32.mrb[0].mxu0
        %3630 = vmatprep.mubr.f32.mxu0 0.0
        %3631 = vmatmul.mubr.f32.gmra.mrb[0].mxu0 %v3443
        %v3632 = vpop.f32.mrb[0].mxu0
        %v3633 = vadd.f32 0.0, %v3632
        %v3634 = vpop.f32.mrb[0].mxu0
        %3635 = vmatprep.mubr.f32.mxu0 0.0
        %3636 = vmatmul.mubr.f32.gmra.mrb[0].mxu0 %v3446
        %v3637 = vpop.f32.mrb[0].mxu0
        %v3638 = vadd.f32 0.0, %v3637
        %v3639 = vpop.f32.mrb[0].mxu0
        %3640 = vmatprep.mubr.f32.mxu0 0.0
        %3641 = vmatmul.mubr.f32.gmra.mrb[0].mxu0 %v3449
        %v3642 = vpop.f32.mrb[0].mxu0
        %v3643 = vadd.f32 0.0, %v3642
        %v3644 = vpop.f32.mrb[0].mxu0
        %3645 = vmatprep.mubr.f32.mxu0 0.0
        %3646 = vmatmul.mubr.f32.gmra.mrb[0].mxu0 %v3452
        %v3647 = vpop.f32.mrb[0].mxu0
        %v3648 = vadd.f32 0.0, %v3647
        %v3649 = vpop.f32.mrb[0].mxu0
        %3650 = vmatprep.mubr.f32.mxu0 0.0
        %3651 = vmatmul.mubr.f32.gmra.mrb[0].mxu0 %v3455
        %v3652 = vpop.f32.mrb[0].mxu0
        %v3653 = vadd.f32 0.0, %v3652
        %v3654 = vpop.f32.mrb[0].mxu0
        %3655 = vmatprep.mubr.f32.mxu0 0.0
        %3656 = vmatmul.mubr.f32.gmra.mrb[0].mxu0 %v3458
        %v3657 = vpop.f32.mrb[0].mxu0
        %v3658 = vadd.f32 0.0, %v3657
        %v3659 = vpop.f32.mrb[0].mxu0
        %3660 = vmatprep.mubr.f32.mxu0 0.0
        %3661 = vmatmul.mubr.f32.gmra.mrb[0].mxu0 %v3461
        %v3662 = vpop.f32.mrb[0].mxu0
        %v3663 = vadd.f32 0.0, %v3662
        %v3664 = vpop.f32.mrb[0].mxu0
        %3665 = vmatprep.mubr.f32.mxu0 0.0
        %3666 = vmatmul.mubr.f32.gmra.mrb[0].mxu0 %v3464
        %v3667 = vpop.f32.mrb[0].mxu0
        %v3668 = vadd.f32 0.0, %v3667
        %v3669 = vpop.f32.mrb[0].mxu0
        %3670 = vmatprep.mubr.f32.mxu0 0.0
        %3671 = vmatmul.mubr.f32.gmra.mrb[0].mxu0 %v3467
        %v3672 = vpop.f32.mrb[0].mxu0
        %v3673 = vadd.f32 0.0, %v3672
        %v3674 = vpop.f32.mrb[0].mxu0
        %3675 = vmatprep.mubr.f32.mxu0 0.0
        %3676 = vmatmul.mubr.f32.gmra.mrb[0].mxu0 %v3470
        %v3677 = vpop.f32.mrb[0].mxu0
        %v3678 = vadd.f32 0.0, %v3677
        %v3679 = vpop.f32.mrb[0].mxu0
        %3680 = vmatprep.mubr.f32.mxu0 0.0
        %3681 = vmatmul.mubr.f32.gmra.mrb[0].mxu0 %v3473
        %v3682 = vpop.f32.mrb[0].mxu0
        %v3683 = vadd.f32 0.0, %v3682
        %v3684 = vpop.f32.mrb[0].mxu0
        %3685 = vmatprep.mubr.f32.mxu0 0.0
        %3686 = vmatmul.mubr.f32.gmra.mrb[0].mxu0 %v3476
        %v3687 = vpop.f32.mrb[0].mxu0
        %v3688 = vadd.f32 0.0, %v3687
        %v3689 = vpop.f32.mrb[0].mxu0
        %3690 = vmatprep.mubr.f32.mxu0 0.0
        %3691 = vmatmul.mubr.f32.gmra.mrb[0].mxu0 %v3479
        %v3692 = vpop.f32.mrb[0].mxu0
        %v3693 = vadd.f32 0.0, %v3692
        %v3694 = vpop.f32.mrb[0].mxu0
        %3695 = vmatprep.mubr.f32.mxu0 0.0
        %3696 = vmatmul.mubr.f32.gmra.mrb[0].mxu0 %v3482
        %v3697 = vpop.f32.mrb[0].mxu0
        %v3698 = vadd.f32 0.0, %v3697
        %v3699 = vpop.f32.mrb[0].mxu0
        %3700 = vmatprep.mubr.f32.mxu0 0.0
        %3701 = vmatmul.mubr.f32.gmra.mrb[0].mxu0 %v3485
        %v3702 = vpop.f32.mrb[0].mxu0
        %v3703 = vadd.f32 0.0, %v3702
        %v3704 = vpop.f32.mrb[0].mxu0
        %3705 = vmatprep.mubr.f32.mxu0 0.0
        %3706 = vmatmul.mubr.f32.gmra.mrb[0].mxu0 %v3488
        %v3707 = vpop.f32.mrb[0].mxu0
        %v3708 = vadd.f32 0.0, %v3707
        %v3709 = vpop.f32.mrb[0].mxu0
        %3710 = vmatprep.mubr.f32.mxu0 0.0
        %3711 = vmatmul.mubr.f32.gmra.mrb[0].mxu0 %v3491
        %v3712 = vpop.f32.mrb[0].mxu0
        %v3713 = vadd.f32 0.0, %v3712
        %v3714 = vpop.f32.mrb[0].mxu0
        %3715 = vmatprep.mubr.f32.mxu0 0.0
        %3716 = vmatmul.mubr.f32.gmra.mrb[0].mxu0 %v3494
        %v3717 = vpop.f32.mrb[0].mxu0
        %v3718 = vadd.f32 0.0, %v3717
        %v3719 = vpop.f32.mrb[0].mxu0
        %3720 = vmatprep.mubr.f32.mxu0 0.0
        %3721 = vmatmul.mubr.f32.gmra.mrb[0].mxu0 %v3497
        %v3722 = vpop.f32.mrb[0].mxu0
        %v3723 = vadd.f32 0.0, %v3722
        %v3724 = vpop.f32.mrb[0].mxu0
        %3725 = vmatprep.mubr.f32.mxu0 0.0
        %3726 = vmatmul.mubr.f32.gmra.mrb[0].mxu0 %v3500
        %v3727 = vpop.f32.mrb[0].mxu0
        %v3728 = vadd.f32 0.0, %v3727
        %v3729 = vpop.f32.mrb[0].mxu0
        %3730 = vmatprep.mubr.f32.mxu0 0.0
        %3731 = vmatmul.mubr.f32.gmra.mrb[0].mxu0 %v3503
        %v3732 = vpop.f32.mrb[0].mxu0
        %v3733 = vadd.f32 0.0, %v3732
        %v3734 = vpop.f32.mrb[0].mxu0
        %3735 = vmatprep.mubr.f32.mxu0 0.0
        %3736 = vmatmul.mubr.f32.gmra.mrb[0].mxu0 %v3506
        %v3737 = vpop.f32.mrb[0].mxu0
        %v3738 = vadd.f32 0.0, %v3737
        %v3739 = vpop.f32.mrb[0].mxu0
        %3740 = vmatprep.mubr.f32.mxu0 0.0
        %3741 = vmatmul.mubr.f32.gmra.mrb[0].mxu0 %v3509
        %v3742 = vpop.f32.mrb[0].mxu0
        %v3743 = vadd.f32 0.0, %v3742
        %v3744 = vpop.f32.mrb[0].mxu0
        %3745 = vmatprep.mubr.f32.mxu0 0.0
        %3746 = vmatmul.mubr.f32.gmra.mrb[0].mxu0 %v3512
        %v3747 = vpop.f32.mrb[0].mxu0
        %v3748 = vadd.f32 0.0, %v3747
        %v3749 = vpop.f32.mrb[0].mxu0
        %3750 = vmatprep.mubr.f32.mxu0 0.0
        %3751 = vmatmul.mubr.f32.gmra.mrb[0].mxu0 %v3515
        %v3752 = vpop.f32.mrb[0].mxu0
        %v3753 = vadd.f32 0.0, %v3752
        %v3754 = vpop.f32.mrb[0].mxu0
        %3755 = vmatprep.mubr.f32.mxu0 0.0
        %3756 = vmatmul.mubr.f32.gmra.mrb[0].mxu0 %v3518
        %v3757 = vpop.f32.mrb[0].mxu0
        %v3758 = vadd.f32 0.0, %v3757
        %v3759 = vpop.f32.mrb[0].mxu0
        %3760 = vmatprep.mubr.f32.mxu0 0.0
        %3761 = vmatmul.mubr.f32.gmra.mrb[0].mxu0 %v3521
        %v3762 = vpop.f32.mrb[0].mxu0
        %v3763 = vadd.f32 0.0, %v3762
        %v3764 = vpop.f32.mrb[0].mxu0
        %3765 = vmatprep.mubr.f32.mxu0 0.0
        %3766 = vmatmul.mubr.f32.gmra.mrb[0].mxu0 %v3524
        %v3767 = vpop.f32.mrb[0].mxu0
        %v3768 = vadd.f32 0.0, %v3767
        %v3769 = vpop.f32.mrb[0].mxu0
        %3770 = vdwg.mxu0
        %v3771 = vadd.f32 %v3344, %v3593
        %v3772 = vadd.f32 %v3345, %v3598
        %v3773 = vadd.f32 %v3346, %v3603
        %v3774 = vadd.f32 %v3347, %v3608
        %v3775 = vadd.f32 %v3348, %v3613
        %v3776 = vadd.f32 %v3349, %v3618
        %v3777 = vadd.f32 %v3350, %v3623
        %v3778 = vadd.f32 %v3351, %v3628
        %v3779 = vadd.f32 %v3352, %v3633
        %v3780 = vadd.f32 %v3353, %v3638
        %v3781 = vadd.f32 %v3354, %v3643
        %v3782 = vadd.f32 %v3355, %v3648
        %v3783 = vadd.f32 %v3356, %v3653
        %v3784 = vadd.f32 %v3357, %v3658
        %v3785 = vadd.f32 %v3358, %v3663
        %v3786 = vadd.f32 %v3359, %v3668
        %v3787 = vadd.f32 %v3360, %v3673
        %v3788 = vadd.f32 %v3361, %v3678
        %v3789 = vadd.f32 %v3362, %v3683
        %v3790 = vadd.f32 %v3363, %v3688
        %v3791 = vadd.f32 %v3364, %v3693
        %v3792 = vadd.f32 %v3365, %v3698
        %v3793 = vadd.f32 %v3366, %v3703
        %v3794 = vadd.f32 %v3367, %v3708
        %v3795 = vadd.f32 %v3368, %v3713
        %v3796 = vadd.f32 %v3369, %v3718
        %v3797 = vadd.f32 %v3370, %v3723
        %v3798 = vadd.f32 %v3371, %v3728
        %v3799 = vadd.f32 %v3372, %v3733
        %v3800 = vadd.f32 %v3373, %v3738
        %v3801 = vadd.f32 %v3374, %v3743
        %v3802 = vadd.f32 %v3375, %v3748
        %v3803 = vadd.f32 %v3376, %v3753
        %v3804 = vadd.f32 %v3377, %v3758
        %v3805 = vadd.f32 %v3378, %v3763
        %v3806 = vadd.f32 %v3379, %v3768
        %v3807 = vld [vmem:[%s437 + $0x26] sm:$0xff]
        %v3808 = vld [vmem:[%s437 + $0x2e] sm:$0xff]
        %v3809 = vld [vmem:[%s437 + $0x36] sm:$0xff]
        %v3810 = vld [vmem:[%s437 + $0x3e] sm:$0xff]
        %v3811 = vld [vmem:[%s437 + $0x46] sm:$0xff]
        %v3812 = vld [vmem:[%s437 + $0x4e] sm:$0xff]
        %v3813 = vld [vmem:[%s437 + $0x56] sm:$0xff]
        %v3814 = vld [vmem:[%s437 + $0x5e] sm:$0xff]
        %v3815 = vld [vmem:[%s437 + $0x66] sm:$0xff]
        %v3816 = vld [vmem:[%s437 + $0x6e] sm:$0xff]
        %v3817 = vld [vmem:[%s437 + $0x76] sm:$0xff]
        %v3818 = vld [vmem:[%s437 + $0x7e] sm:$0xff]
        %v3819 = vld [vmem:[%s437 + $0x86] sm:$0xff]
        %v3820 = vld [vmem:[%s437 + $0x8e] sm:$0xff]
        %v3821 = vld [vmem:[%s437 + $0x96] sm:$0xff]
        %v3822 = vld [vmem:[%s437 + $0x9e] sm:$0xff]
        %v3823 = vld [vmem:[%s437 + $0xa6] sm:$0xff]
        %v3824 = vld [vmem:[%s437 + $0xae] sm:$0xff]
        %v3825 = vld [vmem:[%s437 + $0xb6] sm:$0xff]
        %v3826 = vld [vmem:[%s437 + $0xbe] sm:$0xff]
        %v3827 = vld [vmem:[%s437 + $0xc6] sm:$0xff]
        %v3828 = vld [vmem:[%s437 + $0xce] sm:$0xff]
        %v3829 = vld [vmem:[%s437 + $0xd6] sm:$0xff]
        %v3830 = vld [vmem:[%s437 + $0xde] sm:$0xff]
        %v3831 = vld [vmem:[%s437 + $0xe6] sm:$0xff]
        %v3832 = vld [vmem:[%s437 + $0xee] sm:$0xff]
        %v3833 = vld [vmem:[%s437 + $0xf6] sm:$0xff]
        %v3834 = vld [vmem:[%s437 + $0xfe] sm:$0xff]
        %v3835 = vld [vmem:[%s437 + $0x106] sm:$0xff]
        %v3836 = vld [vmem:[%s437 + $0x10e] sm:$0xff]
        %v3837 = vld [vmem:[%s437 + $0x116] sm:$0xff]
        %v3838 = vld [vmem:[%s437 + $0x11e] sm:$0xff]
        %v3839 = vld [vmem:[%s437 + $0x126] sm:$0xff]
        %v3840 = vld [vmem:[%s437 + $0x12e] sm:$0xff]
        %v3841 = vld [vmem:[%s437 + $0x136] sm:$0xff]
        %v3842 = vld [vmem:[%s437 + $0x13e] sm:$0xff]
        %s3843 = scalar_lea.vmem %s1, 64
        %v3844 = vld [vmem:[%s3843] sm:$0xff]
        %v3846 = vsel %vm538, %v3807, 0
        %v3849 = vsel %vm538, %v3808, 0
        %v3852 = vsel %vm538, %v3809, 0
        %v3855 = vsel %vm538, %v3810, 0
        %v3858 = vsel %vm538, %v3811, 0
        %v3861 = vsel %vm538, %v3812, 0
        %v3864 = vsel %vm538, %v3813, 0
        %v3867 = vsel %vm538, %v3814, 0
        %v3870 = vsel %vm538, %v3815, 0
        %v3873 = vsel %vm538, %v3816, 0
        %v3876 = vsel %vm538, %v3817, 0
        %v3879 = vsel %vm538, %v3818, 0
        %v3882 = vsel %vm538, %v3819, 0
        %v3885 = vsel %vm538, %v3820, 0
        %v3888 = vsel %vm538, %v3821, 0
        %v3891 = vsel %vm538, %v3822, 0
        %v3894 = vsel %vm538, %v3823, 0
        %v3897 = vsel %vm538, %v3824, 0
        %v3900 = vsel %vm538, %v3825, 0
        %v3903 = vsel %vm538, %v3826, 0
        %v3906 = vsel %vm538, %v3827, 0
        %v3909 = vsel %vm538, %v3828, 0
        %v3912 = vsel %vm538, %v3829, 0
        %v3915 = vsel %vm538, %v3830, 0
        %v3918 = vsel %vm538, %v3831, 0
        %v3921 = vsel %vm538, %v3832, 0
        %v3924 = vsel %vm538, %v3833, 0
        %v3927 = vsel %vm538, %v3834, 0
        %v3930 = vsel %vm538, %v3835, 0
        %v3933 = vsel %vm538, %v3836, 0
        %v3936 = vsel %vm538, %v3837, 0
        %v3939 = vsel %vm538, %v3838, 0
        %v3942 = vsel %vm538, %v3839, 0
        %v3945 = vsel %vm538, %v3840, 0
        %v3948 = vsel %vm538, %v3841, 0
        %v3951 = vsel %vm538, %v3842, 0
        %3953 = vmatprep.subr.mxu0 0.0
        %3954 = vmatpush1.msra.mxu0 %v3844
        %3955 = vmatprep.subr.mxu0 0.0
        %3956 = vmatpush1.msra.mxu0 0.0
        %3957 = vmatprep.subr.mxu0 0.0
        %3958 = vmatpush1.msra.mxu0 0.0
        %3959 = vmatprep.subr.mxu0 0.0
        %3960 = vmatpush1.msra.mxu0 0.0
        %3961 = vmatprep.subr.mxu0 0.0
        %3962 = vmatpush1.msra.mxu0 0.0
        %3963 = vmatprep.subr.mxu0 0.0
        %3964 = vmatpush1.msra.mxu0 0.0
        %3965 = vmatprep.subr.mxu0 0.0
        %3966 = vmatpush1.msra.mxu0 0.0
        %3967 = vmatprep.subr.mxu0 0.0
        %3968 = vmatpush1.msra.mxu0 0.0
        %3969 = vmatprep.subr.mxu0 0.0
        %3970 = vmatpush1.msra.mxu0 0.0
        %3971 = vmatprep.subr.mxu0 0.0
        %3972 = vmatpush1.msra.mxu0 0.0
        %3973 = vmatprep.subr.mxu0 0.0
        %3974 = vmatpush1.msra.mxu0 0.0
        %3975 = vmatprep.subr.mxu0 0.0
        %3976 = vmatpush1.msra.mxu0 0.0
        %3977 = vmatprep.subr.mxu0 0.0
        %3978 = vmatpush1.msra.mxu0 0.0
        %3979 = vmatprep.subr.mxu0 0.0
        %3980 = vmatpush1.msra.mxu0 0.0
        %3981 = vmatprep.subr.mxu0 0.0
        %3982 = vmatpush1.msra.mxu0 0.0
        %3983 = vmatprep.subr.mxu0 0.0
        %3984 = vmatpush1.msra.mxu0 0.0
        %3985 = vmatprep.subr.mxu0 0.0
        %3986 = vmatpush1.msra.mxu0 0.0
        %3987 = vmatprep.subr.mxu0 0.0
        %3988 = vmatpush1.msra.mxu0 0.0
        %3989 = vmatprep.subr.mxu0 0.0
        %3990 = vmatpush1.msra.mxu0 0.0
        %3991 = vmatprep.subr.mxu0 0.0
        %3992 = vmatpush1.msra.mxu0 0.0
        %3993 = vmatprep.subr.mxu0 0.0
        %3994 = vmatpush1.msra.mxu0 0.0
        %3995 = vmatprep.subr.mxu0 0.0
        %3996 = vmatpush1.msra.mxu0 0.0
        %3997 = vmatprep.subr.mxu0 0.0
        %3998 = vmatpush1.msra.mxu0 0.0
        %3999 = vmatprep.subr.mxu0 0.0
        %4000 = vmatpush1.msra.mxu0 0.0
        %4001 = vmatprep.subr.mxu0 0.0
        %4002 = vmatpush1.msra.mxu0 0.0
        %4003 = vmatprep.subr.mxu0 0.0
        %4004 = vmatpush1.msra.mxu0 0.0
        %4005 = vmatprep.subr.mxu0 0.0
        %4006 = vmatpush1.msra.mxu0 0.0
        %4007 = vmatprep.subr.mxu0 0.0
        %4008 = vmatpush1.msra.mxu0 0.0
        %4009 = vmatprep.subr.mxu0 0.0
        %4010 = vmatpush1.msra.mxu0 0.0
        %4011 = vmatprep.subr.mxu0 0.0
        %4012 = vmatpush1.msra.mxu0 0.0
        %4013 = vmatprep.subr.mxu0 0.0
        %4014 = vmatpush1.msra.mxu0 0.0
        %4015 = vmatprep.subr.mxu0 0.0
        %4016 = vmatpush1.msra.mxu0 0.0
        %4017 = vmatprep.mubr.f32.mxu0 0.0
        %4018 = vmatmul.mubr.f32.gmra.mrb[0].mxu0 %v3846
        %v4019 = vpop.f32.mrb[0].mxu0
        %v4020 = vadd.f32 0.0, %v4019
        %v4021 = vpop.f32.mrb[0].mxu0
        %4022 = vmatprep.mubr.f32.mxu0 0.0
        %4023 = vmatmul.mubr.f32.gmra.mrb[0].mxu0 %v3849
        %v4024 = vpop.f32.mrb[0].mxu0
        %v4025 = vadd.f32 0.0, %v4024
        %v4026 = vpop.f32.mrb[0].mxu0
        %4027 = vmatprep.mubr.f32.mxu0 0.0
        %4028 = vmatmul.mubr.f32.gmra.mrb[0].mxu0 %v3852
        %v4029 = vpop.f32.mrb[0].mxu0
        %v4030 = vadd.f32 0.0, %v4029
        %v4031 = vpop.f32.mrb[0].mxu0
        %4032 = vmatprep.mubr.f32.mxu0 0.0
        %4033 = vmatmul.mubr.f32.gmra.mrb[0].mxu0 %v3855
        %v4034 = vpop.f32.mrb[0].mxu0
        %v4035 = vadd.f32 0.0, %v4034
        %v4036 = vpop.f32.mrb[0].mxu0
        %4037 = vmatprep.mubr.f32.mxu0 0.0
        %4038 = vmatmul.mubr.f32.gmra.mrb[0].mxu0 %v3858
        %v4039 = vpop.f32.mrb[0].mxu0
        %v4040 = vadd.f32 0.0, %v4039
        %v4041 = vpop.f32.mrb[0].mxu0
        %4042 = vmatprep.mubr.f32.mxu0 0.0
        %4043 = vmatmul.mubr.f32.gmra.mrb[0].mxu0 %v3861
        %v4044 = vpop.f32.mrb[0].mxu0
        %v4045 = vadd.f32 0.0, %v4044
        %v4046 = vpop.f32.mrb[0].mxu0
        %4047 = vmatprep.mubr.f32.mxu0 0.0
        %4048 = vmatmul.mubr.f32.gmra.mrb[0].mxu0 %v3864
        %v4049 = vpop.f32.mrb[0].mxu0
        %v4050 = vadd.f32 0.0, %v4049
        %v4051 = vpop.f32.mrb[0].mxu0
        %4052 = vmatprep.mubr.f32.mxu0 0.0
        %4053 = vmatmul.mubr.f32.gmra.mrb[0].mxu0 %v3867
        %v4054 = vpop.f32.mrb[0].mxu0
        %v4055 = vadd.f32 0.0, %v4054
        %v4056 = vpop.f32.mrb[0].mxu0
        %4057 = vmatprep.mubr.f32.mxu0 0.0
        %4058 = vmatmul.mubr.f32.gmra.mrb[0].mxu0 %v3870
        %v4059 = vpop.f32.mrb[0].mxu0
        %v4060 = vadd.f32 0.0, %v4059
        %v4061 = vpop.f32.mrb[0].mxu0
        %4062 = vmatprep.mubr.f32.mxu0 0.0
        %4063 = vmatmul.mubr.f32.gmra.mrb[0].mxu0 %v3873
        %v4064 = vpop.f32.mrb[0].mxu0
        %v4065 = vadd.f32 0.0, %v4064
        %v4066 = vpop.f32.mrb[0].mxu0
        %4067 = vmatprep.mubr.f32.mxu0 0.0
        %4068 = vmatmul.mubr.f32.gmra.mrb[0].mxu0 %v3876
        %v4069 = vpop.f32.mrb[0].mxu0
        %v4070 = vadd.f32 0.0, %v4069
        %v4071 = vpop.f32.mrb[0].mxu0
        %4072 = vmatprep.mubr.f32.mxu0 0.0
        %4073 = vmatmul.mubr.f32.gmra.mrb[0].mxu0 %v3879
        %v4074 = vpop.f32.mrb[0].mxu0
        %v4075 = vadd.f32 0.0, %v4074
        %v4076 = vpop.f32.mrb[0].mxu0
        %4077 = vmatprep.mubr.f32.mxu0 0.0
        %4078 = vmatmul.mubr.f32.gmra.mrb[0].mxu0 %v3882
        %v4079 = vpop.f32.mrb[0].mxu0
        %v4080 = vadd.f32 0.0, %v4079
        %v4081 = vpop.f32.mrb[0].mxu0
        %4082 = vmatprep.mubr.f32.mxu0 0.0
        %4083 = vmatmul.mubr.f32.gmra.mrb[0].mxu0 %v3885
        %v4084 = vpop.f32.mrb[0].mxu0
        %v4085 = vadd.f32 0.0, %v4084
        %v4086 = vpop.f32.mrb[0].mxu0
        %4087 = vmatprep.mubr.f32.mxu0 0.0
        %4088 = vmatmul.mubr.f32.gmra.mrb[0].mxu0 %v3888
        %v4089 = vpop.f32.mrb[0].mxu0
        %v4090 = vadd.f32 0.0, %v4089
        %v4091 = vpop.f32.mrb[0].mxu0
        %4092 = vmatprep.mubr.f32.mxu0 0.0
        %4093 = vmatmul.mubr.f32.gmra.mrb[0].mxu0 %v3891
        %v4094 = vpop.f32.mrb[0].mxu0
        %v4095 = vadd.f32 0.0, %v4094
        %v4096 = vpop.f32.mrb[0].mxu0
        %4097 = vmatprep.mubr.f32.mxu0 0.0
        %4098 = vmatmul.mubr.f32.gmra.mrb[0].mxu0 %v3894
        %v4099 = vpop.f32.mrb[0].mxu0
        %v4100 = vadd.f32 0.0, %v4099
        %v4101 = vpop.f32.mrb[0].mxu0
        %4102 = vmatprep.mubr.f32.mxu0 0.0
        %4103 = vmatmul.mubr.f32.gmra.mrb[0].mxu0 %v3897
        %v4104 = vpop.f32.mrb[0].mxu0
        %v4105 = vadd.f32 0.0, %v4104
        %v4106 = vpop.f32.mrb[0].mxu0
        %4107 = vmatprep.mubr.f32.mxu0 0.0
        %4108 = vmatmul.mubr.f32.gmra.mrb[0].mxu0 %v3900
        %v4109 = vpop.f32.mrb[0].mxu0
        %v4110 = vadd.f32 0.0, %v4109
        %v4111 = vpop.f32.mrb[0].mxu0
        %4112 = vmatprep.mubr.f32.mxu0 0.0
        %4113 = vmatmul.mubr.f32.gmra.mrb[0].mxu0 %v3903
        %v4114 = vpop.f32.mrb[0].mxu0
        %v4115 = vadd.f32 0.0, %v4114
        %v4116 = vpop.f32.mrb[0].mxu0
        %4117 = vmatprep.mubr.f32.mxu0 0.0
        %4118 = vmatmul.mubr.f32.gmra.mrb[0].mxu0 %v3906
        %v4119 = vpop.f32.mrb[0].mxu0
        %v4120 = vadd.f32 0.0, %v4119
        %v4121 = vpop.f32.mrb[0].mxu0
        %4122 = vmatprep.mubr.f32.mxu0 0.0
        %4123 = vmatmul.mubr.f32.gmra.mrb[0].mxu0 %v3909
        %v4124 = vpop.f32.mrb[0].mxu0
        %v4125 = vadd.f32 0.0, %v4124
        %v4126 = vpop.f32.mrb[0].mxu0
        %4127 = vmatprep.mubr.f32.mxu0 0.0
        %4128 = vmatmul.mubr.f32.gmra.mrb[0].mxu0 %v3912
        %v4129 = vpop.f32.mrb[0].mxu0
        %v4130 = vadd.f32 0.0, %v4129
        %v4131 = vpop.f32.mrb[0].mxu0
        %4132 = vmatprep.mubr.f32.mxu0 0.0
        %4133 = vmatmul.mubr.f32.gmra.mrb[0].mxu0 %v3915
        %v4134 = vpop.f32.mrb[0].mxu0
        %v4135 = vadd.f32 0.0, %v4134
        %v4136 = vpop.f32.mrb[0].mxu0
        %4137 = vmatprep.mubr.f32.mxu0 0.0
        %4138 = vmatmul.mubr.f32.gmra.mrb[0].mxu0 %v3918
        %v4139 = vpop.f32.mrb[0].mxu0
        %v4140 = vadd.f32 0.0, %v4139
        %v4141 = vpop.f32.mrb[0].mxu0
        %4142 = vmatprep.mubr.f32.mxu0 0.0
        %4143 = vmatmul.mubr.f32.gmra.mrb[0].mxu0 %v3921
        %v4144 = vpop.f32.mrb[0].mxu0
        %v4145 = vadd.f32 0.0, %v4144
        %v4146 = vpop.f32.mrb[0].mxu0
        %4147 = vmatprep.mubr.f32.mxu0 0.0
        %4148 = vmatmul.mubr.f32.gmra.mrb[0].mxu0 %v3924
        %v4149 = vpop.f32.mrb[0].mxu0
        %v4150 = vadd.f32 0.0, %v4149
        %v4151 = vpop.f32.mrb[0].mxu0
        %4152 = vmatprep.mubr.f32.mxu0 0.0
        %4153 = vmatmul.mubr.f32.gmra.mrb[0].mxu0 %v3927
        %v4154 = vpop.f32.mrb[0].mxu0
        %v4155 = vadd.f32 0.0, %v4154
        %v4156 = vpop.f32.mrb[0].mxu0
        %4157 = vmatprep.mubr.f32.mxu0 0.0
        %4158 = vmatmul.mubr.f32.gmra.mrb[0].mxu0 %v3930
        %v4159 = vpop.f32.mrb[0].mxu0
        %v4160 = vadd.f32 0.0, %v4159
        %v4161 = vpop.f32.mrb[0].mxu0
        %4162 = vmatprep.mubr.f32.mxu0 0.0
        %4163 = vmatmul.mubr.f32.gmra.mrb[0].mxu0 %v3933
        %v4164 = vpop.f32.mrb[0].mxu0
        %v4165 = vadd.f32 0.0, %v4164
        %v4166 = vpop.f32.mrb[0].mxu0
        %4167 = vmatprep.mubr.f32.mxu0 0.0
        %4168 = vmatmul.mubr.f32.gmra.mrb[0].mxu0 %v3936
        %v4169 = vpop.f32.mrb[0].mxu0
        %v4170 = vadd.f32 0.0, %v4169
        %v4171 = vpop.f32.mrb[0].mxu0
        %4172 = vmatprep.mubr.f32.mxu0 0.0
        %4173 = vmatmul.mubr.f32.gmra.mrb[0].mxu0 %v3939
        %v4174 = vpop.f32.mrb[0].mxu0
        %v4175 = vadd.f32 0.0, %v4174
        %v4176 = vpop.f32.mrb[0].mxu0
        %4177 = vmatprep.mubr.f32.mxu0 0.0
        %4178 = vmatmul.mubr.f32.gmra.mrb[0].mxu0 %v3942
        %v4179 = vpop.f32.mrb[0].mxu0
        %v4180 = vadd.f32 0.0, %v4179
        %v4181 = vpop.f32.mrb[0].mxu0
        %4182 = vmatprep.mubr.f32.mxu0 0.0
        %4183 = vmatmul.mubr.f32.gmra.mrb[0].mxu0 %v3945
        %v4184 = vpop.f32.mrb[0].mxu0
        %v4185 = vadd.f32 0.0, %v4184
        %v4186 = vpop.f32.mrb[0].mxu0
        %4187 = vmatprep.mubr.f32.mxu0 0.0
        %4188 = vmatmul.mubr.f32.gmra.mrb[0].mxu0 %v3948
        %v4189 = vpop.f32.mrb[0].mxu0
        %v4190 = vadd.f32 0.0, %v4189
        %v4191 = vpop.f32.mrb[0].mxu0
        %4192 = vmatprep.mubr.f32.mxu0 0.0
        %4193 = vmatmul.mubr.f32.gmra.mrb[0].mxu0 %v3951
        %v4194 = vpop.f32.mrb[0].mxu0
        %v4195 = vadd.f32 0.0, %v4194
        %v4196 = vpop.f32.mrb[0].mxu0
        %4197 = vdwg.mxu0
        %v4198 = vadd.f32 %v3771, %v4020
        %v4199 = vadd.f32 %v3772, %v4025
        %v4200 = vadd.f32 %v3773, %v4030
        %v4201 = vadd.f32 %v3774, %v4035
        %v4202 = vadd.f32 %v3775, %v4040
        %v4203 = vadd.f32 %v3776, %v4045
        %v4204 = vadd.f32 %v3777, %v4050
        %v4205 = vadd.f32 %v3778, %v4055
        %v4206 = vadd.f32 %v3779, %v4060
        %v4207 = vadd.f32 %v3780, %v4065
        %v4208 = vadd.f32 %v3781, %v4070
        %v4209 = vadd.f32 %v3782, %v4075
        %v4210 = vadd.f32 %v3783, %v4080
        %v4211 = vadd.f32 %v3784, %v4085
        %v4212 = vadd.f32 %v3785, %v4090
        %v4213 = vadd.f32 %v3786, %v4095
        %v4214 = vadd.f32 %v3787, %v4100
        %v4215 = vadd.f32 %v3788, %v4105
        %v4216 = vadd.f32 %v3789, %v4110
        %v4217 = vadd.f32 %v3790, %v4115
        %v4218 = vadd.f32 %v3791, %v4120
        %v4219 = vadd.f32 %v3792, %v4125
        %v4220 = vadd.f32 %v3793, %v4130
        %v4221 = vadd.f32 %v3794, %v4135
        %v4222 = vadd.f32 %v3795, %v4140
        %v4223 = vadd.f32 %v3796, %v4145
        %v4224 = vadd.f32 %v3797, %v4150
        %v4225 = vadd.f32 %v3798, %v4155
        %v4226 = vadd.f32 %v3799, %v4160
        %v4227 = vadd.f32 %v3800, %v4165
        %v4228 = vadd.f32 %v3801, %v4170
        %v4229 = vadd.f32 %v3802, %v4175
        %v4230 = vadd.f32 %v3803, %v4180
        %v4231 = vadd.f32 %v3804, %v4185
        %v4232 = vadd.f32 %v3805, %v4190
        %v4233 = vadd.f32 %v3806, %v4195
        %4234 = vst.msk [vmem:[#allocation2] sm:$0xff] %vm438, %v4198
        %4235 = vst.msk [vmem:[#allocation2 + $0x8] sm:$0xff] %vm438, %v4199
        %4236 = vst.msk [vmem:[#allocation2 + $0x10] sm:$0xff] %vm438, %v4200
        %4237 = vst.msk [vmem:[#allocation2 + $0x18] sm:$0xff] %vm438, %v4201
        %4238 = vst.msk [vmem:[#allocation2 + $0x20] sm:$0xff] %vm438, %v4202
        %4239 = vst.msk [vmem:[#allocation2 + $0x28] sm:$0xff] %vm438, %v4203
        %4240 = vst.msk [vmem:[#allocation2 + $0x30] sm:$0xff] %vm438, %v4204
        %4241 = vst.msk [vmem:[#allocation2 + $0x38] sm:$0xff] %vm438, %v4205
        %4242 = vst.msk [vmem:[#allocation2 + $0x40] sm:$0xff] %vm438, %v4206
        %4243 = vst.msk [vmem:[#allocation2 + $0x48] sm:$0xff] %vm438, %v4207
        %4244 = vst.msk [vmem:[#allocation2 + $0x50] sm:$0xff] %vm438, %v4208
        %4245 = vst.msk [vmem:[#allocation2 + $0x58] sm:$0xff] %vm438, %v4209
        %4246 = vst.msk [vmem:[#allocation2 + $0x60] sm:$0xff] %vm438, %v4210
        %4247 = vst.msk [vmem:[#allocation2 + $0x68] sm:$0xff] %vm438, %v4211
        %4248 = vst.msk [vmem:[#allocation2 + $0x70] sm:$0xff] %vm438, %v4212
        %4249 = vst.msk [vmem:[#allocation2 + $0x78] sm:$0xff] %vm438, %v4213
        %4250 = vst.msk [vmem:[#allocation2 + $0x80] sm:$0xff] %vm438, %v4214
        %4251 = vst.msk [vmem:[#allocation2 + $0x88] sm:$0xff] %vm438, %v4215
        %4252 = vst.msk [vmem:[#allocation2 + $0x90] sm:$0xff] %vm438, %v4216
        %4253 = vst.msk [vmem:[#allocation2 + $0x98] sm:$0xff] %vm438, %v4217
        %4254 = vst.msk [vmem:[#allocation2 + $0xa0] sm:$0xff] %vm438, %v4218
        %4255 = vst.msk [vmem:[#allocation2 + $0xa8] sm:$0xff] %vm438, %v4219
        %4256 = vst.msk [vmem:[#allocation2 + $0xb0] sm:$0xff] %vm438, %v4220
        %4257 = vst.msk [vmem:[#allocation2 + $0xb8] sm:$0xff] %vm438, %v4221
        %4258 = vst.msk [vmem:[#allocation2 + $0xc0] sm:$0xff] %vm438, %v4222
        %4259 = vst.msk [vmem:[#allocation2 + $0xc8] sm:$0xff] %vm438, %v4223
        %4260 = vst.msk [vmem:[#allocation2 + $0xd0] sm:$0xff] %vm438, %v4224
        %4261 = vst.msk [vmem:[#allocation2 + $0xd8] sm:$0xff] %vm438, %v4225
        %4262 = vst.msk [vmem:[#allocation2 + $0xe0] sm:$0xff] %vm438, %v4226
        %4263 = vst.msk [vmem:[#allocation2 + $0xe8] sm:$0xff] %vm438, %v4227
        %4264 = vst.msk [vmem:[#allocation2 + $0xf0] sm:$0xff] %vm438, %v4228
        %4265 = vst.msk [vmem:[#allocation2 + $0xf8] sm:$0xff] %vm438, %v4229
        %4266 = vst.msk [vmem:[#allocation2 + $0x100] sm:$0xff] %vm438, %v4230
        %4267 = vst.msk [vmem:[#allocation2 + $0x108] sm:$0xff] %vm438, %v4231
        %4268 = vst.msk [vmem:[#allocation2 + $0x110] sm:$0xff] %vm438, %v4232
        %4269 = vst.msk [vmem:[#allocation2 + $0x118] sm:$0xff] %vm438, %v4233
        %v4270 = vld [vmem:[%s2] sm:$0x1]
        %v4271 = vld [vmem:[#allocation2] ss:$2 sm:$0xff]
        %s4272 = scalar_lea.vmem [#allocation2], 1
        %v4273 = vld [vmem:[%s4272] ss:$2 sm:$0xff]
        %s4274 = scalar_lea.vmem [#allocation2], 18
        %v4275 = vld [vmem:[%s4274] ss:$2 sm:$0xff]
        %s4276 = scalar_lea.vmem [#allocation2], 19
        %v4277 = vld [vmem:[%s4276] ss:$2 sm:$0xff]
        %v4278 = vmax.f32 %v4271, %v4273
        %v4279 = vmax.f32 %v4275, %v4277
        %v4280 = vmax.f32 %v4278, %v4279
        %v4282 = vlaneseq
        %v4283 = vshrl.u32 %v4282, 7
        %v4284 = vsub.s32 0, %v4283
        %v4285 = vrot.slane %v4270, %v4284
        %v4287 = vadd.f32 %v4280, %v4285
        %v4288 = vmax.f32 %v4287, 0.0
        %4289 = vst.msk [vmem:[#allocation3 + $0xb] sm:$0xff] %vm438, %v4288
        %s4290 = scalar_lea.vmem [#allocation2], 36
        %v4291 = vld [vmem:[%s4290] ss:$2 sm:$0xff]
        %s4292 = scalar_lea.vmem [#allocation2], 37
        %v4293 = vld [vmem:[%s4292] ss:$2 sm:$0xff]
        %s4294 = scalar_lea.vmem [#allocation2], 54
        %v4295 = vld [vmem:[%s4294] ss:$2 sm:$0xff]
        %s4296 = scalar_lea.vmem [#allocation2], 55
        %v4297 = vld [vmem:[%s4296] ss:$2 sm:$0xff]
        %v4298 = vmax.f32 %v4291, %v4293
        %v4299 = vmax.f32 %v4295, %v4297
        %v4300 = vmax.f32 %v4298, %v4299
        %v4301 = vadd.f32 %v4300, %v4285
        %v4302 = vmax.f32 %v4301, 0.0
        %4303 = vst.msk [vmem:[#allocation3 + $0x15] sm:$0xff] %vm438, %v4302
        %s4304 = scalar_lea.vmem [#allocation2], 72
        %v4305 = vld [vmem:[%s4304] ss:$2 sm:$0xff]
        %s4306 = scalar_lea.vmem [#allocation2], 73
        %v4307 = vld [vmem:[%s4306] ss:$2 sm:$0xff]
        %s4308 = scalar_lea.vmem [#allocation2], 90
        %v4309 = vld [vmem:[%s4308] ss:$2 sm:$0xff]
        %s4310 = scalar_lea.vmem [#allocation2], 91
        %v4311 = vld [vmem:[%s4310] ss:$2 sm:$0xff]
        %v4312 = vmax.f32 %v4305, %v4307
        %v4313 = vmax.f32 %v4309, %v4311
        %v4314 = vmax.f32 %v4312, %v4313
        %v4315 = vadd.f32 %v4314, %v4285
        %v4316 = vmax.f32 %v4315, 0.0
        %4317 = vst.msk [vmem:[#allocation3 + $0x1f] sm:$0xff] %vm438, %v4316
        %s4318 = scalar_lea.vmem [#allocation2], 108
        %v4319 = vld [vmem:[%s4318] ss:$2 sm:$0xff]
        %s4320 = scalar_lea.vmem [#allocation2], 109
        %v4321 = vld [vmem:[%s4320] ss:$2 sm:$0xff]
        %s4322 = scalar_lea.vmem [#allocation2], 126
        %v4323 = vld [vmem:[%s4322] ss:$2 sm:$0xff]
        %s4324 = scalar_lea.vmem [#allocation2], 127
        %v4325 = vld [vmem:[%s4324] ss:$2 sm:$0xff]
        %v4326 = vmax.f32 %v4319, %v4321
        %v4327 = vmax.f32 %v4323, %v4325
        %v4328 = vmax.f32 %v4326, %v4327
        %v4329 = vadd.f32 %v4328, %v4285
        %v4330 = vmax.f32 %v4329, 0.0
        %4331 = vst.msk [vmem:[#allocation3 + $0x29] sm:$0xff] %vm438, %v4330
        %s4332 = scalar_lea.vmem [#allocation2], 144
        %v4333 = vld [vmem:[%s4332] ss:$2 sm:$0xff]
        %s4334 = scalar_lea.vmem [#allocation2], 145
        %v4335 = vld [vmem:[%s4334] ss:$2 sm:$0xff]
        %s4336 = scalar_lea.vmem [#allocation2], 162
        %v4337 = vld [vmem:[%s4336] ss:$2 sm:$0xff]
        %s4338 = scalar_lea.vmem [#allocation2], 163
        %v4339 = vld [vmem:[%s4338] ss:$2 sm:$0xff]
        %v4340 = vmax.f32 %v4333, %v4335
        %v4341 = vmax.f32 %v4337, %v4339
        %v4342 = vmax.f32 %v4340, %v4341
        %v4343 = vadd.f32 %v4342, %v4285
        %v4344 = vmax.f32 %v4343, 0.0
        %4345 = vst.msk [vmem:[#allocation3 + $0x33] sm:$0xff] %vm438, %v4344
        %s4346 = scalar_lea.vmem [#allocation2], 180
        %v4347 = vld [vmem:[%s4346] ss:$2 sm:$0xff]
        %s4348 = scalar_lea.vmem [#allocation2], 181
        %v4349 = vld [vmem:[%s4348] ss:$2 sm:$0xff]
        %s4350 = scalar_lea.vmem [#allocation2], 198
        %v4351 = vld [vmem:[%s4350] ss:$2 sm:$0xff]
        %s4352 = scalar_lea.vmem [#allocation2], 199
        %v4353 = vld [vmem:[%s4352] ss:$2 sm:$0xff]
        %v4354 = vmax.f32 %v4347, %v4349
        %v4355 = vmax.f32 %v4351, %v4353
        %v4356 = vmax.f32 %v4354, %v4355
        %v4357 = vadd.f32 %v4356, %v4285
        %v4358 = vmax.f32 %v4357, 0.0
        %4359 = vst.msk [vmem:[#allocation3 + $0x3d] sm:$0xff] %vm438, %v4358
        %s4360 = scalar_lea.vmem [#allocation2], 216
        %v4361 = vld [vmem:[%s4360] ss:$2 sm:$0xff]
        %s4362 = scalar_lea.vmem [#allocation2], 217
        %v4363 = vld [vmem:[%s4362] ss:$2 sm:$0xff]
        %s4364 = scalar_lea.vmem [#allocation2], 234
        %v4365 = vld [vmem:[%s4364] ss:$2 sm:$0xff]
        %s4366 = scalar_lea.vmem [#allocation2], 235
        %v4367 = vld [vmem:[%s4366] ss:$2 sm:$0xff]
        %v4368 = vmax.f32 %v4361, %v4363
        %v4369 = vmax.f32 %v4365, %v4367
        %v4370 = vmax.f32 %v4368, %v4369
        %v4371 = vadd.f32 %v4370, %v4285
        %v4372 = vmax.f32 %v4371, 0.0
        %4373 = vst.msk [vmem:[#allocation3 + $0x47] sm:$0xff] %vm438, %v4372
        %s4374 = scalar_lea.vmem [#allocation2], 252
        %v4375 = vld [vmem:[%s4374] ss:$2 sm:$0xff]
        %s4376 = scalar_lea.vmem [#allocation2], 253
        %v4377 = vld [vmem:[%s4376] ss:$2 sm:$0xff]
        %s4378 = scalar_lea.vmem [#allocation2], 270
        %v4379 = vld [vmem:[%s4378] ss:$2 sm:$0xff]
        %s4380 = scalar_lea.vmem [#allocation2], 271
        %v4381 = vld [vmem:[%s4380] ss:$2 sm:$0xff]
        %v4382 = vmax.f32 %v4375, %v4377
        %v4383 = vmax.f32 %v4379, %v4381
        %v4384 = vmax.f32 %v4382, %v4383
        %v4385 = vadd.f32 %v4384, %v4285
        %v4386 = vmax.f32 %v4385, 0.0
        %4387 = vst.msk [vmem:[#allocation3 + $0x51] sm:$0xff] %vm438, %v4386
        %v4388 = vld [vmem:[#allocation3] sm:$0xff]
        %v4389 = vld [vmem:[#allocation3 + $0x8] sm:$0xff]
        %v4390 = vld [vmem:[#allocation3 + $0x10] sm:$0xff]
        %v4391 = vld [vmem:[#allocation3 + $0x18] sm:$0xff]
        %v4392 = vld [vmem:[#allocation3 + $0x20] sm:$0xff]
        %v4393 = vld [vmem:[#allocation3 + $0x28] sm:$0xff]
        %v4394 = vld [vmem:[#allocation3 + $0x30] sm:$0xff]
        %v4395 = vld [vmem:[#allocation3 + $0x38] sm:$0xff]
        %v4396 = vld [vmem:[#allocation3 + $0x40] sm:$0xff]
        %v4397 = vld [vmem:[#allocation3 + $0x48] sm:$0xff]
        %v4398 = vld [vmem:[%s3] sm:$0xff]
        %v4399 = vld [vmem:[%s3 + $0x8] sm:$0xff]
        %v4400 = vld [vmem:[%s3 + $0x10] sm:$0xff]
        %v4401 = vld [vmem:[%s3 + $0x18] sm:$0xff]
        %v4402 = vld [vmem:[#allocation3 + $0x1] sm:$0xff]
        %v4403 = vld [vmem:[#allocation3 + $0x9] sm:$0xff]
        %v4404 = vld [vmem:[#allocation3 + $0x11] sm:$0xff]
        %v4405 = vld [vmem:[#allocation3 + $0x19] sm:$0xff]
        %v4406 = vld [vmem:[#allocation3 + $0x21] sm:$0xff]
        %v4407 = vld [vmem:[#allocation3 + $0x29] sm:$0xff]
        %v4408 = vld [vmem:[#allocation3 + $0x31] sm:$0xff]
        %v4409 = vld [vmem:[#allocation3 + $0x39] sm:$0xff]
        %v4410 = vld [vmem:[#allocation3 + $0x41] sm:$0xff]
        %v4411 = vld [vmem:[#allocation3 + $0x49] sm:$0xff]
        %s4412 = scalar_lea.vmem %s3, 32
        %v4413 = vld [vmem:[%s4412] sm:$0xff]
        %v4414 = vld [vmem:[%s4412 + $0x8] sm:$0xff]
        %v4415 = vld [vmem:[%s4412 + $0x10] sm:$0xff]
        %v4416 = vld [vmem:[%s4412 + $0x18] sm:$0xff]
        %v4418 = vsel %vm438, %v4402, 0
        %v4421 = vsel %vm438, %v4403, 0
        %v4424 = vsel %vm438, %v4404, 0
        %v4427 = vsel %vm438, %v4405, 0
        %v4430 = vsel %vm438, %v4406, 0
        %v4433 = vsel %vm438, %v4407, 0
        %v4436 = vsel %vm438, %v4408, 0
        %v4439 = vsel %vm438, %v4409, 0
        %v4442 = vsel %vm438, %v4410, 0
        %v4445 = vsel %vm438, %v4411, 0
        %4447 = vmatprep.subr.mxu0 0.0
        %4448 = vmatpush1.msra.mxu0 %v4413
        %4449 = vmatprep.subr.mxu0 0.0
        %4450 = vmatpush1.msra.mxu0 %v4414
        %4451 = vmatprep.subr.mxu0 0.0
        %4452 = vmatpush1.msra.mxu0 %v4415
        %4453 = vmatprep.subr.mxu0 0.0
        %4454 = vmatpush1.msra.mxu0 %v4416
        %4455 = vmatprep.subr.mxu0 0.0
        %4456 = vmatpush1.msra.mxu0 0.0
        %4457 = vmatprep.subr.mxu0 0.0
        %4458 = vmatpush1.msra.mxu0 0.0
        %4459 = vmatprep.subr.mxu0 0.0
        %4460 = vmatpush1.msra.mxu0 0.0
        %4461 = vmatprep.subr.mxu0 0.0
        %4462 = vmatpush1.msra.mxu0 0.0
        %4463 = vmatprep.subr.mxu0 0.0
        %4464 = vmatpush1.msra.mxu0 0.0
        %4465 = vmatprep.subr.mxu0 0.0
        %4466 = vmatpush1.msra.mxu0 0.0
        %4467 = vmatprep.subr.mxu0 0.0
        %4468 = vmatpush1.msra.mxu0 0.0
        %4469 = vmatprep.subr.mxu0 0.0
        %4470 = vmatpush1.msra.mxu0 0.0
        %4471 = vmatprep.subr.mxu0 0.0
        %4472 = vmatpush1.msra.mxu0 0.0
        %4473 = vmatprep.subr.mxu0 0.0
        %4474 = vmatpush1.msra.mxu0 0.0
        %4475 = vmatprep.subr.mxu0 0.0
        %4476 = vmatpush1.msra.mxu0 0.0
        %4477 = vmatprep.subr.mxu0 0.0
        %4478 = vmatpush1.msra.mxu0 0.0
        %4479 = vmatprep.subr.mxu0 0.0
        %4480 = vmatpush1.msra.mxu0 0.0
        %4481 = vmatprep.subr.mxu0 0.0
        %4482 = vmatpush1.msra.mxu0 0.0
        %4483 = vmatprep.subr.mxu0 0.0
        %4484 = vmatpush1.msra.mxu0 0.0
        %4485 = vmatprep.subr.mxu0 0.0
        %4486 = vmatpush1.msra.mxu0 0.0
        %4487 = vmatprep.subr.mxu0 0.0
        %4488 = vmatpush1.msra.mxu0 0.0
        %4489 = vmatprep.subr.mxu0 0.0
        %4490 = vmatpush1.msra.mxu0 0.0
        %4491 = vmatprep.subr.mxu0 0.0
        %4492 = vmatpush1.msra.mxu0 0.0
        %4493 = vmatprep.subr.mxu0 0.0
        %4494 = vmatpush1.msra.mxu0 0.0
        %4495 = vmatprep.subr.mxu0 0.0
        %4496 = vmatpush1.msra.mxu0 0.0
        %4497 = vmatprep.subr.mxu0 0.0
        %4498 = vmatpush1.msra.mxu0 0.0
        %4499 = vmatprep.subr.mxu0 0.0
        %4500 = vmatpush1.msra.mxu0 0.0
        %4501 = vmatprep.subr.mxu0 0.0
        %4502 = vmatpush1.msra.mxu0 0.0
        %4503 = vmatprep.subr.mxu0 0.0
        %4504 = vmatpush1.msra.mxu0 0.0
        %4505 = vmatprep.subr.mxu0 0.0
        %4506 = vmatpush1.msra.mxu0 0.0
        %4507 = vmatprep.subr.mxu0 0.0
        %4508 = vmatpush1.msra.mxu0 0.0
        %4509 = vmatprep.subr.mxu0 0.0
        %4510 = vmatpush1.msra.mxu0 0.0
        %4511 = vmatprep.mubr.f32.mxu0 0.0
        %4512 = vmatmul.mubr.f32.gmra.mrb[0].mxu0 %v4418
        %v4513 = vpop.f32.mrb[0].mxu0
        %v4514 = vadd.f32 0.0, %v4513
        %v4515 = vpop.f32.mrb[0].mxu0
        %4516 = vmatprep.mubr.f32.mxu0 0.0
        %4517 = vmatmul.mubr.f32.gmra.mrb[0].mxu0 %v4421
        %v4518 = vpop.f32.mrb[0].mxu0
        %v4519 = vadd.f32 0.0, %v4518
        %v4520 = vpop.f32.mrb[0].mxu0
        %4521 = vmatprep.mubr.f32.mxu0 0.0
        %4522 = vmatmul.mubr.f32.gmra.mrb[0].mxu0 %v4424
        %v4523 = vpop.f32.mrb[0].mxu0
        %v4524 = vadd.f32 0.0, %v4523
        %v4525 = vpop.f32.mrb[0].mxu0
        %4526 = vmatprep.mubr.f32.mxu0 0.0
        %4527 = vmatmul.mubr.f32.gmra.mrb[0].mxu0 %v4427
        %v4528 = vpop.f32.mrb[0].mxu0
        %v4529 = vadd.f32 0.0, %v4528
        %v4530 = vpop.f32.mrb[0].mxu0
        %4531 = vmatprep.mubr.f32.mxu0 0.0
        %4532 = vmatmul.mubr.f32.gmra.mrb[0].mxu0 %v4430
        %v4533 = vpop.f32.mrb[0].mxu0
        %v4534 = vadd.f32 0.0, %v4533
        %v4535 = vpop.f32.mrb[0].mxu0
        %4536 = vmatprep.mubr.f32.mxu0 0.0
        %4537 = vmatmul.mubr.f32.gmra.mrb[0].mxu0 %v4433
        %v4538 = vpop.f32.mrb[0].mxu0
        %v4539 = vadd.f32 0.0, %v4538
        %v4540 = vpop.f32.mrb[0].mxu0
        %4541 = vmatprep.mubr.f32.mxu0 0.0
        %4542 = vmatmul.mubr.f32.gmra.mrb[0].mxu0 %v4436
        %v4543 = vpop.f32.mrb[0].mxu0
        %v4544 = vadd.f32 0.0, %v4543
        %v4545 = vpop.f32.mrb[0].mxu0
        %4546 = vmatprep.mubr.f32.mxu0 0.0
        %4547 = vmatmul.mubr.f32.gmra.mrb[0].mxu0 %v4439
        %v4548 = vpop.f32.mrb[0].mxu0
        %v4549 = vadd.f32 0.0, %v4548
        %v4550 = vpop.f32.mrb[0].mxu0
        %4551 = vmatprep.mubr.f32.mxu0 0.0
        %4552 = vmatmul.mubr.f32.gmra.mrb[0].mxu0 %v4442
        %v4553 = vpop.f32.mrb[0].mxu0
        %v4554 = vadd.f32 0.0, %v4553
        %v4555 = vpop.f32.mrb[0].mxu0
        %4556 = vmatprep.mubr.f32.mxu0 0.0
        %4557 = vmatmul.mubr.f32.gmra.mrb[0].mxu0 %v4445
        %v4558 = vpop.f32.mrb[0].mxu0
        %v4559 = vadd.f32 0.0, %v4558
        %v4560 = vpop.f32.mrb[0].mxu0
        %4561 = vdwg.mxu0
        %v4563 = vsel %vm438, %v4388, 0
        %v4566 = vsel %vm438, %v4389, 0
        %v4569 = vsel %vm438, %v4390, 0
        %v4572 = vsel %vm438, %v4391, 0
        %v4575 = vsel %vm438, %v4392, 0
        %v4578 = vsel %vm438, %v4393, 0
        %v4581 = vsel %vm438, %v4394, 0
        %v4584 = vsel %vm438, %v4395, 0
        %v4587 = vsel %vm438, %v4396, 0
        %v4590 = vsel %vm438, %v4397, 0
        %4592 = vmatprep.subr.mxu0 0.0
        %4593 = vmatpush1.msra.mxu0 %v4398
        %4594 = vmatprep.subr.mxu0 0.0
        %4595 = vmatpush1.msra.mxu0 %v4399
        %4596 = vmatprep.subr.mxu0 0.0
        %4597 = vmatpush1.msra.mxu0 %v4400
        %4598 = vmatprep.subr.mxu0 0.0
        %4599 = vmatpush1.msra.mxu0 %v4401
        %4600 = vmatprep.subr.mxu0 0.0
        %4601 = vmatpush1.msra.mxu0 0.0
        %4602 = vmatprep.subr.mxu0 0.0
        %4603 = vmatpush1.msra.mxu0 0.0
        %4604 = vmatprep.subr.mxu0 0.0
        %4605 = vmatpush1.msra.mxu0 0.0
        %4606 = vmatprep.subr.mxu0 0.0
        %4607 = vmatpush1.msra.mxu0 0.0
        %4608 = vmatprep.subr.mxu0 0.0
        %4609 = vmatpush1.msra.mxu0 0.0
        %4610 = vmatprep.subr.mxu0 0.0
        %4611 = vmatpush1.msra.mxu0 0.0
        %4612 = vmatprep.subr.mxu0 0.0
        %4613 = vmatpush1.msra.mxu0 0.0
        %4614 = vmatprep.subr.mxu0 0.0
        %4615 = vmatpush1.msra.mxu0 0.0
        %4616 = vmatprep.subr.mxu0 0.0
        %4617 = vmatpush1.msra.mxu0 0.0
        %4618 = vmatprep.subr.mxu0 0.0
        %4619 = vmatpush1.msra.mxu0 0.0
        %4620 = vmatprep.subr.mxu0 0.0
        %4621 = vmatpush1.msra.mxu0 0.0
        %4622 = vmatprep.subr.mxu0 0.0
        %4623 = vmatpush1.msra.mxu0 0.0
        %4624 = vmatprep.subr.mxu0 0.0
        %4625 = vmatpush1.msra.mxu0 0.0
        %4626 = vmatprep.subr.mxu0 0.0
        %4627 = vmatpush1.msra.mxu0 0.0
        %4628 = vmatprep.subr.mxu0 0.0
        %4629 = vmatpush1.msra.mxu0 0.0
        %4630 = vmatprep.subr.mxu0 0.0
        %4631 = vmatpush1.msra.mxu0 0.0
        %4632 = vmatprep.subr.mxu0 0.0
        %4633 = vmatpush1.msra.mxu0 0.0
        %4634 = vmatprep.subr.mxu0 0.0
        %4635 = vmatpush1.msra.mxu0 0.0
        %4636 = vmatprep.subr.mxu0 0.0
        %4637 = vmatpush1.msra.mxu0 0.0
        %4638 = vmatprep.subr.mxu0 0.0
        %4639 = vmatpush1.msra.mxu0 0.0
        %4640 = vmatprep.subr.mxu0 0.0
        %4641 = vmatpush1.msra.mxu0 0.0
        %4642 = vmatprep.subr.mxu0 0.0
        %4643 = vmatpush1.msra.mxu0 0.0
        %4644 = vmatprep.subr.mxu0 0.0
        %4645 = vmatpush1.msra.mxu0 0.0
        %4646 = vmatprep.subr.mxu0 0.0
        %4647 = vmatpush1.msra.mxu0 0.0
        %4648 = vmatprep.subr.mxu0 0.0
        %4649 = vmatpush1.msra.mxu0 0.0
        %4650 = vmatprep.subr.mxu0 0.0
        %4651 = vmatpush1.msra.mxu0 0.0
        %4652 = vmatprep.subr.mxu0 0.0
        %4653 = vmatpush1.msra.mxu0 0.0
        %4654 = vmatprep.subr.mxu0 0.0
        %4655 = vmatpush1.msra.mxu0 0.0
        %4656 = vmatprep.mubr.f32.mxu0 0.0
        %4657 = vmatmul.mubr.f32.gmra.mrb[0].mxu0 %v4563
        %v4658 = vpop.f32.mrb[0].mxu0
        %v4659 = vadd.f32 %v4514, %v4658
        %v4660 = vpop.f32.mrb[0].mxu0
        %4661 = vmatprep.mubr.f32.mxu0 0.0
        %4662 = vmatmul.mubr.f32.gmra.mrb[0].mxu0 %v4566
        %v4663 = vpop.f32.mrb[0].mxu0
        %v4664 = vadd.f32 %v4519, %v4663
        %v4665 = vpop.f32.mrb[0].mxu0
        %4666 = vmatprep.mubr.f32.mxu0 0.0
        %4667 = vmatmul.mubr.f32.gmra.mrb[0].mxu0 %v4569
        %v4668 = vpop.f32.mrb[0].mxu0
        %v4669 = vadd.f32 %v4524, %v4668
        %v4670 = vpop.f32.mrb[0].mxu0
        %4671 = vmatprep.mubr.f32.mxu0 0.0
        %4672 = vmatmul.mubr.f32.gmra.mrb[0].mxu0 %v4572
        %v4673 = vpop.f32.mrb[0].mxu0
        %v4674 = vadd.f32 %v4529, %v4673
        %v4675 = vpop.f32.mrb[0].mxu0
        %4676 = vmatprep.mubr.f32.mxu0 0.0
        %4677 = vmatmul.mubr.f32.gmra.mrb[0].mxu0 %v4575
        %v4678 = vpop.f32.mrb[0].mxu0
        %v4679 = vadd.f32 %v4534, %v4678
        %v4680 = vpop.f32.mrb[0].mxu0
        %4681 = vmatprep.mubr.f32.mxu0 0.0
        %4682 = vmatmul.mubr.f32.gmra.mrb[0].mxu0 %v4578
        %v4683 = vpop.f32.mrb[0].mxu0
        %v4684 = vadd.f32 %v4539, %v4683
        %v4685 = vpop.f32.mrb[0].mxu0
        %4686 = vmatprep.mubr.f32.mxu0 0.0
        %4687 = vmatmul.mubr.f32.gmra.mrb[0].mxu0 %v4581
        %v4688 = vpop.f32.mrb[0].mxu0
        %v4689 = vadd.f32 %v4544, %v4688
        %v4690 = vpop.f32.mrb[0].mxu0
        %4691 = vmatprep.mubr.f32.mxu0 0.0
        %4692 = vmatmul.mubr.f32.gmra.mrb[0].mxu0 %v4584
        %v4693 = vpop.f32.mrb[0].mxu0
        %v4694 = vadd.f32 %v4549, %v4693
        %v4695 = vpop.f32.mrb[0].mxu0
        %4696 = vmatprep.mubr.f32.mxu0 0.0
        %4697 = vmatmul.mubr.f32.gmra.mrb[0].mxu0 %v4587
        %v4698 = vpop.f32.mrb[0].mxu0
        %v4699 = vadd.f32 %v4554, %v4698
        %v4700 = vpop.f32.mrb[0].mxu0
        %4701 = vmatprep.mubr.f32.mxu0 0.0
        %4702 = vmatmul.mubr.f32.gmra.mrb[0].mxu0 %v4590
        %v4703 = vpop.f32.mrb[0].mxu0
        %v4704 = vadd.f32 %v4559, %v4703
        %v4705 = vpop.f32.mrb[0].mxu0
        %4706 = vdwg.mxu0
        %v4707 = vld [vmem:[#allocation3 + $0x2] sm:$0xff]
        %v4708 = vld [vmem:[#allocation3 + $0xa] sm:$0xff]
        %v4709 = vld [vmem:[#allocation3 + $0x12] sm:$0xff]
        %v4710 = vld [vmem:[#allocation3 + $0x1a] sm:$0xff]
        %v4711 = vld [vmem:[#allocation3 + $0x22] sm:$0xff]
        %v4712 = vld [vmem:[#allocation3 + $0x2a] sm:$0xff]
        %v4713 = vld [vmem:[#allocation3 + $0x32] sm:$0xff]
        %v4714 = vld [vmem:[#allocation3 + $0x3a] sm:$0xff]
        %v4715 = vld [vmem:[#allocation3 + $0x42] sm:$0xff]
        %v4716 = vld [vmem:[#allocation3 + $0x4a] sm:$0xff]
        %s4717 = scalar_lea.vmem %s3, 64
        %v4718 = vld [vmem:[%s4717] sm:$0xff]
        %v4719 = vld [vmem:[%s4717 + $0x8] sm:$0xff]
        %v4720 = vld [vmem:[%s4717 + $0x10] sm:$0xff]
        %v4721 = vld [vmem:[%s4717 + $0x18] sm:$0xff]
        %v4723 = vsel %vm438, %v4707, 0
        %v4726 = vsel %vm438, %v4708, 0
        %v4729 = vsel %vm438, %v4709, 0
        %v4732 = vsel %vm438, %v4710, 0
        %v4735 = vsel %vm438, %v4711, 0
        %v4738 = vsel %vm438, %v4712, 0
        %v4741 = vsel %vm438, %v4713, 0
        %v4744 = vsel %vm438, %v4714, 0
        %v4747 = vsel %vm438, %v4715, 0
        %v4750 = vsel %vm438, %v4716, 0
        %4752 = vmatprep.subr.mxu0 0.0
        %4753 = vmatpush1.msra.mxu0 %v4718
        %4754 = vmatprep.subr.mxu0 0.0
        %4755 = vmatpush1.msra.mxu0 %v4719
        %4756 = vmatprep.subr.mxu0 0.0
        %4757 = vmatpush1.msra.mxu0 %v4720
        %4758 = vmatprep.subr.mxu0 0.0
        %4759 = vmatpush1.msra.mxu0 %v4721
        %4760 = vmatprep.subr.mxu0 0.0
        %4761 = vmatpush1.msra.mxu0 0.0
        %4762 = vmatprep.subr.mxu0 0.0
        %4763 = vmatpush1.msra.mxu0 0.0
        %4764 = vmatprep.subr.mxu0 0.0
        %4765 = vmatpush1.msra.mxu0 0.0
        %4766 = vmatprep.subr.mxu0 0.0
        %4767 = vmatpush1.msra.mxu0 0.0
        %4768 = vmatprep.subr.mxu0 0.0
        %4769 = vmatpush1.msra.mxu0 0.0
        %4770 = vmatprep.subr.mxu0 0.0
        %4771 = vmatpush1.msra.mxu0 0.0
        %4772 = vmatprep.subr.mxu0 0.0
        %4773 = vmatpush1.msra.mxu0 0.0
        %4774 = vmatprep.subr.mxu0 0.0
        %4775 = vmatpush1.msra.mxu0 0.0
        %4776 = vmatprep.subr.mxu0 0.0
        %4777 = vmatpush1.msra.mxu0 0.0
        %4778 = vmatprep.subr.mxu0 0.0
        %4779 = vmatpush1.msra.mxu0 0.0
        %4780 = vmatprep.subr.mxu0 0.0
        %4781 = vmatpush1.msra.mxu0 0.0
        %4782 = vmatprep.subr.mxu0 0.0
        %4783 = vmatpush1.msra.mxu0 0.0
        %4784 = vmatprep.subr.mxu0 0.0
        %4785 = vmatpush1.msra.mxu0 0.0
        %4786 = vmatprep.subr.mxu0 0.0
        %4787 = vmatpush1.msra.mxu0 0.0
        %4788 = vmatprep.subr.mxu0 0.0
        %4789 = vmatpush1.msra.mxu0 0.0
        %4790 = vmatprep.subr.mxu0 0.0
        %4791 = vmatpush1.msra.mxu0 0.0
        %4792 = vmatprep.subr.mxu0 0.0
        %4793 = vmatpush1.msra.mxu0 0.0
        %4794 = vmatprep.subr.mxu0 0.0
        %4795 = vmatpush1.msra.mxu0 0.0
        %4796 = vmatprep.subr.mxu0 0.0
        %4797 = vmatpush1.msra.mxu0 0.0
        %4798 = vmatprep.subr.mxu0 0.0
        %4799 = vmatpush1.msra.mxu0 0.0
        %4800 = vmatprep.subr.mxu0 0.0
        %4801 = vmatpush1.msra.mxu0 0.0
        %4802 = vmatprep.subr.mxu0 0.0
        %4803 = vmatpush1.msra.mxu0 0.0
        %4804 = vmatprep.subr.mxu0 0.0
        %4805 = vmatpush1.msra.mxu0 0.0
        %4806 = vmatprep.subr.mxu0 0.0
        %4807 = vmatpush1.msra.mxu0 0.0
        %4808 = vmatprep.subr.mxu0 0.0
        %4809 = vmatpush1.msra.mxu0 0.0
        %4810 = vmatprep.subr.mxu0 0.0
        %4811 = vmatpush1.msra.mxu0 0.0
        %4812 = vmatprep.subr.mxu0 0.0
        %4813 = vmatpush1.msra.mxu0 0.0
        %4814 = vmatprep.subr.mxu0 0.0
        %4815 = vmatpush1.msra.mxu0 0.0
        %4816 = vmatprep.mubr.f32.mxu0 0.0
        %4817 = vmatmul.mubr.f32.gmra.mrb[0].mxu0 %v4723
        %v4818 = vpop.f32.mrb[0].mxu0
        %v4819 = vadd.f32 0.0, %v4818
        %v4820 = vpop.f32.mrb[0].mxu0
        %4821 = vmatprep.mubr.f32.mxu0 0.0
        %4822 = vmatmul.mubr.f32.gmra.mrb[0].mxu0 %v4726
        %v4823 = vpop.f32.mrb[0].mxu0
        %v4824 = vadd.f32 0.0, %v4823
        %v4825 = vpop.f32.mrb[0].mxu0
        %4826 = vmatprep.mubr.f32.mxu0 0.0
        %4827 = vmatmul.mubr.f32.gmra.mrb[0].mxu0 %v4729
        %v4828 = vpop.f32.mrb[0].mxu0
        %v4829 = vadd.f32 0.0, %v4828
        %v4830 = vpop.f32.mrb[0].mxu0
        %4831 = vmatprep.mubr.f32.mxu0 0.0
        %4832 = vmatmul.mubr.f32.gmra.mrb[0].mxu0 %v4732
        %v4833 = vpop.f32.mrb[0].mxu0
        %v4834 = vadd.f32 0.0, %v4833
        %v4835 = vpop.f32.mrb[0].mxu0
        %4836 = vmatprep.mubr.f32.mxu0 0.0
        %4837 = vmatmul.mubr.f32.gmra.mrb[0].mxu0 %v4735
        %v4838 = vpop.f32.mrb[0].mxu0
        %v4839 = vadd.f32 0.0, %v4838
        %v4840 = vpop.f32.mrb[0].mxu0
        %4841 = vmatprep.mubr.f32.mxu0 0.0
        %4842 = vmatmul.mubr.f32.gmra.mrb[0].mxu0 %v4738
        %v4843 = vpop.f32.mrb[0].mxu0
        %v4844 = vadd.f32 0.0, %v4843
        %v4845 = vpop.f32.mrb[0].mxu0
        %4846 = vmatprep.mubr.f32.mxu0 0.0
        %4847 = vmatmul.mubr.f32.gmra.mrb[0].mxu0 %v4741
        %v4848 = vpop.f32.mrb[0].mxu0
        %v4849 = vadd.f32 0.0, %v4848
        %v4850 = vpop.f32.mrb[0].mxu0
        %4851 = vmatprep.mubr.f32.mxu0 0.0
        %4852 = vmatmul.mubr.f32.gmra.mrb[0].mxu0 %v4744
        %v4853 = vpop.f32.mrb[0].mxu0
        %v4854 = vadd.f32 0.0, %v4853
        %v4855 = vpop.f32.mrb[0].mxu0
        %4856 = vmatprep.mubr.f32.mxu0 0.0
        %4857 = vmatmul.mubr.f32.gmra.mrb[0].mxu0 %v4747
        %v4858 = vpop.f32.mrb[0].mxu0
        %v4859 = vadd.f32 0.0, %v4858
        %v4860 = vpop.f32.mrb[0].mxu0
        %4861 = vmatprep.mubr.f32.mxu0 0.0
        %4862 = vmatmul.mubr.f32.gmra.mrb[0].mxu0 %v4750
        %v4863 = vpop.f32.mrb[0].mxu0
        %v4864 = vadd.f32 0.0, %v4863
        %v4865 = vpop.f32.mrb[0].mxu0
        %4866 = vdwg.mxu0
        %v4867 = vadd.f32 %v4659, %v4819
        %v4868 = vadd.f32 %v4664, %v4824
        %v4869 = vadd.f32 %v4669, %v4829
        %v4870 = vadd.f32 %v4674, %v4834
        %v4871 = vadd.f32 %v4679, %v4839
        %v4872 = vadd.f32 %v4684, %v4844
        %v4873 = vadd.f32 %v4689, %v4849
        %v4874 = vadd.f32 %v4694, %v4854
        %v4875 = vadd.f32 %v4699, %v4859
        %v4876 = vadd.f32 %v4704, %v4864
        %v4877 = vld [vmem:[#allocation3 + $0xa] sm:$0xff]
        %v4878 = vld [vmem:[#allocation3 + $0x12] sm:$0xff]
        %v4879 = vld [vmem:[#allocation3 + $0x1a] sm:$0xff]
        %v4880 = vld [vmem:[#allocation3 + $0x22] sm:$0xff]
        %v4881 = vld [vmem:[#allocation3 + $0x2a] sm:$0xff]
        %v4882 = vld [vmem:[#allocation3 + $0x32] sm:$0xff]
        %v4883 = vld [vmem:[#allocation3 + $0x3a] sm:$0xff]
        %v4884 = vld [vmem:[#allocation3 + $0x42] sm:$0xff]
        %v4885 = vld [vmem:[#allocation3 + $0x4a] sm:$0xff]
        %v4886 = vld [vmem:[#allocation3 + $0x52] sm:$0xff]
        %s4887 = scalar_lea.vmem %s3, 96
        %v4888 = vld [vmem:[%s4887] sm:$0xff]
        %v4889 = vld [vmem:[%s4887 + $0x8] sm:$0xff]
        %v4890 = vld [vmem:[%s4887 + $0x10] sm:$0xff]
        %v4891 = vld [vmem:[%s4887 + $0x18] sm:$0xff]
        %v4893 = vsel %vm438, %v4877, 0
        %v4896 = vsel %vm438, %v4878, 0
        %v4899 = vsel %vm438, %v4879, 0
        %v4902 = vsel %vm438, %v4880, 0
        %v4905 = vsel %vm438, %v4881, 0
        %v4908 = vsel %vm438, %v4882, 0
        %v4911 = vsel %vm438, %v4883, 0
        %v4914 = vsel %vm438, %v4884, 0
        %v4917 = vsel %vm438, %v4885, 0
        %v4920 = vsel %vm438, %v4886, 0
        %4922 = vmatprep.subr.mxu0 0.0
        %4923 = vmatpush1.msra.mxu0 %v4888
        %4924 = vmatprep.subr.mxu0 0.0
        %4925 = vmatpush1.msra.mxu0 %v4889
        %4926 = vmatprep.subr.mxu0 0.0
        %4927 = vmatpush1.msra.mxu0 %v4890
        %4928 = vmatprep.subr.mxu0 0.0
        %4929 = vmatpush1.msra.mxu0 %v4891
        %4930 = vmatprep.subr.mxu0 0.0
        %4931 = vmatpush1.msra.mxu0 0.0
        %4932 = vmatprep.subr.mxu0 0.0
        %4933 = vmatpush1.msra.mxu0 0.0
        %4934 = vmatprep.subr.mxu0 0.0
        %4935 = vmatpush1.msra.mxu0 0.0
        %4936 = vmatprep.subr.mxu0 0.0
        %4937 = vmatpush1.msra.mxu0 0.0
        %4938 = vmatprep.subr.mxu0 0.0
        %4939 = vmatpush1.msra.mxu0 0.0
        %4940 = vmatprep.subr.mxu0 0.0
        %4941 = vmatpush1.msra.mxu0 0.0
        %4942 = vmatprep.subr.mxu0 0.0
        %4943 = vmatpush1.msra.mxu0 0.0
        %4944 = vmatprep.subr.mxu0 0.0
        %4945 = vmatpush1.msra.mxu0 0.0
        %4946 = vmatprep.subr.mxu0 0.0
        %4947 = vmatpush1.msra.mxu0 0.0
        %4948 = vmatprep.subr.mxu0 0.0
        %4949 = vmatpush1.msra.mxu0 0.0
        %4950 = vmatprep.subr.mxu0 0.0
        %4951 = vmatpush1.msra.mxu0 0.0
        %4952 = vmatprep.subr.mxu0 0.0
        %4953 = vmatpush1.msra.mxu0 0.0
        %4954 = vmatprep.subr.mxu0 0.0
        %4955 = vmatpush1.msra.mxu0 0.0
        %4956 = vmatprep.subr.mxu0 0.0
        %4957 = vmatpush1.msra.mxu0 0.0
        %4958 = vmatprep.subr.mxu0 0.0
        %4959 = vmatpush1.msra.mxu0 0.0
        %4960 = vmatprep.subr.mxu0 0.0
        %4961 = vmatpush1.msra.mxu0 0.0
        %4962 = vmatprep.subr.mxu0 0.0
        %4963 = vmatpush1.msra.mxu0 0.0
        %4964 = vmatprep.subr.mxu0 0.0
        %4965 = vmatpush1.msra.mxu0 0.0
        %4966 = vmatprep.subr.mxu0 0.0
        %4967 = vmatpush1.msra.mxu0 0.0
        %4968 = vmatprep.subr.mxu0 0.0
        %4969 = vmatpush1.msra.mxu0 0.0
        %4970 = vmatprep.subr.mxu0 0.0
        %4971 = vmatpush1.msra.mxu0 0.0
        %4972 = vmatprep.subr.mxu0 0.0
        %4973 = vmatpush1.msra.mxu0 0.0
        %4974 = vmatprep.subr.mxu0 0.0
        %4975 = vmatpush1.msra.mxu0 0.0
        %4976 = vmatprep.subr.mxu0 0.0
        %4977 = vmatpush1.msra.mxu0 0.0
        %4978 = vmatprep.subr.mxu0 0.0
        %4979 = vmatpush1.msra.mxu0 0.0
        %4980 = vmatprep.subr.mxu0 0.0
        %4981 = vmatpush1.msra.mxu0 0.0
        %4982 = vmatprep.subr.mxu0 0.0
        %4983 = vmatpush1.msra.mxu0 0.0
        %4984 = vmatprep.subr.mxu0 0.0
        %4985 = vmatpush1.msra.mxu0 0.0
        %4986 = vmatprep.mubr.f32.mxu0 0.0
        %4987 = vmatmul.mubr.f32.gmra.mrb[0].mxu0 %v4893
        %v4988 = vpop.f32.mrb[0].mxu0
        %v4989 = vadd.f32 0.0, %v4988
        %v4990 = vpop.f32.mrb[0].mxu0
        %4991 = vmatprep.mubr.f32.mxu0 0.0
        %4992 = vmatmul.mubr.f32.gmra.mrb[0].mxu0 %v4896
        %v4993 = vpop.f32.mrb[0].mxu0
        %v4994 = vadd.f32 0.0, %v4993
        %v4995 = vpop.f32.mrb[0].mxu0
        %4996 = vmatprep.mubr.f32.mxu0 0.0
        %4997 = vmatmul.mubr.f32.gmra.mrb[0].mxu0 %v4899
        %v4998 = vpop.f32.mrb[0].mxu0
        %v4999 = vadd.f32 0.0, %v4998
        %v5000 = vpop.f32.mrb[0].mxu0
        %5001 = vmatprep.mubr.f32.mxu0 0.0
        %5002 = vmatmul.mubr.f32.gmra.mrb[0].mxu0 %v4902
        %v5003 = vpop.f32.mrb[0].mxu0
        %v5004 = vadd.f32 0.0, %v5003
        %v5005 = vpop.f32.mrb[0].mxu0
        %5006 = vmatprep.mubr.f32.mxu0 0.0
        %5007 = vmatmul.mubr.f32.gmra.mrb[0].mxu0 %v4905
        %v5008 = vpop.f32.mrb[0].mxu0
        %v5009 = vadd.f32 0.0, %v5008
        %v5010 = vpop.f32.mrb[0].mxu0
        %5011 = vmatprep.mubr.f32.mxu0 0.0
        %5012 = vmatmul.mubr.f32.gmra.mrb[0].mxu0 %v4908
        %v5013 = vpop.f32.mrb[0].mxu0
        %v5014 = vadd.f32 0.0, %v5013
        %v5015 = vpop.f32.mrb[0].mxu0
        %5016 = vmatprep.mubr.f32.mxu0 0.0
        %5017 = vmatmul.mubr.f32.gmra.mrb[0].mxu0 %v4911
        %v5018 = vpop.f32.mrb[0].mxu0
        %v5019 = vadd.f32 0.0, %v5018
        %v5020 = vpop.f32.mrb[0].mxu0
        %5021 = vmatprep.mubr.f32.mxu0 0.0
        %5022 = vmatmul.mubr.f32.gmra.mrb[0].mxu0 %v4914
        %v5023 = vpop.f32.mrb[0].mxu0
        %v5024 = vadd.f32 0.0, %v5023
        %v5025 = vpop.f32.mrb[0].mxu0
        %5026 = vmatprep.mubr.f32.mxu0 0.0
        %5027 = vmatmul.mubr.f32.gmra.mrb[0].mxu0 %v4917
        %v5028 = vpop.f32.mrb[0].mxu0
        %v5029 = vadd.f32 0.0, %v5028
        %v5030 = vpop.f32.mrb[0].mxu0
        %5031 = vmatprep.mubr.f32.mxu0 0.0
        %5032 = vmatmul.mubr.f32.gmra.mrb[0].mxu0 %v4920
        %v5033 = vpop.f32.mrb[0].mxu0
        %v5034 = vadd.f32 0.0, %v5033
        %v5035 = vpop.f32.mrb[0].mxu0
        %5036 = vdwg.mxu0
        %v5037 = vadd.f32 %v4867, %v4989
        %v5038 = vadd.f32 %v4868, %v4994
        %v5039 = vadd.f32 %v4869, %v4999
        %v5040 = vadd.f32 %v4870, %v5004
        %v5041 = vadd.f32 %v4871, %v5009
        %v5042 = vadd.f32 %v4872, %v5014
        %v5043 = vadd.f32 %v4873, %v5019
        %v5044 = vadd.f32 %v4874, %v5024
        %v5045 = vadd.f32 %v4875, %v5029
        %v5046 = vadd.f32 %v4876, %v5034
        %v5047 = vld [vmem:[#allocation3 + $0xb] sm:$0xff]
        %v5048 = vld [vmem:[#allocation3 + $0x13] sm:$0xff]
        %v5049 = vld [vmem:[#allocation3 + $0x1b] sm:$0xff]
        %v5050 = vld [vmem:[#allocation3 + $0x23] sm:$0xff]
        %v5051 = vld [vmem:[#allocation3 + $0x2b] sm:$0xff]
        %v5052 = vld [vmem:[#allocation3 + $0x33] sm:$0xff]
        %v5053 = vld [vmem:[#allocation3 + $0x3b] sm:$0xff]
        %v5054 = vld [vmem:[#allocation3 + $0x43] sm:$0xff]
        %v5055 = vld [vmem:[#allocation3 + $0x4b] sm:$0xff]
        %v5056 = vld [vmem:[#allocation3 + $0x53] sm:$0xff]
        %s5057 = scalar_lea.vmem %s3, 128
        %v5058 = vld [vmem:[%s5057] sm:$0xff]
        %v5059 = vld [vmem:[%s5057 + $0x8] sm:$0xff]
        %v5060 = vld [vmem:[%s5057 + $0x10] sm:$0xff]
        %v5061 = vld [vmem:[%s5057 + $0x18] sm:$0xff]
        %v5063 = vsel %vm438, %v5047, 0
        %v5066 = vsel %vm438, %v5048, 0
        %v5069 = vsel %vm438, %v5049, 0
        %v5072 = vsel %vm438, %v5050, 0
        %v5075 = vsel %vm438, %v5051, 0
        %v5078 = vsel %vm438, %v5052, 0
        %v5081 = vsel %vm438, %v5053, 0
        %v5084 = vsel %vm438, %v5054, 0
        %v5087 = vsel %vm438, %v5055, 0
        %v5090 = vsel %vm438, %v5056, 0
        %5092 = vmatprep.subr.mxu0 0.0
        %5093 = vmatpush1.msra.mxu0 %v5058
        %5094 = vmatprep.subr.mxu0 0.0
        %5095 = vmatpush1.msra.mxu0 %v5059
        %5096 = vmatprep.subr.mxu0 0.0
        %5097 = vmatpush1.msra.mxu0 %v5060
        %5098 = vmatprep.subr.mxu0 0.0
        %5099 = vmatpush1.msra.mxu0 %v5061
        %5100 = vmatprep.subr.mxu0 0.0
        %5101 = vmatpush1.msra.mxu0 0.0
        %5102 = vmatprep.subr.mxu0 0.0
        %5103 = vmatpush1.msra.mxu0 0.0
        %5104 = vmatprep.subr.mxu0 0.0
        %5105 = vmatpush1.msra.mxu0 0.0
        %5106 = vmatprep.subr.mxu0 0.0
        %5107 = vmatpush1.msra.mxu0 0.0
        %5108 = vmatprep.subr.mxu0 0.0
        %5109 = vmatpush1.msra.mxu0 0.0
        %5110 = vmatprep.subr.mxu0 0.0
        %5111 = vmatpush1.msra.mxu0 0.0
        %5112 = vmatprep.subr.mxu0 0.0
        %5113 = vmatpush1.msra.mxu0 0.0
        %5114 = vmatprep.subr.mxu0 0.0
        %5115 = vmatpush1.msra.mxu0 0.0
        %5116 = vmatprep.subr.mxu0 0.0
        %5117 = vmatpush1.msra.mxu0 0.0
        %5118 = vmatprep.subr.mxu0 0.0
        %5119 = vmatpush1.msra.mxu0 0.0
        %5120 = vmatprep.subr.mxu0 0.0
        %5121 = vmatpush1.msra.mxu0 0.0
        %5122 = vmatprep.subr.mxu0 0.0
        %5123 = vmatpush1.msra.mxu0 0.0
        %5124 = vmatprep.subr.mxu0 0.0
        %5125 = vmatpush1.msra.mxu0 0.0
        %5126 = vmatprep.subr.mxu0 0.0
        %5127 = vmatpush1.msra.mxu0 0.0
        %5128 = vmatprep.subr.mxu0 0.0
        %5129 = vmatpush1.msra.mxu0 0.0
        %5130 = vmatprep.subr.mxu0 0.0
        %5131 = vmatpush1.msra.mxu0 0.0
        %5132 = vmatprep.subr.mxu0 0.0
        %5133 = vmatpush1.msra.mxu0 0.0
        %5134 = vmatprep.subr.mxu0 0.0
        %5135 = vmatpush1.msra.mxu0 0.0
        %5136 = vmatprep.subr.mxu0 0.0
        %5137 = vmatpush1.msra.mxu0 0.0
        %5138 = vmatprep.subr.mxu0 0.0
        %5139 = vmatpush1.msra.mxu0 0.0
        %5140 = vmatprep.subr.mxu0 0.0
        %5141 = vmatpush1.msra.mxu0 0.0
        %5142 = vmatprep.subr.mxu0 0.0
        %5143 = vmatpush1.msra.mxu0 0.0
        %5144 = vmatprep.subr.mxu0 0.0
        %5145 = vmatpush1.msra.mxu0 0.0
        %5146 = vmatprep.subr.mxu0 0.0
        %5147 = vmatpush1.msra.mxu0 0.0
        %5148 = vmatprep.subr.mxu0 0.0
        %5149 = vmatpush1.msra.mxu0 0.0
        %5150 = vmatprep.subr.mxu0 0.0
        %5151 = vmatpush1.msra.mxu0 0.0
        %5152 = vmatprep.subr.mxu0 0.0
        %5153 = vmatpush1.msra.mxu0 0.0
        %5154 = vmatprep.subr.mxu0 0.0
        %5155 = vmatpush1.msra.mxu0 0.0
        %5156 = vmatprep.mubr.f32.mxu0 0.0
        %5157 = vmatmul.mubr.f32.gmra.mrb[0].mxu0 %v5063
        %v5158 = vpop.f32.mrb[0].mxu0
        %v5159 = vadd.f32 0.0, %v5158
        %v5160 = vpop.f32.mrb[0].mxu0
        %5161 = vmatprep.mubr.f32.mxu0 0.0
        %5162 = vmatmul.mubr.f32.gmra.mrb[0].mxu0 %v5066
        %v5163 = vpop.f32.mrb[0].mxu0
        %v5164 = vadd.f32 0.0, %v5163
        %v5165 = vpop.f32.mrb[0].mxu0
        %5166 = vmatprep.mubr.f32.mxu0 0.0
        %5167 = vmatmul.mubr.f32.gmra.mrb[0].mxu0 %v5069
        %v5168 = vpop.f32.mrb[0].mxu0
        %v5169 = vadd.f32 0.0, %v5168
        %v5170 = vpop.f32.mrb[0].mxu0
        %5171 = vmatprep.mubr.f32.mxu0 0.0
        %5172 = vmatmul.mubr.f32.gmra.mrb[0].mxu0 %v5072
        %v5173 = vpop.f32.mrb[0].mxu0
        %v5174 = vadd.f32 0.0, %v5173
        %v5175 = vpop.f32.mrb[0].mxu0
        %5176 = vmatprep.mubr.f32.mxu0 0.0
        %5177 = vmatmul.mubr.f32.gmra.mrb[0].mxu0 %v5075
        %v5178 = vpop.f32.mrb[0].mxu0
        %v5179 = vadd.f32 0.0, %v5178
        %v5180 = vpop.f32.mrb[0].mxu0
        %5181 = vmatprep.mubr.f32.mxu0 0.0
        %5182 = vmatmul.mubr.f32.gmra.mrb[0].mxu0 %v5078
        %v5183 = vpop.f32.mrb[0].mxu0
        %v5184 = vadd.f32 0.0, %v5183
        %v5185 = vpop.f32.mrb[0].mxu0
        %5186 = vmatprep.mubr.f32.mxu0 0.0
        %5187 = vmatmul.mubr.f32.gmra.mrb[0].mxu0 %v5081
        %v5188 = vpop.f32.mrb[0].mxu0
        %v5189 = vadd.f32 0.0, %v5188
        %v5190 = vpop.f32.mrb[0].mxu0
        %5191 = vmatprep.mubr.f32.mxu0 0.0
        %5192 = vmatmul.mubr.f32.gmra.mrb[0].mxu0 %v5084
        %v5193 = vpop.f32.mrb[0].mxu0
        %v5194 = vadd.f32 0.0, %v5193
        %v5195 = vpop.f32.mrb[0].mxu0
        %5196 = vmatprep.mubr.f32.mxu0 0.0
        %5197 = vmatmul.mubr.f32.gmra.mrb[0].mxu0 %v5087
        %v5198 = vpop.f32.mrb[0].mxu0
        %v5199 = vadd.f32 0.0, %v5198
        %v5200 = vpop.f32.mrb[0].mxu0
        %5201 = vmatprep.mubr.f32.mxu0 0.0
        %5202 = vmatmul.mubr.f32.gmra.mrb[0].mxu0 %v5090
        %v5203 = vpop.f32.mrb[0].mxu0
        %v5204 = vadd.f32 0.0, %v5203
        %v5205 = vpop.f32.mrb[0].mxu0
        %5206 = vdwg.mxu0
        %v5207 = vadd.f32 %v5037, %v5159
        %v5208 = vadd.f32 %v5038, %v5164
        %v5209 = vadd.f32 %v5039, %v5169
        %v5210 = vadd.f32 %v5040, %v5174
        %v5211 = vadd.f32 %v5041, %v5179
        %v5212 = vadd.f32 %v5042, %v5184
        %v5213 = vadd.f32 %v5043, %v5189
        %v5214 = vadd.f32 %v5044, %v5194
        %v5215 = vadd.f32 %v5045, %v5199
        %v5216 = vadd.f32 %v5046, %v5204
        %v5217 = vld [vmem:[#allocation3 + $0xc] sm:$0xff]
        %v5218 = vld [vmem:[#allocation3 + $0x14] sm:$0xff]
        %v5219 = vld [vmem:[#allocation3 + $0x1c] sm:$0xff]
        %v5220 = vld [vmem:[#allocation3 + $0x24] sm:$0xff]
        %v5221 = vld [vmem:[#allocation3 + $0x2c] sm:$0xff]
        %v5222 = vld [vmem:[#allocation3 + $0x34] sm:$0xff]
        %v5223 = vld [vmem:[#allocation3 + $0x3c] sm:$0xff]
        %v5224 = vld [vmem:[#allocation3 + $0x44] sm:$0xff]
        %v5225 = vld [vmem:[#allocation3 + $0x4c] sm:$0xff]
        %v5226 = vld [vmem:[#allocation3 + $0x54] sm:$0xff]
        %s5227 = scalar_lea.vmem %s3, 160
        %v5228 = vld [vmem:[%s5227] sm:$0xff]
        %v5229 = vld [vmem:[%s5227 + $0x8] sm:$0xff]
        %v5230 = vld [vmem:[%s5227 + $0x10] sm:$0xff]
        %v5231 = vld [vmem:[%s5227 + $0x18] sm:$0xff]
        %v5233 = vsel %vm438, %v5217, 0
        %v5236 = vsel %vm438, %v5218, 0
        %v5239 = vsel %vm438, %v5219, 0
        %v5242 = vsel %vm438, %v5220, 0
        %v5245 = vsel %vm438, %v5221, 0
        %v5248 = vsel %vm438, %v5222, 0
        %v5251 = vsel %vm438, %v5223, 0
        %v5254 = vsel %vm438, %v5224, 0
        %v5257 = vsel %vm438, %v5225, 0
        %v5260 = vsel %vm438, %v5226, 0
        %5262 = vmatprep.subr.mxu0 0.0
        %5263 = vmatpush1.msra.mxu0 %v5228
        %5264 = vmatprep.subr.mxu0 0.0
        %5265 = vmatpush1.msra.mxu0 %v5229
        %5266 = vmatprep.subr.mxu0 0.0
        %5267 = vmatpush1.msra.mxu0 %v5230
        %5268 = vmatprep.subr.mxu0 0.0
        %5269 = vmatpush1.msra.mxu0 %v5231
        %5270 = vmatprep.subr.mxu0 0.0
        %5271 = vmatpush1.msra.mxu0 0.0
        %5272 = vmatprep.subr.mxu0 0.0
        %5273 = vmatpush1.msra.mxu0 0.0
        %5274 = vmatprep.subr.mxu0 0.0
        %5275 = vmatpush1.msra.mxu0 0.0
        %5276 = vmatprep.subr.mxu0 0.0
        %5277 = vmatpush1.msra.mxu0 0.0
        %5278 = vmatprep.subr.mxu0 0.0
        %5279 = vmatpush1.msra.mxu0 0.0
        %5280 = vmatprep.subr.mxu0 0.0
        %5281 = vmatpush1.msra.mxu0 0.0
        %5282 = vmatprep.subr.mxu0 0.0
        %5283 = vmatpush1.msra.mxu0 0.0
        %5284 = vmatprep.subr.mxu0 0.0
        %5285 = vmatpush1.msra.mxu0 0.0
        %5286 = vmatprep.subr.mxu0 0.0
        %5287 = vmatpush1.msra.mxu0 0.0
        %5288 = vmatprep.subr.mxu0 0.0
        %5289 = vmatpush1.msra.mxu0 0.0
        %5290 = vmatprep.subr.mxu0 0.0
        %5291 = vmatpush1.msra.mxu0 0.0
        %5292 = vmatprep.subr.mxu0 0.0
        %5293 = vmatpush1.msra.mxu0 0.0
        %5294 = vmatprep.subr.mxu0 0.0
        %5295 = vmatpush1.msra.mxu0 0.0
        %5296 = vmatprep.subr.mxu0 0.0
        %5297 = vmatpush1.msra.mxu0 0.0
        %5298 = vmatprep.subr.mxu0 0.0
        %5299 = vmatpush1.msra.mxu0 0.0
        %5300 = vmatprep.subr.mxu0 0.0
        %5301 = vmatpush1.msra.mxu0 0.0
        %5302 = vmatprep.subr.mxu0 0.0
        %5303 = vmatpush1.msra.mxu0 0.0
        %5304 = vmatprep.subr.mxu0 0.0
        %5305 = vmatpush1.msra.mxu0 0.0
        %5306 = vmatprep.subr.mxu0 0.0
        %5307 = vmatpush1.msra.mxu0 0.0
        %5308 = vmatprep.subr.mxu0 0.0
        %5309 = vmatpush1.msra.mxu0 0.0
        %5310 = vmatprep.subr.mxu0 0.0
        %5311 = vmatpush1.msra.mxu0 0.0
        %5312 = vmatprep.subr.mxu0 0.0
        %5313 = vmatpush1.msra.mxu0 0.0
        %5314 = vmatprep.subr.mxu0 0.0
        %5315 = vmatpush1.msra.mxu0 0.0
        %5316 = vmatprep.subr.mxu0 0.0
        %5317 = vmatpush1.msra.mxu0 0.0
        %5318 = vmatprep.subr.mxu0 0.0
        %5319 = vmatpush1.msra.mxu0 0.0
        %5320 = vmatprep.subr.mxu0 0.0
        %5321 = vmatpush1.msra.mxu0 0.0
        %5322 = vmatprep.subr.mxu0 0.0
        %5323 = vmatpush1.msra.mxu0 0.0
        %5324 = vmatprep.subr.mxu0 0.0
        %5325 = vmatpush1.msra.mxu0 0.0
        %5326 = vmatprep.mubr.f32.mxu0 0.0
        %5327 = vmatmul.mubr.f32.gmra.mrb[0].mxu0 %v5233
        %v5328 = vpop.f32.mrb[0].mxu0
        %v5329 = vadd.f32 0.0, %v5328
        %v5330 = vpop.f32.mrb[0].mxu0
        %5331 = vmatprep.mubr.f32.mxu0 0.0
        %5332 = vmatmul.mubr.f32.gmra.mrb[0].mxu0 %v5236
        %v5333 = vpop.f32.mrb[0].mxu0
        %v5334 = vadd.f32 0.0, %v5333
        %v5335 = vpop.f32.mrb[0].mxu0
        %5336 = vmatprep.mubr.f32.mxu0 0.0
        %5337 = vmatmul.mubr.f32.gmra.mrb[0].mxu0 %v5239
        %v5338 = vpop.f32.mrb[0].mxu0
        %v5339 = vadd.f32 0.0, %v5338
        %v5340 = vpop.f32.mrb[0].mxu0
        %5341 = vmatprep.mubr.f32.mxu0 0.0
        %5342 = vmatmul.mubr.f32.gmra.mrb[0].mxu0 %v5242
        %v5343 = vpop.f32.mrb[0].mxu0
        %v5344 = vadd.f32 0.0, %v5343
        %v5345 = vpop.f32.mrb[0].mxu0
        %5346 = vmatprep.mubr.f32.mxu0 0.0
        %5347 = vmatmul.mubr.f32.gmra.mrb[0].mxu0 %v5245
        %v5348 = vpop.f32.mrb[0].mxu0
        %v5349 = vadd.f32 0.0, %v5348
        %v5350 = vpop.f32.mrb[0].mxu0
        %5351 = vmatprep.mubr.f32.mxu0 0.0
        %5352 = vmatmul.mubr.f32.gmra.mrb[0].mxu0 %v5248
        %v5353 = vpop.f32.mrb[0].mxu0
        %v5354 = vadd.f32 0.0, %v5353
        %v5355 = vpop.f32.mrb[0].mxu0
        %5356 = vmatprep.mubr.f32.mxu0 0.0
        %5357 = vmatmul.mubr.f32.gmra.mrb[0].mxu0 %v5251
        %v5358 = vpop.f32.mrb[0].mxu0
        %v5359 = vadd.f32 0.0, %v5358
        %v5360 = vpop.f32.mrb[0].mxu0
        %5361 = vmatprep.mubr.f32.mxu0 0.0
        %5362 = vmatmul.mubr.f32.gmra.mrb[0].mxu0 %v5254
        %v5363 = vpop.f32.mrb[0].mxu0
        %v5364 = vadd.f32 0.0, %v5363
        %v5365 = vpop.f32.mrb[0].mxu0
        %5366 = vmatprep.mubr.f32.mxu0 0.0
        %5367 = vmatmul.mubr.f32.gmra.mrb[0].mxu0 %v5257
        %v5368 = vpop.f32.mrb[0].mxu0
        %v5369 = vadd.f32 0.0, %v5368
        %v5370 = vpop.f32.mrb[0].mxu0
        %5371 = vmatprep.mubr.f32.mxu0 0.0
        %5372 = vmatmul.mubr.f32.gmra.mrb[0].mxu0 %v5260
        %v5373 = vpop.f32.mrb[0].mxu0
        %v5374 = vadd.f32 0.0, %v5373
        %v5375 = vpop.f32.mrb[0].mxu0
        %5376 = vdwg.mxu0
        %v5377 = vadd.f32 %v5207, %v5329
        %v5378 = vadd.f32 %v5208, %v5334
        %v5379 = vadd.f32 %v5209, %v5339
        %v5380 = vadd.f32 %v5210, %v5344
        %v5381 = vadd.f32 %v5211, %v5349
        %v5382 = vadd.f32 %v5212, %v5354
        %v5383 = vadd.f32 %v5213, %v5359
        %v5384 = vadd.f32 %v5214, %v5364
        %v5385 = vadd.f32 %v5215, %v5369
        %v5386 = vadd.f32 %v5216, %v5374
        %v5387 = vld [vmem:[#allocation3 + $0x14] sm:$0xff]
        %v5388 = vld [vmem:[#allocation3 + $0x1c] sm:$0xff]
        %v5389 = vld [vmem:[#allocation3 + $0x24] sm:$0xff]
        %v5390 = vld [vmem:[#allocation3 + $0x2c] sm:$0xff]
        %v5391 = vld [vmem:[#allocation3 + $0x34] sm:$0xff]
        %v5392 = vld [vmem:[#allocation3 + $0x3c] sm:$0xff]
        %v5393 = vld [vmem:[#allocation3 + $0x44] sm:$0xff]
        %v5394 = vld [vmem:[#allocation3 + $0x4c] sm:$0xff]
        %v5395 = vld [vmem:[#allocation3 + $0x54] sm:$0xff]
        %v5396 = vld [vmem:[#allocation3 + $0x5c] sm:$0xff]
        %s5397 = scalar_lea.vmem %s3, 192
        %v5398 = vld [vmem:[%s5397] sm:$0xff]
        %v5399 = vld [vmem:[%s5397 + $0x8] sm:$0xff]
        %v5400 = vld [vmem:[%s5397 + $0x10] sm:$0xff]
        %v5401 = vld [vmem:[%s5397 + $0x18] sm:$0xff]
        %v5403 = vsel %vm438, %v5387, 0
        %v5406 = vsel %vm438, %v5388, 0
        %v5409 = vsel %vm438, %v5389, 0
        %v5412 = vsel %vm438, %v5390, 0
        %v5415 = vsel %vm438, %v5391, 0
        %v5418 = vsel %vm438, %v5392, 0
        %v5421 = vsel %vm438, %v5393, 0
        %v5424 = vsel %vm438, %v5394, 0
        %v5427 = vsel %vm438, %v5395, 0
        %v5430 = vsel %vm438, %v5396, 0
        %5432 = vmatprep.subr.mxu0 0.0
        %5433 = vmatpush1.msra.mxu0 %v5398
        %5434 = vmatprep.subr.mxu0 0.0
        %5435 = vmatpush1.msra.mxu0 %v5399
        %5436 = vmatprep.subr.mxu0 0.0
        %5437 = vmatpush1.msra.mxu0 %v5400
        %5438 = vmatprep.subr.mxu0 0.0
        %5439 = vmatpush1.msra.mxu0 %v5401
        %5440 = vmatprep.subr.mxu0 0.0
        %5441 = vmatpush1.msra.mxu0 0.0
        %5442 = vmatprep.subr.mxu0 0.0
        %5443 = vmatpush1.msra.mxu0 0.0
        %5444 = vmatprep.subr.mxu0 0.0
        %5445 = vmatpush1.msra.mxu0 0.0
        %5446 = vmatprep.subr.mxu0 0.0
        %5447 = vmatpush1.msra.mxu0 0.0
        %5448 = vmatprep.subr.mxu0 0.0
        %5449 = vmatpush1.msra.mxu0 0.0
        %5450 = vmatprep.subr.mxu0 0.0
        %5451 = vmatpush1.msra.mxu0 0.0
        %5452 = vmatprep.subr.mxu0 0.0
        %5453 = vmatpush1.msra.mxu0 0.0
        %5454 = vmatprep.subr.mxu0 0.0
        %5455 = vmatpush1.msra.mxu0 0.0
        %5456 = vmatprep.subr.mxu0 0.0
        %5457 = vmatpush1.msra.mxu0 0.0
        %5458 = vmatprep.subr.mxu0 0.0
        %5459 = vmatpush1.msra.mxu0 0.0
        %5460 = vmatprep.subr.mxu0 0.0
        %5461 = vmatpush1.msra.mxu0 0.0
        %5462 = vmatprep.subr.mxu0 0.0
        %5463 = vmatpush1.msra.mxu0 0.0
        %5464 = vmatprep.subr.mxu0 0.0
        %5465 = vmatpush1.msra.mxu0 0.0
        %5466 = vmatprep.subr.mxu0 0.0
        %5467 = vmatpush1.msra.mxu0 0.0
        %5468 = vmatprep.subr.mxu0 0.0
        %5469 = vmatpush1.msra.mxu0 0.0
        %5470 = vmatprep.subr.mxu0 0.0
        %5471 = vmatpush1.msra.mxu0 0.0
        %5472 = vmatprep.subr.mxu0 0.0
        %5473 = vmatpush1.msra.mxu0 0.0
        %5474 = vmatprep.subr.mxu0 0.0
        %5475 = vmatpush1.msra.mxu0 0.0
        %5476 = vmatprep.subr.mxu0 0.0
        %5477 = vmatpush1.msra.mxu0 0.0
        %5478 = vmatprep.subr.mxu0 0.0
        %5479 = vmatpush1.msra.mxu0 0.0
        %5480 = vmatprep.subr.mxu0 0.0
        %5481 = vmatpush1.msra.mxu0 0.0
        %5482 = vmatprep.subr.mxu0 0.0
        %5483 = vmatpush1.msra.mxu0 0.0
        %5484 = vmatprep.subr.mxu0 0.0
        %5485 = vmatpush1.msra.mxu0 0.0
        %5486 = vmatprep.subr.mxu0 0.0
        %5487 = vmatpush1.msra.mxu0 0.0
        %5488 = vmatprep.subr.mxu0 0.0
        %5489 = vmatpush1.msra.mxu0 0.0
        %5490 = vmatprep.subr.mxu0 0.0
        %5491 = vmatpush1.msra.mxu0 0.0
        %5492 = vmatprep.subr.mxu0 0.0
        %5493 = vmatpush1.msra.mxu0 0.0
        %5494 = vmatprep.subr.mxu0 0.0
        %5495 = vmatpush1.msra.mxu0 0.0
        %5496 = vmatprep.mubr.f32.mxu0 0.0
        %5497 = vmatmul.mubr.f32.gmra.mrb[0].mxu0 %v5403
        %v5498 = vpop.f32.mrb[0].mxu0
        %v5499 = vadd.f32 0.0, %v5498
        %v5500 = vpop.f32.mrb[0].mxu0
        %5501 = vmatprep.mubr.f32.mxu0 0.0
        %5502 = vmatmul.mubr.f32.gmra.mrb[0].mxu0 %v5406
        %v5503 = vpop.f32.mrb[0].mxu0
        %v5504 = vadd.f32 0.0, %v5503
        %v5505 = vpop.f32.mrb[0].mxu0
        %5506 = vmatprep.mubr.f32.mxu0 0.0
        %5507 = vmatmul.mubr.f32.gmra.mrb[0].mxu0 %v5409
        %v5508 = vpop.f32.mrb[0].mxu0
        %v5509 = vadd.f32 0.0, %v5508
        %v5510 = vpop.f32.mrb[0].mxu0
        %5511 = vmatprep.mubr.f32.mxu0 0.0
        %5512 = vmatmul.mubr.f32.gmra.mrb[0].mxu0 %v5412
        %v5513 = vpop.f32.mrb[0].mxu0
        %v5514 = vadd.f32 0.0, %v5513
        %v5515 = vpop.f32.mrb[0].mxu0
        %5516 = vmatprep.mubr.f32.mxu0 0.0
        %5517 = vmatmul.mubr.f32.gmra.mrb[0].mxu0 %v5415
        %v5518 = vpop.f32.mrb[0].mxu0
        %v5519 = vadd.f32 0.0, %v5518
        %v5520 = vpop.f32.mrb[0].mxu0
        %5521 = vmatprep.mubr.f32.mxu0 0.0
        %5522 = vmatmul.mubr.f32.gmra.mrb[0].mxu0 %v5418
        %v5523 = vpop.f32.mrb[0].mxu0
        %v5524 = vadd.f32 0.0, %v5523
        %v5525 = vpop.f32.mrb[0].mxu0
        %5526 = vmatprep.mubr.f32.mxu0 0.0
        %5527 = vmatmul.mubr.f32.gmra.mrb[0].mxu0 %v5421
        %v5528 = vpop.f32.mrb[0].mxu0
        %v5529 = vadd.f32 0.0, %v5528
        %v5530 = vpop.f32.mrb[0].mxu0
        %5531 = vmatprep.mubr.f32.mxu0 0.0
        %5532 = vmatmul.mubr.f32.gmra.mrb[0].mxu0 %v5424
        %v5533 = vpop.f32.mrb[0].mxu0
        %v5534 = vadd.f32 0.0, %v5533
        %v5535 = vpop.f32.mrb[0].mxu0
        %5536 = vmatprep.mubr.f32.mxu0 0.0
        %5537 = vmatmul.mubr.f32.gmra.mrb[0].mxu0 %v5427
        %v5538 = vpop.f32.mrb[0].mxu0
        %v5539 = vadd.f32 0.0, %v5538
        %v5540 = vpop.f32.mrb[0].mxu0
        %5541 = vmatprep.mubr.f32.mxu0 0.0
        %5542 = vmatmul.mubr.f32.gmra.mrb[0].mxu0 %v5430
        %v5543 = vpop.f32.mrb[0].mxu0
        %v5544 = vadd.f32 0.0, %v5543
        %v5545 = vpop.f32.mrb[0].mxu0
        %5546 = vdwg.mxu0
        %v5547 = vadd.f32 %v5377, %v5499
        %v5548 = vadd.f32 %v5378, %v5504
        %v5549 = vadd.f32 %v5379, %v5509
        %v5550 = vadd.f32 %v5380, %v5514
        %v5551 = vadd.f32 %v5381, %v5519
        %v5552 = vadd.f32 %v5382, %v5524
        %v5553 = vadd.f32 %v5383, %v5529
        %v5554 = vadd.f32 %v5384, %v5534
        %v5555 = vadd.f32 %v5385, %v5539
        %v5556 = vadd.f32 %v5386, %v5544
        %v5557 = vld [vmem:[#allocation3 + $0x15] sm:$0xff]
        %v5558 = vld [vmem:[#allocation3 + $0x1d] sm:$0xff]
        %v5559 = vld [vmem:[#allocation3 + $0x25] sm:$0xff]
        %v5560 = vld [vmem:[#allocation3 + $0x2d] sm:$0xff]
        %v5561 = vld [vmem:[#allocation3 + $0x35] sm:$0xff]
        %v5562 = vld [vmem:[#allocation3 + $0x3d] sm:$0xff]
        %v5563 = vld [vmem:[#allocation3 + $0x45] sm:$0xff]
        %v5564 = vld [vmem:[#allocation3 + $0x4d] sm:$0xff]
        %v5565 = vld [vmem:[#allocation3 + $0x55] sm:$0xff]
        %v5566 = vld [vmem:[#allocation3 + $0x5d] sm:$0xff]
        %s5567 = scalar_lea.vmem %s3, 224
        %v5568 = vld [vmem:[%s5567] sm:$0xff]
        %v5569 = vld [vmem:[%s5567 + $0x8] sm:$0xff]
        %v5570 = vld [vmem:[%s5567 + $0x10] sm:$0xff]
        %v5571 = vld [vmem:[%s5567 + $0x18] sm:$0xff]
        %v5573 = vsel %vm438, %v5557, 0
        %v5576 = vsel %vm438, %v5558, 0
        %v5579 = vsel %vm438, %v5559, 0
        %v5582 = vsel %vm438, %v5560, 0
        %v5585 = vsel %vm438, %v5561, 0
        %v5588 = vsel %vm438, %v5562, 0
        %v5591 = vsel %vm438, %v5563, 0
        %v5594 = vsel %vm438, %v5564, 0
        %v5597 = vsel %vm438, %v5565, 0
        %v5600 = vsel %vm438, %v5566, 0
        %5602 = vmatprep.subr.mxu0 0.0
        %5603 = vmatpush1.msra.mxu0 %v5568
        %5604 = vmatprep.subr.mxu0 0.0
        %5605 = vmatpush1.msra.mxu0 %v5569
        %5606 = vmatprep.subr.mxu0 0.0
        %5607 = vmatpush1.msra.mxu0 %v5570
        %5608 = vmatprep.subr.mxu0 0.0
        %5609 = vmatpush1.msra.mxu0 %v5571
        %5610 = vmatprep.subr.mxu0 0.0
        %5611 = vmatpush1.msra.mxu0 0.0
        %5612 = vmatprep.subr.mxu0 0.0
        %5613 = vmatpush1.msra.mxu0 0.0
        %5614 = vmatprep.subr.mxu0 0.0
        %5615 = vmatpush1.msra.mxu0 0.0
        %5616 = vmatprep.subr.mxu0 0.0
        %5617 = vmatpush1.msra.mxu0 0.0
        %5618 = vmatprep.subr.mxu0 0.0
        %5619 = vmatpush1.msra.mxu0 0.0
        %5620 = vmatprep.subr.mxu0 0.0
        %5621 = vmatpush1.msra.mxu0 0.0
        %5622 = vmatprep.subr.mxu0 0.0
        %5623 = vmatpush1.msra.mxu0 0.0
        %5624 = vmatprep.subr.mxu0 0.0
        %5625 = vmatpush1.msra.mxu0 0.0
        %5626 = vmatprep.subr.mxu0 0.0
        %5627 = vmatpush1.msra.mxu0 0.0
        %5628 = vmatprep.subr.mxu0 0.0
        %5629 = vmatpush1.msra.mxu0 0.0
        %5630 = vmatprep.subr.mxu0 0.0
        %5631 = vmatpush1.msra.mxu0 0.0
        %5632 = vmatprep.subr.mxu0 0.0
        %5633 = vmatpush1.msra.mxu0 0.0
        %5634 = vmatprep.subr.mxu0 0.0
        %5635 = vmatpush1.msra.mxu0 0.0
        %5636 = vmatprep.subr.mxu0 0.0
        %5637 = vmatpush1.msra.mxu0 0.0
        %5638 = vmatprep.subr.mxu0 0.0
        %5639 = vmatpush1.msra.mxu0 0.0
        %5640 = vmatprep.subr.mxu0 0.0
        %5641 = vmatpush1.msra.mxu0 0.0
        %5642 = vmatprep.subr.mxu0 0.0
        %5643 = vmatpush1.msra.mxu0 0.0
        %5644 = vmatprep.subr.mxu0 0.0
        %5645 = vmatpush1.msra.mxu0 0.0
        %5646 = vmatprep.subr.mxu0 0.0
        %5647 = vmatpush1.msra.mxu0 0.0
        %5648 = vmatprep.subr.mxu0 0.0
        %5649 = vmatpush1.msra.mxu0 0.0
        %5650 = vmatprep.subr.mxu0 0.0
        %5651 = vmatpush1.msra.mxu0 0.0
        %5652 = vmatprep.subr.mxu0 0.0
        %5653 = vmatpush1.msra.mxu0 0.0
        %5654 = vmatprep.subr.mxu0 0.0
        %5655 = vmatpush1.msra.mxu0 0.0
        %5656 = vmatprep.subr.mxu0 0.0
        %5657 = vmatpush1.msra.mxu0 0.0
        %5658 = vmatprep.subr.mxu0 0.0
        %5659 = vmatpush1.msra.mxu0 0.0
        %5660 = vmatprep.subr.mxu0 0.0
        %5661 = vmatpush1.msra.mxu0 0.0
        %5662 = vmatprep.subr.mxu0 0.0
        %5663 = vmatpush1.msra.mxu0 0.0
        %5664 = vmatprep.subr.mxu0 0.0
        %5665 = vmatpush1.msra.mxu0 0.0
        %5666 = vmatprep.mubr.f32.mxu0 0.0
        %5667 = vmatmul.mubr.f32.gmra.mrb[0].mxu0 %v5573
        %v5668 = vpop.f32.mrb[0].mxu0
        %v5669 = vadd.f32 0.0, %v5668
        %v5670 = vpop.f32.mrb[0].mxu0
        %5671 = vmatprep.mubr.f32.mxu0 0.0
        %5672 = vmatmul.mubr.f32.gmra.mrb[0].mxu0 %v5576
        %v5673 = vpop.f32.mrb[0].mxu0
        %v5674 = vadd.f32 0.0, %v5673
        %v5675 = vpop.f32.mrb[0].mxu0
        %5676 = vmatprep.mubr.f32.mxu0 0.0
        %5677 = vmatmul.mubr.f32.gmra.mrb[0].mxu0 %v5579
        %v5678 = vpop.f32.mrb[0].mxu0
        %v5679 = vadd.f32 0.0, %v5678
        %v5680 = vpop.f32.mrb[0].mxu0
        %5681 = vmatprep.mubr.f32.mxu0 0.0
        %5682 = vmatmul.mubr.f32.gmra.mrb[0].mxu0 %v5582
        %v5683 = vpop.f32.mrb[0].mxu0
        %v5684 = vadd.f32 0.0, %v5683
        %v5685 = vpop.f32.mrb[0].mxu0
        %5686 = vmatprep.mubr.f32.mxu0 0.0
        %5687 = vmatmul.mubr.f32.gmra.mrb[0].mxu0 %v5585
        %v5688 = vpop.f32.mrb[0].mxu0
        %v5689 = vadd.f32 0.0, %v5688
        %v5690 = vpop.f32.mrb[0].mxu0
        %5691 = vmatprep.mubr.f32.mxu0 0.0
        %5692 = vmatmul.mubr.f32.gmra.mrb[0].mxu0 %v5588
        %v5693 = vpop.f32.mrb[0].mxu0
        %v5694 = vadd.f32 0.0, %v5693
        %v5695 = vpop.f32.mrb[0].mxu0
        %5696 = vmatprep.mubr.f32.mxu0 0.0
        %5697 = vmatmul.mubr.f32.gmra.mrb[0].mxu0 %v5591
        %v5698 = vpop.f32.mrb[0].mxu0
        %v5699 = vadd.f32 0.0, %v5698
        %v5700 = vpop.f32.mrb[0].mxu0
        %5701 = vmatprep.mubr.f32.mxu0 0.0
        %5702 = vmatmul.mubr.f32.gmra.mrb[0].mxu0 %v5594
        %v5703 = vpop.f32.mrb[0].mxu0
        %v5704 = vadd.f32 0.0, %v5703
        %v5705 = vpop.f32.mrb[0].mxu0
        %5706 = vmatprep.mubr.f32.mxu0 0.0
        %5707 = vmatmul.mubr.f32.gmra.mrb[0].mxu0 %v5597
        %v5708 = vpop.f32.mrb[0].mxu0
        %v5709 = vadd.f32 0.0, %v5708
        %v5710 = vpop.f32.mrb[0].mxu0
        %5711 = vmatprep.mubr.f32.mxu0 0.0
        %5712 = vmatmul.mubr.f32.gmra.mrb[0].mxu0 %v5600
        %v5713 = vpop.f32.mrb[0].mxu0
        %v5714 = vadd.f32 0.0, %v5713
        %v5715 = vpop.f32.mrb[0].mxu0
        %5716 = vdwg.mxu0
        %v5717 = vadd.f32 %v5547, %v5669
        %v5718 = vadd.f32 %v5548, %v5674
        %v5719 = vadd.f32 %v5549, %v5679
        %v5720 = vadd.f32 %v5550, %v5684
        %v5721 = vadd.f32 %v5551, %v5689
        %v5722 = vadd.f32 %v5552, %v5694
        %v5723 = vadd.f32 %v5553, %v5699
        %v5724 = vadd.f32 %v5554, %v5704
        %v5725 = vadd.f32 %v5555, %v5709
        %v5726 = vadd.f32 %v5556, %v5714
        %v5727 = vld [vmem:[#allocation3 + $0x16] sm:$0xff]
        %v5728 = vld [vmem:[#allocation3 + $0x1e] sm:$0xff]
        %v5729 = vld [vmem:[#allocation3 + $0x26] sm:$0xff]
        %v5730 = vld [vmem:[#allocation3 + $0x2e] sm:$0xff]
        %v5731 = vld [vmem:[#allocation3 + $0x36] sm:$0xff]
        %v5732 = vld [vmem:[#allocation3 + $0x3e] sm:$0xff]
        %v5733 = vld [vmem:[#allocation3 + $0x46] sm:$0xff]
        %v5734 = vld [vmem:[#allocation3 + $0x4e] sm:$0xff]
        %v5735 = vld [vmem:[#allocation3 + $0x56] sm:$0xff]
        %v5736 = vld [vmem:[#allocation3 + $0x5e] sm:$0xff]
        %s5737 = scalar_lea.vmem %s3, 256
        %v5738 = vld [vmem:[%s5737] sm:$0xff]
        %v5739 = vld [vmem:[%s5737 + $0x8] sm:$0xff]
        %v5740 = vld [vmem:[%s5737 + $0x10] sm:$0xff]
        %v5741 = vld [vmem:[%s5737 + $0x18] sm:$0xff]
        %v5743 = vsel %vm438, %v5727, 0
        %v5746 = vsel %vm438, %v5728, 0
        %v5749 = vsel %vm438, %v5729, 0
        %v5752 = vsel %vm438, %v5730, 0
        %v5755 = vsel %vm438, %v5731, 0
        %v5758 = vsel %vm438, %v5732, 0
        %v5761 = vsel %vm438, %v5733, 0
        %v5764 = vsel %vm438, %v5734, 0
        %v5767 = vsel %vm438, %v5735, 0
        %v5770 = vsel %vm438, %v5736, 0
        %5772 = vmatprep.subr.mxu0 0.0
        %5773 = vmatpush1.msra.mxu0 %v5738
        %5774 = vmatprep.subr.mxu0 0.0
        %5775 = vmatpush1.msra.mxu0 %v5739
        %5776 = vmatprep.subr.mxu0 0.0
        %5777 = vmatpush1.msra.mxu0 %v5740
        %5778 = vmatprep.subr.mxu0 0.0
        %5779 = vmatpush1.msra.mxu0 %v5741
        %5780 = vmatprep.subr.mxu0 0.0
        %5781 = vmatpush1.msra.mxu0 0.0
        %5782 = vmatprep.subr.mxu0 0.0
        %5783 = vmatpush1.msra.mxu0 0.0
        %5784 = vmatprep.subr.mxu0 0.0
        %5785 = vmatpush1.msra.mxu0 0.0
        %5786 = vmatprep.subr.mxu0 0.0
        %5787 = vmatpush1.msra.mxu0 0.0
        %5788 = vmatprep.subr.mxu0 0.0
        %5789 = vmatpush1.msra.mxu0 0.0
        %5790 = vmatprep.subr.mxu0 0.0
        %5791 = vmatpush1.msra.mxu0 0.0
        %5792 = vmatprep.subr.mxu0 0.0
        %5793 = vmatpush1.msra.mxu0 0.0
        %5794 = vmatprep.subr.mxu0 0.0
        %5795 = vmatpush1.msra.mxu0 0.0
        %5796 = vmatprep.subr.mxu0 0.0
        %5797 = vmatpush1.msra.mxu0 0.0
        %5798 = vmatprep.subr.mxu0 0.0
        %5799 = vmatpush1.msra.mxu0 0.0
        %5800 = vmatprep.subr.mxu0 0.0
        %5801 = vmatpush1.msra.mxu0 0.0
        %5802 = vmatprep.subr.mxu0 0.0
        %5803 = vmatpush1.msra.mxu0 0.0
        %5804 = vmatprep.subr.mxu0 0.0
        %5805 = vmatpush1.msra.mxu0 0.0
        %5806 = vmatprep.subr.mxu0 0.0
        %5807 = vmatpush1.msra.mxu0 0.0
        %5808 = vmatprep.subr.mxu0 0.0
        %5809 = vmatpush1.msra.mxu0 0.0
        %5810 = vmatprep.subr.mxu0 0.0
        %5811 = vmatpush1.msra.mxu0 0.0
        %5812 = vmatprep.subr.mxu0 0.0
        %5813 = vmatpush1.msra.mxu0 0.0
        %5814 = vmatprep.subr.mxu0 0.0
        %5815 = vmatpush1.msra.mxu0 0.0
        %5816 = vmatprep.subr.mxu0 0.0
        %5817 = vmatpush1.msra.mxu0 0.0
        %5818 = vmatprep.subr.mxu0 0.0
        %5819 = vmatpush1.msra.mxu0 0.0
        %5820 = vmatprep.subr.mxu0 0.0
        %5821 = vmatpush1.msra.mxu0 0.0
        %5822 = vmatprep.subr.mxu0 0.0
        %5823 = vmatpush1.msra.mxu0 0.0
        %5824 = vmatprep.subr.mxu0 0.0
        %5825 = vmatpush1.msra.mxu0 0.0
        %5826 = vmatprep.subr.mxu0 0.0
        %5827 = vmatpush1.msra.mxu0 0.0
        %5828 = vmatprep.subr.mxu0 0.0
        %5829 = vmatpush1.msra.mxu0 0.0
        %5830 = vmatprep.subr.mxu0 0.0
        %5831 = vmatpush1.msra.mxu0 0.0
        %5832 = vmatprep.subr.mxu0 0.0
        %5833 = vmatpush1.msra.mxu0 0.0
        %5834 = vmatprep.subr.mxu0 0.0
        %5835 = vmatpush1.msra.mxu0 0.0
        %5836 = vmatprep.mubr.f32.mxu0 0.0
        %5837 = vmatmul.mubr.f32.gmra.mrb[0].mxu0 %v5743
        %v5838 = vpop.f32.mrb[0].mxu0
        %v5839 = vadd.f32 0.0, %v5838
        %v5840 = vpop.f32.mrb[0].mxu0
        %5841 = vmatprep.mubr.f32.mxu0 0.0
        %5842 = vmatmul.mubr.f32.gmra.mrb[0].mxu0 %v5746
        %v5843 = vpop.f32.mrb[0].mxu0
        %v5844 = vadd.f32 0.0, %v5843
        %v5845 = vpop.f32.mrb[0].mxu0
        %5846 = vmatprep.mubr.f32.mxu0 0.0
        %5847 = vmatmul.mubr.f32.gmra.mrb[0].mxu0 %v5749
        %v5848 = vpop.f32.mrb[0].mxu0
        %v5849 = vadd.f32 0.0, %v5848
        %v5850 = vpop.f32.mrb[0].mxu0
        %5851 = vmatprep.mubr.f32.mxu0 0.0
        %5852 = vmatmul.mubr.f32.gmra.mrb[0].mxu0 %v5752
        %v5853 = vpop.f32.mrb[0].mxu0
        %v5854 = vadd.f32 0.0, %v5853
        %v5855 = vpop.f32.mrb[0].mxu0
        %5856 = vmatprep.mubr.f32.mxu0 0.0
        %5857 = vmatmul.mubr.f32.gmra.mrb[0].mxu0 %v5755
        %v5858 = vpop.f32.mrb[0].mxu0
        %v5859 = vadd.f32 0.0, %v5858
        %v5860 = vpop.f32.mrb[0].mxu0
        %5861 = vmatprep.mubr.f32.mxu0 0.0
        %5862 = vmatmul.mubr.f32.gmra.mrb[0].mxu0 %v5758
        %v5863 = vpop.f32.mrb[0].mxu0
        %v5864 = vadd.f32 0.0, %v5863
        %v5865 = vpop.f32.mrb[0].mxu0
        %5866 = vmatprep.mubr.f32.mxu0 0.0
        %5867 = vmatmul.mubr.f32.gmra.mrb[0].mxu0 %v5761
        %v5868 = vpop.f32.mrb[0].mxu0
        %v5869 = vadd.f32 0.0, %v5868
        %v5870 = vpop.f32.mrb[0].mxu0
        %5871 = vmatprep.mubr.f32.mxu0 0.0
        %5872 = vmatmul.mubr.f32.gmra.mrb[0].mxu0 %v5764
        %v5873 = vpop.f32.mrb[0].mxu0
        %v5874 = vadd.f32 0.0, %v5873
        %v5875 = vpop.f32.mrb[0].mxu0
        %5876 = vmatprep.mubr.f32.mxu0 0.0
        %5877 = vmatmul.mubr.f32.gmra.mrb[0].mxu0 %v5767
        %v5878 = vpop.f32.mrb[0].mxu0
        %v5879 = vadd.f32 0.0, %v5878
        %v5880 = vpop.f32.mrb[0].mxu0
        %5881 = vmatprep.mubr.f32.mxu0 0.0
        %5882 = vmatmul.mubr.f32.gmra.mrb[0].mxu0 %v5770
        %v5883 = vpop.f32.mrb[0].mxu0
        %v5884 = vadd.f32 0.0, %v5883
        %v5885 = vpop.f32.mrb[0].mxu0
        %5886 = vdwg.mxu0
        %v5887 = vadd.f32 %v5717, %v5839
        %v5888 = vadd.f32 %v5718, %v5844
        %v5889 = vadd.f32 %v5719, %v5849
        %v5890 = vadd.f32 %v5720, %v5854
        %v5891 = vadd.f32 %v5721, %v5859
        %v5892 = vadd.f32 %v5722, %v5864
        %v5893 = vadd.f32 %v5723, %v5869
        %v5894 = vadd.f32 %v5724, %v5874
        %v5895 = vadd.f32 %v5725, %v5879
        %v5896 = vadd.f32 %v5726, %v5884
        %5897 = vst.msk [vmem:[#allocation2] sm:$0xff] %vm438, %v5887
        %5898 = vst.msk [vmem:[#allocation2 + $0x8] sm:$0xff] %vm438, %v5888
        %5899 = vst.msk [vmem:[#allocation2 + $0x10] sm:$0xff] %vm438, %v5889
        %5900 = vst.msk [vmem:[#allocation2 + $0x18] sm:$0xff] %vm438, %v5890
        %5901 = vst.msk [vmem:[#allocation2 + $0x20] sm:$0xff] %vm438, %v5891
        %5902 = vst.msk [vmem:[#allocation2 + $0x28] sm:$0xff] %vm438, %v5892
        %5903 = vst.msk [vmem:[#allocation2 + $0x30] sm:$0xff] %vm438, %v5893
        %5904 = vst.msk [vmem:[#allocation2 + $0x38] sm:$0xff] %vm438, %v5894
        %5905 = vst.msk [vmem:[#allocation2 + $0x40] sm:$0xff] %vm438, %v5895
        %5906 = vst.msk [vmem:[#allocation2 + $0x48] sm:$0xff] %vm438, %v5896
        %v5907 = vld [vmem:[%s4] sm:$0x1]
        %v5908 = vld [vmem:[#allocation2] ss:$2 sm:$0xf]
        %v5909 = vld [vmem:[%s4272] ss:$2 sm:$0xf]
        %s5910 = scalar_lea.vmem [#allocation2], 10
        %v5911 = vld [vmem:[%s5910] ss:$2 sm:$0xf]
        %s5912 = scalar_lea.vmem [#allocation2], 11
        %v5913 = vld [vmem:[%s5912] ss:$2 sm:$0xf]
        %v5914 = vmax.f32 %v5908, %v5909
        %v5915 = vmax.f32 %v5911, %v5913
        %v5916 = vmax.f32 %v5914, %v5915
        %v5918 = vlaneseq
        %v5919 = vshrl.u32 %v5918, 7
        %v5920 = vsub.s32 0, %v5919
        %v5921 = vrot.slane %v5907, %v5920
        %v5923 = vadd.f32 %v5916, %v5921
        %v5924 = vmax.f32 %v5923, 0.0
        %5925 = vst.msk [vmem:[#allocation4 + $0x7] sm:$0xf] %vm452, %v5924
        %s5926 = scalar_lea.vmem [#allocation2], 20
        %v5927 = vld [vmem:[%s5926] ss:$2 sm:$0xf]
        %s5928 = scalar_lea.vmem [#allocation2], 21
        %v5929 = vld [vmem:[%s5928] ss:$2 sm:$0xf]
        %s5930 = scalar_lea.vmem [#allocation2], 30
        %v5931 = vld [vmem:[%s5930] ss:$2 sm:$0xf]
        %s5932 = scalar_lea.vmem [#allocation2], 31
        %v5933 = vld [vmem:[%s5932] ss:$2 sm:$0xf]
        %v5934 = vmax.f32 %v5927, %v5929
        %v5935 = vmax.f32 %v5931, %v5933
        %v5936 = vmax.f32 %v5934, %v5935
        %v5937 = vadd.f32 %v5936, %v5921
        %v5938 = vmax.f32 %v5937, 0.0
        %5939 = vst.msk [vmem:[#allocation4 + $0xd] sm:$0xf] %vm452, %v5938
        %s5940 = scalar_lea.vmem [#allocation2], 40
        %v5941 = vld [vmem:[%s5940] ss:$2 sm:$0xf]
        %s5942 = scalar_lea.vmem [#allocation2], 41
        %v5943 = vld [vmem:[%s5942] ss:$2 sm:$0xf]
        %s5944 = scalar_lea.vmem [#allocation2], 50
        %v5945 = vld [vmem:[%s5944] ss:$2 sm:$0xf]
        %s5946 = scalar_lea.vmem [#allocation2], 51
        %v5947 = vld [vmem:[%s5946] ss:$2 sm:$0xf]
        %v5948 = vmax.f32 %v5941, %v5943
        %v5949 = vmax.f32 %v5945, %v5947
        %v5950 = vmax.f32 %v5948, %v5949
        %v5951 = vadd.f32 %v5950, %v5921
        %v5952 = vmax.f32 %v5951, 0.0
        %5953 = vst.msk [vmem:[#allocation4 + $0x13] sm:$0xf] %vm452, %v5952
        %s5954 = scalar_lea.vmem [#allocation2], 60
        %v5955 = vld [vmem:[%s5954] ss:$2 sm:$0xf]
        %s5956 = scalar_lea.vmem [#allocation2], 61
        %v5957 = vld [vmem:[%s5956] ss:$2 sm:$0xf]
        %s5958 = scalar_lea.vmem [#allocation2], 70
        %v5959 = vld [vmem:[%s5958] ss:$2 sm:$0xf]
        %s5960 = scalar_lea.vmem [#allocation2], 71
        %v5961 = vld [vmem:[%s5960] ss:$2 sm:$0xf]
        %v5962 = vmax.f32 %v5955, %v5957
        %v5963 = vmax.f32 %v5959, %v5961
        %v5964 = vmax.f32 %v5962, %v5963
        %v5965 = vadd.f32 %v5964, %v5921
        %v5966 = vmax.f32 %v5965, 0.0
        %5967 = vst.msk [vmem:[#allocation4 + $0x19] sm:$0xf] %vm452, %v5966
        %v5968 = vld [vmem:[#allocation4] sm:$0xff]
        %v5969 = vld [vmem:[#allocation4 + $0x8] sm:$0xff]
        %v5970 = vld [vmem:[#allocation4 + $0x10] sm:$0xff]
        %v5971 = vld [vmem:[%s5] sm:$0xff]
        %v5972 = vld [vmem:[%s5 + $0x8] sm:$0xff]
        %v5973 = vld [vmem:[%s5 + $0x10] sm:$0xff]
        %v5974 = vld [vmem:[%s5 + $0x18] sm:$0xff]
        %v5975 = vld [vmem:[#allocation4 + $0x1] sm:$0xff]
        %v5976 = vld [vmem:[#allocation4 + $0x9] sm:$0xff]
        %v5977 = vld [vmem:[#allocation4 + $0x11] sm:$0xff]
        %s5978 = scalar_lea.vmem %s5, 32
        %v5979 = vld [vmem:[%s5978] sm:$0xff]
        %v5980 = vld [vmem:[%s5978 + $0x8] sm:$0xff]
        %v5981 = vld [vmem:[%s5978 + $0x10] sm:$0xff]
        %v5982 = vld [vmem:[%s5978 + $0x18] sm:$0xff]
        %v5984 = vsel %vm438, %v5975, 0
        %v5987 = vsel %vm438, %v5976, 0
        %v5990 = vsel %vm438, %v5977, 0
        %5992 = vmatprep.subr.mxu0 0.0
        %5993 = vmatpush1.msra.mxu0 %v5979
        %5994 = vmatprep.subr.mxu0 0.0
        %5995 = vmatpush1.msra.mxu0 %v5980
        %5996 = vmatprep.subr.mxu0 0.0
        %5997 = vmatpush1.msra.mxu0 %v5981
        %5998 = vmatprep.subr.mxu0 0.0
        %5999 = vmatpush1.msra.mxu0 %v5982
        %6000 = vmatprep.subr.mxu0 0.0
        %6001 = vmatpush1.msra.mxu0 0.0
        %6002 = vmatprep.subr.mxu0 0.0
        %6003 = vmatpush1.msra.mxu0 0.0
        %6004 = vmatprep.subr.mxu0 0.0
        %6005 = vmatpush1.msra.mxu0 0.0
        %6006 = vmatprep.subr.mxu0 0.0
        %6007 = vmatpush1.msra.mxu0 0.0
        %6008 = vmatprep.subr.mxu0 0.0
        %6009 = vmatpush1.msra.mxu0 0.0
        %6010 = vmatprep.subr.mxu0 0.0
        %6011 = vmatpush1.msra.mxu0 0.0
        %6012 = vmatprep.subr.mxu0 0.0
        %6013 = vmatpush1.msra.mxu0 0.0
        %6014 = vmatprep.subr.mxu0 0.0
        %6015 = vmatpush1.msra.mxu0 0.0
        %6016 = vmatprep.subr.mxu0 0.0
        %6017 = vmatpush1.msra.mxu0 0.0
        %6018 = vmatprep.subr.mxu0 0.0
        %6019 = vmatpush1.msra.mxu0 0.0
        %6020 = vmatprep.subr.mxu0 0.0
        %6021 = vmatpush1.msra.mxu0 0.0
        %6022 = vmatprep.subr.mxu0 0.0
        %6023 = vmatpush1.msra.mxu0 0.0
        %6024 = vmatprep.subr.mxu0 0.0
        %6025 = vmatpush1.msra.mxu0 0.0
        %6026 = vmatprep.subr.mxu0 0.0
        %6027 = vmatpush1.msra.mxu0 0.0
        %6028 = vmatprep.subr.mxu0 0.0
        %6029 = vmatpush1.msra.mxu0 0.0
        %6030 = vmatprep.subr.mxu0 0.0
        %6031 = vmatpush1.msra.mxu0 0.0
        %6032 = vmatprep.subr.mxu0 0.0
        %6033 = vmatpush1.msra.mxu0 0.0
        %6034 = vmatprep.subr.mxu0 0.0
        %6035 = vmatpush1.msra.mxu0 0.0
        %6036 = vmatprep.subr.mxu0 0.0
        %6037 = vmatpush1.msra.mxu0 0.0
        %6038 = vmatprep.subr.mxu0 0.0
        %6039 = vmatpush1.msra.mxu0 0.0
        %6040 = vmatprep.subr.mxu0 0.0
        %6041 = vmatpush1.msra.mxu0 0.0
        %6042 = vmatprep.subr.mxu0 0.0
        %6043 = vmatpush1.msra.mxu0 0.0
        %6044 = vmatprep.subr.mxu0 0.0
        %6045 = vmatpush1.msra.mxu0 0.0
        %6046 = vmatprep.subr.mxu0 0.0
        %6047 = vmatpush1.msra.mxu0 0.0
        %6048 = vmatprep.subr.mxu0 0.0
        %6049 = vmatpush1.msra.mxu0 0.0
        %6050 = vmatprep.subr.mxu0 0.0
        %6051 = vmatpush1.msra.mxu0 0.0
        %6052 = vmatprep.subr.mxu0 0.0
        %6053 = vmatpush1.msra.mxu0 0.0
        %6054 = vmatprep.subr.mxu0 0.0
        %6055 = vmatpush1.msra.mxu0 0.0
        %6056 = vmatprep.mubr.f32.mxu0 0.0
        %6057 = vmatmul.mubr.f32.gmra.mrb[0].mxu0 %v5984
        %v6058 = vpop.f32.mrb[0].mxu0
        %v6059 = vadd.f32 0.0, %v6058
        %v6060 = vpop.f32.mrb[0].mxu0
        %6061 = vmatprep.mubr.f32.mxu0 0.0
        %6062 = vmatmul.mubr.f32.gmra.mrb[0].mxu0 %v5987
        %v6063 = vpop.f32.mrb[0].mxu0
        %v6064 = vadd.f32 0.0, %v6063
        %v6065 = vpop.f32.mrb[0].mxu0
        %6066 = vmatprep.mubr.f32.mxu0 0.0
        %6067 = vmatmul.mubr.f32.gmra.mrb[0].mxu0 %v5990
        %v6068 = vpop.f32.mrb[0].mxu0
        %v6069 = vadd.f32 0.0, %v6068
        %v6070 = vpop.f32.mrb[0].mxu0
        %6071 = vdwg.mxu0
        %v6073 = vsel %vm438, %v5968, 0
        %v6076 = vsel %vm438, %v5969, 0
        %v6079 = vsel %vm438, %v5970, 0
        %6081 = vmatprep.subr.mxu0 0.0
        %6082 = vmatpush1.msra.mxu0 %v5971
        %6083 = vmatprep.subr.mxu0 0.0
        %6084 = vmatpush1.msra.mxu0 %v5972
        %6085 = vmatprep.subr.mxu0 0.0
        %6086 = vmatpush1.msra.mxu0 %v5973
        %6087 = vmatprep.subr.mxu0 0.0
        %6088 = vmatpush1.msra.mxu0 %v5974
        %6089 = vmatprep.subr.mxu0 0.0
        %6090 = vmatpush1.msra.mxu0 0.0
        %6091 = vmatprep.subr.mxu0 0.0
        %6092 = vmatpush1.msra.mxu0 0.0
        %6093 = vmatprep.subr.mxu0 0.0
        %6094 = vmatpush1.msra.mxu0 0.0
        %6095 = vmatprep.subr.mxu0 0.0
        %6096 = vmatpush1.msra.mxu0 0.0
        %6097 = vmatprep.subr.mxu0 0.0
        %6098 = vmatpush1.msra.mxu0 0.0
        %6099 = vmatprep.subr.mxu0 0.0
        %6100 = vmatpush1.msra.mxu0 0.0
        %6101 = vmatprep.subr.mxu0 0.0
        %6102 = vmatpush1.msra.mxu0 0.0
        %6103 = vmatprep.subr.mxu0 0.0
        %6104 = vmatpush1.msra.mxu0 0.0
        %6105 = vmatprep.subr.mxu0 0.0
        %6106 = vmatpush1.msra.mxu0 0.0
        %6107 = vmatprep.subr.mxu0 0.0
        %6108 = vmatpush1.msra.mxu0 0.0
        %6109 = vmatprep.subr.mxu0 0.0
        %6110 = vmatpush1.msra.mxu0 0.0
        %6111 = vmatprep.subr.mxu0 0.0
        %6112 = vmatpush1.msra.mxu0 0.0
        %6113 = vmatprep.subr.mxu0 0.0
        %6114 = vmatpush1.msra.mxu0 0.0
        %6115 = vmatprep.subr.mxu0 0.0
        %6116 = vmatpush1.msra.mxu0 0.0
        %6117 = vmatprep.subr.mxu0 0.0
        %6118 = vmatpush1.msra.mxu0 0.0
        %6119 = vmatprep.subr.mxu0 0.0
        %6120 = vmatpush1.msra.mxu0 0.0
        %6121 = vmatprep.subr.mxu0 0.0
        %6122 = vmatpush1.msra.mxu0 0.0
        %6123 = vmatprep.subr.mxu0 0.0
        %6124 = vmatpush1.msra.mxu0 0.0
        %6125 = vmatprep.subr.mxu0 0.0
        %6126 = vmatpush1.msra.mxu0 0.0
        %6127 = vmatprep.subr.mxu0 0.0
        %6128 = vmatpush1.msra.mxu0 0.0
        %6129 = vmatprep.subr.mxu0 0.0
        %6130 = vmatpush1.msra.mxu0 0.0
        %6131 = vmatprep.subr.mxu0 0.0
        %6132 = vmatpush1.msra.mxu0 0.0
        %6133 = vmatprep.subr.mxu0 0.0
        %6134 = vmatpush1.msra.mxu0 0.0
        %6135 = vmatprep.subr.mxu0 0.0
        %6136 = vmatpush1.msra.mxu0 0.0
        %6137 = vmatprep.subr.mxu0 0.0
        %6138 = vmatpush1.msra.mxu0 0.0
        %6139 = vmatprep.subr.mxu0 0.0
        %6140 = vmatpush1.msra.mxu0 0.0
        %6141 = vmatprep.subr.mxu0 0.0
        %6142 = vmatpush1.msra.mxu0 0.0
        %6143 = vmatprep.subr.mxu0 0.0
        %6144 = vmatpush1.msra.mxu0 0.0
        %6145 = vmatprep.mubr.f32.mxu0 0.0
        %6146 = vmatmul.mubr.f32.gmra.mrb[0].mxu0 %v6073
        %v6147 = vpop.f32.mrb[0].mxu0
        %v6148 = vadd.f32 %v6059, %v6147
        %v6149 = vpop.f32.mrb[0].mxu0
        %6150 = vmatprep.mubr.f32.mxu0 0.0
        %6151 = vmatmul.mubr.f32.gmra.mrb[0].mxu0 %v6076
        %v6152 = vpop.f32.mrb[0].mxu0
        %v6153 = vadd.f32 %v6064, %v6152
        %v6154 = vpop.f32.mrb[0].mxu0
        %6155 = vmatprep.mubr.f32.mxu0 0.0
        %6156 = vmatmul.mubr.f32.gmra.mrb[0].mxu0 %v6079
        %v6157 = vpop.f32.mrb[0].mxu0
        %v6158 = vadd.f32 %v6069, %v6157
        %v6159 = vpop.f32.mrb[0].mxu0
        %6160 = vdwg.mxu0
        %v6161 = vld [vmem:[#allocation4 + $0x2] sm:$0xff]
        %v6162 = vld [vmem:[#allocation4 + $0xa] sm:$0xff]
        %v6163 = vld [vmem:[#allocation4 + $0x12] sm:$0xff]
        %s6164 = scalar_lea.vmem %s5, 64
        %v6165 = vld [vmem:[%s6164] sm:$0xff]
        %v6166 = vld [vmem:[%s6164 + $0x8] sm:$0xff]
        %v6167 = vld [vmem:[%s6164 + $0x10] sm:$0xff]
        %v6168 = vld [vmem:[%s6164 + $0x18] sm:$0xff]
        %v6170 = vsel %vm438, %v6161, 0
        %v6173 = vsel %vm438, %v6162, 0
        %v6176 = vsel %vm438, %v6163, 0
        %6178 = vmatprep.subr.mxu0 0.0
        %6179 = vmatpush1.msra.mxu0 %v6165
        %6180 = vmatprep.subr.mxu0 0.0
        %6181 = vmatpush1.msra.mxu0 %v6166
        %6182 = vmatprep.subr.mxu0 0.0
        %6183 = vmatpush1.msra.mxu0 %v6167
        %6184 = vmatprep.subr.mxu0 0.0
        %6185 = vmatpush1.msra.mxu0 %v6168
        %6186 = vmatprep.subr.mxu0 0.0
        %6187 = vmatpush1.msra.mxu0 0.0
        %6188 = vmatprep.subr.mxu0 0.0
        %6189 = vmatpush1.msra.mxu0 0.0
        %6190 = vmatprep.subr.mxu0 0.0
        %6191 = vmatpush1.msra.mxu0 0.0
        %6192 = vmatprep.subr.mxu0 0.0
        %6193 = vmatpush1.msra.mxu0 0.0
        %6194 = vmatprep.subr.mxu0 0.0
        %6195 = vmatpush1.msra.mxu0 0.0
        %6196 = vmatprep.subr.mxu0 0.0
        %6197 = vmatpush1.msra.mxu0 0.0
        %6198 = vmatprep.subr.mxu0 0.0
        %6199 = vmatpush1.msra.mxu0 0.0
        %6200 = vmatprep.subr.mxu0 0.0
        %6201 = vmatpush1.msra.mxu0 0.0
        %6202 = vmatprep.subr.mxu0 0.0
        %6203 = vmatpush1.msra.mxu0 0.0
        %6204 = vmatprep.subr.mxu0 0.0
        %6205 = vmatpush1.msra.mxu0 0.0
        %6206 = vmatprep.subr.mxu0 0.0
        %6207 = vmatpush1.msra.mxu0 0.0
        %6208 = vmatprep.subr.mxu0 0.0
        %6209 = vmatpush1.msra.mxu0 0.0
        %6210 = vmatprep.subr.mxu0 0.0
        %6211 = vmatpush1.msra.mxu0 0.0
        %6212 = vmatprep.subr.mxu0 0.0
        %6213 = vmatpush1.msra.mxu0 0.0
        %6214 = vmatprep.subr.mxu0 0.0
        %6215 = vmatpush1.msra.mxu0 0.0
        %6216 = vmatprep.subr.mxu0 0.0
        %6217 = vmatpush1.msra.mxu0 0.0
        %6218 = vmatprep.subr.mxu0 0.0
        %6219 = vmatpush1.msra.mxu0 0.0
        %6220 = vmatprep.subr.mxu0 0.0
        %6221 = vmatpush1.msra.mxu0 0.0
        %6222 = vmatprep.subr.mxu0 0.0
        %6223 = vmatpush1.msra.mxu0 0.0
        %6224 = vmatprep.subr.mxu0 0.0
        %6225 = vmatpush1.msra.mxu0 0.0
        %6226 = vmatprep.subr.mxu0 0.0
        %6227 = vmatpush1.msra.mxu0 0.0
        %6228 = vmatprep.subr.mxu0 0.0
        %6229 = vmatpush1.msra.mxu0 0.0
        %6230 = vmatprep.subr.mxu0 0.0
        %6231 = vmatpush1.msra.mxu0 0.0
        %6232 = vmatprep.subr.mxu0 0.0
        %6233 = vmatpush1.msra.mxu0 0.0
        %6234 = vmatprep.subr.mxu0 0.0
        %6235 = vmatpush1.msra.mxu0 0.0
        %6236 = vmatprep.subr.mxu0 0.0
        %6237 = vmatpush1.msra.mxu0 0.0
        %6238 = vmatprep.subr.mxu0 0.0
        %6239 = vmatpush1.msra.mxu0 0.0
        %6240 = vmatprep.subr.mxu0 0.0
        %6241 = vmatpush1.msra.mxu0 0.0
        %6242 = vmatprep.mubr.f32.mxu0 0.0
        %6243 = vmatmul.mubr.f32.gmra.mrb[0].mxu0 %v6170
        %v6244 = vpop.f32.mrb[0].mxu0
        %v6245 = vadd.f32 0.0, %v6244
        %v6246 = vpop.f32.mrb[0].mxu0
        %6247 = vmatprep.mubr.f32.mxu0 0.0
        %6248 = vmatmul.mubr.f32.gmra.mrb[0].mxu0 %v6173
        %v6249 = vpop.f32.mrb[0].mxu0
        %v6250 = vadd.f32 0.0, %v6249
        %v6251 = vpop.f32.mrb[0].mxu0
        %6252 = vmatprep.mubr.f32.mxu0 0.0
        %6253 = vmatmul.mubr.f32.gmra.mrb[0].mxu0 %v6176
        %v6254 = vpop.f32.mrb[0].mxu0
        %v6255 = vadd.f32 0.0, %v6254
        %v6256 = vpop.f32.mrb[0].mxu0
        %6257 = vdwg.mxu0
        %v6258 = vadd.f32 %v6148, %v6245
        %v6259 = vadd.f32 %v6153, %v6250
        %v6260 = vadd.f32 %v6158, %v6255
        %v6261 = vld [vmem:[#allocation4 + $0x6] sm:$0xff]
        %v6262 = vld [vmem:[#allocation4 + $0xe] sm:$0xff]
        %v6263 = vld [vmem:[#allocation4 + $0x16] sm:$0xff]
        %s6264 = scalar_lea.vmem %s5, 96
        %v6265 = vld [vmem:[%s6264] sm:$0xff]
        %v6266 = vld [vmem:[%s6264 + $0x8] sm:$0xff]
        %v6267 = vld [vmem:[%s6264 + $0x10] sm:$0xff]
        %v6268 = vld [vmem:[%s6264 + $0x18] sm:$0xff]
        %v6270 = vsel %vm438, %v6261, 0
        %v6273 = vsel %vm438, %v6262, 0
        %v6276 = vsel %vm438, %v6263, 0
        %6278 = vmatprep.subr.mxu0 0.0
        %6279 = vmatpush1.msra.mxu0 %v6265
        %6280 = vmatprep.subr.mxu0 0.0
        %6281 = vmatpush1.msra.mxu0 %v6266
        %6282 = vmatprep.subr.mxu0 0.0
        %6283 = vmatpush1.msra.mxu0 %v6267
        %6284 = vmatprep.subr.mxu0 0.0
        %6285 = vmatpush1.msra.mxu0 %v6268
        %6286 = vmatprep.subr.mxu0 0.0
        %6287 = vmatpush1.msra.mxu0 0.0
        %6288 = vmatprep.subr.mxu0 0.0
        %6289 = vmatpush1.msra.mxu0 0.0
        %6290 = vmatprep.subr.mxu0 0.0
        %6291 = vmatpush1.msra.mxu0 0.0
        %6292 = vmatprep.subr.mxu0 0.0
        %6293 = vmatpush1.msra.mxu0 0.0
        %6294 = vmatprep.subr.mxu0 0.0
        %6295 = vmatpush1.msra.mxu0 0.0
        %6296 = vmatprep.subr.mxu0 0.0
        %6297 = vmatpush1.msra.mxu0 0.0
        %6298 = vmatprep.subr.mxu0 0.0
        %6299 = vmatpush1.msra.mxu0 0.0
        %6300 = vmatprep.subr.mxu0 0.0
        %6301 = vmatpush1.msra.mxu0 0.0
        %6302 = vmatprep.subr.mxu0 0.0
        %6303 = vmatpush1.msra.mxu0 0.0
        %6304 = vmatprep.subr.mxu0 0.0
        %6305 = vmatpush1.msra.mxu0 0.0
        %6306 = vmatprep.subr.mxu0 0.0
        %6307 = vmatpush1.msra.mxu0 0.0
        %6308 = vmatprep.subr.mxu0 0.0
        %6309 = vmatpush1.msra.mxu0 0.0
        %6310 = vmatprep.subr.mxu0 0.0
        %6311 = vmatpush1.msra.mxu0 0.0
        %6312 = vmatprep.subr.mxu0 0.0
        %6313 = vmatpush1.msra.mxu0 0.0
        %6314 = vmatprep.subr.mxu0 0.0
        %6315 = vmatpush1.msra.mxu0 0.0
        %6316 = vmatprep.subr.mxu0 0.0
        %6317 = vmatpush1.msra.mxu0 0.0
        %6318 = vmatprep.subr.mxu0 0.0
        %6319 = vmatpush1.msra.mxu0 0.0
        %6320 = vmatprep.subr.mxu0 0.0
        %6321 = vmatpush1.msra.mxu0 0.0
        %6322 = vmatprep.subr.mxu0 0.0
        %6323 = vmatpush1.msra.mxu0 0.0
        %6324 = vmatprep.subr.mxu0 0.0
        %6325 = vmatpush1.msra.mxu0 0.0
        %6326 = vmatprep.subr.mxu0 0.0
        %6327 = vmatpush1.msra.mxu0 0.0
        %6328 = vmatprep.subr.mxu0 0.0
        %6329 = vmatpush1.msra.mxu0 0.0
        %6330 = vmatprep.subr.mxu0 0.0
        %6331 = vmatpush1.msra.mxu0 0.0
        %6332 = vmatprep.subr.mxu0 0.0
        %6333 = vmatpush1.msra.mxu0 0.0
        %6334 = vmatprep.subr.mxu0 0.0
        %6335 = vmatpush1.msra.mxu0 0.0
        %6336 = vmatprep.subr.mxu0 0.0
        %6337 = vmatpush1.msra.mxu0 0.0
        %6338 = vmatprep.subr.mxu0 0.0
        %6339 = vmatpush1.msra.mxu0 0.0
        %6340 = vmatprep.subr.mxu0 0.0
        %6341 = vmatpush1.msra.mxu0 0.0
        %6342 = vmatprep.mubr.f32.mxu0 0.0
        %6343 = vmatmul.mubr.f32.gmra.mrb[0].mxu0 %v6270
        %v6344 = vpop.f32.mrb[0].mxu0
        %v6345 = vadd.f32 0.0, %v6344
        %v6346 = vpop.f32.mrb[0].mxu0
        %6347 = vmatprep.mubr.f32.mxu0 0.0
        %6348 = vmatmul.mubr.f32.gmra.mrb[0].mxu0 %v6273
        %v6349 = vpop.f32.mrb[0].mxu0
        %v6350 = vadd.f32 0.0, %v6349
        %v6351 = vpop.f32.mrb[0].mxu0
        %6352 = vmatprep.mubr.f32.mxu0 0.0
        %6353 = vmatmul.mubr.f32.gmra.mrb[0].mxu0 %v6276
        %v6354 = vpop.f32.mrb[0].mxu0
        %v6355 = vadd.f32 0.0, %v6354
        %v6356 = vpop.f32.mrb[0].mxu0
        %6357 = vdwg.mxu0
        %v6358 = vadd.f32 %v6258, %v6345
        %v6359 = vadd.f32 %v6259, %v6350
        %v6360 = vadd.f32 %v6260, %v6355
        %v6361 = vld [vmem:[#allocation4 + $0x7] sm:$0xff]
        %v6362 = vld [vmem:[#allocation4 + $0xf] sm:$0xff]
        %v6363 = vld [vmem:[#allocation4 + $0x17] sm:$0xff]
        %s6364 = scalar_lea.vmem %s5, 128
        %v6365 = vld [vmem:[%s6364] sm:$0xff]
        %v6366 = vld [vmem:[%s6364 + $0x8] sm:$0xff]
        %v6367 = vld [vmem:[%s6364 + $0x10] sm:$0xff]
        %v6368 = vld [vmem:[%s6364 + $0x18] sm:$0xff]
        %v6370 = vsel %vm438, %v6361, 0
        %v6373 = vsel %vm438, %v6362, 0
        %v6376 = vsel %vm438, %v6363, 0
        %6378 = vmatprep.subr.mxu0 0.0
        %6379 = vmatpush1.msra.mxu0 %v6365
        %6380 = vmatprep.subr.mxu0 0.0
        %6381 = vmatpush1.msra.mxu0 %v6366
        %6382 = vmatprep.subr.mxu0 0.0
        %6383 = vmatpush1.msra.mxu0 %v6367
        %6384 = vmatprep.subr.mxu0 0.0
        %6385 = vmatpush1.msra.mxu0 %v6368
        %6386 = vmatprep.subr.mxu0 0.0
        %6387 = vmatpush1.msra.mxu0 0.0
        %6388 = vmatprep.subr.mxu0 0.0
        %6389 = vmatpush1.msra.mxu0 0.0
        %6390 = vmatprep.subr.mxu0 0.0
        %6391 = vmatpush1.msra.mxu0 0.0
        %6392 = vmatprep.subr.mxu0 0.0
        %6393 = vmatpush1.msra.mxu0 0.0
        %6394 = vmatprep.subr.mxu0 0.0
        %6395 = vmatpush1.msra.mxu0 0.0
        %6396 = vmatprep.subr.mxu0 0.0
        %6397 = vmatpush1.msra.mxu0 0.0
        %6398 = vmatprep.subr.mxu0 0.0
        %6399 = vmatpush1.msra.mxu0 0.0
        %6400 = vmatprep.subr.mxu0 0.0
        %6401 = vmatpush1.msra.mxu0 0.0
        %6402 = vmatprep.subr.mxu0 0.0
        %6403 = vmatpush1.msra.mxu0 0.0
        %6404 = vmatprep.subr.mxu0 0.0
        %6405 = vmatpush1.msra.mxu0 0.0
        %6406 = vmatprep.subr.mxu0 0.0
        %6407 = vmatpush1.msra.mxu0 0.0
        %6408 = vmatprep.subr.mxu0 0.0
        %6409 = vmatpush1.msra.mxu0 0.0
        %6410 = vmatprep.subr.mxu0 0.0
        %6411 = vmatpush1.msra.mxu0 0.0
        %6412 = vmatprep.subr.mxu0 0.0
        %6413 = vmatpush1.msra.mxu0 0.0
        %6414 = vmatprep.subr.mxu0 0.0
        %6415 = vmatpush1.msra.mxu0 0.0
        %6416 = vmatprep.subr.mxu0 0.0
        %6417 = vmatpush1.msra.mxu0 0.0
        %6418 = vmatprep.subr.mxu0 0.0
        %6419 = vmatpush1.msra.mxu0 0.0
        %6420 = vmatprep.subr.mxu0 0.0
        %6421 = vmatpush1.msra.mxu0 0.0
        %6422 = vmatprep.subr.mxu0 0.0
        %6423 = vmatpush1.msra.mxu0 0.0
        %6424 = vmatprep.subr.mxu0 0.0
        %6425 = vmatpush1.msra.mxu0 0.0
        %6426 = vmatprep.subr.mxu0 0.0
        %6427 = vmatpush1.msra.mxu0 0.0
        %6428 = vmatprep.subr.mxu0 0.0
        %6429 = vmatpush1.msra.mxu0 0.0
        %6430 = vmatprep.subr.mxu0 0.0
        %6431 = vmatpush1.msra.mxu0 0.0
        %6432 = vmatprep.subr.mxu0 0.0
        %6433 = vmatpush1.msra.mxu0 0.0
        %6434 = vmatprep.subr.mxu0 0.0
        %6435 = vmatpush1.msra.mxu0 0.0
        %6436 = vmatprep.subr.mxu0 0.0
        %6437 = vmatpush1.msra.mxu0 0.0
        %6438 = vmatprep.subr.mxu0 0.0
        %6439 = vmatpush1.msra.mxu0 0.0
        %6440 = vmatprep.subr.mxu0 0.0
        %6441 = vmatpush1.msra.mxu0 0.0
        %6442 = vmatprep.mubr.f32.mxu0 0.0
        %6443 = vmatmul.mubr.f32.gmra.mrb[0].mxu0 %v6370
        %v6444 = vpop.f32.mrb[0].mxu0
        %v6445 = vadd.f32 0.0, %v6444
        %v6446 = vpop.f32.mrb[0].mxu0
        %6447 = vmatprep.mubr.f32.mxu0 0.0
        %6448 = vmatmul.mubr.f32.gmra.mrb[0].mxu0 %v6373
        %v6449 = vpop.f32.mrb[0].mxu0
        %v6450 = vadd.f32 0.0, %v6449
        %v6451 = vpop.f32.mrb[0].mxu0
        %6452 = vmatprep.mubr.f32.mxu0 0.0
        %6453 = vmatmul.mubr.f32.gmra.mrb[0].mxu0 %v6376
        %v6454 = vpop.f32.mrb[0].mxu0
        %v6455 = vadd.f32 0.0, %v6454
        %v6456 = vpop.f32.mrb[0].mxu0
        %6457 = vdwg.mxu0
        %v6458 = vadd.f32 %v6358, %v6445
        %v6459 = vadd.f32 %v6359, %v6450
        %v6460 = vadd.f32 %v6360, %v6455
        %v6461 = vld [vmem:[#allocation4 + $0x8] sm:$0xff]
        %v6462 = vld [vmem:[#allocation4 + $0x10] sm:$0xff]
        %v6463 = vld [vmem:[#allocation4 + $0x18] sm:$0xff]
        %s6464 = scalar_lea.vmem %s5, 160
        %v6465 = vld [vmem:[%s6464] sm:$0xff]
        %v6466 = vld [vmem:[%s6464 + $0x8] sm:$0xff]
        %v6467 = vld [vmem:[%s6464 + $0x10] sm:$0xff]
        %v6468 = vld [vmem:[%s6464 + $0x18] sm:$0xff]
        %v6470 = vsel %vm438, %v6461, 0
        %v6473 = vsel %vm438, %v6462, 0
        %v6476 = vsel %vm438, %v6463, 0
        %6478 = vmatprep.subr.mxu0 0.0
        %6479 = vmatpush1.msra.mxu0 %v6465
        %6480 = vmatprep.subr.mxu0 0.0
        %6481 = vmatpush1.msra.mxu0 %v6466
        %6482 = vmatprep.subr.mxu0 0.0
        %6483 = vmatpush1.msra.mxu0 %v6467
        %6484 = vmatprep.subr.mxu0 0.0
        %6485 = vmatpush1.msra.mxu0 %v6468
        %6486 = vmatprep.subr.mxu0 0.0
        %6487 = vmatpush1.msra.mxu0 0.0
        %6488 = vmatprep.subr.mxu0 0.0
        %6489 = vmatpush1.msra.mxu0 0.0
        %6490 = vmatprep.subr.mxu0 0.0
        %6491 = vmatpush1.msra.mxu0 0.0
        %6492 = vmatprep.subr.mxu0 0.0
        %6493 = vmatpush1.msra.mxu0 0.0
        %6494 = vmatprep.subr.mxu0 0.0
        %6495 = vmatpush1.msra.mxu0 0.0
        %6496 = vmatprep.subr.mxu0 0.0
        %6497 = vmatpush1.msra.mxu0 0.0
        %6498 = vmatprep.subr.mxu0 0.0
        %6499 = vmatpush1.msra.mxu0 0.0
        %6500 = vmatprep.subr.mxu0 0.0
        %6501 = vmatpush1.msra.mxu0 0.0
        %6502 = vmatprep.subr.mxu0 0.0
        %6503 = vmatpush1.msra.mxu0 0.0
        %6504 = vmatprep.subr.mxu0 0.0
        %6505 = vmatpush1.msra.mxu0 0.0
        %6506 = vmatprep.subr.mxu0 0.0
        %6507 = vmatpush1.msra.mxu0 0.0
        %6508 = vmatprep.subr.mxu0 0.0
        %6509 = vmatpush1.msra.mxu0 0.0
        %6510 = vmatprep.subr.mxu0 0.0
        %6511 = vmatpush1.msra.mxu0 0.0
        %6512 = vmatprep.subr.mxu0 0.0
        %6513 = vmatpush1.msra.mxu0 0.0
        %6514 = vmatprep.subr.mxu0 0.0
        %6515 = vmatpush1.msra.mxu0 0.0
        %6516 = vmatprep.subr.mxu0 0.0
        %6517 = vmatpush1.msra.mxu0 0.0
        %6518 = vmatprep.subr.mxu0 0.0
        %6519 = vmatpush1.msra.mxu0 0.0
        %6520 = vmatprep.subr.mxu0 0.0
        %6521 = vmatpush1.msra.mxu0 0.0
        %6522 = vmatprep.subr.mxu0 0.0
        %6523 = vmatpush1.msra.mxu0 0.0
        %6524 = vmatprep.subr.mxu0 0.0
        %6525 = vmatpush1.msra.mxu0 0.0
        %6526 = vmatprep.subr.mxu0 0.0
        %6527 = vmatpush1.msra.mxu0 0.0
        %6528 = vmatprep.subr.mxu0 0.0
        %6529 = vmatpush1.msra.mxu0 0.0
        %6530 = vmatprep.subr.mxu0 0.0
        %6531 = vmatpush1.msra.mxu0 0.0
        %6532 = vmatprep.subr.mxu0 0.0
        %6533 = vmatpush1.msra.mxu0 0.0
        %6534 = vmatprep.subr.mxu0 0.0
        %6535 = vmatpush1.msra.mxu0 0.0
        %6536 = vmatprep.subr.mxu0 0.0
        %6537 = vmatpush1.msra.mxu0 0.0
        %6538 = vmatprep.subr.mxu0 0.0
        %6539 = vmatpush1.msra.mxu0 0.0
        %6540 = vmatprep.subr.mxu0 0.0
        %6541 = vmatpush1.msra.mxu0 0.0
        %6542 = vmatprep.mubr.f32.mxu0 0.0
        %6543 = vmatmul.mubr.f32.gmra.mrb[0].mxu0 %v6470
        %v6544 = vpop.f32.mrb[0].mxu0
        %v6545 = vadd.f32 0.0, %v6544
        %v6546 = vpop.f32.mrb[0].mxu0
        %6547 = vmatprep.mubr.f32.mxu0 0.0
        %6548 = vmatmul.mubr.f32.gmra.mrb[0].mxu0 %v6473
        %v6549 = vpop.f32.mrb[0].mxu0
        %v6550 = vadd.f32 0.0, %v6549
        %v6551 = vpop.f32.mrb[0].mxu0
        %6552 = vmatprep.mubr.f32.mxu0 0.0
        %6553 = vmatmul.mubr.f32.gmra.mrb[0].mxu0 %v6476
        %v6554 = vpop.f32.mrb[0].mxu0
        %v6555 = vadd.f32 0.0, %v6554
        %v6556 = vpop.f32.mrb[0].mxu0
        %6557 = vdwg.mxu0
        %v6558 = vadd.f32 %v6458, %v6545
        %v6559 = vadd.f32 %v6459, %v6550
        %v6560 = vadd.f32 %v6460, %v6555
        %v6561 = vld [vmem:[#allocation4 + $0xc] sm:$0xff]
        %v6562 = vld [vmem:[#allocation4 + $0x14] sm:$0xff]
        %v6563 = vld [vmem:[#allocation4 + $0x1c] sm:$0xff]
        %s6564 = scalar_lea.vmem %s5, 192
        %v6565 = vld [vmem:[%s6564] sm:$0xff]
        %v6566 = vld [vmem:[%s6564 + $0x8] sm:$0xff]
        %v6567 = vld [vmem:[%s6564 + $0x10] sm:$0xff]
        %v6568 = vld [vmem:[%s6564 + $0x18] sm:$0xff]
        %v6570 = vsel %vm438, %v6561, 0
        %v6573 = vsel %vm438, %v6562, 0
        %v6576 = vsel %vm438, %v6563, 0
        %6578 = vmatprep.subr.mxu0 0.0
        %6579 = vmatpush1.msra.mxu0 %v6565
        %6580 = vmatprep.subr.mxu0 0.0
        %6581 = vmatpush1.msra.mxu0 %v6566
        %6582 = vmatprep.subr.mxu0 0.0
        %6583 = vmatpush1.msra.mxu0 %v6567
        %6584 = vmatprep.subr.mxu0 0.0
        %6585 = vmatpush1.msra.mxu0 %v6568
        %6586 = vmatprep.subr.mxu0 0.0
        %6587 = vmatpush1.msra.mxu0 0.0
        %6588 = vmatprep.subr.mxu0 0.0
        %6589 = vmatpush1.msra.mxu0 0.0
        %6590 = vmatprep.subr.mxu0 0.0
        %6591 = vmatpush1.msra.mxu0 0.0
        %6592 = vmatprep.subr.mxu0 0.0
        %6593 = vmatpush1.msra.mxu0 0.0
        %6594 = vmatprep.subr.mxu0 0.0
        %6595 = vmatpush1.msra.mxu0 0.0
        %6596 = vmatprep.subr.mxu0 0.0
        %6597 = vmatpush1.msra.mxu0 0.0
        %6598 = vmatprep.subr.mxu0 0.0
        %6599 = vmatpush1.msra.mxu0 0.0
        %6600 = vmatprep.subr.mxu0 0.0
        %6601 = vmatpush1.msra.mxu0 0.0
        %6602 = vmatprep.subr.mxu0 0.0
        %6603 = vmatpush1.msra.mxu0 0.0
        %6604 = vmatprep.subr.mxu0 0.0
        %6605 = vmatpush1.msra.mxu0 0.0
        %6606 = vmatprep.subr.mxu0 0.0
        %6607 = vmatpush1.msra.mxu0 0.0
        %6608 = vmatprep.subr.mxu0 0.0
        %6609 = vmatpush1.msra.mxu0 0.0
        %6610 = vmatprep.subr.mxu0 0.0
        %6611 = vmatpush1.msra.mxu0 0.0
        %6612 = vmatprep.subr.mxu0 0.0
        %6613 = vmatpush1.msra.mxu0 0.0
        %6614 = vmatprep.subr.mxu0 0.0
        %6615 = vmatpush1.msra.mxu0 0.0
        %6616 = vmatprep.subr.mxu0 0.0
        %6617 = vmatpush1.msra.mxu0 0.0
        %6618 = vmatprep.subr.mxu0 0.0
        %6619 = vmatpush1.msra.mxu0 0.0
        %6620 = vmatprep.subr.mxu0 0.0
        %6621 = vmatpush1.msra.mxu0 0.0
        %6622 = vmatprep.subr.mxu0 0.0
        %6623 = vmatpush1.msra.mxu0 0.0
        %6624 = vmatprep.subr.mxu0 0.0
        %6625 = vmatpush1.msra.mxu0 0.0
        %6626 = vmatprep.subr.mxu0 0.0
        %6627 = vmatpush1.msra.mxu0 0.0
        %6628 = vmatprep.subr.mxu0 0.0
        %6629 = vmatpush1.msra.mxu0 0.0
        %6630 = vmatprep.subr.mxu0 0.0
        %6631 = vmatpush1.msra.mxu0 0.0
        %6632 = vmatprep.subr.mxu0 0.0
        %6633 = vmatpush1.msra.mxu0 0.0
        %6634 = vmatprep.subr.mxu0 0.0
        %6635 = vmatpush1.msra.mxu0 0.0
        %6636 = vmatprep.subr.mxu0 0.0
        %6637 = vmatpush1.msra.mxu0 0.0
        %6638 = vmatprep.subr.mxu0 0.0
        %6639 = vmatpush1.msra.mxu0 0.0
        %6640 = vmatprep.subr.mxu0 0.0
        %6641 = vmatpush1.msra.mxu0 0.0
        %6642 = vmatprep.mubr.f32.mxu0 0.0
        %6643 = vmatmul.mubr.f32.gmra.mrb[0].mxu0 %v6570
        %v6644 = vpop.f32.mrb[0].mxu0
        %v6645 = vadd.f32 0.0, %v6644
        %v6646 = vpop.f32.mrb[0].mxu0
        %6647 = vmatprep.mubr.f32.mxu0 0.0
        %6648 = vmatmul.mubr.f32.gmra.mrb[0].mxu0 %v6573
        %v6649 = vpop.f32.mrb[0].mxu0
        %v6650 = vadd.f32 0.0, %v6649
        %v6651 = vpop.f32.mrb[0].mxu0
        %6652 = vmatprep.mubr.f32.mxu0 0.0
        %6653 = vmatmul.mubr.f32.gmra.mrb[0].mxu0 %v6576
        %v6654 = vpop.f32.mrb[0].mxu0
        %v6655 = vadd.f32 0.0, %v6654
        %v6656 = vpop.f32.mrb[0].mxu0
        %6657 = vdwg.mxu0
        %v6658 = vadd.f32 %v6558, %v6645
        %v6659 = vadd.f32 %v6559, %v6650
        %v6660 = vadd.f32 %v6560, %v6655
        %v6661 = vld [vmem:[#allocation4 + $0xd] sm:$0xff]
        %v6662 = vld [vmem:[#allocation4 + $0x15] sm:$0xff]
        %v6663 = vld [vmem:[#allocation4 + $0x1d] sm:$0xff]
        %s6664 = scalar_lea.vmem %s5, 224
        %v6665 = vld [vmem:[%s6664] sm:$0xff]
        %v6666 = vld [vmem:[%s6664 + $0x8] sm:$0xff]
        %v6667 = vld [vmem:[%s6664 + $0x10] sm:$0xff]
        %v6668 = vld [vmem:[%s6664 + $0x18] sm:$0xff]
        %v6670 = vsel %vm438, %v6661, 0
        %v6673 = vsel %vm438, %v6662, 0
        %v6676 = vsel %vm438, %v6663, 0
        %6678 = vmatprep.subr.mxu0 0.0
        %6679 = vmatpush1.msra.mxu0 %v6665
        %6680 = vmatprep.subr.mxu0 0.0
        %6681 = vmatpush1.msra.mxu0 %v6666
        %6682 = vmatprep.subr.mxu0 0.0
        %6683 = vmatpush1.msra.mxu0 %v6667
        %6684 = vmatprep.subr.mxu0 0.0
        %6685 = vmatpush1.msra.mxu0 %v6668
        %6686 = vmatprep.subr.mxu0 0.0
        %6687 = vmatpush1.msra.mxu0 0.0
        %6688 = vmatprep.subr.mxu0 0.0
        %6689 = vmatpush1.msra.mxu0 0.0
        %6690 = vmatprep.subr.mxu0 0.0
        %6691 = vmatpush1.msra.mxu0 0.0
        %6692 = vmatprep.subr.mxu0 0.0
        %6693 = vmatpush1.msra.mxu0 0.0
        %6694 = vmatprep.subr.mxu0 0.0
        %6695 = vmatpush1.msra.mxu0 0.0
        %6696 = vmatprep.subr.mxu0 0.0
        %6697 = vmatpush1.msra.mxu0 0.0
        %6698 = vmatprep.subr.mxu0 0.0
        %6699 = vmatpush1.msra.mxu0 0.0
        %6700 = vmatprep.subr.mxu0 0.0
        %6701 = vmatpush1.msra.mxu0 0.0
        %6702 = vmatprep.subr.mxu0 0.0
        %6703 = vmatpush1.msra.mxu0 0.0
        %6704 = vmatprep.subr.mxu0 0.0
        %6705 = vmatpush1.msra.mxu0 0.0
        %6706 = vmatprep.subr.mxu0 0.0
        %6707 = vmatpush1.msra.mxu0 0.0
        %6708 = vmatprep.subr.mxu0 0.0
        %6709 = vmatpush1.msra.mxu0 0.0
        %6710 = vmatprep.subr.mxu0 0.0
        %6711 = vmatpush1.msra.mxu0 0.0
        %6712 = vmatprep.subr.mxu0 0.0
        %6713 = vmatpush1.msra.mxu0 0.0
        %6714 = vmatprep.subr.mxu0 0.0
        %6715 = vmatpush1.msra.mxu0 0.0
        %6716 = vmatprep.subr.mxu0 0.0
        %6717 = vmatpush1.msra.mxu0 0.0
        %6718 = vmatprep.subr.mxu0 0.0
        %6719 = vmatpush1.msra.mxu0 0.0
        %6720 = vmatprep.subr.mxu0 0.0
        %6721 = vmatpush1.msra.mxu0 0.0
        %6722 = vmatprep.subr.mxu0 0.0
        %6723 = vmatpush1.msra.mxu0 0.0
        %6724 = vmatprep.subr.mxu0 0.0
        %6725 = vmatpush1.msra.mxu0 0.0
        %6726 = vmatprep.subr.mxu0 0.0
        %6727 = vmatpush1.msra.mxu0 0.0
        %6728 = vmatprep.subr.mxu0 0.0
        %6729 = vmatpush1.msra.mxu0 0.0
        %6730 = vmatprep.subr.mxu0 0.0
        %6731 = vmatpush1.msra.mxu0 0.0
        %6732 = vmatprep.subr.mxu0 0.0
        %6733 = vmatpush1.msra.mxu0 0.0
        %6734 = vmatprep.subr.mxu0 0.0
        %6735 = vmatpush1.msra.mxu0 0.0
        %6736 = vmatprep.subr.mxu0 0.0
        %6737 = vmatpush1.msra.mxu0 0.0
        %6738 = vmatprep.subr.mxu0 0.0
        %6739 = vmatpush1.msra.mxu0 0.0
        %6740 = vmatprep.subr.mxu0 0.0
        %6741 = vmatpush1.msra.mxu0 0.0
        %6742 = vmatprep.mubr.f32.mxu0 0.0
        %6743 = vmatmul.mubr.f32.gmra.mrb[0].mxu0 %v6670
        %v6744 = vpop.f32.mrb[0].mxu0
        %v6745 = vadd.f32 0.0, %v6744
        %v6746 = vpop.f32.mrb[0].mxu0
        %6747 = vmatprep.mubr.f32.mxu0 0.0
        %6748 = vmatmul.mubr.f32.gmra.mrb[0].mxu0 %v6673
        %v6749 = vpop.f32.mrb[0].mxu0
        %v6750 = vadd.f32 0.0, %v6749
        %v6751 = vpop.f32.mrb[0].mxu0
        %6752 = vmatprep.mubr.f32.mxu0 0.0
        %6753 = vmatmul.mubr.f32.gmra.mrb[0].mxu0 %v6676
        %v6754 = vpop.f32.mrb[0].mxu0
        %v6755 = vadd.f32 0.0, %v6754
        %v6756 = vpop.f32.mrb[0].mxu0
        %6757 = vdwg.mxu0
        %v6758 = vadd.f32 %v6658, %v6745
        %v6759 = vadd.f32 %v6659, %v6750
        %v6760 = vadd.f32 %v6660, %v6755
        %v6761 = vld [vmem:[#allocation4 + $0xe] sm:$0xff]
        %v6762 = vld [vmem:[#allocation4 + $0x16] sm:$0xff]
        %v6763 = vld [vmem:[#allocation4 + $0x1e] sm:$0xff]
        %s6764 = scalar_lea.vmem %s5, 256
        %v6765 = vld [vmem:[%s6764] sm:$0xff]
        %v6766 = vld [vmem:[%s6764 + $0x8] sm:$0xff]
        %v6767 = vld [vmem:[%s6764 + $0x10] sm:$0xff]
        %v6768 = vld [vmem:[%s6764 + $0x18] sm:$0xff]
        %v6770 = vsel %vm438, %v6761, 0
        %v6773 = vsel %vm438, %v6762, 0
        %v6776 = vsel %vm438, %v6763, 0
        %6778 = vmatprep.subr.mxu0 0.0
        %6779 = vmatpush1.msra.mxu0 %v6765
        %6780 = vmatprep.subr.mxu0 0.0
        %6781 = vmatpush1.msra.mxu0 %v6766
        %6782 = vmatprep.subr.mxu0 0.0
        %6783 = vmatpush1.msra.mxu0 %v6767
        %6784 = vmatprep.subr.mxu0 0.0
        %6785 = vmatpush1.msra.mxu0 %v6768
        %6786 = vmatprep.subr.mxu0 0.0
        %6787 = vmatpush1.msra.mxu0 0.0
        %6788 = vmatprep.subr.mxu0 0.0
        %6789 = vmatpush1.msra.mxu0 0.0
        %6790 = vmatprep.subr.mxu0 0.0
        %6791 = vmatpush1.msra.mxu0 0.0
        %6792 = vmatprep.subr.mxu0 0.0
        %6793 = vmatpush1.msra.mxu0 0.0
        %6794 = vmatprep.subr.mxu0 0.0
        %6795 = vmatpush1.msra.mxu0 0.0
        %6796 = vmatprep.subr.mxu0 0.0
        %6797 = vmatpush1.msra.mxu0 0.0
        %6798 = vmatprep.subr.mxu0 0.0
        %6799 = vmatpush1.msra.mxu0 0.0
        %6800 = vmatprep.subr.mxu0 0.0
        %6801 = vmatpush1.msra.mxu0 0.0
        %6802 = vmatprep.subr.mxu0 0.0
        %6803 = vmatpush1.msra.mxu0 0.0
        %6804 = vmatprep.subr.mxu0 0.0
        %6805 = vmatpush1.msra.mxu0 0.0
        %6806 = vmatprep.subr.mxu0 0.0
        %6807 = vmatpush1.msra.mxu0 0.0
        %6808 = vmatprep.subr.mxu0 0.0
        %6809 = vmatpush1.msra.mxu0 0.0
        %6810 = vmatprep.subr.mxu0 0.0
        %6811 = vmatpush1.msra.mxu0 0.0
        %6812 = vmatprep.subr.mxu0 0.0
        %6813 = vmatpush1.msra.mxu0 0.0
        %6814 = vmatprep.subr.mxu0 0.0
        %6815 = vmatpush1.msra.mxu0 0.0
        %6816 = vmatprep.subr.mxu0 0.0
        %6817 = vmatpush1.msra.mxu0 0.0
        %6818 = vmatprep.subr.mxu0 0.0
        %6819 = vmatpush1.msra.mxu0 0.0
        %6820 = vmatprep.subr.mxu0 0.0
        %6821 = vmatpush1.msra.mxu0 0.0
        %6822 = vmatprep.subr.mxu0 0.0
        %6823 = vmatpush1.msra.mxu0 0.0
        %6824 = vmatprep.subr.mxu0 0.0
        %6825 = vmatpush1.msra.mxu0 0.0
        %6826 = vmatprep.subr.mxu0 0.0
        %6827 = vmatpush1.msra.mxu0 0.0
        %6828 = vmatprep.subr.mxu0 0.0
        %6829 = vmatpush1.msra.mxu0 0.0
        %6830 = vmatprep.subr.mxu0 0.0
        %6831 = vmatpush1.msra.mxu0 0.0
        %6832 = vmatprep.subr.mxu0 0.0
        %6833 = vmatpush1.msra.mxu0 0.0
        %6834 = vmatprep.subr.mxu0 0.0
        %6835 = vmatpush1.msra.mxu0 0.0
        %6836 = vmatprep.subr.mxu0 0.0
        %6837 = vmatpush1.msra.mxu0 0.0
        %6838 = vmatprep.subr.mxu0 0.0
        %6839 = vmatpush1.msra.mxu0 0.0
        %6840 = vmatprep.subr.mxu0 0.0
        %6841 = vmatpush1.msra.mxu0 0.0
        %6842 = vmatprep.mubr.f32.mxu0 0.0
        %6843 = vmatmul.mubr.f32.gmra.mrb[0].mxu0 %v6770
        %v6844 = vpop.f32.mrb[0].mxu0
        %v6845 = vadd.f32 0.0, %v6844
        %v6846 = vpop.f32.mrb[0].mxu0
        %6847 = vmatprep.mubr.f32.mxu0 0.0
        %6848 = vmatmul.mubr.f32.gmra.mrb[0].mxu0 %v6773
        %v6849 = vpop.f32.mrb[0].mxu0
        %v6850 = vadd.f32 0.0, %v6849
        %v6851 = vpop.f32.mrb[0].mxu0
        %6852 = vmatprep.mubr.f32.mxu0 0.0
        %6853 = vmatmul.mubr.f32.gmra.mrb[0].mxu0 %v6776
        %v6854 = vpop.f32.mrb[0].mxu0
        %v6855 = vadd.f32 0.0, %v6854
        %v6856 = vpop.f32.mrb[0].mxu0
        %6857 = vdwg.mxu0
        %v6858 = vadd.f32 %v6758, %v6845
        %v6859 = vadd.f32 %v6759, %v6850
        %v6860 = vadd.f32 %v6760, %v6855
        %6861 = vst.msk [vmem:[#allocation2] sm:$0xff] %vm438, %v6858
        %6862 = vst.msk [vmem:[#allocation2 + $0x8] sm:$0xff] %vm438, %v6859
        %6863 = vst.msk [vmem:[#allocation2 + $0x10] sm:$0xff] %vm438, %v6860
        %v6864 = vld [vmem:[%s6] sm:$0x1]
        %v6865 = vld [vmem:[#allocation2] ss:$2 sm:$0x3]
        %v6866 = vld [vmem:[%s4272] ss:$2 sm:$0x3]
        %s6867 = scalar_lea.vmem [#allocation2], 6
        %v6868 = vld [vmem:[%s6867] ss:$2 sm:$0x3]
        %s6869 = scalar_lea.vmem [#allocation2], 7
        %v6870 = vld [vmem:[%s6869] ss:$2 sm:$0x3]
        %v6871 = vmax.f32 %v6865, %v6866
        %v6872 = vmax.f32 %v6868, %v6870
        %v6873 = vmax.f32 %v6871, %v6872
        %v6875 = vlaneseq
        %v6876 = vshrl.u32 %v6875, 7
        %v6877 = vsub.s32 0, %v6876
        %v6878 = vrot.slane %v6864, %v6877
        %v6880 = vadd.f32 %v6873, %v6878
        %v6881 = vmax.f32 %v6880, 0.0
        %vm6882 = vcmask 254976
        %6883 = vst.msk [vmem:[#allocation5 + $0x5] sm:$0x3] %vm6882, %v6881
        %s6884 = scalar_lea.vmem [#allocation2], 12
        %v6885 = vld [vmem:[%s6884] ss:$2 sm:$0x3]
        %s6886 = scalar_lea.vmem [#allocation2], 13
        %v6887 = vld [vmem:[%s6886] ss:$2 sm:$0x3]
        %v6888 = vld [vmem:[%s4274] ss:$2 sm:$0x3]
        %v6889 = vld [vmem:[%s4276] ss:$2 sm:$0x3]
        %v6890 = vmax.f32 %v6885, %v6887
        %v6891 = vmax.f32 %v6888, %v6889
        %v6892 = vmax.f32 %v6890, %v6891
        %v6893 = vadd.f32 %v6892, %v6878
        %v6894 = vmax.f32 %v6893, 0.0
        %6895 = vst.msk [vmem:[#allocation5 + $0x9] sm:$0x3] %vm6882, %v6894
        %v6896 = vld [vmem:[#allocation5] sm:$0xff]
        %v6897 = vld [vmem:[%s7] sm:$0xff]
        %v6898 = vld [vmem:[%s7 + $0x8] sm:$0xff]
        %v6899 = vld [vmem:[%s7 + $0x10] sm:$0xff]
        %v6900 = vld [vmem:[%s7 + $0x18] sm:$0xff]
        %v6901 = vld [vmem:[#allocation5 + $0x1] sm:$0xff]
        %s6902 = scalar_lea.vmem %s7, 32
        %v6903 = vld [vmem:[%s6902] sm:$0xff]
        %v6904 = vld [vmem:[%s6902 + $0x8] sm:$0xff]
        %v6905 = vld [vmem:[%s6902 + $0x10] sm:$0xff]
        %v6906 = vld [vmem:[%s6902 + $0x18] sm:$0xff]
        %v6908 = vsel %vm438, %v6901, 0
        %6910 = vmatprep.subr.mxu0 0.0
        %6911 = vmatpush1.msra.mxu0 %v6903
        %6912 = vmatprep.subr.mxu0 0.0
        %6913 = vmatpush1.msra.mxu0 %v6904
        %6914 = vmatprep.subr.mxu0 0.0
        %6915 = vmatpush1.msra.mxu0 %v6905
        %6916 = vmatprep.subr.mxu0 0.0
        %6917 = vmatpush1.msra.mxu0 %v6906
        %6918 = vmatprep.subr.mxu0 0.0
        %6919 = vmatpush1.msra.mxu0 0.0
        %6920 = vmatprep.subr.mxu0 0.0
        %6921 = vmatpush1.msra.mxu0 0.0
        %6922 = vmatprep.subr.mxu0 0.0
        %6923 = vmatpush1.msra.mxu0 0.0
        %6924 = vmatprep.subr.mxu0 0.0
        %6925 = vmatpush1.msra.mxu0 0.0
        %6926 = vmatprep.subr.mxu0 0.0
        %6927 = vmatpush1.msra.mxu0 0.0
        %6928 = vmatprep.subr.mxu0 0.0
        %6929 = vmatpush1.msra.mxu0 0.0
        %6930 = vmatprep.subr.mxu0 0.0
        %6931 = vmatpush1.msra.mxu0 0.0
        %6932 = vmatprep.subr.mxu0 0.0
        %6933 = vmatpush1.msra.mxu0 0.0
        %6934 = vmatprep.subr.mxu0 0.0
        %6935 = vmatpush1.msra.mxu0 0.0
        %6936 = vmatprep.subr.mxu0 0.0
        %6937 = vmatpush1.msra.mxu0 0.0
        %6938 = vmatprep.subr.mxu0 0.0
        %6939 = vmatpush1.msra.mxu0 0.0
        %6940 = vmatprep.subr.mxu0 0.0
        %6941 = vmatpush1.msra.mxu0 0.0
        %6942 = vmatprep.subr.mxu0 0.0
        %6943 = vmatpush1.msra.mxu0 0.0
        %6944 = vmatprep.subr.mxu0 0.0
        %6945 = vmatpush1.msra.mxu0 0.0
        %6946 = vmatprep.subr.mxu0 0.0
        %6947 = vmatpush1.msra.mxu0 0.0
        %6948 = vmatprep.subr.mxu0 0.0
        %6949 = vmatpush1.msra.mxu0 0.0
        %6950 = vmatprep.subr.mxu0 0.0
        %6951 = vmatpush1.msra.mxu0 0.0
        %6952 = vmatprep.subr.mxu0 0.0
        %6953 = vmatpush1.msra.mxu0 0.0
        %6954 = vmatprep.subr.mxu0 0.0
        %6955 = vmatpush1.msra.mxu0 0.0
        %6956 = vmatprep.subr.mxu0 0.0
        %6957 = vmatpush1.msra.mxu0 0.0
        %6958 = vmatprep.subr.mxu0 0.0
        %6959 = vmatpush1.msra.mxu0 0.0
        %6960 = vmatprep.subr.mxu0 0.0
        %6961 = vmatpush1.msra.mxu0 0.0
        %6962 = vmatprep.subr.mxu0 0.0
        %6963 = vmatpush1.msra.mxu0 0.0
        %6964 = vmatprep.subr.mxu0 0.0
        %6965 = vmatpush1.msra.mxu0 0.0
        %6966 = vmatprep.subr.mxu0 0.0
        %6967 = vmatpush1.msra.mxu0 0.0
        %6968 = vmatprep.subr.mxu0 0.0
        %6969 = vmatpush1.msra.mxu0 0.0
        %6970 = vmatprep.subr.mxu0 0.0
        %6971 = vmatpush1.msra.mxu0 0.0
        %6972 = vmatprep.subr.mxu0 0.0
        %6973 = vmatpush1.msra.mxu0 0.0
        %6974 = vmatprep.mubr.f32.mxu0 0.0
        %6975 = vmatmul.mubr.f32.gmra.mrb[0].mxu0 %v6908
        %v6976 = vpop.f32.mrb[0].mxu0
        %v6977 = vadd.f32 0.0, %v6976
        %v6978 = vpop.f32.mrb[0].mxu0
        %6979 = vdwg.mxu0
        %v6981 = vsel %vm438, %v6896, 0
        %6983 = vmatprep.subr.mxu0 0.0
        %6984 = vmatpush1.msra.mxu0 %v6897
        %6985 = vmatprep.subr.mxu0 0.0
        %6986 = vmatpush1.msra.mxu0 %v6898
        %6987 = vmatprep.subr.mxu0 0.0
        %6988 = vmatpush1.msra.mxu0 %v6899
        %6989 = vmatprep.subr.mxu0 0.0
        %6990 = vmatpush1.msra.mxu0 %v6900
        %6991 = vmatprep.subr.mxu0 0.0
        %6992 = vmatpush1.msra.mxu0 0.0
        %6993 = vmatprep.subr.mxu0 0.0
        %6994 = vmatpush1.msra.mxu0 0.0
        %6995 = vmatprep.subr.mxu0 0.0
        %6996 = vmatpush1.msra.mxu0 0.0
        %6997 = vmatprep.subr.mxu0 0.0
        %6998 = vmatpush1.msra.mxu0 0.0
        %6999 = vmatprep.subr.mxu0 0.0
        %7000 = vmatpush1.msra.mxu0 0.0
        %7001 = vmatprep.subr.mxu0 0.0
        %7002 = vmatpush1.msra.mxu0 0.0
        %7003 = vmatprep.subr.mxu0 0.0
        %7004 = vmatpush1.msra.mxu0 0.0
        %7005 = vmatprep.subr.mxu0 0.0
        %7006 = vmatpush1.msra.mxu0 0.0
        %7007 = vmatprep.subr.mxu0 0.0
        %7008 = vmatpush1.msra.mxu0 0.0
        %7009 = vmatprep.subr.mxu0 0.0
        %7010 = vmatpush1.msra.mxu0 0.0
        %7011 = vmatprep.subr.mxu0 0.0
        %7012 = vmatpush1.msra.mxu0 0.0
        %7013 = vmatprep.subr.mxu0 0.0
        %7014 = vmatpush1.msra.mxu0 0.0
        %7015 = vmatprep.subr.mxu0 0.0
        %7016 = vmatpush1.msra.mxu0 0.0
        %7017 = vmatprep.subr.mxu0 0.0
        %7018 = vmatpush1.msra.mxu0 0.0
        %7019 = vmatprep.subr.mxu0 0.0
        %7020 = vmatpush1.msra.mxu0 0.0
        %7021 = vmatprep.subr.mxu0 0.0
        %7022 = vmatpush1.msra.mxu0 0.0
        %7023 = vmatprep.subr.mxu0 0.0
        %7024 = vmatpush1.msra.mxu0 0.0
        %7025 = vmatprep.subr.mxu0 0.0
        %7026 = vmatpush1.msra.mxu0 0.0
        %7027 = vmatprep.subr.mxu0 0.0
        %7028 = vmatpush1.msra.mxu0 0.0
        %7029 = vmatprep.subr.mxu0 0.0
        %7030 = vmatpush1.msra.mxu0 0.0
        %7031 = vmatprep.subr.mxu0 0.0
        %7032 = vmatpush1.msra.mxu0 0.0
        %7033 = vmatprep.subr.mxu0 0.0
        %7034 = vmatpush1.msra.mxu0 0.0
        %7035 = vmatprep.subr.mxu0 0.0
        %7036 = vmatpush1.msra.mxu0 0.0
        %7037 = vmatprep.subr.mxu0 0.0
        %7038 = vmatpush1.msra.mxu0 0.0
        %7039 = vmatprep.subr.mxu0 0.0
        %7040 = vmatpush1.msra.mxu0 0.0
        %7041 = vmatprep.subr.mxu0 0.0
        %7042 = vmatpush1.msra.mxu0 0.0
        %7043 = vmatprep.subr.mxu0 0.0
        %7044 = vmatpush1.msra.mxu0 0.0
        %7045 = vmatprep.subr.mxu0 0.0
        %7046 = vmatpush1.msra.mxu0 0.0
        %7047 = vmatprep.mubr.f32.mxu0 0.0
        %7048 = vmatmul.mubr.f32.gmra.mrb[0].mxu0 %v6981
        %v7049 = vpop.f32.mrb[0].mxu0
        %v7050 = vadd.f32 %v6977, %v7049
        %v7051 = vpop.f32.mrb[0].mxu0
        %7052 = vdwg.mxu0
        %v7053 = vld [vmem:[#allocation5 + $0x2] sm:$0xff]
        %s7054 = scalar_lea.vmem %s7, 64
        %v7055 = vld [vmem:[%s7054] sm:$0xff]
        %v7056 = vld [vmem:[%s7054 + $0x8] sm:$0xff]
        %v7057 = vld [vmem:[%s7054 + $0x10] sm:$0xff]
        %v7058 = vld [vmem:[%s7054 + $0x18] sm:$0xff]
        %v7060 = vsel %vm438, %v7053, 0
        %7062 = vmatprep.subr.mxu0 0.0
        %7063 = vmatpush1.msra.mxu0 %v7055
        %7064 = vmatprep.subr.mxu0 0.0
        %7065 = vmatpush1.msra.mxu0 %v7056
        %7066 = vmatprep.subr.mxu0 0.0
        %7067 = vmatpush1.msra.mxu0 %v7057
        %7068 = vmatprep.subr.mxu0 0.0
        %7069 = vmatpush1.msra.mxu0 %v7058
        %7070 = vmatprep.subr.mxu0 0.0
        %7071 = vmatpush1.msra.mxu0 0.0
        %7072 = vmatprep.subr.mxu0 0.0
        %7073 = vmatpush1.msra.mxu0 0.0
        %7074 = vmatprep.subr.mxu0 0.0
        %7075 = vmatpush1.msra.mxu0 0.0
        %7076 = vmatprep.subr.mxu0 0.0
        %7077 = vmatpush1.msra.mxu0 0.0
        %7078 = vmatprep.subr.mxu0 0.0
        %7079 = vmatpush1.msra.mxu0 0.0
        %7080 = vmatprep.subr.mxu0 0.0
        %7081 = vmatpush1.msra.mxu0 0.0
        %7082 = vmatprep.subr.mxu0 0.0
        %7083 = vmatpush1.msra.mxu0 0.0
        %7084 = vmatprep.subr.mxu0 0.0
        %7085 = vmatpush1.msra.mxu0 0.0
        %7086 = vmatprep.subr.mxu0 0.0
        %7087 = vmatpush1.msra.mxu0 0.0
        %7088 = vmatprep.subr.mxu0 0.0
        %7089 = vmatpush1.msra.mxu0 0.0
        %7090 = vmatprep.subr.mxu0 0.0
        %7091 = vmatpush1.msra.mxu0 0.0
        %7092 = vmatprep.subr.mxu0 0.0
        %7093 = vmatpush1.msra.mxu0 0.0
        %7094 = vmatprep.subr.mxu0 0.0
        %7095 = vmatpush1.msra.mxu0 0.0
        %7096 = vmatprep.subr.mxu0 0.0
        %7097 = vmatpush1.msra.mxu0 0.0
        %7098 = vmatprep.subr.mxu0 0.0
        %7099 = vmatpush1.msra.mxu0 0.0
        %7100 = vmatprep.subr.mxu0 0.0
        %7101 = vmatpush1.msra.mxu0 0.0
        %7102 = vmatprep.subr.mxu0 0.0
        %7103 = vmatpush1.msra.mxu0 0.0
        %7104 = vmatprep.subr.mxu0 0.0
        %7105 = vmatpush1.msra.mxu0 0.0
        %7106 = vmatprep.subr.mxu0 0.0
        %7107 = vmatpush1.msra.mxu0 0.0
        %7108 = vmatprep.subr.mxu0 0.0
        %7109 = vmatpush1.msra.mxu0 0.0
        %7110 = vmatprep.subr.mxu0 0.0
        %7111 = vmatpush1.msra.mxu0 0.0
        %7112 = vmatprep.subr.mxu0 0.0
        %7113 = vmatpush1.msra.mxu0 0.0
        %7114 = vmatprep.subr.mxu0 0.0
        %7115 = vmatpush1.msra.mxu0 0.0
        %7116 = vmatprep.subr.mxu0 0.0
        %7117 = vmatpush1.msra.mxu0 0.0
        %7118 = vmatprep.subr.mxu0 0.0
        %7119 = vmatpush1.msra.mxu0 0.0
        %7120 = vmatprep.subr.mxu0 0.0
        %7121 = vmatpush1.msra.mxu0 0.0
        %7122 = vmatprep.subr.mxu0 0.0
        %7123 = vmatpush1.msra.mxu0 0.0
        %7124 = vmatprep.subr.mxu0 0.0
        %7125 = vmatpush1.msra.mxu0 0.0
        %7126 = vmatprep.mubr.f32.mxu0 0.0
        %7127 = vmatmul.mubr.f32.gmra.mrb[0].mxu0 %v7060
        %v7128 = vpop.f32.mrb[0].mxu0
        %v7129 = vadd.f32 0.0, %v7128
        %v7130 = vpop.f32.mrb[0].mxu0
        %7131 = vdwg.mxu0
        %v7132 = vadd.f32 %v7050, %v7129
        %v7133 = vld [vmem:[#allocation5 + $0x4] sm:$0xff]
        %s7134 = scalar_lea.vmem %s7, 96
        %v7135 = vld [vmem:[%s7134] sm:$0xff]
        %v7136 = vld [vmem:[%s7134 + $0x8] sm:$0xff]
        %v7137 = vld [vmem:[%s7134 + $0x10] sm:$0xff]
        %v7138 = vld [vmem:[%s7134 + $0x18] sm:$0xff]
        %v7140 = vsel %vm438, %v7133, 0
        %7142 = vmatprep.subr.mxu0 0.0
        %7143 = vmatpush1.msra.mxu0 %v7135
        %7144 = vmatprep.subr.mxu0 0.0
        %7145 = vmatpush1.msra.mxu0 %v7136
        %7146 = vmatprep.subr.mxu0 0.0
        %7147 = vmatpush1.msra.mxu0 %v7137
        %7148 = vmatprep.subr.mxu0 0.0
        %7149 = vmatpush1.msra.mxu0 %v7138
        %7150 = vmatprep.subr.mxu0 0.0
        %7151 = vmatpush1.msra.mxu0 0.0
        %7152 = vmatprep.subr.mxu0 0.0
        %7153 = vmatpush1.msra.mxu0 0.0
        %7154 = vmatprep.subr.mxu0 0.0
        %7155 = vmatpush1.msra.mxu0 0.0
        %7156 = vmatprep.subr.mxu0 0.0
        %7157 = vmatpush1.msra.mxu0 0.0
        %7158 = vmatprep.subr.mxu0 0.0
        %7159 = vmatpush1.msra.mxu0 0.0
        %7160 = vmatprep.subr.mxu0 0.0
        %7161 = vmatpush1.msra.mxu0 0.0
        %7162 = vmatprep.subr.mxu0 0.0
        %7163 = vmatpush1.msra.mxu0 0.0
        %7164 = vmatprep.subr.mxu0 0.0
        %7165 = vmatpush1.msra.mxu0 0.0
        %7166 = vmatprep.subr.mxu0 0.0
        %7167 = vmatpush1.msra.mxu0 0.0
        %7168 = vmatprep.subr.mxu0 0.0
        %7169 = vmatpush1.msra.mxu0 0.0
        %7170 = vmatprep.subr.mxu0 0.0
        %7171 = vmatpush1.msra.mxu0 0.0
        %7172 = vmatprep.subr.mxu0 0.0
        %7173 = vmatpush1.msra.mxu0 0.0
        %7174 = vmatprep.subr.mxu0 0.0
        %7175 = vmatpush1.msra.mxu0 0.0
        %7176 = vmatprep.subr.mxu0 0.0
        %7177 = vmatpush1.msra.mxu0 0.0
        %7178 = vmatprep.subr.mxu0 0.0
        %7179 = vmatpush1.msra.mxu0 0.0
        %7180 = vmatprep.subr.mxu0 0.0
        %7181 = vmatpush1.msra.mxu0 0.0
        %7182 = vmatprep.subr.mxu0 0.0
        %7183 = vmatpush1.msra.mxu0 0.0
        %7184 = vmatprep.subr.mxu0 0.0
        %7185 = vmatpush1.msra.mxu0 0.0
        %7186 = vmatprep.subr.mxu0 0.0
        %7187 = vmatpush1.msra.mxu0 0.0
        %7188 = vmatprep.subr.mxu0 0.0
        %7189 = vmatpush1.msra.mxu0 0.0
        %7190 = vmatprep.subr.mxu0 0.0
        %7191 = vmatpush1.msra.mxu0 0.0
        %7192 = vmatprep.subr.mxu0 0.0
        %7193 = vmatpush1.msra.mxu0 0.0
        %7194 = vmatprep.subr.mxu0 0.0
        %7195 = vmatpush1.msra.mxu0 0.0
        %7196 = vmatprep.subr.mxu0 0.0
        %7197 = vmatpush1.msra.mxu0 0.0
        %7198 = vmatprep.subr.mxu0 0.0
        %7199 = vmatpush1.msra.mxu0 0.0
        %7200 = vmatprep.subr.mxu0 0.0
        %7201 = vmatpush1.msra.mxu0 0.0
        %7202 = vmatprep.subr.mxu0 0.0
        %7203 = vmatpush1.msra.mxu0 0.0
        %7204 = vmatprep.subr.mxu0 0.0
        %7205 = vmatpush1.msra.mxu0 0.0
        %7206 = vmatprep.mubr.f32.mxu0 0.0
        %7207 = vmatmul.mubr.f32.gmra.mrb[0].mxu0 %v7140
        %v7208 = vpop.f32.mrb[0].mxu0
        %v7209 = vadd.f32 0.0, %v7208
        %v7210 = vpop.f32.mrb[0].mxu0
        %7211 = vdwg.mxu0
        %v7212 = vadd.f32 %v7132, %v7209
        %v7213 = vld [vmem:[#allocation5 + $0x5] sm:$0xff]
        %s7214 = scalar_lea.vmem %s7, 128
        %v7215 = vld [vmem:[%s7214] sm:$0xff]
        %v7216 = vld [vmem:[%s7214 + $0x8] sm:$0xff]
        %v7217 = vld [vmem:[%s7214 + $0x10] sm:$0xff]
        %v7218 = vld [vmem:[%s7214 + $0x18] sm:$0xff]
        %v7220 = vsel %vm438, %v7213, 0
        %7222 = vmatprep.subr.mxu0 0.0
        %7223 = vmatpush1.msra.mxu0 %v7215
        %7224 = vmatprep.subr.mxu0 0.0
        %7225 = vmatpush1.msra.mxu0 %v7216
        %7226 = vmatprep.subr.mxu0 0.0
        %7227 = vmatpush1.msra.mxu0 %v7217
        %7228 = vmatprep.subr.mxu0 0.0
        %7229 = vmatpush1.msra.mxu0 %v7218
        %7230 = vmatprep.subr.mxu0 0.0
        %7231 = vmatpush1.msra.mxu0 0.0
        %7232 = vmatprep.subr.mxu0 0.0
        %7233 = vmatpush1.msra.mxu0 0.0
        %7234 = vmatprep.subr.mxu0 0.0
        %7235 = vmatpush1.msra.mxu0 0.0
        %7236 = vmatprep.subr.mxu0 0.0
        %7237 = vmatpush1.msra.mxu0 0.0
        %7238 = vmatprep.subr.mxu0 0.0
        %7239 = vmatpush1.msra.mxu0 0.0
        %7240 = vmatprep.subr.mxu0 0.0
        %7241 = vmatpush1.msra.mxu0 0.0
        %7242 = vmatprep.subr.mxu0 0.0
        %7243 = vmatpush1.msra.mxu0 0.0
        %7244 = vmatprep.subr.mxu0 0.0
        %7245 = vmatpush1.msra.mxu0 0.0
        %7246 = vmatprep.subr.mxu0 0.0
        %7247 = vmatpush1.msra.mxu0 0.0
        %7248 = vmatprep.subr.mxu0 0.0
        %7249 = vmatpush1.msra.mxu0 0.0
        %7250 = vmatprep.subr.mxu0 0.0
        %7251 = vmatpush1.msra.mxu0 0.0
        %7252 = vmatprep.subr.mxu0 0.0
        %7253 = vmatpush1.msra.mxu0 0.0
        %7254 = vmatprep.subr.mxu0 0.0
        %7255 = vmatpush1.msra.mxu0 0.0
        %7256 = vmatprep.subr.mxu0 0.0
        %7257 = vmatpush1.msra.mxu0 0.0
        %7258 = vmatprep.subr.mxu0 0.0
        %7259 = vmatpush1.msra.mxu0 0.0
        %7260 = vmatprep.subr.mxu0 0.0
        %7261 = vmatpush1.msra.mxu0 0.0
        %7262 = vmatprep.subr.mxu0 0.0
        %7263 = vmatpush1.msra.mxu0 0.0
        %7264 = vmatprep.subr.mxu0 0.0
        %7265 = vmatpush1.msra.mxu0 0.0
        %7266 = vmatprep.subr.mxu0 0.0
        %7267 = vmatpush1.msra.mxu0 0.0
        %7268 = vmatprep.subr.mxu0 0.0
        %7269 = vmatpush1.msra.mxu0 0.0
        %7270 = vmatprep.subr.mxu0 0.0
        %7271 = vmatpush1.msra.mxu0 0.0
        %7272 = vmatprep.subr.mxu0 0.0
        %7273 = vmatpush1.msra.mxu0 0.0
        %7274 = vmatprep.subr.mxu0 0.0
        %7275 = vmatpush1.msra.mxu0 0.0
        %7276 = vmatprep.subr.mxu0 0.0
        %7277 = vmatpush1.msra.mxu0 0.0
        %7278 = vmatprep.subr.mxu0 0.0
        %7279 = vmatpush1.msra.mxu0 0.0
        %7280 = vmatprep.subr.mxu0 0.0
        %7281 = vmatpush1.msra.mxu0 0.0
        %7282 = vmatprep.subr.mxu0 0.0
        %7283 = vmatpush1.msra.mxu0 0.0
        %7284 = vmatprep.subr.mxu0 0.0
        %7285 = vmatpush1.msra.mxu0 0.0
        %7286 = vmatprep.mubr.f32.mxu0 0.0
        %7287 = vmatmul.mubr.f32.gmra.mrb[0].mxu0 %v7220
        %v7288 = vpop.f32.mrb[0].mxu0
        %v7289 = vadd.f32 0.0, %v7288
        %v7290 = vpop.f32.mrb[0].mxu0
        %7291 = vdwg.mxu0
        %v7292 = vadd.f32 %v7212, %v7289
        %v7293 = vld [vmem:[#allocation5 + $0x6] sm:$0xff]
        %s7294 = scalar_lea.vmem %s7, 160
        %v7295 = vld [vmem:[%s7294] sm:$0xff]
        %v7296 = vld [vmem:[%s7294 + $0x8] sm:$0xff]
        %v7297 = vld [vmem:[%s7294 + $0x10] sm:$0xff]
        %v7298 = vld [vmem:[%s7294 + $0x18] sm:$0xff]
        %v7300 = vsel %vm438, %v7293, 0
        %7302 = vmatprep.subr.mxu0 0.0
        %7303 = vmatpush1.msra.mxu0 %v7295
        %7304 = vmatprep.subr.mxu0 0.0
        %7305 = vmatpush1.msra.mxu0 %v7296
        %7306 = vmatprep.subr.mxu0 0.0
        %7307 = vmatpush1.msra.mxu0 %v7297
        %7308 = vmatprep.subr.mxu0 0.0
        %7309 = vmatpush1.msra.mxu0 %v7298
        %7310 = vmatprep.subr.mxu0 0.0
        %7311 = vmatpush1.msra.mxu0 0.0
        %7312 = vmatprep.subr.mxu0 0.0
        %7313 = vmatpush1.msra.mxu0 0.0
        %7314 = vmatprep.subr.mxu0 0.0
        %7315 = vmatpush1.msra.mxu0 0.0
        %7316 = vmatprep.subr.mxu0 0.0
        %7317 = vmatpush1.msra.mxu0 0.0
        %7318 = vmatprep.subr.mxu0 0.0
        %7319 = vmatpush1.msra.mxu0 0.0
        %7320 = vmatprep.subr.mxu0 0.0
        %7321 = vmatpush1.msra.mxu0 0.0
        %7322 = vmatprep.subr.mxu0 0.0
        %7323 = vmatpush1.msra.mxu0 0.0
        %7324 = vmatprep.subr.mxu0 0.0
        %7325 = vmatpush1.msra.mxu0 0.0
        %7326 = vmatprep.subr.mxu0 0.0
        %7327 = vmatpush1.msra.mxu0 0.0
        %7328 = vmatprep.subr.mxu0 0.0
        %7329 = vmatpush1.msra.mxu0 0.0
        %7330 = vmatprep.subr.mxu0 0.0
        %7331 = vmatpush1.msra.mxu0 0.0
        %7332 = vmatprep.subr.mxu0 0.0
        %7333 = vmatpush1.msra.mxu0 0.0
        %7334 = vmatprep.subr.mxu0 0.0
        %7335 = vmatpush1.msra.mxu0 0.0
        %7336 = vmatprep.subr.mxu0 0.0
        %7337 = vmatpush1.msra.mxu0 0.0
        %7338 = vmatprep.subr.mxu0 0.0
        %7339 = vmatpush1.msra.mxu0 0.0
        %7340 = vmatprep.subr.mxu0 0.0
        %7341 = vmatpush1.msra.mxu0 0.0
        %7342 = vmatprep.subr.mxu0 0.0
        %7343 = vmatpush1.msra.mxu0 0.0
        %7344 = vmatprep.subr.mxu0 0.0
        %7345 = vmatpush1.msra.mxu0 0.0
        %7346 = vmatprep.subr.mxu0 0.0
        %7347 = vmatpush1.msra.mxu0 0.0
        %7348 = vmatprep.subr.mxu0 0.0
        %7349 = vmatpush1.msra.mxu0 0.0
        %7350 = vmatprep.subr.mxu0 0.0
        %7351 = vmatpush1.msra.mxu0 0.0
        %7352 = vmatprep.subr.mxu0 0.0
        %7353 = vmatpush1.msra.mxu0 0.0
        %7354 = vmatprep.subr.mxu0 0.0
        %7355 = vmatpush1.msra.mxu0 0.0
        %7356 = vmatprep.subr.mxu0 0.0
        %7357 = vmatpush1.msra.mxu0 0.0
        %7358 = vmatprep.subr.mxu0 0.0
        %7359 = vmatpush1.msra.mxu0 0.0
        %7360 = vmatprep.subr.mxu0 0.0
        %7361 = vmatpush1.msra.mxu0 0.0
        %7362 = vmatprep.subr.mxu0 0.0
        %7363 = vmatpush1.msra.mxu0 0.0
        %7364 = vmatprep.subr.mxu0 0.0
        %7365 = vmatpush1.msra.mxu0 0.0
        %7366 = vmatprep.mubr.f32.mxu0 0.0
        %7367 = vmatmul.mubr.f32.gmra.mrb[0].mxu0 %v7300
        %v7368 = vpop.f32.mrb[0].mxu0
        %v7369 = vadd.f32 0.0, %v7368
        %v7370 = vpop.f32.mrb[0].mxu0
        %7371 = vdwg.mxu0
        %v7372 = vadd.f32 %v7292, %v7369
        %v7373 = vld [vmem:[#allocation5 + $0x8] sm:$0xff]
        %s7374 = scalar_lea.vmem %s7, 192
        %v7375 = vld [vmem:[%s7374] sm:$0xff]
        %v7376 = vld [vmem:[%s7374 + $0x8] sm:$0xff]
        %v7377 = vld [vmem:[%s7374 + $0x10] sm:$0xff]
        %v7378 = vld [vmem:[%s7374 + $0x18] sm:$0xff]
        %v7380 = vsel %vm438, %v7373, 0
        %7382 = vmatprep.subr.mxu0 0.0
        %7383 = vmatpush1.msra.mxu0 %v7375
        %7384 = vmatprep.subr.mxu0 0.0
        %7385 = vmatpush1.msra.mxu0 %v7376
        %7386 = vmatprep.subr.mxu0 0.0
        %7387 = vmatpush1.msra.mxu0 %v7377
        %7388 = vmatprep.subr.mxu0 0.0
        %7389 = vmatpush1.msra.mxu0 %v7378
        %7390 = vmatprep.subr.mxu0 0.0
        %7391 = vmatpush1.msra.mxu0 0.0
        %7392 = vmatprep.subr.mxu0 0.0
        %7393 = vmatpush1.msra.mxu0 0.0
        %7394 = vmatprep.subr.mxu0 0.0
        %7395 = vmatpush1.msra.mxu0 0.0
        %7396 = vmatprep.subr.mxu0 0.0
        %7397 = vmatpush1.msra.mxu0 0.0
        %7398 = vmatprep.subr.mxu0 0.0
        %7399 = vmatpush1.msra.mxu0 0.0
        %7400 = vmatprep.subr.mxu0 0.0
        %7401 = vmatpush1.msra.mxu0 0.0
        %7402 = vmatprep.subr.mxu0 0.0
        %7403 = vmatpush1.msra.mxu0 0.0
        %7404 = vmatprep.subr.mxu0 0.0
        %7405 = vmatpush1.msra.mxu0 0.0
        %7406 = vmatprep.subr.mxu0 0.0
        %7407 = vmatpush1.msra.mxu0 0.0
        %7408 = vmatprep.subr.mxu0 0.0
        %7409 = vmatpush1.msra.mxu0 0.0
        %7410 = vmatprep.subr.mxu0 0.0
        %7411 = vmatpush1.msra.mxu0 0.0
        %7412 = vmatprep.subr.mxu0 0.0
        %7413 = vmatpush1.msra.mxu0 0.0
        %7414 = vmatprep.subr.mxu0 0.0
        %7415 = vmatpush1.msra.mxu0 0.0
        %7416 = vmatprep.subr.mxu0 0.0
        %7417 = vmatpush1.msra.mxu0 0.0
        %7418 = vmatprep.subr.mxu0 0.0
        %7419 = vmatpush1.msra.mxu0 0.0
        %7420 = vmatprep.subr.mxu0 0.0
        %7421 = vmatpush1.msra.mxu0 0.0
        %7422 = vmatprep.subr.mxu0 0.0
        %7423 = vmatpush1.msra.mxu0 0.0
        %7424 = vmatprep.subr.mxu0 0.0
        %7425 = vmatpush1.msra.mxu0 0.0
        %7426 = vmatprep.subr.mxu0 0.0
        %7427 = vmatpush1.msra.mxu0 0.0
        %7428 = vmatprep.subr.mxu0 0.0
        %7429 = vmatpush1.msra.mxu0 0.0
        %7430 = vmatprep.subr.mxu0 0.0
        %7431 = vmatpush1.msra.mxu0 0.0
        %7432 = vmatprep.subr.mxu0 0.0
        %7433 = vmatpush1.msra.mxu0 0.0
        %7434 = vmatprep.subr.mxu0 0.0
        %7435 = vmatpush1.msra.mxu0 0.0
        %7436 = vmatprep.subr.mxu0 0.0
        %7437 = vmatpush1.msra.mxu0 0.0
        %7438 = vmatprep.subr.mxu0 0.0
        %7439 = vmatpush1.msra.mxu0 0.0
        %7440 = vmatprep.subr.mxu0 0.0
        %7441 = vmatpush1.msra.mxu0 0.0
        %7442 = vmatprep.subr.mxu0 0.0
        %7443 = vmatpush1.msra.mxu0 0.0
        %7444 = vmatprep.subr.mxu0 0.0
        %7445 = vmatpush1.msra.mxu0 0.0
        %7446 = vmatprep.mubr.f32.mxu0 0.0
        %7447 = vmatmul.mubr.f32.gmra.mrb[0].mxu0 %v7380
        %v7448 = vpop.f32.mrb[0].mxu0
        %v7449 = vadd.f32 0.0, %v7448
        %v7450 = vpop.f32.mrb[0].mxu0
        %7451 = vdwg.mxu0
        %v7452 = vadd.f32 %v7372, %v7449
        %v7453 = vld [vmem:[#allocation5 + $0x9] sm:$0xff]
        %s7454 = scalar_lea.vmem %s7, 224
        %v7455 = vld [vmem:[%s7454] sm:$0xff]
        %v7456 = vld [vmem:[%s7454 + $0x8] sm:$0xff]
        %v7457 = vld [vmem:[%s7454 + $0x10] sm:$0xff]
        %v7458 = vld [vmem:[%s7454 + $0x18] sm:$0xff]
        %v7460 = vsel %vm438, %v7453, 0
        %7462 = vmatprep.subr.mxu0 0.0
        %7463 = vmatpush1.msra.mxu0 %v7455
        %7464 = vmatprep.subr.mxu0 0.0
        %7465 = vmatpush1.msra.mxu0 %v7456
        %7466 = vmatprep.subr.mxu0 0.0
        %7467 = vmatpush1.msra.mxu0 %v7457
        %7468 = vmatprep.subr.mxu0 0.0
        %7469 = vmatpush1.msra.mxu0 %v7458
        %7470 = vmatprep.subr.mxu0 0.0
        %7471 = vmatpush1.msra.mxu0 0.0
        %7472 = vmatprep.subr.mxu0 0.0
        %7473 = vmatpush1.msra.mxu0 0.0
        %7474 = vmatprep.subr.mxu0 0.0
        %7475 = vmatpush1.msra.mxu0 0.0
        %7476 = vmatprep.subr.mxu0 0.0
        %7477 = vmatpush1.msra.mxu0 0.0
        %7478 = vmatprep.subr.mxu0 0.0
        %7479 = vmatpush1.msra.mxu0 0.0
        %7480 = vmatprep.subr.mxu0 0.0
        %7481 = vmatpush1.msra.mxu0 0.0
        %7482 = vmatprep.subr.mxu0 0.0
        %7483 = vmatpush1.msra.mxu0 0.0
        %7484 = vmatprep.subr.mxu0 0.0
        %7485 = vmatpush1.msra.mxu0 0.0
        %7486 = vmatprep.subr.mxu0 0.0
        %7487 = vmatpush1.msra.mxu0 0.0
        %7488 = vmatprep.subr.mxu0 0.0
        %7489 = vmatpush1.msra.mxu0 0.0
        %7490 = vmatprep.subr.mxu0 0.0
        %7491 = vmatpush1.msra.mxu0 0.0
        %7492 = vmatprep.subr.mxu0 0.0
        %7493 = vmatpush1.msra.mxu0 0.0
        %7494 = vmatprep.subr.mxu0 0.0
        %7495 = vmatpush1.msra.mxu0 0.0
        %7496 = vmatprep.subr.mxu0 0.0
        %7497 = vmatpush1.msra.mxu0 0.0
        %7498 = vmatprep.subr.mxu0 0.0
        %7499 = vmatpush1.msra.mxu0 0.0
        %7500 = vmatprep.subr.mxu0 0.0
        %7501 = vmatpush1.msra.mxu0 0.0
        %7502 = vmatprep.subr.mxu0 0.0
        %7503 = vmatpush1.msra.mxu0 0.0
        %7504 = vmatprep.subr.mxu0 0.0
        %7505 = vmatpush1.msra.mxu0 0.0
        %7506 = vmatprep.subr.mxu0 0.0
        %7507 = vmatpush1.msra.mxu0 0.0
        %7508 = vmatprep.subr.mxu0 0.0
        %7509 = vmatpush1.msra.mxu0 0.0
        %7510 = vmatprep.subr.mxu0 0.0
        %7511 = vmatpush1.msra.mxu0 0.0
        %7512 = vmatprep.subr.mxu0 0.0
        %7513 = vmatpush1.msra.mxu0 0.0
        %7514 = vmatprep.subr.mxu0 0.0
        %7515 = vmatpush1.msra.mxu0 0.0
        %7516 = vmatprep.subr.mxu0 0.0
        %7517 = vmatpush1.msra.mxu0 0.0
        %7518 = vmatprep.subr.mxu0 0.0
        %7519 = vmatpush1.msra.mxu0 0.0
        %7520 = vmatprep.subr.mxu0 0.0
        %7521 = vmatpush1.msra.mxu0 0.0
        %7522 = vmatprep.subr.mxu0 0.0
        %7523 = vmatpush1.msra.mxu0 0.0
        %7524 = vmatprep.subr.mxu0 0.0
        %7525 = vmatpush1.msra.mxu0 0.0
        %7526 = vmatprep.mubr.f32.mxu0 0.0
        %7527 = vmatmul.mubr.f32.gmra.mrb[0].mxu0 %v7460
        %v7528 = vpop.f32.mrb[0].mxu0
        %v7529 = vadd.f32 0.0, %v7528
        %v7530 = vpop.f32.mrb[0].mxu0
        %7531 = vdwg.mxu0
        %v7532 = vadd.f32 %v7452, %v7529
        %v7533 = vld [vmem:[#allocation5 + $0xa] sm:$0xff]
        %s7534 = scalar_lea.vmem %s7, 256
        %v7535 = vld [vmem:[%s7534] sm:$0xff]
        %v7536 = vld [vmem:[%s7534 + $0x8] sm:$0xff]
        %v7537 = vld [vmem:[%s7534 + $0x10] sm:$0xff]
        %v7538 = vld [vmem:[%s7534 + $0x18] sm:$0xff]
        %v7540 = vsel %vm438, %v7533, 0
        %7542 = vmatprep.subr.mxu0 0.0
        %7543 = vmatpush1.msra.mxu0 %v7535
        %7544 = vmatprep.subr.mxu0 0.0
        %7545 = vmatpush1.msra.mxu0 %v7536
        %7546 = vmatprep.subr.mxu0 0.0
        %7547 = vmatpush1.msra.mxu0 %v7537
        %7548 = vmatprep.subr.mxu0 0.0
        %7549 = vmatpush1.msra.mxu0 %v7538
        %7550 = vmatprep.subr.mxu0 0.0
        %7551 = vmatpush1.msra.mxu0 0.0
        %7552 = vmatprep.subr.mxu0 0.0
        %7553 = vmatpush1.msra.mxu0 0.0
        %7554 = vmatprep.subr.mxu0 0.0
        %7555 = vmatpush1.msra.mxu0 0.0
        %7556 = vmatprep.subr.mxu0 0.0
        %7557 = vmatpush1.msra.mxu0 0.0
        %7558 = vmatprep.subr.mxu0 0.0
        %7559 = vmatpush1.msra.mxu0 0.0
        %7560 = vmatprep.subr.mxu0 0.0
        %7561 = vmatpush1.msra.mxu0 0.0
        %7562 = vmatprep.subr.mxu0 0.0
        %7563 = vmatpush1.msra.mxu0 0.0
        %7564 = vmatprep.subr.mxu0 0.0
        %7565 = vmatpush1.msra.mxu0 0.0
        %7566 = vmatprep.subr.mxu0 0.0
        %7567 = vmatpush1.msra.mxu0 0.0
        %7568 = vmatprep.subr.mxu0 0.0
        %7569 = vmatpush1.msra.mxu0 0.0
        %7570 = vmatprep.subr.mxu0 0.0
        %7571 = vmatpush1.msra.mxu0 0.0
        %7572 = vmatprep.subr.mxu0 0.0
        %7573 = vmatpush1.msra.mxu0 0.0
        %7574 = vmatprep.subr.mxu0 0.0
        %7575 = vmatpush1.msra.mxu0 0.0
        %7576 = vmatprep.subr.mxu0 0.0
        %7577 = vmatpush1.msra.mxu0 0.0
        %7578 = vmatprep.subr.mxu0 0.0
        %7579 = vmatpush1.msra.mxu0 0.0
        %7580 = vmatprep.subr.mxu0 0.0
        %7581 = vmatpush1.msra.mxu0 0.0
        %7582 = vmatprep.subr.mxu0 0.0
        %7583 = vmatpush1.msra.mxu0 0.0
        %7584 = vmatprep.subr.mxu0 0.0
        %7585 = vmatpush1.msra.mxu0 0.0
        %7586 = vmatprep.subr.mxu0 0.0
        %7587 = vmatpush1.msra.mxu0 0.0
        %7588 = vmatprep.subr.mxu0 0.0
        %7589 = vmatpush1.msra.mxu0 0.0
        %7590 = vmatprep.subr.mxu0 0.0
        %7591 = vmatpush1.msra.mxu0 0.0
        %7592 = vmatprep.subr.mxu0 0.0
        %7593 = vmatpush1.msra.mxu0 0.0
        %7594 = vmatprep.subr.mxu0 0.0
        %7595 = vmatpush1.msra.mxu0 0.0
        %7596 = vmatprep.subr.mxu0 0.0
        %7597 = vmatpush1.msra.mxu0 0.0
        %7598 = vmatprep.subr.mxu0 0.0
        %7599 = vmatpush1.msra.mxu0 0.0
        %7600 = vmatprep.subr.mxu0 0.0
        %7601 = vmatpush1.msra.mxu0 0.0
        %7602 = vmatprep.subr.mxu0 0.0
        %7603 = vmatpush1.msra.mxu0 0.0
        %7604 = vmatprep.subr.mxu0 0.0
        %7605 = vmatpush1.msra.mxu0 0.0
        %7606 = vmatprep.mubr.f32.mxu0 0.0
        %7607 = vmatmul.mubr.f32.gmra.mrb[0].mxu0 %v7540
        %v7608 = vpop.f32.mrb[0].mxu0
        %v7609 = vadd.f32 0.0, %v7608
        %v7610 = vpop.f32.mrb[0].mxu0
        %7611 = vdwg.mxu0
        %v7612 = vadd.f32 %v7532, %v7609
        %7613 = vst.msk [vmem:[#allocation2] sm:$0xff] %vm438, %v7612
        %v7614 = vld [vmem:[%s8] sm:$0x1]
        %v7615 = vld [vmem:[#allocation2] ss:$2 sm:$0x1]
        %v7616 = vld [vmem:[%s4272] ss:$2 sm:$0x1]
        %s7617 = scalar_lea.vmem [#allocation2], 4
        %v7618 = vld [vmem:[%s7617] ss:$2 sm:$0x1]
        %s7619 = scalar_lea.vmem [#allocation2], 5
        %v7620 = vld [vmem:[%s7619] ss:$2 sm:$0x1]
        %v7621 = vmax.f32 %v7615, %v7616
        %v7622 = vmax.f32 %v7618, %v7620
        %v7623 = vmax.f32 %v7621, %v7622
        %v7624 = vadd.f32 %v7623, %v7614
        %v7625 = vmax.f32 %v7624, 0.0
        %v7626 = vld [vmem:[%s9] sm:$0xff]
        %v7627 = vld [vmem:[%s9 + $0x8] sm:$0xff]
        %v7628 = vld [vmem:[%s9 + $0x10] sm:$0xff]
        %v7629 = vld [vmem:[%s9 + $0x18] sm:$0xff]
        %v7630 = vld [vmem:[%s10] sm:$0x1]
        %v7632 = vsel %vm438, %v7625, 0
        %7634 = vmatprep.subr.mxu0 0.0
        %7635 = vmatpush1.msra.mxu0 %v7626
        %7636 = vmatprep.subr.mxu0 0.0
        %7637 = vmatpush1.msra.mxu0 %v7627
        %7638 = vmatprep.subr.mxu0 0.0
        %7639 = vmatpush1.msra.mxu0 %v7628
        %7640 = vmatprep.subr.mxu0 0.0
        %7641 = vmatpush1.msra.mxu0 %v7629
        %7642 = vmatprep.subr.mxu0 0.0
        %7643 = vmatpush1.msra.mxu0 0.0
        %7644 = vmatprep.subr.mxu0 0.0
        %7645 = vmatpush1.msra.mxu0 0.0
        %7646 = vmatprep.subr.mxu0 0.0
        %7647 = vmatpush1.msra.mxu0 0.0
        %7648 = vmatprep.subr.mxu0 0.0
        %7649 = vmatpush1.msra.mxu0 0.0
        %7650 = vmatprep.subr.mxu0 0.0
        %7651 = vmatpush1.msra.mxu0 0.0
        %7652 = vmatprep.subr.mxu0 0.0
        %7653 = vmatpush1.msra.mxu0 0.0
        %7654 = vmatprep.subr.mxu0 0.0
        %7655 = vmatpush1.msra.mxu0 0.0
        %7656 = vmatprep.subr.mxu0 0.0
        %7657 = vmatpush1.msra.mxu0 0.0
        %7658 = vmatprep.subr.mxu0 0.0
        %7659 = vmatpush1.msra.mxu0 0.0
        %7660 = vmatprep.subr.mxu0 0.0
        %7661 = vmatpush1.msra.mxu0 0.0
        %7662 = vmatprep.subr.mxu0 0.0
        %7663 = vmatpush1.msra.mxu0 0.0
        %7664 = vmatprep.subr.mxu0 0.0
        %7665 = vmatpush1.msra.mxu0 0.0
        %7666 = vmatprep.subr.mxu0 0.0
        %7667 = vmatpush1.msra.mxu0 0.0
        %7668 = vmatprep.subr.mxu0 0.0
        %7669 = vmatpush1.msra.mxu0 0.0
        %7670 = vmatprep.subr.mxu0 0.0
        %7671 = vmatpush1.msra.mxu0 0.0
        %7672 = vmatprep.subr.mxu0 0.0
        %7673 = vmatpush1.msra.mxu0 0.0
        %7674 = vmatprep.subr.mxu0 0.0
        %7675 = vmatpush1.msra.mxu0 0.0
        %7676 = vmatprep.subr.mxu0 0.0
        %7677 = vmatpush1.msra.mxu0 0.0
        %7678 = vmatprep.subr.mxu0 0.0
        %7679 = vmatpush1.msra.mxu0 0.0
        %7680 = vmatprep.subr.mxu0 0.0
        %7681 = vmatpush1.msra.mxu0 0.0
        %7682 = vmatprep.subr.mxu0 0.0
        %7683 = vmatpush1.msra.mxu0 0.0
        %7684 = vmatprep.subr.mxu0 0.0
        %7685 = vmatpush1.msra.mxu0 0.0
        %7686 = vmatprep.subr.mxu0 0.0
        %7687 = vmatpush1.msra.mxu0 0.0
        %7688 = vmatprep.subr.mxu0 0.0
        %7689 = vmatpush1.msra.mxu0 0.0
        %7690 = vmatprep.subr.mxu0 0.0
        %7691 = vmatpush1.msra.mxu0 0.0
        %7692 = vmatprep.subr.mxu0 0.0
        %7693 = vmatpush1.msra.mxu0 0.0
        %7694 = vmatprep.subr.mxu0 0.0
        %7695 = vmatpush1.msra.mxu0 0.0
        %7696 = vmatprep.subr.mxu0 0.0
        %7697 = vmatpush1.msra.mxu0 0.0
        %7698 = vmatprep.mubr.f32.mxu0 0.0
        %7699 = vmatmul.mubr.f32.gmra.mrb[0].mxu0 %v7632
        %v7700 = vpop.f32.mrb[0].mxu0
        %v7701 = vadd.f32 %v7630, %v7700
        %v7702 = vpop.f32.mrb[0].mxu0
        %7703 = vdwg.mxu0
        %v7704 = vmax.f32 %v7701, 0.0
        %v7705 = vld [vmem:[%s11] sm:$0xff]
        %v7706 = vld [vmem:[%s11 + $0x8] sm:$0xff]
        %v7707 = vld [vmem:[%s11 + $0x10] sm:$0xff]
        %v7708 = vld [vmem:[%s11 + $0x18] sm:$0xff]
        %v7709 = vld [vmem:[%s12] sm:$0x1]
        %v7711 = vsel %vm438, %v7704, 0
        %7713 = vmatprep.subr.mxu0 0.0
        %7714 = vmatpush1.msra.mxu0 %v7705
        %7715 = vmatprep.subr.mxu0 0.0
        %7716 = vmatpush1.msra.mxu0 %v7706
        %7717 = vmatprep.subr.mxu0 0.0
        %7718 = vmatpush1.msra.mxu0 %v7707
        %7719 = vmatprep.subr.mxu0 0.0
        %7720 = vmatpush1.msra.mxu0 %v7708
        %7721 = vmatprep.subr.mxu0 0.0
        %7722 = vmatpush1.msra.mxu0 0.0
        %7723 = vmatprep.subr.mxu0 0.0
        %7724 = vmatpush1.msra.mxu0 0.0
        %7725 = vmatprep.subr.mxu0 0.0
        %7726 = vmatpush1.msra.mxu0 0.0
        %7727 = vmatprep.subr.mxu0 0.0
        %7728 = vmatpush1.msra.mxu0 0.0
        %7729 = vmatprep.subr.mxu0 0.0
        %7730 = vmatpush1.msra.mxu0 0.0
        %7731 = vmatprep.subr.mxu0 0.0
        %7732 = vmatpush1.msra.mxu0 0.0
        %7733 = vmatprep.subr.mxu0 0.0
        %7734 = vmatpush1.msra.mxu0 0.0
        %7735 = vmatprep.subr.mxu0 0.0
        %7736 = vmatpush1.msra.mxu0 0.0
        %7737 = vmatprep.subr.mxu0 0.0
        %7738 = vmatpush1.msra.mxu0 0.0
        %7739 = vmatprep.subr.mxu0 0.0
        %7740 = vmatpush1.msra.mxu0 0.0
        %7741 = vmatprep.subr.mxu0 0.0
        %7742 = vmatpush1.msra.mxu0 0.0
        %7743 = vmatprep.subr.mxu0 0.0
        %7744 = vmatpush1.msra.mxu0 0.0
        %7745 = vmatprep.subr.mxu0 0.0
        %7746 = vmatpush1.msra.mxu0 0.0
        %7747 = vmatprep.subr.mxu0 0.0
        %7748 = vmatpush1.msra.mxu0 0.0
        %7749 = vmatprep.subr.mxu0 0.0
        %7750 = vmatpush1.msra.mxu0 0.0
        %7751 = vmatprep.subr.mxu0 0.0
        %7752 = vmatpush1.msra.mxu0 0.0
        %7753 = vmatprep.subr.mxu0 0.0
        %7754 = vmatpush1.msra.mxu0 0.0
        %7755 = vmatprep.subr.mxu0 0.0
        %7756 = vmatpush1.msra.mxu0 0.0
        %7757 = vmatprep.subr.mxu0 0.0
        %7758 = vmatpush1.msra.mxu0 0.0
        %7759 = vmatprep.subr.mxu0 0.0
        %7760 = vmatpush1.msra.mxu0 0.0
        %7761 = vmatprep.subr.mxu0 0.0
        %7762 = vmatpush1.msra.mxu0 0.0
        %7763 = vmatprep.subr.mxu0 0.0
        %7764 = vmatpush1.msra.mxu0 0.0
        %7765 = vmatprep.subr.mxu0 0.0
        %7766 = vmatpush1.msra.mxu0 0.0
        %7767 = vmatprep.subr.mxu0 0.0
        %7768 = vmatpush1.msra.mxu0 0.0
        %7769 = vmatprep.subr.mxu0 0.0
        %7770 = vmatpush1.msra.mxu0 0.0
        %7771 = vmatprep.subr.mxu0 0.0
        %7772 = vmatpush1.msra.mxu0 0.0
        %7773 = vmatprep.subr.mxu0 0.0
        %7774 = vmatpush1.msra.mxu0 0.0
        %7775 = vmatprep.subr.mxu0 0.0
        %7776 = vmatpush1.msra.mxu0 0.0
        %7777 = vmatprep.mubr.f32.mxu0 0.0
        %7778 = vmatmul.mubr.f32.gmra.mrb[0].mxu0 %v7711
        %v7779 = vpop.f32.mrb[0].mxu0
        %v7780 = vadd.f32 %v7709, %v7779
        %v7781 = vpop.f32.mrb[0].mxu0
        %7782 = vdwg.mxu0
        %vm7783 = vcmask 32768
        %7784 = vst.msk [vmem:[%s432] sm:$0x1] %vm7783, %v7780
        %s7785 = sand.u32 %s313, 1
        %s7786 = scalar_lea.sflag [#allocation7], %s7785
        %s7787 = sand.u32 %s313, 1
        %s7788 = scalar_lea.vmem [#allocation6], %s7787
        // Predicated region
        $region73: #{simsiam_classifier_forward.1} parent=71 // pred_check
          %p7789 = pneg %p323
        $region74: #{simsiam_classifier_forward.1} parent=71 // pred_check_branch
          %7791 = sbr.rel (%p7789) target = $region76
        $region75: #{simsiam_classifier_forward.1} parent=71 // pred_region
          %s7793 = ssub.s32 16, 16
          %7794 = vsyncadd %s7786, %s7793
          %s7795 = smul.addr %s27, 16
          %s7796 = scalar_lea.hbm %s13, %s7795
          %s7798 = sshll.u32 %s7788, 4
          %s7799 = int_to_ptr.vmem [resolvable:$true] %s7798
          %7801 = dma.vmem_to_hbm [thread:$0]  %s7799, 16, %s7796, %s7786
        $region76: #{simsiam_classifier_forward.1} parent=71 // pred_fallthru
          _
      $region72: #{simsiam_classifier_forward.1} parent=5 // pred_fallthru
        _
      %p7802 = scmp.le.s32.totalorder 2, %s22
      // Predicated region
      $region77: #{simsiam_classifier_forward.1} parent=5 // pred_check
        %p7803 = pneg %p7802
      $region78: #{simsiam_classifier_forward.1} parent=5 // pred_check_branch
        %7805 = sbr.rel (%p7803) target = $region80
      $region79: #{simsiam_classifier_forward.1} parent=5 // pred_region
        %s7806 = ssub.s32 %s22, 2
        // Predicated region
        $region81: #{simsiam_classifier_forward.1} parent=79 // pred_check
          %p7807 = pneg %p329
        $region82: #{simsiam_classifier_forward.1} parent=79 // pred_check_branch
          %7809 = sbr.rel (%p7807) target = $region84
        $region83: #{simsiam_classifier_forward.1} parent=79 // pred_region
          %s7810 = sand.u32 %s314, 1
          %s7811 = scalar_lea.sflag [#allocation7], %s7810
          %s7812 = sand.u32 %s314, 1
          %s7813 = scalar_lea.vmem [#allocation6], %s7812
          %7814 = dma.done %s7811, 16
        $region84: #{simsiam_classifier_forward.1} parent=79 // pred_fallthru
          _
      $region80: #{simsiam_classifier_forward.1} parent=5 // pred_fallthru
        _
    $region6: #{simsiam_classifier_forward.1} parent=1 // loop_footer
      %s26 = sadd.s32 1, %s22
    $region7: #{simsiam_classifier_forward.1} parent=1 // loop_footer_branch
      %21 = sbr.rel target = $region3
    $region8: #{simsiam_classifier_forward.1} parent=1 // loop_exit
      _
    %7815 = vsyncpa [#allocation7], 1
    %s7816 = scalar_lea.sflag [#allocation7], 1
    %7817 = vsyncpa %s7816, 1

</llo_original>
